<compile_context>
chip_gen: v6e
topology: v6e:2x2x1
jax: 0.10.0
libtpu: 0.0.40
codegen_flags: <defaults>
</compile_context>

<pallas_src>
import collections
import functools

import jax
import jax.numpy as jnp
from jax.experimental import pallas as pl
from jax.experimental.pallas import tpu as pltpu

_VMEM_LIMIT = 48 * 1024 * 1024   # leaves headroom even on v7x's 64 MiB VMEM
_LANE = 128                      # out-channel padding target (lane width)


def _round_up(x, m):
    return ((x + m - 1) // m) * m


# ----------------------------------------------------------------------------
# Flat "guarded ring" activation layout shared by both 3x3 convs
# ----------------------------------------------------------------------------
_ConvLayout = collections.namedtuple("_ConvLayout",
                                     ["Hp", "Wp", "B", "tr", "R", "Lf", "tw"])


def _layout_params(H, W, tr_target=512):
    """The zero-padded (Hp, Wp) image is stored row-major as a flat vector at
    flat offset `tr` (one full row-tile of guard on each side).  Output row
    tile r covers flat rows [(r+1)*tr, (r+2)*tr); its 3x3 taps are reads at
    static shifts inside a single halo'd window of `tw` rows."""
    Hp, Wp = H + 2, W + 2
    B = _round_up(Wp + 1, 8)                              # static halo back-off
    tr = max(min(tr_target, _round_up(Hp * Wp, 8)), B)    # row tile (mult of 8)
    R = pl.cdiv(Hp * Wp, tr)                              # row tiles per image
    Lf = (R + 2) * tr                                     # + guard tile each side
    tw = tr + 2 * B                                       # halo'd input window
    return _ConvLayout(Hp, Wp, B, tr, R, Lf, tw)


def _to_conv_layout(x_nhwc, H, W):
    """(N, H, W, C) f32 -> (N, Lf, C) bf16 in the guarded-ring layout."""
    lay = _layout_params(H, W)
    N, C = x_nhwc.shape[0], x_nhwc.shape[-1]
    xp = jnp.pad(x_nhwc, ((0, 0), (1, 1), (1, 1), (0, 0)))
    xf = xp.reshape(N, lay.Hp * lay.Wp, C)
    xf = jnp.pad(xf, ((0, 0), (lay.tr, lay.Lf - lay.tr - lay.Hp * lay.Wp), (0, 0)))
    return xf.astype(jnp.bfloat16)


def _interior_mask(H, W):
    """(R*tr, 1) f32 mask: 1 on interior pixels, 0 on ring / tail rows."""
    lay = _layout_params(H, W)
    p = jnp.arange(lay.R * lay.tr, dtype=jnp.int32)
    hp = p // lay.Wp
    wp = p % lay.Wp
    m = (hp >= 1) & (hp <= H) & (wp >= 1) & (wp <= W)
    return m.astype(jnp.float32)[:, None]


# ----------------------------------------------------------------------------
# Pallas kernels
# ----------------------------------------------------------------------------
def _conv3x3_kernel(x_ref, w_ref, b_ref, m_ref, o_ref, *, Wp, B, tr, tw, relu):
    """3x3 'same' conv + folded-BN bias + optional ReLU on one row tile.

    x_ref : (1, Lf, Cin) bf16   whole per-image flat activations (VMEM-resident)
    w_ref : (9, Cin, Cpad) bf16 per-tap weights (BN scale folded in)
    b_ref : (1, Cpad) f32       folded BN bias
    m_ref : (tr, 1) f32         interior mask for this row tile
    o_ref : (1, tr, Cpad)       output tile, written in the same ring layout
    """
    r = pl.program_id(1)
    cpad = o_ref.shape[-1]

    # One halo'd window per tile; the 9 taps are static shifts inside it.
    start = pl.multiple_of(r * tr + (tr - B), 8)
    win = x_ref[0, pl.ds(start, tw), :].astype(jnp.float32)     # (tw, Cin)

    acc = jnp.zeros((tr, cpad), jnp.float32)
    for kh in range(3):
        for kw in range(3):
            s = B + (kh - 1) * Wp + (kw - 1)                    # static shift
            lhs = win[s:s + tr, :].astype(jnp.bfloat16)
            acc = acc + jnp.dot(lhs, w_ref[kh * 3 + kw],
                                preferred_element_type=jnp.float32)

    y = acc + b_ref[...]
    if relu:
        y = jnp.maximum(y, 0.0)
    # Zero the padding ring / tail rows so the output is directly consumable
    # as the next conv's (already zero-padded) input.
    y = jnp.where(m_ref[...] != 0.0, y, 0.0)
    o_ref[0] = y.astype(o_ref.dtype)


def _matmul_bias_kernel(a_ref, w_ref, b_ref, o_ref, *, relu):
    y = jnp.dot(a_ref[...], w_ref[...], preferred_element_type=jnp.float32)
    y = y + b_ref[...]
    if relu:
        y = jnp.maximum(y, 0.0)
    o_ref[...] = y.astype(o_ref.dtype)


def _pool_add_kernel(y_ref, r_ref, o_ref, *, pool_type):
    """2x2 avg/max pool (h-parity in dim 1, w-parity packed in lanes) + residual."""
    cpad = o_ref.shape[-1]
    top = y_ref[:, 0, :, :].astype(jnp.float32)      # (tb, Wh, 2*Cpad)
    bot = y_ref[:, 1, :, :].astype(jnp.float32)
    a, b = top[:, :, :cpad], top[:, :, cpad:]
    c, d = bot[:, :, :cpad], bot[:, :, cpad:]
    if pool_type == "avg":
        pooled = (a + b + c + d) * 0.25
    else:  # max
        pooled = jnp.maximum(jnp.maximum(a, b), jnp.maximum(c, d))
    o_ref[...] = pooled + r_ref[...]


# ----------------------------------------------------------------------------
# pallas_call wrappers
# ----------------------------------------------------------------------------
def conv3x3_bn_act(x_lay, w_taps, bias, mask, *, H, W, relu, out_dtype=jnp.float32):
    """x_lay: (N, Lf, Cin) bf16 in ring layout -> (N, Lf, Cpad) in ring layout."""
    N, Lf, Cin = x_lay.shape
    T, Cin_w, Cpad = w_taps.shape
    lay = _layout_params(H, W)
    assert T == 9 and Cin_w == Cin and Lf == lay.Lf, (T, Cin_w, Cin, Lf, lay.Lf)

    kernel = functools.partial(_conv3x3_kernel, Wp=lay.Wp, B=lay.B,
                               tr=lay.tr, tw=lay.tw, relu=relu)
    out_bytes = N * lay.R * lay.tr * Cpad * jnp.dtype(out_dtype).itemsize
    cost = pl.CostEstimate(
        flops=2 * N * lay.R * lay.tr * 9 * Cin * Cpad,
        transcendentals=0,
        bytes_accessed=(x_lay.size * 2 + w_taps.size * 2 + bias.size * 4
                        + mask.size * 4 + out_bytes))

    return pl.pallas_call(
        kernel,
        out_shape=jax.ShapeDtypeStruct((N, Lf, Cpad), out_dtype),
        grid_spec=pltpu.PrefetchScalarGridSpec(
            num_scalar_prefetch=0,
            grid=(N, lay.R),
            in_specs=[
                # Per-image flat activations stay VMEM-resident across row tiles.
                pl.BlockSpec((1, Lf, Cin), lambda n, r: (n, 0, 0)),
                pl.BlockSpec((9, Cin, Cpad), lambda n, r: (0, 0, 0)),
                pl.BlockSpec((1, Cpad), lambda n, r: (0, 0)),
                pl.BlockSpec((lay.tr, 1), lambda n, r: (r, 0)),
            ],
            # +1: skip the leading guard tile of the ring layout.
            out_specs=pl.BlockSpec((1, lay.tr, Cpad), lambda n, r: (n, r + 1, 0)),
        ),
        compiler_params=pltpu.CompilerParams(
            dimension_semantics=("parallel", "parallel"),
            vmem_limit_bytes=_VMEM_LIMIT),
        cost_estimate=cost,
    )(x_lay, w_taps, bias, mask)


def matmul_bias(a, w, bias, *, relu=False, out_dtype=jnp.float32, tm=512):
    """a: (M, K), w: (K, C) -> (M, C) = relu?(a @ w + bias); bf16 MXU, f32 acc."""
    M, K = a.shape
    Kw, C = w.shape
    assert Kw == K and C % _LANE == 0, (K, Kw, C)
    tm = max(8, min(tm, _round_up(M, 8)))
    if _round_up(M, tm) // tm < 2 and M > 8:       # give megacore >= 2 blocks
        tm = _round_up(pl.cdiv(M, 2), 8)
    Mp = _round_up(M, tm)
    a = a.astype(jnp.bfloat16)
    if Mp != M:
        a = jnp.pad(a, ((0, Mp - M), (0, 0)))
    cost = pl.CostEstimate(flops=2 * Mp * K * C, transcendentals=0,
                           bytes_accessed=Mp * K * 2 + K * C * 2 + C * 4 + Mp * C * 4)
    out = pl.pallas_call(
        functools.partial(_matmul_bias_kernel, relu=relu),
        out_shape=jax.ShapeDtypeStruct((Mp, C), out_dtype),
        grid_spec=pltpu.PrefetchScalarGridSpec(
            num_scalar_prefetch=0,
            grid=(Mp // tm,),
            in_specs=[pl.BlockSpec((tm, K), lambda i: (i, 0)),
                      pl.BlockSpec((K, C), lambda i: (0, 0)),
                      pl.BlockSpec((1, C), lambda i: (0, 0))],
            out_specs=pl.BlockSpec((tm, C), lambda i: (i, 0)),
        ),
        compiler_params=pltpu.CompilerParams(
            dimension_semantics=("parallel",),
            vmem_limit_bytes=_VMEM_LIMIT),
        cost_estimate=cost,
    )(a, w.astype(jnp.bfloat16), bias.astype(jnp.float32))
    return out[:M]


def pool_add(y_blk, resid, *, pool_type):
    """y_blk: (P, 2, Wh, 2*C); resid: (P, Wh, C) f32 -> (P, Wh, C) f32."""
    P, two, Wh, c2 = y_blk.shape
    Pr, Whr, C = resid.shape
    assert two == 2 and c2 == 2 * C and Pr == P and Whr == Wh
    tb = max(1, min(P, 1024 // max(1, Wh)))
    if P // tb < 2 and P >= 2:                     # >= 2 parallel blocks
        tb = max(1, P // 2)
    Pp = _round_up(P, tb)
    if Pp != P:
        y_blk = jnp.pad(y_blk, ((0, Pp - P), (0, 0), (0, 0), (0, 0)))
        resid = jnp.pad(resid, ((0, Pp - P), (0, 0), (0, 0)))
    out = pl.pallas_call(
        functools.partial(_pool_add_kernel, pool_type=pool_type),
        out_shape=jax.ShapeDtypeStruct((Pp, Wh, C), jnp.float32),
        grid_spec=pltpu.PrefetchScalarGridSpec(
            num_scalar_prefetch=0,
            grid=(Pp // tb,),
            in_specs=[pl.BlockSpec((tb, 2, Wh, 2 * C), lambda i: (i, 0, 0, 0)),
                      pl.BlockSpec((tb, Wh, C), lambda i: (i, 0, 0))],
            out_specs=pl.BlockSpec((tb, Wh, C), lambda i: (i, 0, 0)),
        ),
        compiler_params=pltpu.CompilerParams(
            dimension_semantics=("parallel",),
            vmem_limit_bytes=_VMEM_LIMIT),
    )(y_blk, resid)
    return out[:P]


# ----------------------------------------------------------------------------
# JAX glue (layout plumbing + host-side BN folding)
# ----------------------------------------------------------------------------
def _fold_bn(gamma, beta, mean, var, eps=1e-5):
    scale = gamma * jax.lax.rsqrt(var + eps)
    bias = beta - mean * scale
    return scale, bias


def _pack_conv_w(w_hwio, cpad_out, cpad_in=None):
    """(kh, kw, ci, co) -> (kh*kw, ci[_pad], cpad_out) bf16, zero-padded channels."""
    kh, kw, ci, co = w_hwio.shape
    if cpad_in is not None and cpad_in != ci:
        w_hwio = jnp.pad(w_hwio, ((0, 0), (0, 0), (0, cpad_in - ci), (0, 0)))
        ci = cpad_in
    if cpad_out != co:
        w_hwio = jnp.pad(w_hwio, ((0, 0), (0, 0), (0, 0), (0, cpad_out - co)))
    return w_hwio.reshape(kh * kw, ci, cpad_out).astype(jnp.bfloat16)


def _pad_bias(b, cpad):
    return jnp.pad(b, (0, cpad - b.shape[0])).reshape(1, cpad).astype(jnp.float32)


def conv_block_forward(x_nchw, p, pool_type="avg"):
    """Pallas implementation of ConvBlock.forward (pool_size fixed to (2, 2))."""
    N, Cin, H, W = x_nchw.shape
    assert H % 2 == 0 and W % 2 == 0, "2x2 pool / stride-2 residual need even H, W"
    Cout = p["w_res_hwio"].shape[-1]
    Cpad = _round_up(Cout, _LANE)
    Hh, Wh = H // 2, W // 2
    lay = _layout_params(H, W)

    x = jnp.transpose(x_nchw, (0, 2, 3, 1)).astype(jnp.float32)       # NHWC

    # Fold BN (eval mode): scale into the conv weights, bias added in-kernel.
    s_r, b_r = _fold_bn(p["bn_res_gamma"], p["bn_res_beta"], p["bn_res_mean"], p["bn_res_var"])
    s_1, b_1 = _fold_bn(p["bn1_gamma"], p["bn1_beta"], p["bn1_mean"], p["bn1_var"])
    s_2, b_2 = _fold_bn(p["bn2_gamma"], p["bn2_beta"], p["bn2_mean"], p["bn2_var"])

    w1 = _pack_conv_w(p["w1_hwio"] * s_1, Cpad)                       # (9, Cin,  Cpad)
    w2 = _pack_conv_w(p["w2_hwio"] * s_2, Cpad, cpad_in=Cpad)         # (9, Cpad, Cpad)
    wr = jnp.pad(p["w_res_hwio"][0, 0] * s_r,
                 ((0, 0), (0, Cpad - Cout))).astype(jnp.bfloat16)     # (Cin, Cpad)
    b1p, b2p, brp = (_pad_bias(b, Cpad) for b in (b_1, b_2, b_r))

    # ---- residual branch: 1x1 conv, stride (2, 2), + folded BN -------------
    xr = x[:, ::2, ::2, :].reshape(N * Hh * Wh, Cin)
    resid = matmul_bias(xr, wr, brp, relu=False)                      # (M, Cpad) f32
    resid = resid.reshape(N * Hh, Wh, Cpad)

    # ---- main branch: conv1 -> conv2 in the flat guarded-ring layout -------
    mask = _interior_mask(H, W)                                       # (R*tr, 1)
    x_lay = _to_conv_layout(x, H, W)                                  # (N, Lf, Cin) bf16
    y1 = conv3x3_bn_act(x_lay, w1, b1p, mask, H=H, W=W, relu=True,
                        out_dtype=jnp.bfloat16)                       # (N, Lf, Cpad)
    y2 = conv3x3_bn_act(y1, w2, b2p, mask, H=H, W=W, relu=True,
                        out_dtype=jnp.float32)                        # (N, Lf, Cpad)

    # ---- 2x2 pooling + residual add -----------------------------------------
    if pool_type not in ("avg", "max"):
        # TODO(synk): FractionalMaxPool2d ('frac') uses stochastic region sampling; no clean Pallas equivalent.
        raise NotImplementedError(f"pool_type={pool_type!r}")
    y2i = y2[:, lay.tr:lay.tr + lay.Hp * lay.Wp, :].reshape(N, lay.Hp, lay.Wp, Cpad)
    y2i = y2i[:, 1:H + 1, 1:W + 1, :]                                 # (N, H, W, Cpad)
    y2b = y2i.reshape(N * Hh, 2, Wh, 2 * Cpad)                        # parities packed
    out = pool_add(y2b, resid, pool_type=pool_type)                   # (N*Hh, Wh, Cpad)

    out = out.reshape(N, Hh, Wh, Cpad)[:, :, :, :Cout]
    return jnp.transpose(out, (0, 3, 1, 2))                           # NCHW


# ----------------------------------------------------------------------------
# Deterministic parameters + pure-JAX reference for self-check
# ----------------------------------------------------------------------------
def init_params(key, cin, cout):
    ks = jax.random.split(key, 16)
    p = {
        "w_res_hwio": 0.2 * jax.random.normal(ks[0], (1, 1, cin, cout), jnp.float32),
        "w1_hwio":    0.1 * jax.random.normal(ks[1], (3, 3, cin, cout), jnp.float32),
        "w2_hwio":    0.1 * jax.random.normal(ks[2], (3, 3, cout, cout), jnp.float32),
    }
    for i, name in enumerate(["bn_res", "bn1", "bn2"]):
        p[name + "_gamma"] = 1.0 + 0.1 * jax.random.normal(ks[3 + i], (cout,), jnp.float32)
        p[name + "_beta"] = 0.1 * jax.random.normal(ks[6 + i], (cout,), jnp.float32)
        p[name + "_mean"] = 0.05 * jax.random.normal(ks[9 + i], (cout,), jnp.float32)
        p[name + "_var"] = 1.0 + 0.1 * jnp.abs(jax.random.normal(ks[12 + i], (cout,), jnp.float32))
    return p


def ref_forward(x_nchw, p, eps=1e-5):
    x = jnp.transpose(x_nchw, (0, 2, 3, 1)).astype(jnp.float32)
    dn = ("NHWC", "HWIO", "NHWC")

    def conv(inp, w, stride, pad):
        return jax.lax.conv_general_dilated(
            inp, w, window_strides=stride, padding=pad,
            dimension_numbers=dn, precision=jax.lax.Precision.HIGHEST)

    def bn(inp, name):
        return ((inp - p[name + "_mean"]) / jnp.sqrt(p[name + "_var"] + eps)
                * p[name + "_gamma"] + p[name + "_beta"])

    res = bn(conv(x, p["w_res_hwio"], (2, 2), "VALID"), "bn_res")
    y = jax.nn.relu(bn(conv(x, p["w1_hwio"], (1, 1), ((1, 1), (1, 1))), "bn1"))
    y = jax.nn.relu(bn(conv(y, p["w2_hwio"], (1, 1), ((1, 1), (1, 1))), "bn2"))
    y = jax.lax.reduce_window(y, 0.0, jax.lax.add,
                              (1, 2, 2, 1), (1, 2, 2, 1), "VALID") * 0.25
    y = y + res
    return jnp.transpose(y, (0, 3, 1, 2))


if __name__ == "__main__":
    N, Cin, Cout, H, W = 2, 4, 8, 16, 16
    root = jax.random.PRNGKey(0)
    kx, kp = jax.random.split(root)
    x = jax.random.normal(kx, (N, Cin, H, W), jnp.float32)
    params = init_params(kp, Cin, Cout)

    fwd = jax.jit(functools.partial(conv_block_forward, pool_type="avg"))
    out = jax.block_until_ready(fwd(x, params))

    assert out.shape == (N, Cout, H // 2, W // 2), out.shape
    ref = ref_forward(x, params)
    err = float(jnp.max(jnp.abs(out - ref)))
    # bf16 MXU operands with f32 accumulation: expected max-abs error ~1e-2.
    assert err < 6e-2, f"max abs error vs reference: {err}"
    print("KERNEL_OK")
</pallas_src>

<mosaic_0001>
module attributes {stable_mosaic.version = 11 : i64} {
  func.func @_conv3x3_kernel(%arg0: i32, %arg1: i32, %arg2: memref<1x984x4xbf16, #tpu.memory_space<vmem>>, %arg3: memref<9x4x128xbf16, #tpu.memory_space<vmem>>, %arg4: memref<1x128xf32, #tpu.memory_space<vmem>>, %arg5: memref<328x1xf32, #tpu.memory_space<vmem>>, %arg6: memref<1x328x128xbf16, #tpu.memory_space<vmem>>) attributes {dimension_semantics = [#tpu.dimension_semantics<parallel>, #tpu.dimension_semantics<parallel>], iteration_bounds = array<i64: 2, 1>, scalar_prefetch = 0 : i64, scratch_operands = 0 : i64, tpu.core_type = #tpu.core_type<tc>, window_params = [{transform_indices = @transform_0, window_bounds = array<i64: 1, 984, 4>}, {pipeline_mode = #tpu.pipeline_mode<synchronous>, transform_indices = @transform_1, window_bounds = array<i64: 9, 4, 128>}, {pipeline_mode = #tpu.pipeline_mode<synchronous>, transform_indices = @transform_2, window_bounds = array<i64: 1, 128>}, {transform_indices = @transform_3, window_bounds = array<i64: 328, 1>}, {transform_indices = @transform_4, window_bounds = array<i64: 1, 328, 128>}]} {
    %c328_i32 = arith.constant 328 : i32
    %0 = arith.muli %arg1, %c328_i32 : i32
    %c304_i32 = arith.constant 304 : i32
    %1 = arith.addi %0, %c304_i32 : i32
    %2 = tpu.assume_multiple %1, 8 : i32
    %c0 = arith.constant 0 : index
    %3 = arith.index_cast %2 : i32 to index
    %c0_0 = arith.constant 0 : index
    %4 = vector.load %arg2[%c0, %3, %c0_0] : memref<1x984x4xbf16, #tpu.memory_space<vmem>>, vector<1x376x4xbf16>
    %5 = vector.shape_cast %4 : vector<1x376x4xbf16> to vector<376x4xbf16>
    %6 = arith.extf %5 : vector<376x4xbf16> to vector<376x4xf32>
    %cst = arith.constant 0.000000e+00 : f32
    %7 = vector.broadcast %cst : f32 to vector<328x128xf32>
    %8 = vector.extract_strided_slice %6 {offsets = [5, 0], sizes = [328, 4], strides = [1, 1]} : vector<376x4xf32> to vector<328x4xf32>
    %9 = arith.truncf %8 : vector<328x4xf32> to vector<328x4xbf16>
    %c0_1 = arith.constant 0 : index
    %c0_2 = arith.constant 0 : index
    %c0_3 = arith.constant 0 : index
    %10 = vector.load %arg3[%c0_1, %c0_2, %c0_3] : memref<9x4x128xbf16, #tpu.memory_space<vmem>>, vector<1x4x128xbf16>
    %11 = vector.shape_cast %10 : vector<1x4x128xbf16> to vector<4x128xbf16>
    %cst_4 = arith.constant dense<0.000000e+00> : vector<328x128xf32>
    %12 = tpu.matmul %9, %11, %cst_4 {dimension_numbers = #tpu.dot_dimension_numbers<[1], [0], [0], [1], [0, 0, 1, 1], [], []>} : vector<328x4xbf16>, vector<4x128xbf16>, vector<328x128xf32> -> vector<328x128xf32>
    %13 = arith.addf %7, %12 : vector<328x128xf32>
    %14 = vector.extract_strided_slice %6 {offsets = [6, 0], sizes = [328, 4], strides = [1, 1]} : vector<376x4xf32> to vector<328x4xf32>
    %15 = arith.truncf %14 : vector<328x4xf32> to vector<328x4xbf16>
    %c1 = arith.constant 1 : index
    %c0_5 = arith.constant 0 : index
    %c0_6 = arith.constant 0 : index
    %16 = vector.load %arg3[%c1, %c0_5, %c0_6] : memref<9x4x128xbf16, #tpu.memory_space<vmem>>, vector<1x4x128xbf16>
    %17 = vector.shape_cast %16 : vector<1x4x128xbf16> to vector<4x128xbf16>
    %cst_7 = arith.constant dense<0.000000e+00> : vector<328x128xf32>
    %18 = tpu.matmul %15, %17, %cst_7 {dimension_numbers = #tpu.dot_dimension_numbers<[1], [0], [0], [1], [0, 0, 1, 1], [], []>} : vector<328x4xbf16>, vector<4x128xbf16>, vector<328x128xf32> -> vector<328x128xf32>
    %19 = arith.addf %13, %18 : vector<328x128xf32>
    %20 = vector.extract_strided_slice %6 {offsets = [7, 0], sizes = [328, 4], strides = [1, 1]} : vector<376x4xf32> to vector<328x4xf32>
    %21 = arith.truncf %20 : vector<328x4xf32> to vector<328x4xbf16>
    %c2 = arith.constant 2 : index
    %c0_8 = arith.constant 0 : index
    %c0_9 = arith.constant 0 : index
    %22 = vector.load %arg3[%c2, %c0_8, %c0_9] : memref<9x4x128xbf16, #tpu.memory_space<vmem>>, vector<1x4x128xbf16>
    %23 = vector.shape_cast %22 : vector<1x4x128xbf16> to vector<4x128xbf16>
    %cst_10 = arith.constant dense<0.000000e+00> : vector<328x128xf32>
    %24 = tpu.matmul %21, %23, %cst_10 {dimension_numbers = #tpu.dot_dimension_numbers<[1], [0], [0], [1], [0, 0, 1, 1], [], []>} : vector<328x4xbf16>, vector<4x128xbf16>, vector<328x128xf32> -> vector<328x128xf32>
    %25 = arith.addf %19, %24 : vector<328x128xf32>
    %26 = vector.extract_strided_slice %6 {offsets = [23, 0], sizes = [328, 4], strides = [1, 1]} : vector<376x4xf32> to vector<328x4xf32>
    %27 = arith.truncf %26 : vector<328x4xf32> to vector<328x4xbf16>
    %c3 = arith.constant 3 : index
    %c0_11 = arith.constant 0 : index
    %c0_12 = arith.constant 0 : index
    %28 = vector.load %arg3[%c3, %c0_11, %c0_12] : memref<9x4x128xbf16, #tpu.memory_space<vmem>>, vector<1x4x128xbf16>
    %29 = vector.shape_cast %28 : vector<1x4x128xbf16> to vector<4x128xbf16>
    %cst_13 = arith.constant dense<0.000000e+00> : vector<328x128xf32>
    %30 = tpu.matmul %27, %29, %cst_13 {dimension_numbers = #tpu.dot_dimension_numbers<[1], [0], [0], [1], [0, 0, 1, 1], [], []>} : vector<328x4xbf16>, vector<4x128xbf16>, vector<328x128xf32> -> vector<328x128xf32>
    %31 = arith.addf %25, %30 : vector<328x128xf32>
    %32 = vector.extract_strided_slice %6 {offsets = [24, 0], sizes = [328, 4], strides = [1, 1]} : vector<376x4xf32> to vector<328x4xf32>
    %33 = arith.truncf %32 : vector<328x4xf32> to vector<328x4xbf16>
    %c4 = arith.constant 4 : index
    %c0_14 = arith.constant 0 : index
    %c0_15 = arith.constant 0 : index
    %34 = vector.load %arg3[%c4, %c0_14, %c0_15] : memref<9x4x128xbf16, #tpu.memory_space<vmem>>, vector<1x4x128xbf16>
    %35 = vector.shape_cast %34 : vector<1x4x128xbf16> to vector<4x128xbf16>
    %cst_16 = arith.constant dense<0.000000e+00> : vector<328x128xf32>
    %36 = tpu.matmul %33, %35, %cst_16 {dimension_numbers = #tpu.dot_dimension_numbers<[1], [0], [0], [1], [0, 0, 1, 1], [], []>} : vector<328x4xbf16>, vector<4x128xbf16>, vector<328x128xf32> -> vector<328x128xf32>
    %37 = arith.addf %31, %36 : vector<328x128xf32>
    %38 = vector.extract_strided_slice %6 {offsets = [25, 0], sizes = [328, 4], strides = [1, 1]} : vector<376x4xf32> to vector<328x4xf32>
    %39 = arith.truncf %38 : vector<328x4xf32> to vector<328x4xbf16>
    %c5 = arith.constant 5 : index
    %c0_17 = arith.constant 0 : index
    %c0_18 = arith.constant 0 : index
    %40 = vector.load %arg3[%c5, %c0_17, %c0_18] : memref<9x4x128xbf16, #tpu.memory_space<vmem>>, vector<1x4x128xbf16>
    %41 = vector.shape_cast %40 : vector<1x4x128xbf16> to vector<4x128xbf16>
    %cst_19 = arith.constant dense<0.000000e+00> : vector<328x128xf32>
    %42 = tpu.matmul %39, %41, %cst_19 {dimension_numbers = #tpu.dot_dimension_numbers<[1], [0], [0], [1], [0, 0, 1, 1], [], []>} : vector<328x4xbf16>, vector<4x128xbf16>, vector<328x128xf32> -> vector<328x128xf32>
    %43 = arith.addf %37, %42 : vector<328x128xf32>
    %44 = vector.extract_strided_slice %6 {offsets = [41, 0], sizes = [328, 4], strides = [1, 1]} : vector<376x4xf32> to vector<328x4xf32>
    %45 = arith.truncf %44 : vector<328x4xf32> to vector<328x4xbf16>
    %c6 = arith.constant 6 : index
    %c0_20 = arith.constant 0 : index
    %c0_21 = arith.constant 0 : index
    %46 = vector.load %arg3[%c6, %c0_20, %c0_21] : memref<9x4x128xbf16, #tpu.memory_space<vmem>>, vector<1x4x128xbf16>
    %47 = vector.shape_cast %46 : vector<1x4x128xbf16> to vector<4x128xbf16>
    %cst_22 = arith.constant dense<0.000000e+00> : vector<328x128xf32>
    %48 = tpu.matmul %45, %47, %cst_22 {dimension_numbers = #tpu.dot_dimension_numbers<[1], [0], [0], [1], [0, 0, 1, 1], [], []>} : vector<328x4xbf16>, vector<4x128xbf16>, vector<328x128xf32> -> vector<328x128xf32>
    %49 = arith.addf %43, %48 : vector<328x128xf32>
    %50 = vector.extract_strided_slice %6 {offsets = [42, 0], sizes = [328, 4], strides = [1, 1]} : vector<376x4xf32> to vector<328x4xf32>
    %51 = arith.truncf %50 : vector<328x4xf32> to vector<328x4xbf16>
    %c7 = arith.constant 7 : index
    %c0_23 = arith.constant 0 : index
    %c0_24 = arith.constant 0 : index
    %52 = vector.load %arg3[%c7, %c0_23, %c0_24] : memref<9x4x128xbf16, #tpu.memory_space<vmem>>, vector<1x4x128xbf16>
    %53 = vector.shape_cast %52 : vector<1x4x128xbf16> to vector<4x128xbf16>
    %cst_25 = arith.constant dense<0.000000e+00> : vector<328x128xf32>
    %54 = tpu.matmul %51, %53, %cst_25 {dimension_numbers = #tpu.dot_dimension_numbers<[1], [0], [0], [1], [0, 0, 1, 1], [], []>} : vector<328x4xbf16>, vector<4x128xbf16>, vector<328x128xf32> -> vector<328x128xf32>
    %55 = arith.addf %49, %54 : vector<328x128xf32>
    %56 = vector.extract_strided_slice %6 {offsets = [43, 0], sizes = [328, 4], strides = [1, 1]} : vector<376x4xf32> to vector<328x4xf32>
    %57 = arith.truncf %56 : vector<328x4xf32> to vector<328x4xbf16>
    %c8 = arith.constant 8 : index
    %c0_26 = arith.constant 0 : index
    %c0_27 = arith.constant 0 : index
    %58 = vector.load %arg3[%c8, %c0_26, %c0_27] : memref<9x4x128xbf16, #tpu.memory_space<vmem>>, vector<1x4x128xbf16>
    %59 = vector.shape_cast %58 : vector<1x4x128xbf16> to vector<4x128xbf16>
    %cst_28 = arith.constant dense<0.000000e+00> : vector<328x128xf32>
    %60 = tpu.matmul %57, %59, %cst_28 {dimension_numbers = #tpu.dot_dimension_numbers<[1], [0], [0], [1], [0, 0, 1, 1], [], []>} : vector<328x4xbf16>, vector<4x128xbf16>, vector<328x128xf32> -> vector<328x128xf32>
    %61 = arith.addf %55, %60 : vector<328x128xf32>
    %c0_29 = arith.constant 0 : index
    %c0_30 = arith.constant 0 : index
    %62 = vector.load %arg4[%c0_29, %c0_30] : memref<1x128xf32, #tpu.memory_space<vmem>>, vector<1x128xf32>
    %63 = vector.broadcast %62 : vector<1x128xf32> to vector<328x128xf32>
    %64 = arith.addf %61, %63 : vector<328x128xf32>
    %cst_31 = arith.constant 0.000000e+00 : f32
    %65 = vector.broadcast %cst_31 : f32 to vector<328x128xf32>
    %66 = arith.maximumf %64, %65 : vector<328x128xf32>
    %c0_32 = arith.constant 0 : index
    %c0_33 = arith.constant 0 : index
    %67 = vector.load %arg5[%c0_32, %c0_33] : memref<328x1xf32, #tpu.memory_space<vmem>>, vector<328x1xf32>
    %cst_34 = arith.constant 0.000000e+00 : f32
    %68 = vector.broadcast %cst_34 : f32 to vector<328x1xf32>
    %69 = arith.cmpf one, %67, %68 : vector<328x1xf32>
    %cst_35 = arith.constant 0.000000e+00 : f32
    %70 = vector.shape_cast %69 : vector<328x1xi1> to vector<328x1xi1>
    %71 = vector.broadcast %70 : vector<328x1xi1> to vector<328x128xi1>
    %72 = vector.broadcast %cst_35 : f32 to vector<328x128xf32>
    %73 = arith.select %71, %66, %72 : vector<328x128xi1>, vector<328x128xf32>
    %74 = arith.truncf %73 : vector<328x128xf32> to vector<328x128xbf16>
    %c0_36 = arith.constant 0 : index
    %c0_37 = arith.constant 0 : index
    %c0_38 = arith.constant 0 : index
    %75 = vector.load %arg6[%c0_36, %c0_37, %c0_38] : memref<1x328x128xbf16, #tpu.memory_space<vmem>>, vector<1x328x128xbf16>
    %76 = vector.shape_cast %75 : vector<1x328x128xbf16> to vector<328x128xbf16>
    %77 = vector.shape_cast %74 : vector<328x128xbf16> to vector<1x328x128xbf16>
    tpu.vector_store %arg6[%c0_36, %c0_37, %c0_38], %77 {strides = array<i32>} : memref<1x328x128xbf16, #tpu.memory_space<vmem>>, vector<1x328x128xbf16>,
    return
  }
  func.func @transform_0(%arg0: i32, %arg1: i32) -> (i32, i32, i32) {
    %c0_i32 = arith.constant 0 : i32
    %c0_i32_0 = arith.constant 0 : i32
    %c0_i32_1 = arith.constant 0 : i32
    return %arg0, %c0_i32, %c0_i32_0 : i32, i32, i32
  }
  func.func @transform_1(%arg0: i32, %arg1: i32) -> (i32, i32, i32) {
    %c0_i32 = arith.constant 0 : i32
    %c0_i32_0 = arith.constant 0 : i32
    %c0_i32_1 = arith.constant 0 : i32
    %c0_i32_2 = arith.constant 0 : i32
    return %c0_i32, %c0_i32_0, %c0_i32_1 : i32, i32, i32
  }
  func.func @transform_2(%arg0: i32, %arg1: i32) -> (i32, i32) {
    %c0_i32 = arith.constant 0 : i32
    %c0_i32_0 = arith.constant 0 : i32
    %c0_i32_1 = arith.constant 0 : i32
    return %c0_i32, %c0_i32_0 : i32, i32
  }
  func.func @transform_3(%arg0: i32, %arg1: i32) -> (i32, i32) {
    %c0_i32 = arith.constant 0 : i32
    %c0_i32_0 = arith.constant 0 : i32
    return %arg1, %c0_i32 : i32, i32
  }
  func.func @transform_4(%arg0: i32, %arg1: i32) -> (i32, i32, i32) {
    %c1_i32 = arith.constant 1 : i32
    %0 = arith.addi %arg1, %c1_i32 : i32
    %c0_i32 = arith.constant 0 : i32
    %c0_i32_0 = arith.constant 0 : i32
    return %arg0, %0, %c0_i32 : i32, i32, i32
  }
}

module attributes {stable_mosaic.version = 11 : i64} {
  func.func @_conv3x3_kernel(%arg0: i32, %arg1: i32, %arg2: memref<1x984x128xbf16, #tpu.memory_space<vmem>>, %arg3: memref<9x128x128xbf16, #tpu.memory_space<vmem>>, %arg4: memref<1x128xf32, #tpu.memory_space<vmem>>, %arg5: memref<328x1xf32, #tpu.memory_space<vmem>>, %arg6: memref<1x328x128xf32, #tpu.memory_space<vmem>>) attributes {dimension_semantics = [#tpu.dimension_semantics<parallel>, #tpu.dimension_semantics<parallel>], iteration_bounds = array<i64: 2, 1>, scalar_prefetch = 0 : i64, scratch_operands = 0 : i64, tpu.core_type = #tpu.core_type<tc>, window_params = [{transform_indices = @transform_0, window_bounds = array<i64: 1, 984, 128>}, {pipeline_mode = #tpu.pipeline_mode<synchronous>, transform_indices = @transform_1, window_bounds = array<i64: 9, 128, 128>}, {pipeline_mode = #tpu.pipeline_mode<synchronous>, transform_indices = @transform_2, window_bounds = array<i64: 1, 128>}, {transform_indices = @transform_3, window_bounds = array<i64: 328, 1>}, {transform_indices = @transform_4, window_bounds = array<i64: 1, 328, 128>}]} {
    %c328_i32 = arith.constant 328 : i32
    %0 = arith.muli %arg1, %c328_i32 : i32
    %c304_i32 = arith.constant 304 : i32
    %1 = arith.addi %0, %c304_i32 : i32
    %2 = tpu.assume_multiple %1, 8 : i32
    %c0 = arith.constant 0 : index
    %3 = arith.index_cast %2 : i32 to index
    %c0_0 = arith.constant 0 : index
    %4 = vector.load %arg2[%c0, %3, %c0_0] : memref<1x984x128xbf16, #tpu.memory_space<vmem>>, vector<1x376x128xbf16>
    %5 = vector.shape_cast %4 : vector<1x376x128xbf16> to vector<376x128xbf16>
    %6 = arith.extf %5 : vector<376x128xbf16> to vector<376x128xf32>
    %cst = arith.constant 0.000000e+00 : f32
    %7 = vector.broadcast %cst : f32 to vector<328x128xf32>
    %8 = vector.extract_strided_slice %6 {offsets = [5, 0], sizes = [328, 128], strides = [1, 1]} : vector<376x128xf32> to vector<328x128xf32>
    %9 = arith.truncf %8 : vector<328x128xf32> to vector<328x128xbf16>
    %c0_1 = arith.constant 0 : index
    %c0_2 = arith.constant 0 : index
    %c0_3 = arith.constant 0 : index
    %10 = vector.load %arg3[%c0_1, %c0_2, %c0_3] : memref<9x128x128xbf16, #tpu.memory_space<vmem>>, vector<1x128x128xbf16>
    %11 = vector.shape_cast %10 : vector<1x128x128xbf16> to vector<128x128xbf16>
    %cst_4 = arith.constant dense<0.000000e+00> : vector<328x128xf32>
    %12 = tpu.matmul %9, %11, %cst_4 {dimension_numbers = #tpu.dot_dimension_numbers<[1], [0], [0], [1], [0, 0, 1, 1], [], []>} : vector<328x128xbf16>, vector<128x128xbf16>, vector<328x128xf32> -> vector<328x128xf32>
    %13 = arith.addf %7, %12 : vector<328x128xf32>
    %14 = vector.extract_strided_slice %6 {offsets = [6, 0], sizes = [328, 128], strides = [1, 1]} : vector<376x128xf32> to vector<328x128xf32>
    %15 = arith.truncf %14 : vector<328x128xf32> to vector<328x128xbf16>
    %c1 = arith.constant 1 : index
    %c0_5 = arith.constant 0 : index
    %c0_6 = arith.constant 0 : index
    %16 = vector.load %arg3[%c1, %c0_5, %c0_6] : memref<9x128x128xbf16, #tpu.memory_space<vmem>>, vector<1x128x128xbf16>
    %17 = vector.shape_cast %16 : vector<1x128x128xbf16> to vector<128x128xbf16>
    %cst_7 = arith.constant dense<0.000000e+00> : vector<328x128xf32>
    %18 = tpu.matmul %15, %17, %cst_7 {dimension_numbers = #tpu.dot_dimension_numbers<[1], [0], [0], [1], [0, 0, 1, 1], [], []>} : vector<328x128xbf16>, vector<128x128xbf16>, vector<328x128xf32> -> vector<328x128xf32>
    %19 = arith.addf %13, %18 : vector<328x128xf32>
    %20 = vector.extract_strided_slice %6 {offsets = [7, 0], sizes = [328, 128], strides = [1, 1]} : vector<376x128xf32> to vector<328x128xf32>
    %21 = arith.truncf %20 : vector<328x128xf32> to vector<328x128xbf16>
    %c2 = arith.constant 2 : index
    %c0_8 = arith.constant 0 : index
    %c0_9 = arith.constant 0 : index
    %22 = vector.load %arg3[%c2, %c0_8, %c0_9] : memref<9x128x128xbf16, #tpu.memory_space<vmem>>, vector<1x128x128xbf16>
    %23 = vector.shape_cast %22 : vector<1x128x128xbf16> to vector<128x128xbf16>
    %cst_10 = arith.constant dense<0.000000e+00> : vector<328x128xf32>
    %24 = tpu.matmul %21, %23, %cst_10 {dimension_numbers = #tpu.dot_dimension_numbers<[1], [0], [0], [1], [0, 0, 1, 1], [], []>} : vector<328x128xbf16>, vector<128x128xbf16>, vector<328x128xf32> -> vector<328x128xf32>
    %25 = arith.addf %19, %24 : vector<328x128xf32>
    %26 = vector.extract_strided_slice %6 {offsets = [23, 0], sizes = [328, 128], strides = [1, 1]} : vector<376x128xf32> to vector<328x128xf32>
    %27 = arith.truncf %26 : vector<328x128xf32> to vector<328x128xbf16>
    %c3 = arith.constant 3 : index
    %c0_11 = arith.constant 0 : index
    %c0_12 = arith.constant 0 : index
    %28 = vector.load %arg3[%c3, %c0_11, %c0_12] : memref<9x128x128xbf16, #tpu.memory_space<vmem>>, vector<1x128x128xbf16>
    %29 = vector.shape_cast %28 : vector<1x128x128xbf16> to vector<128x128xbf16>
    %cst_13 = arith.constant dense<0.000000e+00> : vector<328x128xf32>
    %30 = tpu.matmul %27, %29, %cst_13 {dimension_numbers = #tpu.dot_dimension_numbers<[1], [0], [0], [1], [0, 0, 1, 1], [], []>} : vector<328x128xbf16>, vector<128x128xbf16>, vector<328x128xf32> -> vector<328x128xf32>
    %31 = arith.addf %25, %30 : vector<328x128xf32>
    %32 = vector.extract_strided_slice %6 {offsets = [24, 0], sizes = [328, 128], strides = [1, 1]} : vector<376x128xf32> to vector<328x128xf32>
    %33 = arith.truncf %32 : vector<328x128xf32> to vector<328x128xbf16>
    %c4 = arith.constant 4 : index
    %c0_14 = arith.constant 0 : index
    %c0_15 = arith.constant 0 : index
    %34 = vector.load %arg3[%c4, %c0_14, %c0_15] : memref<9x128x128xbf16, #tpu.memory_space<vmem>>, vector<1x128x128xbf16>
    %35 = vector.shape_cast %34 : vector<1x128x128xbf16> to vector<128x128xbf16>
    %cst_16 = arith.constant dense<0.000000e+00> : vector<328x128xf32>
    %36 = tpu.matmul %33, %35, %cst_16 {dimension_numbers = #tpu.dot_dimension_numbers<[1], [0], [0], [1], [0, 0, 1, 1], [], []>} : vector<328x128xbf16>, vector<128x128xbf16>, vector<328x128xf32> -> vector<328x128xf32>
    %37 = arith.addf %31, %36 : vector<328x128xf32>
    %38 = vector.extract_strided_slice %6 {offsets = [25, 0], sizes = [328, 128], strides = [1, 1]} : vector<376x128xf32> to vector<328x128xf32>
    %39 = arith.truncf %38 : vector<328x128xf32> to vector<328x128xbf16>
    %c5 = arith.constant 5 : index
    %c0_17 = arith.constant 0 : index
    %c0_18 = arith.constant 0 : index
    %40 = vector.load %arg3[%c5, %c0_17, %c0_18] : memref<9x128x128xbf16, #tpu.memory_space<vmem>>, vector<1x128x128xbf16>
    %41 = vector.shape_cast %40 : vector<1x128x128xbf16> to vector<128x128xbf16>
    %cst_19 = arith.constant dense<0.000000e+00> : vector<328x128xf32>
    %42 = tpu.matmul %39, %41, %cst_19 {dimension_numbers = #tpu.dot_dimension_numbers<[1], [0], [0], [1], [0, 0, 1, 1], [], []>} : vector<328x128xbf16>, vector<128x128xbf16>, vector<328x128xf32> -> vector<328x128xf32>
    %43 = arith.addf %37, %42 : vector<328x128xf32>
    %44 = vector.extract_strided_slice %6 {offsets = [41, 0], sizes = [328, 128], strides = [1, 1]} : vector<376x128xf32> to vector<328x128xf32>
    %45 = arith.truncf %44 : vector<328x128xf32> to vector<328x128xbf16>
    %c6 = arith.constant 6 : index
    %c0_20 = arith.constant 0 : index
    %c0_21 = arith.constant 0 : index
    %46 = vector.load %arg3[%c6, %c0_20, %c0_21] : memref<9x128x128xbf16, #tpu.memory_space<vmem>>, vector<1x128x128xbf16>
    %47 = vector.shape_cast %46 : vector<1x128x128xbf16> to vector<128x128xbf16>
    %cst_22 = arith.constant dense<0.000000e+00> : vector<328x128xf32>
    %48 = tpu.matmul %45, %47, %cst_22 {dimension_numbers = #tpu.dot_dimension_numbers<[1], [0], [0], [1], [0, 0, 1, 1], [], []>} : vector<328x128xbf16>, vector<128x128xbf16>, vector<328x128xf32> -> vector<328x128xf32>
    %49 = arith.addf %43, %48 : vector<328x128xf32>
    %50 = vector.extract_strided_slice %6 {offsets = [42, 0], sizes = [328, 128], strides = [1, 1]} : vector<376x128xf32> to vector<328x128xf32>
    %51 = arith.truncf %50 : vector<328x128xf32> to vector<328x128xbf16>
    %c7 = arith.constant 7 : index
    %c0_23 = arith.constant 0 : index
    %c0_24 = arith.constant 0 : index
    %52 = vector.load %arg3[%c7, %c0_23, %c0_24] : memref<9x128x128xbf16, #tpu.memory_space<vmem>>, vector<1x128x128xbf16>
    %53 = vector.shape_cast %52 : vector<1x128x128xbf16> to vector<128x128xbf16>
    %cst_25 = arith.constant dense<0.000000e+00> : vector<328x128xf32>
    %54 = tpu.matmul %51, %53, %cst_25 {dimension_numbers = #tpu.dot_dimension_numbers<[1], [0], [0], [1], [0, 0, 1, 1], [], []>} : vector<328x128xbf16>, vector<128x128xbf16>, vector<328x128xf32> -> vector<328x128xf32>
    %55 = arith.addf %49, %54 : vector<328x128xf32>
    %56 = vector.extract_strided_slice %6 {offsets = [43, 0], sizes = [328, 128], strides = [1, 1]} : vector<376x128xf32> to vector<328x128xf32>
    %57 = arith.truncf %56 : vector<328x128xf32> to vector<328x128xbf16>
    %c8 = arith.constant 8 : index
    %c0_26 = arith.constant 0 : index
    %c0_27 = arith.constant 0 : index
    %58 = vector.load %arg3[%c8, %c0_26, %c0_27] : memref<9x128x128xbf16, #tpu.memory_space<vmem>>, vector<1x128x128xbf16>
    %59 = vector.shape_cast %58 : vector<1x128x128xbf16> to vector<128x128xbf16>
    %cst_28 = arith.constant dense<0.000000e+00> : vector<328x128xf32>
    %60 = tpu.matmul %57, %59, %cst_28 {dimension_numbers = #tpu.dot_dimension_numbers<[1], [0], [0], [1], [0, 0, 1, 1], [], []>} : vector<328x128xbf16>, vector<128x128xbf16>, vector<328x128xf32> -> vector<328x128xf32>
    %61 = arith.addf %55, %60 : vector<328x128xf32>
    %c0_29 = arith.constant 0 : index
    %c0_30 = arith.constant 0 : index
    %62 = vector.load %arg4[%c0_29, %c0_30] : memref<1x128xf32, #tpu.memory_space<vmem>>, vector<1x128xf32>
    %63 = vector.broadcast %62 : vector<1x128xf32> to vector<328x128xf32>
    %64 = arith.addf %61, %63 : vector<328x128xf32>
    %cst_31 = arith.constant 0.000000e+00 : f32
    %65 = vector.broadcast %cst_31 : f32 to vector<328x128xf32>
    %66 = arith.maximumf %64, %65 : vector<328x128xf32>
    %c0_32 = arith.constant 0 : index
    %c0_33 = arith.constant 0 : index
    %67 = vector.load %arg5[%c0_32, %c0_33] : memref<328x1xf32, #tpu.memory_space<vmem>>, vector<328x1xf32>
    %cst_34 = arith.constant 0.000000e+00 : f32
    %68 = vector.broadcast %cst_34 : f32 to vector<328x1xf32>
    %69 = arith.cmpf one, %67, %68 : vector<328x1xf32>
    %cst_35 = arith.constant 0.000000e+00 : f32
    %70 = vector.shape_cast %69 : vector<328x1xi1> to vector<328x1xi1>
    %71 = vector.broadcast %70 : vector<328x1xi1> to vector<328x128xi1>
    %72 = vector.broadcast %cst_35 : f32 to vector<328x128xf32>
    %73 = arith.select %71, %66, %72 : vector<328x128xi1>, vector<328x128xf32>
    %c0_36 = arith.constant 0 : index
    %c0_37 = arith.constant 0 : index
    %c0_38 = arith.constant 0 : index
    %74 = vector.load %arg6[%c0_36, %c0_37, %c0_38] : memref<1x328x128xf32, #tpu.memory_space<vmem>>, vector<1x328x128xf32>
    %75 = vector.shape_cast %74 : vector<1x328x128xf32> to vector<328x128xf32>
    %76 = vector.shape_cast %73 : vector<328x128xf32> to vector<1x328x128xf32>
    tpu.vector_store %arg6[%c0_36, %c0_37, %c0_38], %76 {strides = array<i32>} : memref<1x328x128xf32, #tpu.memory_space<vmem>>, vector<1x328x128xf32>,
    return
  }
  func.func @transform_0(%arg0: i32, %arg1: i32) -> (i32, i32, i32) {
    %c0_i32 = arith.constant 0 : i32
    %c0_i32_0 = arith.constant 0 : i32
    %c0_i32_1 = arith.constant 0 : i32
    return %arg0, %c0_i32, %c0_i32_0 : i32, i32, i32
  }
  func.func @transform_1(%arg0: i32, %arg1: i32) -> (i32, i32, i32) {
    %c0_i32 = arith.constant 0 : i32
    %c0_i32_0 = arith.constant 0 : i32
    %c0_i32_1 = arith.constant 0 : i32
    %c0_i32_2 = arith.constant 0 : i32
    return %c0_i32, %c0_i32_0, %c0_i32_1 : i32, i32, i32
  }
  func.func @transform_2(%arg0: i32, %arg1: i32) -> (i32, i32) {
    %c0_i32 = arith.constant 0 : i32
    %c0_i32_0 = arith.constant 0 : i32
    %c0_i32_1 = arith.constant 0 : i32
    return %c0_i32, %c0_i32_0 : i32, i32
  }
  func.func @transform_3(%arg0: i32, %arg1: i32) -> (i32, i32) {
    %c0_i32 = arith.constant 0 : i32
    %c0_i32_0 = arith.constant 0 : i32
    return %arg1, %c0_i32 : i32, i32
  }
  func.func @transform_4(%arg0: i32, %arg1: i32) -> (i32, i32, i32) {
    %c1_i32 = arith.constant 1 : i32
    %0 = arith.addi %arg1, %c1_i32 : i32
    %c0_i32 = arith.constant 0 : i32
    %c0_i32_0 = arith.constant 0 : i32
    return %arg0, %0, %c0_i32 : i32, i32, i32
  }
}

module attributes {stable_mosaic.version = 11 : i64} {
  func.func @_matmul_bias_kernel(%arg0: i32, %arg1: memref<64x4xbf16, #tpu.memory_space<vmem>>, %arg2: memref<4x128xbf16, #tpu.memory_space<vmem>>, %arg3: memref<1x128xf32, #tpu.memory_space<vmem>>, %arg4: memref<64x128xf32, #tpu.memory_space<vmem>>) attributes {dimension_semantics = [#tpu.dimension_semantics<parallel>], iteration_bounds = array<i64: 2>, scalar_prefetch = 0 : i64, scratch_operands = 0 : i64, tpu.core_type = #tpu.core_type<tc>, window_params = [{transform_indices = @transform_0, window_bounds = array<i64: 64, 4>}, {pipeline_mode = #tpu.pipeline_mode<synchronous>, transform_indices = @transform_1, window_bounds = array<i64: 4, 128>}, {pipeline_mode = #tpu.pipeline_mode<synchronous>, transform_indices = @transform_2, window_bounds = array<i64: 1, 128>}, {transform_indices = @transform_3, window_bounds = array<i64: 64, 128>}]} {
    %c0 = arith.constant 0 : index
    %c0_0 = arith.constant 0 : index
    %0 = vector.load %arg1[%c0, %c0_0] : memref<64x4xbf16, #tpu.memory_space<vmem>>, vector<64x4xbf16>
    %c0_1 = arith.constant 0 : index
    %c0_2 = arith.constant 0 : index
    %1 = vector.load %arg2[%c0_1, %c0_2] : memref<4x128xbf16, #tpu.memory_space<vmem>>, vector<4x128xbf16>
    %cst = arith.constant dense<0.000000e+00> : vector<64x128xf32>
    %2 = tpu.matmul %0, %1, %cst {dimension_numbers = #tpu.dot_dimension_numbers<[1], [0], [0], [1], [0, 0, 1, 1], [], []>} : vector<64x4xbf16>, vector<4x128xbf16>, vector<64x128xf32> -> vector<64x128xf32>
    %c0_3 = arith.constant 0 : index
    %c0_4 = arith.constant 0 : index
    %3 = vector.load %arg3[%c0_3, %c0_4] : memref<1x128xf32, #tpu.memory_space<vmem>>, vector<1x128xf32>
    %4 = vector.broadcast %3 : vector<1x128xf32> to vector<64x128xf32>
    %5 = arith.addf %2, %4 : vector<64x128xf32>
    %c0_5 = arith.constant 0 : index
    %c0_6 = arith.constant 0 : index
    %6 = vector.load %arg4[%c0_5, %c0_6] : memref<64x128xf32, #tpu.memory_space<vmem>>, vector<64x128xf32>
    tpu.vector_store %arg4[%c0_5, %c0_6], %5 {strides = array<i32>} : memref<64x128xf32, #tpu.memory_space<vmem>>, vector<64x128xf32>,
    return
  }
  func.func @transform_0(%arg0: i32) -> (i32, i32) {
    %c0_i32 = arith.constant 0 : i32
    %c0_i32_0 = arith.constant 0 : i32
    return %arg0, %c0_i32 : i32, i32
  }
  func.func @transform_1(%arg0: i32) -> (i32, i32) {
    %c0_i32 = arith.constant 0 : i32
    %c0_i32_0 = arith.constant 0 : i32
    %c0_i32_1 = arith.constant 0 : i32
    return %c0_i32, %c0_i32_0 : i32, i32
  }
  func.func @transform_2(%arg0: i32) -> (i32, i32) {
    %c0_i32 = arith.constant 0 : i32
    %c0_i32_0 = arith.constant 0 : i32
    %c0_i32_1 = arith.constant 0 : i32
    return %c0_i32, %c0_i32_0 : i32, i32
  }
  func.func @transform_3(%arg0: i32) -> (i32, i32) {
    %c0_i32 = arith.constant 0 : i32
    %c0_i32_0 = arith.constant 0 : i32
    return %arg0, %c0_i32 : i32, i32
  }
}

module attributes {stable_mosaic.version = 11 : i64} {
  func.func @_pool_add_kernel(%arg0: i32, %arg1: memref<8x2x8x256xf32, #tpu.memory_space<vmem>>, %arg2: memref<8x8x128xf32, #tpu.memory_space<vmem>>, %arg3: memref<8x8x128xf32, #tpu.memory_space<vmem>>) attributes {dimension_semantics = [#tpu.dimension_semantics<parallel>], iteration_bounds = array<i64: 2>, scalar_prefetch = 0 : i64, scratch_operands = 0 : i64, tpu.core_type = #tpu.core_type<tc>, window_params = [{transform_indices = @transform_0, window_bounds = array<i64: 8, 2, 8, 256>}, {transform_indices = @transform_1, window_bounds = array<i64: 8, 8, 128>}, {transform_indices = @transform_2, window_bounds = array<i64: 8, 8, 128>}]} {
    %c0 = arith.constant 0 : index
    %c0_0 = arith.constant 0 : index
    %c0_1 = arith.constant 0 : index
    %c0_2 = arith.constant 0 : index
    %0 = vector.load %arg1[%c0, %c0_0, %c0_1, %c0_2] : memref<8x2x8x256xf32, #tpu.memory_space<vmem>>, vector<8x1x8x256xf32>
    %1 = vector.shape_cast %0 : vector<8x1x8x256xf32> to vector<8x8x256xf32>
    %c0_3 = arith.constant 0 : index
    %c1 = arith.constant 1 : index
    %c0_4 = arith.constant 0 : index
    %c0_5 = arith.constant 0 : index
    %2 = vector.load %arg1[%c0_3, %c1, %c0_4, %c0_5] : memref<8x2x8x256xf32, #tpu.memory_space<vmem>>, vector<8x1x8x256xf32>
    %3 = vector.shape_cast %2 : vector<8x1x8x256xf32> to vector<8x8x256xf32>
    %4 = vector.extract_strided_slice %1 {offsets = [0, 0, 0], sizes = [8, 8, 128], strides = [1, 1, 1]} : vector<8x8x256xf32> to vector<8x8x128xf32>
    %5 = vector.extract_strided_slice %1 {offsets = [0, 0, 128], sizes = [8, 8, 128], strides = [1, 1, 1]} : vector<8x8x256xf32> to vector<8x8x128xf32>
    %6 = vector.extract_strided_slice %3 {offsets = [0, 0, 0], sizes = [8, 8, 128], strides = [1, 1, 1]} : vector<8x8x256xf32> to vector<8x8x128xf32>
    %7 = vector.extract_strided_slice %3 {offsets = [0, 0, 128], sizes = [8, 8, 128], strides = [1, 1, 1]} : vector<8x8x256xf32> to vector<8x8x128xf32>
    %8 = arith.addf %4, %5 : vector<8x8x128xf32>
    %9 = arith.addf %8, %6 : vector<8x8x128xf32>
    %10 = arith.addf %9, %7 : vector<8x8x128xf32>
    %cst = arith.constant 2.500000e-01 : f32
    %11 = vector.broadcast %cst : f32 to vector<8x8x128xf32>
    %12 = arith.mulf %10, %11 : vector<8x8x128xf32>
    %c0_6 = arith.constant 0 : index
    %c0_7 = arith.constant 0 : index
    %c0_8 = arith.constant 0 : index
    %13 = vector.load %arg2[%c0_6, %c0_7, %c0_8] : memref<8x8x128xf32, #tpu.memory_space<vmem>>, vector<8x8x128xf32>
    %14 = arith.addf %12, %13 : vector<8x8x128xf32>
    %c0_9 = arith.constant 0 : index
    %c0_10 = arith.constant 0 : index
    %c0_11 = arith.constant 0 : index
    %15 = vector.load %arg3[%c0_9, %c0_10, %c0_11] : memref<8x8x128xf32, #tpu.memory_space<vmem>>, vector<8x8x128xf32>
    tpu.vector_store %arg3[%c0_9, %c0_10, %c0_11], %14 {strides = array<i32>} : memref<8x8x128xf32, #tpu.memory_space<vmem>>, vector<8x8x128xf32>,
    return
  }
  func.func @transform_0(%arg0: i32) -> (i32, i32, i32, i32) {
    %c0_i32 = arith.constant 0 : i32
    %c0_i32_0 = arith.constant 0 : i32
    %c0_i32_1 = arith.constant 0 : i32
    %c0_i32_2 = arith.constant 0 : i32
    return %arg0, %c0_i32, %c0_i32_0, %c0_i32_1 : i32, i32, i32, i32
  }
  func.func @transform_1(%arg0: i32) -> (i32, i32, i32) {
    %c0_i32 = arith.constant 0 : i32
    %c0_i32_0 = arith.constant 0 : i32
    %c0_i32_1 = arith.constant 0 : i32
    return %arg0, %c0_i32, %c0_i32_0 : i32, i32, i32
  }
  func.func @transform_2(%arg0: i32) -> (i32, i32, i32) {
    %c0_i32 = arith.constant 0 : i32
    %c0_i32_0 = arith.constant 0 : i32
    %c0_i32_1 = arith.constant 0 : i32
    return %arg0, %c0_i32, %c0_i32_0 : i32, i32, i32
  }
}

</mosaic_0001>

<llo_original>
// kernel: conv_block_forward.4
$region0: #{conv_block_forward.4}
  #allocation0 [shape = 'u32[]', space=smem, size = 0x4, offset = 0x4, fixed_abs, tag = 'smem constant byte address 0x4 - core index']
  #allocation1 [shape = 'u32[144,128]{1,0:T(1,128)}', space=vmem, size = 0x12000, scoped, tag = 'internal scratch']
  %s0 = inlined_call_operand.vmem [shape: bf16[128,4], index: 0, kind: input, shape index: {}]
  %s1 = inlined_call_operand.vmem [shape: bf16[4,128], index: 1, kind: input, shape index: {}]
  %s2 = inlined_call_operand.vmem [shape: f32[1,128], index: 2, kind: input, shape index: {}]
  %s3 = inlined_call_operand.vmem [shape: f32[128,128], index: 3, kind: output, shape index: {}]
  %s4 = sld [smem:[#allocation0]]
  $region45: #{conv_block_forward.4} parent=0
    _
  %s6 = ssub.s32 1, %s4
  %s7 = scalar_select 0, %s6, %s4
  loop: start=0, step=1, limit=4
  $region2: #{conv_block_forward.4} parent=0 // loop_pre_header
    _
  $region3: #{conv_block_forward.4} parent=0 // loop_header
    %s9 = sphi 0, %s13
    %p10 = scmp.ge.s32.totalorder %s9, 4
    %s19 = sphi 0, %s21
    %s22 = sphi 0, %s19
    %s23 = sphi 0, %s22
    %s39 = sphi 0, %s23
    %s43 = sphi 0, %s43
    %s45 = sphi 0, %s43
    %s46 = sphi 0, %s45
    %s60 = sphi 0, %s46
    %s64 = sphi 0, %s64
    %s66 = sphi 0, %s64
    %s67 = sphi 0, %s66
    %s81 = sphi 0, %s67
    %s87 = sphi 0, %s89
    %s90 = sphi 0, %s87
    %s91 = sphi 0, %s90
    %s107 = sphi 0, %s91
  $region4: #{conv_block_forward.4} parent=0 // loop_header_branch
    %12 = sbr.rel (%p10) target = $region8
  $region5: #{conv_block_forward.4} parent=0 // loop_body
    %s14 = ssub.s32 %s9, 1
    %s15 = ssub.s32 %s9, 2
    %s16 = sadd.s32 %s9, 1
    %s17 = ssub.s32 %s9, %s16
    %p18 = scmp.eq.s32.totalorder %s17, 0
    %s20 = sadd.s32 %s19, 1
    %s21 = scalar_select %p18, %s19, %s20
    %p24 = pneg %p18
    %p25 = scmp.eq.s32.totalorder %s9, 1
    %p26 = por %p24, %p25
    %p27 = scmp.ne.s32.totalorder %s19, %s22
    %p28 = scmp.eq.s32.totalorder %s9, 0
    %p29 = por %p27, %p28
    %p30 = scmp.ne.s32.totalorder %s19, %s22
    %p31 = scmp.eq.s32.totalorder %s14, 1
    %p32 = por %p30, %p31
    %p33 = scmp.ne.s32.totalorder %s22, %s23
    %p34 = scmp.eq.s32.totalorder %s14, 0
    %p35 = por %p33, %p34
    %p36 = scmp.ne.s32.totalorder %s22, %s23
    %p37 = scmp.eq.s32.totalorder %s15, 1
    %p38 = por %p36, %p37
    %p40 = scmp.ne.s32.totalorder %s23, %s39
    %p41 = scmp.eq.s32.totalorder %s15, 0
    %p42 = por %p40, %p41
    %s44 = sadd.s32 %s43, 1
    %p47 = scmp.eq.s32.totalorder %s9, 1
    %p48 = scmp.ne.s32.totalorder %s43, %s45
    %p49 = scmp.eq.s32.totalorder %s9, 0
    %p50 = por %p48, %p49
    %p51 = scmp.ne.s32.totalorder %s43, %s45
    %p52 = scmp.eq.s32.totalorder %s14, 1
    %p53 = por %p51, %p52
    %p54 = scmp.ne.s32.totalorder %s45, %s46
    %p55 = scmp.eq.s32.totalorder %s14, 0
    %p56 = por %p54, %p55
    %p57 = scmp.ne.s32.totalorder %s45, %s46
    %p58 = scmp.eq.s32.totalorder %s15, 1
    %p59 = por %p57, %p58
    %p61 = scmp.ne.s32.totalorder %s46, %s60
    %p62 = scmp.eq.s32.totalorder %s15, 0
    %p63 = por %p61, %p62
    %s65 = sadd.s32 %s64, 1
    %p68 = scmp.eq.s32.totalorder %s9, 1
    %p69 = scmp.ne.s32.totalorder %s64, %s66
    %p70 = scmp.eq.s32.totalorder %s9, 0
    %p71 = por %p69, %p70
    %p72 = scmp.ne.s32.totalorder %s64, %s66
    %p73 = scmp.eq.s32.totalorder %s14, 1
    %p74 = por %p72, %p73
    %p75 = scmp.ne.s32.totalorder %s66, %s67
    %p76 = scmp.eq.s32.totalorder %s14, 0
    %p77 = por %p75, %p76
    %p78 = scmp.ne.s32.totalorder %s66, %s67
    %p79 = scmp.eq.s32.totalorder %s15, 1
    %p80 = por %p78, %p79
    %p82 = scmp.ne.s32.totalorder %s67, %s81
    %p83 = scmp.eq.s32.totalorder %s15, 0
    %p84 = por %p82, %p83
    %s85 = ssub.s32 %s9, %s16
    %p86 = scmp.eq.s32.totalorder %s85, 0
    %s88 = sadd.s32 %s87, 1
    %s89 = scalar_select %p86, %s87, %s88
    %p92 = pneg %p86
    %p93 = scmp.eq.s32.totalorder %s9, 1
    %p94 = por %p92, %p93
    %p95 = scmp.ne.s32.totalorder %s87, %s90
    %p96 = scmp.eq.s32.totalorder %s9, 0
    %p97 = por %p95, %p96
    %p98 = scmp.ne.s32.totalorder %s87, %s90
    %p99 = scmp.eq.s32.totalorder %s14, 1
    %p100 = por %p98, %p99
    %p101 = scmp.ne.s32.totalorder %s90, %s91
    %p102 = scmp.eq.s32.totalorder %s14, 0
    %p103 = por %p101, %p102
    %p104 = scmp.ne.s32.totalorder %s90, %s91
    %p105 = scmp.eq.s32.totalorder %s15, 1
    %p106 = por %p104, %p105
    %p108 = scmp.ne.s32.totalorder %s91, %s107
    %p109 = scmp.eq.s32.totalorder %s15, 0
    %p110 = por %p108, %p109
    %p111 = scmp.le.s32.totalorder 1, %s9
    %p112 = scmp.lt.s32.totalorder %s9, 3
    %p113 = pnand %p111, %p112
    %p114 = pneg %p113
    // Predicated region
    $region9: #{conv_block_forward.4} parent=5 // pred_check
      _
    $region10: #{conv_block_forward.4} parent=5 // pred_check_branch
      %116 = sbr.rel (%p113) target = $region12
    $region11: #{conv_block_forward.4} parent=5 // pred_region
      %s117 = ssub.s32 %s9, 1
      // Predicated region
      $region13: #{conv_block_forward.4} parent=11 // pred_check
        %p118 = pneg %p56
      $region14: #{conv_block_forward.4} parent=11 // pred_check_branch
        %120 = sbr.rel (%p118) target = $region16
      $region15: #{conv_block_forward.4} parent=11 // pred_region
        _
      $region16: #{conv_block_forward.4} parent=11 // pred_fallthru
        _
      // Predicated region
      $region17: #{conv_block_forward.4} parent=11 // pred_check
        %p121 = pneg %p77
      $region18: #{conv_block_forward.4} parent=11 // pred_check_branch
        %123 = sbr.rel (%p121) target = $region20
      $region19: #{conv_block_forward.4} parent=11 // pred_region
        _
      $region20: #{conv_block_forward.4} parent=11 // pred_fallthru
        _
    $region12: #{conv_block_forward.4} parent=5 // pred_fallthru
      _
    %p124 = scmp.lt.s32.totalorder %s9, 2
    // Predicated region
    $region21: #{conv_block_forward.4} parent=5 // pred_check
      %p125 = pneg %p124
    $region22: #{conv_block_forward.4} parent=5 // pred_check_branch
      %127 = sbr.rel (%p125) target = $region24
    $region23: #{conv_block_forward.4} parent=5 // pred_region
      // Predicated region
      $region25: #{conv_block_forward.4} parent=23 // pred_check
        %p128 = pneg %p29
      $region26: #{conv_block_forward.4} parent=23 // pred_check_branch
        %130 = sbr.rel (%p128) target = $region28
      $region27: #{conv_block_forward.4} parent=23 // pred_region
        %s131 = smul.u32 8, %s9
        %p132 = scmp.lt.s32.totalorder %s131, 15
        %s133 = scalar_select %p132, %s131, 15
        %s134 = smul.addr %s133, 4
        %s135 = scalar_lea.vmem %s0, %s134
        %s136 = smul.u32 8, %s9
      $region28: #{conv_block_forward.4} parent=23 // pred_fallthru
        _
    $region24: #{conv_block_forward.4} parent=5 // pred_fallthru
      _
    %p137 = scmp.le.s32.totalorder 1, %s9
    %p138 = scmp.lt.s32.totalorder %s9, 3
    %p139 = pnand %p137, %p138
    %p140 = pneg %p139
    // Predicated region
    $region29: #{conv_block_forward.4} parent=5 // pred_check
      _
    $region30: #{conv_block_forward.4} parent=5 // pred_check_branch
      %142 = sbr.rel (%p139) target = $region32
    $region31: #{conv_block_forward.4} parent=5 // pred_region
      %s143 = ssub.s32 %s9, 1
      %s144 = smul.u32 8, %s14
      %p145 = scmp.lt.s32.totalorder %s144, 15
      %s146 = scalar_select %p145, %s144, 15
      %s147 = smul.addr %s146, 4
      %s148 = scalar_lea.vmem %s0, %s147
      %p149 = pneg %p35
      %p150 = pneg %p32
      %p151 = pneg %p56
      %p152 = pneg %p53
      %p153 = pneg %p77
      %p154 = pneg %p74
      %p155 = pneg %p103
      %p156 = pneg %p100
      %s157 = smul.u32 8, %s14
      %p158 = scmp.lt.s32.totalorder %s157, 15
      %s159 = scalar_select %p158, %s157, 15
      %s160 = smul.addr %s159, 8
      %s161 = scalar_lea.vmem %s3, %s160
      %s162 = smul.u32 8, %s14
      %p163 = scmp.lt.s32.totalorder %s162, 15
      %s164 = scalar_select %p163, %s162, 15
      %s165 = smul.addr %s164, 4
      %s166 = scalar_lea.vmem %s0, %s165
      %s167 = smul.u32 8, %s14
      %s168 = smul.u32 8, %s14
      %p169 = scmp.lt.s32.totalorder %s168, 15
      %s170 = scalar_select %p169, %s168, 15
      %s171 = smul.addr %s170, 8
      %s172 = scalar_lea.vmem %s3, %s171
      %s173 = smul.u32 8, %s14
      %v175 = vld [vmem:[%s166] sm:$0xf]
      %v176 = vld [vmem:[%s166 + $0x4] sm:$0xf]
      %v177 = vld [vmem:[%s166 + $0x8] sm:$0xf]
      %v178 = vld [vmem:[%s166 + $0xc] sm:$0xf]
      %v179 = vld [vmem:[%s166 + $0x10] sm:$0xf]
      %v180 = vld [vmem:[%s166 + $0x14] sm:$0xf]
      %v181 = vld [vmem:[%s166 + $0x18] sm:$0xf]
      %v182 = vld [vmem:[%s166 + $0x1c] sm:$0xf]
      %v183 = vld [vmem:[%s1] sm:$0x3]
      %v184 = vld [vmem:[%s2] sm:$0x1]
      %v186 = vlaneseq
      %v187 = vshrl.u32 %v186, 7
      %v188 = vsub.s32 0, %v187
      %v189 = vrot.slane %v184, %v188
      %v199 = vunpack.c.l.b16 %v175
      %v200 = vunpack.c.l.b16 %v176
      %v201 = vunpack.c.l.b16 %v177
      %v202 = vunpack.c.l.b16 %v178
      %v203 = vunpack.c.l.b16 %v179
      %v204 = vunpack.c.l.b16 %v180
      %v205 = vunpack.c.l.b16 %v181
      %v206 = vunpack.c.l.b16 %v182
      %v207 = vpack.c.b16 %v200, %v199
      %v208 = vpack.c.b16 %v202, %v201
      %v209 = vpack.c.b16 %v204, %v203
      %v210 = vpack.c.b16 %v206, %v205
      %vm211 = vcmask 31744
      %v213 = vsel %vm211, %v207, 0
      %v216 = vsel %vm211, %v208, 0
      %v219 = vsel %vm211, %v209, 0
      %v222 = vsel %vm211, %v210, 0
      %vm224 = vcmask 1041408
      %v226 = vsel %vm224, %v183, 0
      %228 = vmatprep.subr.bf16.mxu0 0
      %229 = vmatpush1.bf16.msra.mxu0 0
      %230 = vmatprep.subr.bf16.mxu0 0
      %231 = vmatpush1.bf16.msra.mxu0 0
      %232 = vmatprep.subr.bf16.mxu0 0
      %233 = vmatpush1.bf16.msra.mxu0 0
      %234 = vmatprep.subr.bf16.mxu0 0
      %235 = vmatpush1.bf16.msra.mxu0 0
      %236 = vmatprep.subr.bf16.mxu0 0
      %237 = vmatpush1.bf16.msra.mxu0 0
      %238 = vmatprep.subr.bf16.mxu0 0
      %239 = vmatpush1.bf16.msra.mxu0 0
      %240 = vmatprep.subr.bf16.mxu0 0
      %241 = vmatpush1.bf16.msra.mxu0 0
      %242 = vmatprep.subr.bf16.mxu0 0
      %243 = vmatpush1.bf16.msra.mxu0 %v226
      %244 = vmatprep.subr.bf16.mxu0 0
      %245 = vmatpush2.bf16.msra.mxu0 0
      %246 = vmatprep.subr.bf16.mxu0 0
      %247 = vmatpush2.bf16.msra.mxu0 0
      %248 = vmatprep.subr.bf16.mxu0 0
      %249 = vmatpush2.bf16.msra.mxu0 0
      %250 = vmatprep.subr.bf16.mxu0 0
      %251 = vmatpush2.bf16.msra.mxu0 0
      %252 = vmatprep.subr.bf16.mxu0 0
      %253 = vmatpush2.bf16.msra.mxu0 0
      %254 = vmatprep.subr.bf16.mxu0 0
      %255 = vmatpush2.bf16.msra.mxu0 0
      %256 = vmatprep.subr.bf16.mxu0 0
      %257 = vmatpush2.bf16.msra.mxu0 0
      %258 = vmatprep.subr.bf16.mxu0 0
      %259 = vmatpush2.bf16.msra.mxu0 0
      %260 = vmatprep.mubr.bf16.mxu0 0
      %261 = vmatmul.mubr.bf16.gmra.mxu0 %v213
      %v262 = vpop.f32.mrf.mxu0
      %v263 = vadd.f32 %v189, %v262
      %v264 = vpop.f32.mrf.mxu0
      %v265 = vpop.f32.mrf.mxu0
      %v266 = vadd.f32 %v189, %v265
      %v267 = vpop.f32.mrf.mxu0
      %268 = vmatprep.mubr.bf16.mxu0 0
      %269 = vmatmul.mubr.bf16.gmra.mxu0 %v216
      %v270 = vpop.f32.mrf.mxu0
      %v271 = vadd.f32 %v189, %v270
      %v272 = vpop.f32.mrf.mxu0
      %v273 = vpop.f32.mrf.mxu0
      %v274 = vadd.f32 %v189, %v273
      %v275 = vpop.f32.mrf.mxu0
      %276 = vmatprep.mubr.bf16.mxu0 0
      %277 = vmatmul.mubr.bf16.gmra.mxu0 %v219
      %v278 = vpop.f32.mrf.mxu0
      %v279 = vadd.f32 %v189, %v278
      %v280 = vpop.f32.mrf.mxu0
      %v281 = vpop.f32.mrf.mxu0
      %v282 = vadd.f32 %v189, %v281
      %v283 = vpop.f32.mrf.mxu0
      %284 = vmatprep.mubr.bf16.mxu0 0
      %285 = vmatmul.mubr.bf16.gmra.mxu0 %v222
      %v286 = vpop.f32.mrf.mxu0
      %v287 = vadd.f32 %v189, %v286
      %v288 = vpop.f32.mrf.mxu0
      %v289 = vpop.f32.mrf.mxu0
      %v290 = vadd.f32 %v189, %v289
      %v291 = vpop.f32.mrf.mxu0
      %292 = vdwg.mxu0
      %293 = vst [vmem:[%s172] sm:$0xff] %v263
      %294 = vst [vmem:[%s172 + $0x8] sm:$0xff] %v266
      %295 = vst [vmem:[%s172 + $0x10] sm:$0xff] %v271
      %296 = vst [vmem:[%s172 + $0x18] sm:$0xff] %v274
      %297 = vst [vmem:[%s172 + $0x20] sm:$0xff] %v279
      %298 = vst [vmem:[%s172 + $0x28] sm:$0xff] %v282
      %299 = vst [vmem:[%s172 + $0x30] sm:$0xff] %v287
      %300 = vst [vmem:[%s172 + $0x38] sm:$0xff] %v290
      %s301 = smul.u32 8, %s14
      %p302 = scmp.lt.s32.totalorder %s301, 15
      %s303 = scalar_select %p302, %s301, 15
      %s304 = smul.addr %s303, 8
      %s305 = scalar_lea.vmem %s3, %s304
      // Predicated region
      $region33: #{conv_block_forward.4} parent=31 // pred_check
        %p306 = pneg %p100
      $region34: #{conv_block_forward.4} parent=31 // pred_check_branch
        %308 = sbr.rel (%p306) target = $region36
      $region35: #{conv_block_forward.4} parent=31 // pred_region
        %s309 = smul.u32 8, %s14
      $region36: #{conv_block_forward.4} parent=31 // pred_fallthru
        _
    $region32: #{conv_block_forward.4} parent=5 // pred_fallthru
      _
    %p310 = scmp.le.s32.totalorder 2, %s9
    // Predicated region
    $region37: #{conv_block_forward.4} parent=5 // pred_check
      %p311 = pneg %p310
    $region38: #{conv_block_forward.4} parent=5 // pred_check_branch
      %313 = sbr.rel (%p311) target = $region40
    $region39: #{conv_block_forward.4} parent=5 // pred_region
      %s314 = ssub.s32 %s9, 2
      // Predicated region
      $region41: #{conv_block_forward.4} parent=39 // pred_check
        %p315 = pneg %p106
      $region42: #{conv_block_forward.4} parent=39 // pred_check_branch
        %317 = sbr.rel (%p315) target = $region44
      $region43: #{conv_block_forward.4} parent=39 // pred_region
        %s318 = smul.u32 8, %s15
        %p319 = scmp.lt.s32.totalorder %s318, 15
        %s320 = scalar_select %p319, %s318, 15
        %s321 = smul.addr %s320, 8
        %s322 = scalar_lea.vmem %s3, %s321
      $region44: #{conv_block_forward.4} parent=39 // pred_fallthru
        _
    $region40: #{conv_block_forward.4} parent=5 // pred_fallthru
      _
  $region6: #{conv_block_forward.4} parent=0 // loop_footer
    %s13 = sadd.s32 1, %s9
  $region7: #{conv_block_forward.4} parent=0 // loop_footer_branch
    %8 = sbr.rel target = $region3
  $region8: #{conv_block_forward.4} parent=0 // loop_exit
    _

// kernel: conv_block_forward.7
$region0: #{conv_block_forward.7}
  #allocation0 [shape = 'u32[]', space=smem, size = 0x4, offset = 0x4, fixed_abs, tag = 'smem constant byte address 0x4 - core index']
  #allocation1 [shape = 'u32[144,128]{1,0:T(1,128)}', space=vmem, size = 0x12000, scoped, tag = 'internal scratch']
  %s0 = inlined_call_operand.vmem [shape: f32[16,2,8,256], index: 0, kind: input, shape index: {}]
  %s1 = inlined_call_operand.vmem [shape: f32[16,8,128], index: 1, kind: input, shape index: {}]
  %s2 = inlined_call_operand.vmem [shape: f32[16,8,128], index: 2, kind: output, shape index: {}]
  %s3 = sld [smem:[#allocation0]]
  $region41: #{conv_block_forward.7} parent=0
    _
  %s5 = ssub.s32 1, %s3
  %s6 = scalar_select 0, %s5, %s3
  loop: start=0, step=1, limit=4
  $region2: #{conv_block_forward.7} parent=0 // loop_pre_header
    _
  $region3: #{conv_block_forward.7} parent=0 // loop_header
    %s8 = sphi 0, %s12
    %p9 = scmp.ge.s32.totalorder %s8, 4
    %s18 = sphi 0, %s20
    %s21 = sphi 0, %s18
    %s22 = sphi 0, %s21
    %s38 = sphi 0, %s22
    %s44 = sphi 0, %s46
    %s47 = sphi 0, %s44
    %s48 = sphi 0, %s47
    %s64 = sphi 0, %s48
    %s70 = sphi 0, %s72
    %s73 = sphi 0, %s70
    %s74 = sphi 0, %s73
    %s90 = sphi 0, %s74
  $region4: #{conv_block_forward.7} parent=0 // loop_header_branch
    %11 = sbr.rel (%p9) target = $region8
  $region5: #{conv_block_forward.7} parent=0 // loop_body
    %s13 = ssub.s32 %s8, 1
    %s14 = ssub.s32 %s8, 2
    %s15 = sadd.s32 %s8, 1
    %s16 = ssub.s32 %s8, %s15
    %p17 = scmp.eq.s32.totalorder %s16, 0
    %s19 = sadd.s32 %s18, 1
    %s20 = scalar_select %p17, %s18, %s19
    %p23 = pneg %p17
    %p24 = scmp.eq.s32.totalorder %s8, 1
    %p25 = por %p23, %p24
    %p26 = scmp.ne.s32.totalorder %s18, %s21
    %p27 = scmp.eq.s32.totalorder %s8, 0
    %p28 = por %p26, %p27
    %p29 = scmp.ne.s32.totalorder %s18, %s21
    %p30 = scmp.eq.s32.totalorder %s13, 1
    %p31 = por %p29, %p30
    %p32 = scmp.ne.s32.totalorder %s21, %s22
    %p33 = scmp.eq.s32.totalorder %s13, 0
    %p34 = por %p32, %p33
    %p35 = scmp.ne.s32.totalorder %s21, %s22
    %p36 = scmp.eq.s32.totalorder %s14, 1
    %p37 = por %p35, %p36
    %p39 = scmp.ne.s32.totalorder %s22, %s38
    %p40 = scmp.eq.s32.totalorder %s14, 0
    %p41 = por %p39, %p40
    %s42 = ssub.s32 %s8, %s15
    %p43 = scmp.eq.s32.totalorder %s42, 0
    %s45 = sadd.s32 %s44, 1
    %s46 = scalar_select %p43, %s44, %s45
    %p49 = pneg %p43
    %p50 = scmp.eq.s32.totalorder %s8, 1
    %p51 = por %p49, %p50
    %p52 = scmp.ne.s32.totalorder %s44, %s47
    %p53 = scmp.eq.s32.totalorder %s8, 0
    %p54 = por %p52, %p53
    %p55 = scmp.ne.s32.totalorder %s44, %s47
    %p56 = scmp.eq.s32.totalorder %s13, 1
    %p57 = por %p55, %p56
    %p58 = scmp.ne.s32.totalorder %s47, %s48
    %p59 = scmp.eq.s32.totalorder %s13, 0
    %p60 = por %p58, %p59
    %p61 = scmp.ne.s32.totalorder %s47, %s48
    %p62 = scmp.eq.s32.totalorder %s14, 1
    %p63 = por %p61, %p62
    %p65 = scmp.ne.s32.totalorder %s48, %s64
    %p66 = scmp.eq.s32.totalorder %s14, 0
    %p67 = por %p65, %p66
    %s68 = ssub.s32 %s8, %s15
    %p69 = scmp.eq.s32.totalorder %s68, 0
    %s71 = sadd.s32 %s70, 1
    %s72 = scalar_select %p69, %s70, %s71
    %p75 = pneg %p69
    %p76 = scmp.eq.s32.totalorder %s8, 1
    %p77 = por %p75, %p76
    %p78 = scmp.ne.s32.totalorder %s70, %s73
    %p79 = scmp.eq.s32.totalorder %s8, 0
    %p80 = por %p78, %p79
    %p81 = scmp.ne.s32.totalorder %s70, %s73
    %p82 = scmp.eq.s32.totalorder %s13, 1
    %p83 = por %p81, %p82
    %p84 = scmp.ne.s32.totalorder %s73, %s74
    %p85 = scmp.eq.s32.totalorder %s13, 0
    %p86 = por %p84, %p85
    %p87 = scmp.ne.s32.totalorder %s73, %s74
    %p88 = scmp.eq.s32.totalorder %s14, 1
    %p89 = por %p87, %p88
    %p91 = scmp.ne.s32.totalorder %s74, %s90
    %p92 = scmp.eq.s32.totalorder %s14, 0
    %p93 = por %p91, %p92
    %p94 = scmp.le.s32.totalorder 1, %s8
    %p95 = scmp.lt.s32.totalorder %s8, 3
    %p96 = pnand %p94, %p95
    %p97 = pneg %p96
    // Predicated region
    $region9: #{conv_block_forward.7} parent=5 // pred_check
      _
    $region10: #{conv_block_forward.7} parent=5 // pred_check_branch
      %99 = sbr.rel (%p96) target = $region12
    $region11: #{conv_block_forward.7} parent=5 // pred_region
      %s100 = ssub.s32 %s8, 1
    $region12: #{conv_block_forward.7} parent=5 // pred_fallthru
      _
    %p101 = scmp.lt.s32.totalorder %s8, 2
    // Predicated region
    $region13: #{conv_block_forward.7} parent=5 // pred_check
      %p102 = pneg %p101
    $region14: #{conv_block_forward.7} parent=5 // pred_check_branch
      %104 = sbr.rel (%p102) target = $region16
    $region15: #{conv_block_forward.7} parent=5 // pred_region
      // Predicated region
      $region17: #{conv_block_forward.7} parent=15 // pred_check
        %p105 = pneg %p28
      $region18: #{conv_block_forward.7} parent=15 // pred_check_branch
        %107 = sbr.rel (%p105) target = $region20
      $region19: #{conv_block_forward.7} parent=15 // pred_region
        %s108 = smul.u32 8, %s8
        %p109 = scmp.lt.s32.totalorder %s108, 15
        %s110 = scalar_select %p109, %s108, 15
        %s111 = smul.addr %s110, 4
        %s112 = smul.addr %s111, 8
        %s113 = scalar_lea.vmem %s0, %s112
        %s114 = smul.u32 8, %s8
      $region20: #{conv_block_forward.7} parent=15 // pred_fallthru
        _
      // Predicated region
      $region21: #{conv_block_forward.7} parent=15 // pred_check
        %p115 = pneg %p54
      $region22: #{conv_block_forward.7} parent=15 // pred_check_branch
        %117 = sbr.rel (%p115) target = $region24
      $region23: #{conv_block_forward.7} parent=15 // pred_region
        %s118 = smul.u32 8, %s8
        %p119 = scmp.lt.s32.totalorder %s118, 15
        %s120 = scalar_select %p119, %s118, 15
        %s121 = smul.addr %s120, 8
        %s122 = scalar_lea.vmem %s1, %s121
        %s123 = smul.u32 8, %s8
      $region24: #{conv_block_forward.7} parent=15 // pred_fallthru
        _
    $region16: #{conv_block_forward.7} parent=5 // pred_fallthru
      _
    %p124 = scmp.le.s32.totalorder 1, %s8
    %p125 = scmp.lt.s32.totalorder %s8, 3
    %p126 = pnand %p124, %p125
    %p127 = pneg %p126
    // Predicated region
    $region25: #{conv_block_forward.7} parent=5 // pred_check
      _
    $region26: #{conv_block_forward.7} parent=5 // pred_check_branch
      %129 = sbr.rel (%p126) target = $region28
    $region27: #{conv_block_forward.7} parent=5 // pred_region
      %s130 = ssub.s32 %s8, 1
      %s131 = smul.u32 8, %s13
      %p132 = scmp.lt.s32.totalorder %s131, 15
      %s133 = scalar_select %p132, %s131, 15
      %s134 = smul.addr %s133, 4
      %s135 = smul.addr %s134, 8
      %s136 = scalar_lea.vmem %s0, %s135
      %p137 = pneg %p34
      %p138 = pneg %p31
      %s139 = smul.u32 8, %s13
      %p140 = scmp.lt.s32.totalorder %s139, 15
      %s141 = scalar_select %p140, %s139, 15
      %s142 = smul.addr %s141, 8
      %s143 = scalar_lea.vmem %s1, %s142
      %p144 = pneg %p60
      %p145 = pneg %p57
      %p146 = pneg %p86
      %p147 = pneg %p83
      %s148 = smul.u32 8, %s13
      %p149 = scmp.lt.s32.totalorder %s148, 15
      %s150 = scalar_select %p149, %s148, 15
      %s151 = smul.addr %s150, 8
      %s152 = scalar_lea.vmem %s2, %s151
      %s153 = smul.u32 8, %s13
      %p154 = scmp.lt.s32.totalorder %s153, 15
      %s155 = scalar_select %p154, %s153, 15
      %s156 = smul.addr %s155, 4
      %s157 = smul.addr %s156, 8
      %s158 = scalar_lea.vmem %s0, %s157
      %s159 = smul.u32 8, %s13
      %s160 = smul.u32 8, %s13
      %p161 = scmp.lt.s32.totalorder %s160, 15
      %s162 = scalar_select %p161, %s160, 15
      %s163 = smul.addr %s162, 8
      %s164 = scalar_lea.vmem %s1, %s163
      %s165 = smul.u32 8, %s13
      %s166 = smul.u32 8, %s13
      %p167 = scmp.lt.s32.totalorder %s166, 15
      %s168 = scalar_select %p167, %s166, 15
      %s169 = smul.addr %s168, 8
      %s170 = scalar_lea.vmem %s2, %s169
      %s171 = smul.u32 8, %s13
      %v172 = vld [vmem:[%s158] sm:$0xff]
      %v173 = vld [vmem:[%s158 + $0x8] sm:$0xff]
      %v174 = vld [vmem:[%s158 + $0x20] sm:$0xff]
      %v175 = vld [vmem:[%s158 + $0x28] sm:$0xff]
      %v176 = vld [vmem:[%s158 + $0x40] sm:$0xff]
      %v177 = vld [vmem:[%s158 + $0x48] sm:$0xff]
      %v178 = vld [vmem:[%s158 + $0x60] sm:$0xff]
      %v179 = vld [vmem:[%s158 + $0x68] sm:$0xff]
      %v180 = vld [vmem:[%s158 + $0x80] sm:$0xff]
      %v181 = vld [vmem:[%s158 + $0x88] sm:$0xff]
      %v182 = vld [vmem:[%s158 + $0xa0] sm:$0xff]
      %v183 = vld [vmem:[%s158 + $0xa8] sm:$0xff]
      %v184 = vld [vmem:[%s158 + $0xc0] sm:$0xff]
      %v185 = vld [vmem:[%s158 + $0xc8] sm:$0xff]
      %v186 = vld [vmem:[%s158 + $0xe0] sm:$0xff]
      %v187 = vld [vmem:[%s158 + $0xe8] sm:$0xff]
      %s188 = scalar_lea.vmem %s158, 16
      %v189 = vld [vmem:[%s188] sm:$0xff]
      %v190 = vld [vmem:[%s188 + $0x8] sm:$0xff]
      %v191 = vld [vmem:[%s188 + $0x20] sm:$0xff]
      %v192 = vld [vmem:[%s188 + $0x28] sm:$0xff]
      %v193 = vld [vmem:[%s188 + $0x40] sm:$0xff]
      %v194 = vld [vmem:[%s188 + $0x48] sm:$0xff]
      %v195 = vld [vmem:[%s188 + $0x60] sm:$0xff]
      %v196 = vld [vmem:[%s188 + $0x68] sm:$0xff]
      %v197 = vld [vmem:[%s188 + $0x80] sm:$0xff]
      %v198 = vld [vmem:[%s188 + $0x88] sm:$0xff]
      %v199 = vld [vmem:[%s188 + $0xa0] sm:$0xff]
      %v200 = vld [vmem:[%s188 + $0xa8] sm:$0xff]
      %v201 = vld [vmem:[%s188 + $0xc0] sm:$0xff]
      %v202 = vld [vmem:[%s188 + $0xc8] sm:$0xff]
      %v203 = vld [vmem:[%s188 + $0xe0] sm:$0xff]
      %v204 = vld [vmem:[%s188 + $0xe8] sm:$0xff]
      %v205 = vadd.f32 %v172, %v173
      %v206 = vadd.f32 %v174, %v175
      %v207 = vadd.f32 %v176, %v177
      %v208 = vadd.f32 %v178, %v179
      %v209 = vadd.f32 %v180, %v181
      %v210 = vadd.f32 %v182, %v183
      %v211 = vadd.f32 %v184, %v185
      %v212 = vadd.f32 %v186, %v187
      %v213 = vadd.f32 %v205, %v189
      %v214 = vadd.f32 %v206, %v191
      %v215 = vadd.f32 %v207, %v193
      %v216 = vadd.f32 %v208, %v195
      %v217 = vadd.f32 %v209, %v197
      %v218 = vadd.f32 %v210, %v199
      %v219 = vadd.f32 %v211, %v201
      %v220 = vadd.f32 %v212, %v203
      %v221 = vadd.f32 %v213, %v190
      %v222 = vadd.f32 %v214, %v192
      %v223 = vadd.f32 %v215, %v194
      %v224 = vadd.f32 %v216, %v196
      %v225 = vadd.f32 %v217, %v198
      %v226 = vadd.f32 %v218, %v200
      %v227 = vadd.f32 %v219, %v202
      %v228 = vadd.f32 %v220, %v204
      %v229 = vmul.f32 %v221, 0.25
      %v230 = vmul.f32 %v222, 0.25
      %v231 = vmul.f32 %v223, 0.25
      %v232 = vmul.f32 %v224, 0.25
      %v233 = vmul.f32 %v225, 0.25
      %v234 = vmul.f32 %v226, 0.25
      %v235 = vmul.f32 %v227, 0.25
      %v236 = vmul.f32 %v228, 0.25
      %v237 = vld [vmem:[%s164] sm:$0xff]
      %v238 = vld [vmem:[%s164 + $0x8] sm:$0xff]
      %v239 = vld [vmem:[%s164 + $0x10] sm:$0xff]
      %v240 = vld [vmem:[%s164 + $0x18] sm:$0xff]
      %v241 = vld [vmem:[%s164 + $0x20] sm:$0xff]
      %v242 = vld [vmem:[%s164 + $0x28] sm:$0xff]
      %v243 = vld [vmem:[%s164 + $0x30] sm:$0xff]
      %v244 = vld [vmem:[%s164 + $0x38] sm:$0xff]
      %v245 = vadd.f32 %v229, %v237
      %v246 = vadd.f32 %v230, %v238
      %v247 = vadd.f32 %v231, %v239
      %v248 = vadd.f32 %v232, %v240
      %v249 = vadd.f32 %v233, %v241
      %v250 = vadd.f32 %v234, %v242
      %v251 = vadd.f32 %v235, %v243
      %v252 = vadd.f32 %v236, %v244
      %253 = vst [vmem:[%s170] sm:$0xff] %v245
      %254 = vst [vmem:[%s170 + $0x8] sm:$0xff] %v246
      %255 = vst [vmem:[%s170 + $0x10] sm:$0xff] %v247
      %256 = vst [vmem:[%s170 + $0x18] sm:$0xff] %v248
      %257 = vst [vmem:[%s170 + $0x20] sm:$0xff] %v249
      %258 = vst [vmem:[%s170 + $0x28] sm:$0xff] %v250
      %259 = vst [vmem:[%s170 + $0x30] sm:$0xff] %v251
      %260 = vst [vmem:[%s170 + $0x38] sm:$0xff] %v252
      %s261 = smul.u32 8, %s13
      %p262 = scmp.lt.s32.totalorder %s261, 15
      %s263 = scalar_select %p262, %s261, 15
      %s264 = smul.addr %s263, 8
      %s265 = scalar_lea.vmem %s2, %s264
      // Predicated region
      $region29: #{conv_block_forward.7} parent=27 // pred_check
        %p266 = pneg %p83
      $region30: #{conv_block_forward.7} parent=27 // pred_check_branch
        %268 = sbr.rel (%p266) target = $region32
      $region31: #{conv_block_forward.7} parent=27 // pred_region
        %s269 = smul.u32 8, %s13
      $region32: #{conv_block_forward.7} parent=27 // pred_fallthru
        _
    $region28: #{conv_block_forward.7} parent=5 // pred_fallthru
      _
    %p270 = scmp.le.s32.totalorder 2, %s8
    // Predicated region
    $region33: #{conv_block_forward.7} parent=5 // pred_check
      %p271 = pneg %p270
    $region34: #{conv_block_forward.7} parent=5 // pred_check_branch
      %273 = sbr.rel (%p271) target = $region36
    $region35: #{conv_block_forward.7} parent=5 // pred_region
      %s274 = ssub.s32 %s8, 2
      // Predicated region
      $region37: #{conv_block_forward.7} parent=35 // pred_check
        %p275 = pneg %p89
      $region38: #{conv_block_forward.7} parent=35 // pred_check_branch
        %277 = sbr.rel (%p275) target = $region40
      $region39: #{conv_block_forward.7} parent=35 // pred_region
        %s278 = smul.u32 8, %s14
        %p279 = scmp.lt.s32.totalorder %s278, 15
        %s280 = scalar_select %p279, %s278, 15
        %s281 = smul.addr %s280, 8
        %s282 = scalar_lea.vmem %s2, %s281
      $region40: #{conv_block_forward.7} parent=35 // pred_fallthru
        _
    $region36: #{conv_block_forward.7} parent=5 // pred_fallthru
      _
  $region6: #{conv_block_forward.7} parent=0 // loop_footer
    %s12 = sadd.s32 1, %s8
  $region7: #{conv_block_forward.7} parent=0 // loop_footer_branch
    %7 = sbr.rel target = $region3
  $region8: #{conv_block_forward.7} parent=0 // loop_exit
    _

// kernel: conv_block_forward.5
$region0: #{conv_block_forward.5}
  #allocation0 [shape = 'u32[]', space=smem, size = 0x4, offset = 0x4, fixed_abs, tag = 'smem constant byte address 0x4 - core index']
  #allocation1 [shape = 'u32[144,128]{1,0:T(1,128)}', space=vmem, size = 0x12000, scoped, tag = 'internal scratch']
  %s0 = inlined_call_operand.vmem [shape: bf16[2,984,4], index: 0, kind: input, shape index: {}]
  %s1 = inlined_call_operand.vmem [shape: bf16[9,4,128], index: 1, kind: input, shape index: {}]
  %s2 = inlined_call_operand.vmem [shape: f32[1,128], index: 2, kind: input, shape index: {}]
  %s3 = inlined_call_operand.vmem [shape: f32[328,1], index: 3, kind: input, shape index: {}]
  %s4 = inlined_call_operand.vmem [shape: bf16[2,984,128], index: 4, kind: output, shape index: {}]
  %s5 = sld [smem:[#allocation0]]
  $region49: #{conv_block_forward.5} parent=0
    _
  %s7 = ssub.s32 1, %s5
  %s8 = scalar_select 0, %s7, %s5
  loop: start=0, step=1, limit=4
  $region2: #{conv_block_forward.5} parent=0 // loop_pre_header
    _
  $region3: #{conv_block_forward.5} parent=0 // loop_header
    %s10 = sphi 0, %s14
    %p11 = scmp.ge.s32.totalorder %s10, 4
    %s17 = sphi 0, %s29
    %s18 = sphi 0, %s25
    %s19 = sphi 0, %s17
    %s20 = sphi 0, %s18
    %s21 = sphi 0, %s19
    %s22 = sphi 0, %s20
    %s32 = sphi 0, %s34
    %s35 = sphi 0, %s32
    %s36 = sphi 0, %s35
    %s52 = sphi 0, %s36
    %s56 = sphi 0, %s56
    %s58 = sphi 0, %s56
    %s59 = sphi 0, %s58
    %s73 = sphi 0, %s59
    %s77 = sphi 0, %s77
    %s79 = sphi 0, %s77
    %s80 = sphi 0, %s79
    %s94 = sphi 0, %s80
    %s100 = sphi 0, %s102
    %s103 = sphi 0, %s100
    %s104 = sphi 0, %s103
    %s120 = sphi 0, %s104
    %s130 = sphi 0, %s132
    %s133 = sphi 0, %s130
    %s134 = sphi 0, %s133
    %s150 = sphi 0, %s134
  $region4: #{conv_block_forward.5} parent=0 // loop_header_branch
    %13 = sbr.rel (%p11) target = $region8
  $region5: #{conv_block_forward.5} parent=0 // loop_body
    %s15 = ssub.s32 %s10, 1
    %s16 = ssub.s32 %s10, 2
    %s23 = sadd.s32 1, %s18
    %p24 = scmp.ge.s32.totalorder %s23, 1
    %s25 = scalar_select %p24, 0, %s23
    %s26 = sadd.s32 1, %s17
    %s27 = scalar_select %p24, %s26, %s17
    %p28 = scmp.ge.s32.totalorder %s27, 2
    %s29 = scalar_select %p28, 0, %s27
    %s30 = ssub.s32 %s17, %s29
    %p31 = scmp.eq.s32.totalorder %s30, 0
    %s33 = sadd.s32 %s32, 1
    %s34 = scalar_select %p31, %s32, %s33
    %p37 = pneg %p31
    %p38 = scmp.eq.s32.totalorder %s10, 1
    %p39 = por %p37, %p38
    %p40 = scmp.ne.s32.totalorder %s32, %s35
    %p41 = scmp.eq.s32.totalorder %s10, 0
    %p42 = por %p40, %p41
    %p43 = scmp.ne.s32.totalorder %s32, %s35
    %p44 = scmp.eq.s32.totalorder %s15, 1
    %p45 = por %p43, %p44
    %p46 = scmp.ne.s32.totalorder %s35, %s36
    %p47 = scmp.eq.s32.totalorder %s15, 0
    %p48 = por %p46, %p47
    %p49 = scmp.ne.s32.totalorder %s35, %s36
    %p50 = scmp.eq.s32.totalorder %s16, 1
    %p51 = por %p49, %p50
    %p53 = scmp.ne.s32.totalorder %s36, %s52
    %p54 = scmp.eq.s32.totalorder %s16, 0
    %p55 = por %p53, %p54
    %s57 = sadd.s32 %s56, 1
    %p60 = scmp.eq.s32.totalorder %s10, 1
    %p61 = scmp.ne.s32.totalorder %s56, %s58
    %p62 = scmp.eq.s32.totalorder %s10, 0
    %p63 = por %p61, %p62
    %p64 = scmp.ne.s32.totalorder %s56, %s58
    %p65 = scmp.eq.s32.totalorder %s15, 1
    %p66 = por %p64, %p65
    %p67 = scmp.ne.s32.totalorder %s58, %s59
    %p68 = scmp.eq.s32.totalorder %s15, 0
    %p69 = por %p67, %p68
    %p70 = scmp.ne.s32.totalorder %s58, %s59
    %p71 = scmp.eq.s32.totalorder %s16, 1
    %p72 = por %p70, %p71
    %p74 = scmp.ne.s32.totalorder %s59, %s73
    %p75 = scmp.eq.s32.totalorder %s16, 0
    %p76 = por %p74, %p75
    %s78 = sadd.s32 %s77, 1
    %p81 = scmp.eq.s32.totalorder %s10, 1
    %p82 = scmp.ne.s32.totalorder %s77, %s79
    %p83 = scmp.eq.s32.totalorder %s10, 0
    %p84 = por %p82, %p83
    %p85 = scmp.ne.s32.totalorder %s77, %s79
    %p86 = scmp.eq.s32.totalorder %s15, 1
    %p87 = por %p85, %p86
    %p88 = scmp.ne.s32.totalorder %s79, %s80
    %p89 = scmp.eq.s32.totalorder %s15, 0
    %p90 = por %p88, %p89
    %p91 = scmp.ne.s32.totalorder %s79, %s80
    %p92 = scmp.eq.s32.totalorder %s16, 1
    %p93 = por %p91, %p92
    %p95 = scmp.ne.s32.totalorder %s80, %s94
    %p96 = scmp.eq.s32.totalorder %s16, 0
    %p97 = por %p95, %p96
    %s98 = ssub.s32 %s18, %s25
    %p99 = scmp.eq.s32.totalorder %s98, 0
    %s101 = sadd.s32 %s100, 1
    %s102 = scalar_select %p99, %s100, %s101
    %p105 = pneg %p99
    %p106 = scmp.eq.s32.totalorder %s10, 1
    %p107 = por %p105, %p106
    %p108 = scmp.ne.s32.totalorder %s100, %s103
    %p109 = scmp.eq.s32.totalorder %s10, 0
    %p110 = por %p108, %p109
    %p111 = scmp.ne.s32.totalorder %s100, %s103
    %p112 = scmp.eq.s32.totalorder %s15, 1
    %p113 = por %p111, %p112
    %p114 = scmp.ne.s32.totalorder %s103, %s104
    %p115 = scmp.eq.s32.totalorder %s15, 0
    %p116 = por %p114, %p115
    %p117 = scmp.ne.s32.totalorder %s103, %s104
    %p118 = scmp.eq.s32.totalorder %s16, 1
    %p119 = por %p117, %p118
    %p121 = scmp.ne.s32.totalorder %s104, %s120
    %p122 = scmp.eq.s32.totalorder %s16, 0
    %p123 = por %p121, %p122
    %s124 = sadd.s32 %s18, 1
    %s125 = sadd.s32 %s25, 1
    %s126 = ssub.s32 %s17, %s29
    %s127 = ssub.s32 %s124, %s125
    %s128 = sor.u32 %s126, %s127
    %p129 = scmp.eq.s32.totalorder %s128, 0
    %s131 = sadd.s32 %s130, 1
    %s132 = scalar_select %p129, %s130, %s131
    %p135 = pneg %p129
    %p136 = scmp.eq.s32.totalorder %s10, 1
    %p137 = por %p135, %p136
    %p138 = scmp.ne.s32.totalorder %s130, %s133
    %p139 = scmp.eq.s32.totalorder %s10, 0
    %p140 = por %p138, %p139
    %p141 = scmp.ne.s32.totalorder %s130, %s133
    %p142 = scmp.eq.s32.totalorder %s15, 1
    %p143 = por %p141, %p142
    %p144 = scmp.ne.s32.totalorder %s133, %s134
    %p145 = scmp.eq.s32.totalorder %s15, 0
    %p146 = por %p144, %p145
    %p147 = scmp.ne.s32.totalorder %s133, %s134
    %p148 = scmp.eq.s32.totalorder %s16, 1
    %p149 = por %p147, %p148
    %p151 = scmp.ne.s32.totalorder %s134, %s150
    %p152 = scmp.eq.s32.totalorder %s16, 0
    %p153 = por %p151, %p152
    %p154 = scmp.le.s32.totalorder 1, %s10
    %p155 = scmp.lt.s32.totalorder %s10, 3
    %p156 = pnand %p154, %p155
    %p157 = pneg %p156
    // Predicated region
    $region9: #{conv_block_forward.5} parent=5 // pred_check
      _
    $region10: #{conv_block_forward.5} parent=5 // pred_check_branch
      %159 = sbr.rel (%p156) target = $region12
    $region11: #{conv_block_forward.5} parent=5 // pred_region
      %s160 = ssub.s32 %s10, 1
      // Predicated region
      $region13: #{conv_block_forward.5} parent=11 // pred_check
        %p161 = pneg %p69
      $region14: #{conv_block_forward.5} parent=11 // pred_check_branch
        %163 = sbr.rel (%p161) target = $region16
      $region15: #{conv_block_forward.5} parent=11 // pred_region
        _
      $region16: #{conv_block_forward.5} parent=11 // pred_fallthru
        _
      // Predicated region
      $region17: #{conv_block_forward.5} parent=11 // pred_check
        %p164 = pneg %p90
      $region18: #{conv_block_forward.5} parent=11 // pred_check_branch
        %166 = sbr.rel (%p164) target = $region20
      $region19: #{conv_block_forward.5} parent=11 // pred_region
        _
      $region20: #{conv_block_forward.5} parent=11 // pred_fallthru
        _
      // Predicated region
      $region21: #{conv_block_forward.5} parent=11 // pred_check
        %p167 = pneg %p116
      $region22: #{conv_block_forward.5} parent=11 // pred_check_branch
        %169 = sbr.rel (%p167) target = $region24
      $region23: #{conv_block_forward.5} parent=11 // pred_region
        %s170 = smul.u32 41, %s20
        %p171 = scmp.lt.s32.totalorder %s170, 40
        %s172 = scalar_select %p171, %s170, 40
        %s173 = smul.addr %s172, 8
        %s174 = scalar_lea.vmem %s3, %s173
        %s175 = smul.u32 41, %s20
      $region24: #{conv_block_forward.5} parent=11 // pred_fallthru
        _
    $region12: #{conv_block_forward.5} parent=5 // pred_fallthru
      _
    %p176 = scmp.lt.s32.totalorder %s10, 2
    // Predicated region
    $region25: #{conv_block_forward.5} parent=5 // pred_check
      %p177 = pneg %p176
    $region26: #{conv_block_forward.5} parent=5 // pred_check_branch
      %179 = sbr.rel (%p177) target = $region28
    $region27: #{conv_block_forward.5} parent=5 // pred_region
      // Predicated region
      $region29: #{conv_block_forward.5} parent=27 // pred_check
        %p180 = pneg %p42
      $region30: #{conv_block_forward.5} parent=27 // pred_check_branch
        %182 = sbr.rel (%p180) target = $region32
      $region31: #{conv_block_forward.5} parent=27 // pred_region
        %p183 = scmp.lt.s32.totalorder %s17, 1
        %s184 = scalar_select %p183, %s17, 1
        %s185 = smul.addr %s184, 123
        %s186 = smul.addr %s185, 4
        %s187 = scalar_lea.vmem %s0, %s186
      $region32: #{conv_block_forward.5} parent=27 // pred_fallthru
        _
    $region28: #{conv_block_forward.5} parent=5 // pred_fallthru
      _
    %p188 = scmp.le.s32.totalorder 1, %s10
    %p189 = scmp.lt.s32.totalorder %s10, 3
    %p190 = pnand %p188, %p189
    %p191 = pneg %p190
    // Predicated region
    $region33: #{conv_block_forward.5} parent=5 // pred_check
      _
    $region34: #{conv_block_forward.5} parent=5 // pred_check_branch
      %193 = sbr.rel (%p190) target = $region36
    $region35: #{conv_block_forward.5} parent=5 // pred_region
      %s194 = ssub.s32 %s10, 1
      %p195 = scmp.lt.s32.totalorder %s19, 1
      %s196 = scalar_select %p195, %s19, 1
      %s197 = smul.addr %s196, 123
      %s198 = smul.addr %s197, 4
      %s199 = scalar_lea.vmem %s0, %s198
      %p200 = pneg %p48
      %p201 = pneg %p45
      %p202 = pneg %p69
      %p203 = pneg %p66
      %p204 = pneg %p90
      %p205 = pneg %p87
      %s206 = smul.u32 41, %s20
      %p207 = scmp.lt.s32.totalorder %s206, 40
      %s208 = scalar_select %p207, %s206, 40
      %s209 = smul.addr %s208, 8
      %s210 = scalar_lea.vmem %s3, %s209
      %p211 = pneg %p116
      %p212 = pneg %p113
      %p213 = pneg %p146
      %p214 = pneg %p143
      %s215 = sadd.s32 %s20, 1
      %s216 = smul.u32 41, %s215
      %p217 = scmp.lt.s32.totalorder %s19, 1
      %s218 = scalar_select %p217, %s19, 1
      %p219 = scmp.lt.s32.totalorder %s216, 122
      %s220 = scalar_select %p219, %s216, 122
      %s221 = smul.addr %s218, 123
      %s222 = sadd.s32 %s220, %s221
      %s223 = smul.addr %s222, 4
      %s224 = scalar_lea.vmem %s4, %s223
      %p225 = scmp.lt.s32.totalorder %s19, 1
      %s226 = scalar_select %p225, %s19, 1
      %s227 = smul.addr %s226, 123
      %s228 = smul.addr %s227, 4
      %s229 = scalar_lea.vmem %s0, %s228
      %s230 = smul.u32 41, %s20
      %p231 = scmp.lt.s32.totalorder %s230, 40
      %s232 = scalar_select %p231, %s230, 40
      %s233 = smul.addr %s232, 8
      %s234 = scalar_lea.vmem %s3, %s233
      %s235 = smul.u32 41, %s20
      %s236 = sadd.s32 %s20, 1
      %s237 = smul.u32 41, %s236
      %p238 = scmp.lt.s32.totalorder %s19, 1
      %s239 = scalar_select %p238, %s19, 1
      %p240 = scmp.lt.s32.totalorder %s237, 122
      %s241 = scalar_select %p240, %s237, 122
      %s242 = smul.addr %s239, 123
      %s243 = sadd.s32 %s241, %s242
      %s244 = smul.addr %s243, 4
      %s245 = scalar_lea.vmem %s4, %s244
      %s246 = sadd.s32 %s20, 1
      %s247 = smul.u32 41, %s246
      %s249 = smul.u32 %s20, 328
      %s250 = sadd.s32 %s249, 304
      %s251 = sshra.s32 %s250, 3
      %s252 = sand.u32 %s250, 7
      %s253 = smul.addr %s251, 4
      %s254 = scalar_lea.vmem %s229, %s253
      %v255 = vld [vmem:[%s254] sm:$0xf]
      %v256 = vld [vmem:[%s254 + $0x4] sm:$0xf]
      %v257 = vld [vmem:[%s254 + $0x8] sm:$0xf]
      %v258 = vld [vmem:[%s254 + $0xc] sm:$0xf]
      %v259 = vld [vmem:[%s254 + $0x10] sm:$0xf]
      %v260 = vld [vmem:[%s254 + $0x14] sm:$0xf]
      %v261 = vld [vmem:[%s254 + $0x18] sm:$0xf]
      %v262 = vld [vmem:[%s254 + $0x1c] sm:$0xf]
      %v263 = vld [vmem:[%s254 + $0x20] sm:$0xf]
      %v264 = vld [vmem:[%s254 + $0x24] sm:$0xf]
      %v265 = vld [vmem:[%s254 + $0x28] sm:$0xf]
      %v266 = vld [vmem:[%s254 + $0x2c] sm:$0xf]
      %v267 = vld [vmem:[%s254 + $0x30] sm:$0xf]
      %v268 = vld [vmem:[%s254 + $0x34] sm:$0xf]
      %v269 = vld [vmem:[%s254 + $0x38] sm:$0xf]
      %v270 = vld [vmem:[%s254 + $0x3c] sm:$0xf]
      %v271 = vld [vmem:[%s254 + $0x40] sm:$0xf]
      %v272 = vld [vmem:[%s254 + $0x44] sm:$0xf]
      %v273 = vld [vmem:[%s254 + $0x48] sm:$0xf]
      %v274 = vld [vmem:[%s254 + $0x4c] sm:$0xf]
      %v275 = vld [vmem:[%s254 + $0x50] sm:$0xf]
      %v276 = vld [vmem:[%s254 + $0x54] sm:$0xf]
      %v277 = vld [vmem:[%s254 + $0x58] sm:$0xf]
      %v278 = vld [vmem:[%s254 + $0x5c] sm:$0xf]
      %v279 = vld [vmem:[%s254 + $0x60] sm:$0xf]
      %v280 = vld [vmem:[%s254 + $0x64] sm:$0xf]
      %v281 = vld [vmem:[%s254 + $0x68] sm:$0xf]
      %v282 = vld [vmem:[%s254 + $0x6c] sm:$0xf]
      %v283 = vld [vmem:[%s254 + $0x70] sm:$0xf]
      %v284 = vld [vmem:[%s254 + $0x74] sm:$0xf]
      %v285 = vld [vmem:[%s254 + $0x78] sm:$0xf]
      %v286 = vld [vmem:[%s254 + $0x7c] sm:$0xf]
      %v287 = vld [vmem:[%s254 + $0x80] sm:$0xf]
      %v288 = vld [vmem:[%s254 + $0x84] sm:$0xf]
      %v289 = vld [vmem:[%s254 + $0x88] sm:$0xf]
      %v290 = vld [vmem:[%s254 + $0x8c] sm:$0xf]
      %v291 = vld [vmem:[%s254 + $0x90] sm:$0xf]
      %v292 = vld [vmem:[%s254 + $0x94] sm:$0xf]
      %v293 = vld [vmem:[%s254 + $0x98] sm:$0xf]
      %v294 = vld [vmem:[%s254 + $0x9c] sm:$0xf]
      %v295 = vld [vmem:[%s254 + $0xa0] sm:$0xf]
      %v296 = vld [vmem:[%s254 + $0xa4] sm:$0xf]
      %v297 = vld [vmem:[%s254 + $0xa8] sm:$0xf]
      %v298 = vld [vmem:[%s254 + $0xac] sm:$0xf]
      %v299 = vld [vmem:[%s254 + $0xb0] sm:$0xf]
      %v300 = vld [vmem:[%s254 + $0xb4] sm:$0xf]
      %v301 = vld [vmem:[%s254 + $0xb8] sm:$0xf]
      %v302 = vunpack.c.l.bf16 %v255
      %v303 = vunpack.c.l.bf16 %v256
      %v304 = vunpack.c.l.bf16 %v257
      %v305 = vunpack.c.l.bf16 %v258
      %v306 = vunpack.c.l.bf16 %v259
      %v307 = vunpack.c.l.bf16 %v260
      %v308 = vunpack.c.l.bf16 %v261
      %v309 = vunpack.c.l.bf16 %v262
      %v310 = vunpack.c.l.bf16 %v263
      %v311 = vunpack.c.l.bf16 %v264
      %v312 = vunpack.c.l.bf16 %v265
      %v313 = vunpack.c.l.bf16 %v266
      %v314 = vunpack.c.l.bf16 %v267
      %v315 = vunpack.c.l.bf16 %v268
      %v316 = vunpack.c.l.bf16 %v269
      %v317 = vunpack.c.l.bf16 %v270
      %v318 = vunpack.c.l.bf16 %v271
      %v319 = vunpack.c.l.bf16 %v272
      %v320 = vunpack.c.l.bf16 %v273
      %v321 = vunpack.c.l.bf16 %v274
      %v322 = vunpack.c.l.bf16 %v275
      %v323 = vunpack.c.l.bf16 %v276
      %v324 = vunpack.c.l.bf16 %v277
      %v325 = vunpack.c.l.bf16 %v278
      %v326 = vunpack.c.l.bf16 %v279
      %v327 = vunpack.c.l.bf16 %v280
      %v328 = vunpack.c.l.bf16 %v281
      %v329 = vunpack.c.l.bf16 %v282
      %v330 = vunpack.c.l.bf16 %v283
      %v331 = vunpack.c.l.bf16 %v284
      %v332 = vunpack.c.l.bf16 %v285
      %v333 = vunpack.c.l.bf16 %v286
      %v334 = vunpack.c.l.bf16 %v287
      %v335 = vunpack.c.l.bf16 %v288
      %v336 = vunpack.c.l.bf16 %v289
      %v337 = vunpack.c.l.bf16 %v290
      %v338 = vunpack.c.l.bf16 %v291
      %v339 = vunpack.c.l.bf16 %v292
      %v340 = vunpack.c.l.bf16 %v293
      %v341 = vunpack.c.l.bf16 %v294
      %v342 = vunpack.c.l.bf16 %v295
      %v343 = vunpack.c.l.bf16 %v296
      %v344 = vunpack.c.l.bf16 %v297
      %v345 = vunpack.c.l.bf16 %v298
      %v346 = vunpack.c.l.bf16 %v299
      %v347 = vunpack.c.l.bf16 %v300
      %v348 = vunpack.c.l.bf16 %v301
      %v349 = vpack.c.bf16 %v303, %v302
      %v350 = vpack.c.bf16 %v305, %v304
      %v351 = vpack.c.bf16 %v307, %v306
      %v352 = vpack.c.bf16 %v309, %v308
      %v353 = vpack.c.bf16 %v311, %v310
      %v354 = vpack.c.bf16 %v313, %v312
      %v355 = vpack.c.bf16 %v315, %v314
      %v356 = vpack.c.bf16 %v317, %v316
      %v357 = vpack.c.bf16 %v319, %v318
      %v358 = vpack.c.bf16 %v321, %v320
      %v359 = vpack.c.bf16 %v323, %v322
      %v360 = vpack.c.bf16 %v325, %v324
      %v361 = vpack.c.bf16 %v327, %v326
      %v362 = vpack.c.bf16 %v329, %v328
      %v363 = vpack.c.bf16 %v331, %v330
      %v364 = vpack.c.bf16 %v333, %v332
      %v365 = vpack.c.bf16 %v335, %v334
      %v366 = vpack.c.bf16 %v337, %v336
      %v367 = vpack.c.bf16 %v339, %v338
      %v368 = vpack.c.bf16 %v341, %v340
      %v369 = vpack.c.bf16 %v343, %v342
      %v370 = vld [vmem:[%s1] sm:$0x3]
      %s371 = scalar_lea.vmem %s1, 2
      %v372 = vld [vmem:[%s371] sm:$0x3]
      %vm394 = vcmask 1044480
      %v395 = vrot.slane %v349, 3
      %v396 = vrot.slane %v350, 3
      %v397 = vsel %vm394, %v395, %v396
      %v398 = vrot.slane %v351, 3
      %v399 = vsel %vm394, %v396, %v398
      %v400 = vrot.slane %v352, 3
      %v401 = vsel %vm394, %v398, %v400
      %v402 = vrot.slane %v353, 3
      %v403 = vsel %vm394, %v400, %v402
      %v404 = vrot.slane %v354, 3
      %v405 = vsel %vm394, %v402, %v404
      %v406 = vrot.slane %v355, 3
      %v407 = vsel %vm394, %v404, %v406
      %v408 = vrot.slane %v356, 3
      %v409 = vsel %vm394, %v406, %v408
      %v410 = vrot.slane %v357, 3
      %v411 = vsel %vm394, %v408, %v410
      %v412 = vrot.slane %v358, 3
      %v413 = vsel %vm394, %v410, %v412
      %v414 = vrot.slane %v359, 3
      %v415 = vsel %vm394, %v412, %v414
      %v416 = vrot.slane %v360, 3
      %v417 = vsel %vm394, %v414, %v416
      %v418 = vrot.slane %v361, 3
      %v419 = vsel %vm394, %v416, %v418
      %v420 = vrot.slane %v362, 3
      %v421 = vsel %vm394, %v418, %v420
      %v422 = vrot.slane %v363, 3
      %v423 = vsel %vm394, %v420, %v422
      %v424 = vrot.slane %v364, 3
      %v425 = vsel %vm394, %v422, %v424
      %v426 = vrot.slane %v365, 3
      %v427 = vsel %vm394, %v424, %v426
      %v428 = vrot.slane %v366, 3
      %v429 = vsel %vm394, %v426, %v428
      %v430 = vrot.slane %v367, 3
      %v431 = vsel %vm394, %v428, %v430
      %v432 = vrot.slane %v368, 3
      %v433 = vsel %vm394, %v430, %v432
      %v434 = vrot.slane %v369, 3
      %v435 = vsel %vm394, %v432, %v434
      %vm436 = vcmask 31744
      %v438 = vsel %vm436, %v397, 0
      %v441 = vsel %vm436, %v399, 0
      %v444 = vsel %vm436, %v401, 0
      %v447 = vsel %vm436, %v403, 0
      %v450 = vsel %vm436, %v405, 0
      %v453 = vsel %vm436, %v407, 0
      %v456 = vsel %vm436, %v409, 0
      %v459 = vsel %vm436, %v411, 0
      %v462 = vsel %vm436, %v413, 0
      %v465 = vsel %vm436, %v415, 0
      %v468 = vsel %vm436, %v417, 0
      %v471 = vsel %vm436, %v419, 0
      %v474 = vsel %vm436, %v421, 0
      %v477 = vsel %vm436, %v423, 0
      %v480 = vsel %vm436, %v425, 0
      %v483 = vsel %vm436, %v427, 0
      %v486 = vsel %vm436, %v429, 0
      %v489 = vsel %vm436, %v431, 0
      %v492 = vsel %vm436, %v433, 0
      %v495 = vsel %vm436, %v435, 0
      %v498 = vsel %vm436, %v434, 0
      %vm500 = vcmask 1041408
      %v502 = vsel %vm500, %v372, 0
      %504 = vmatprep.subr.bf16.mxu0 0
      %505 = vmatpush1.bf16.msra.mxu0 0
      %506 = vmatprep.subr.bf16.mxu0 0
      %507 = vmatpush1.bf16.msra.mxu0 0
      %508 = vmatprep.subr.bf16.mxu0 0
      %509 = vmatpush1.bf16.msra.mxu0 0
      %510 = vmatprep.subr.bf16.mxu0 0
      %511 = vmatpush1.bf16.msra.mxu0 0
      %512 = vmatprep.subr.bf16.mxu0 0
      %513 = vmatpush1.bf16.msra.mxu0 0
      %514 = vmatprep.subr.bf16.mxu0 0
      %515 = vmatpush1.bf16.msra.mxu0 0
      %516 = vmatprep.subr.bf16.mxu0 0
      %517 = vmatpush1.bf16.msra.mxu0 0
      %518 = vmatprep.subr.bf16.mxu0 0
      %519 = vmatpush1.bf16.msra.mxu0 %v502
      %520 = vmatprep.subr.bf16.mxu0 0
      %521 = vmatpush2.bf16.msra.mxu0 0
      %522 = vmatprep.subr.bf16.mxu0 0
      %523 = vmatpush2.bf16.msra.mxu0 0
      %524 = vmatprep.subr.bf16.mxu0 0
      %525 = vmatpush2.bf16.msra.mxu0 0
      %526 = vmatprep.subr.bf16.mxu0 0
      %527 = vmatpush2.bf16.msra.mxu0 0
      %528 = vmatprep.subr.bf16.mxu0 0
      %529 = vmatpush2.bf16.msra.mxu0 0
      %530 = vmatprep.subr.bf16.mxu0 0
      %531 = vmatpush2.bf16.msra.mxu0 0
      %532 = vmatprep.subr.bf16.mxu0 0
      %533 = vmatpush2.bf16.msra.mxu0 0
      %534 = vmatprep.subr.bf16.mxu0 0
      %535 = vmatpush2.bf16.msra.mxu0 0
      %536 = vmatprep.mubr.bf16.mxu0 0
      %537 = vmatmul.mubr.bf16.gmra.mxu0 %v438
      %v538 = vpop.f32.mrf.mxu0
      %v539 = vadd.f32 0.0, %v538
      %v540 = vpop.f32.mrf.mxu0
      %v541 = vpop.f32.mrf.mxu0
      %v542 = vadd.f32 0.0, %v541
      %v543 = vpop.f32.mrf.mxu0
      %544 = vmatprep.mubr.bf16.mxu0 0
      %545 = vmatmul.mubr.bf16.gmra.mxu0 %v441
      %v546 = vpop.f32.mrf.mxu0
      %v547 = vadd.f32 0.0, %v546
      %v548 = vpop.f32.mrf.mxu0
      %v549 = vpop.f32.mrf.mxu0
      %v550 = vadd.f32 0.0, %v549
      %v551 = vpop.f32.mrf.mxu0
      %552 = vmatprep.mubr.bf16.mxu0 0
      %553 = vmatmul.mubr.bf16.gmra.mxu0 %v444
      %v554 = vpop.f32.mrf.mxu0
      %v555 = vadd.f32 0.0, %v554
      %v556 = vpop.f32.mrf.mxu0
      %v557 = vpop.f32.mrf.mxu0
      %v558 = vadd.f32 0.0, %v557
      %v559 = vpop.f32.mrf.mxu0
      %560 = vmatprep.mubr.bf16.mxu0 0
      %561 = vmatmul.mubr.bf16.gmra.mxu0 %v447
      %v562 = vpop.f32.mrf.mxu0
      %v563 = vadd.f32 0.0, %v562
      %v564 = vpop.f32.mrf.mxu0
      %v565 = vpop.f32.mrf.mxu0
      %v566 = vadd.f32 0.0, %v565
      %v567 = vpop.f32.mrf.mxu0
      %568 = vmatprep.mubr.bf16.mxu0 0
      %569 = vmatmul.mubr.bf16.gmra.mxu0 %v450
      %v570 = vpop.f32.mrf.mxu0
      %v571 = vadd.f32 0.0, %v570
      %v572 = vpop.f32.mrf.mxu0
      %v573 = vpop.f32.mrf.mxu0
      %v574 = vadd.f32 0.0, %v573
      %v575 = vpop.f32.mrf.mxu0
      %576 = vmatprep.mubr.bf16.mxu0 0
      %577 = vmatmul.mubr.bf16.gmra.mxu0 %v453
      %v578 = vpop.f32.mrf.mxu0
      %v579 = vadd.f32 0.0, %v578
      %v580 = vpop.f32.mrf.mxu0
      %v581 = vpop.f32.mrf.mxu0
      %v582 = vadd.f32 0.0, %v581
      %v583 = vpop.f32.mrf.mxu0
      %584 = vmatprep.mubr.bf16.mxu0 0
      %585 = vmatmul.mubr.bf16.gmra.mxu0 %v456
      %v586 = vpop.f32.mrf.mxu0
      %v587 = vadd.f32 0.0, %v586
      %v588 = vpop.f32.mrf.mxu0
      %v589 = vpop.f32.mrf.mxu0
      %v590 = vadd.f32 0.0, %v589
      %v591 = vpop.f32.mrf.mxu0
      %592 = vmatprep.mubr.bf16.mxu0 0
      %593 = vmatmul.mubr.bf16.gmra.mxu0 %v459
      %v594 = vpop.f32.mrf.mxu0
      %v595 = vadd.f32 0.0, %v594
      %v596 = vpop.f32.mrf.mxu0
      %v597 = vpop.f32.mrf.mxu0
      %v598 = vadd.f32 0.0, %v597
      %v599 = vpop.f32.mrf.mxu0
      %600 = vmatprep.mubr.bf16.mxu0 0
      %601 = vmatmul.mubr.bf16.gmra.mxu0 %v462
      %v602 = vpop.f32.mrf.mxu0
      %v603 = vadd.f32 0.0, %v602
      %v604 = vpop.f32.mrf.mxu0
      %v605 = vpop.f32.mrf.mxu0
      %v606 = vadd.f32 0.0, %v605
      %v607 = vpop.f32.mrf.mxu0
      %608 = vmatprep.mubr.bf16.mxu0 0
      %609 = vmatmul.mubr.bf16.gmra.mxu0 %v465
      %v610 = vpop.f32.mrf.mxu0
      %v611 = vadd.f32 0.0, %v610
      %v612 = vpop.f32.mrf.mxu0
      %v613 = vpop.f32.mrf.mxu0
      %v614 = vadd.f32 0.0, %v613
      %v615 = vpop.f32.mrf.mxu0
      %616 = vmatprep.mubr.bf16.mxu0 0
      %617 = vmatmul.mubr.bf16.gmra.mxu0 %v468
      %v618 = vpop.f32.mrf.mxu0
      %v619 = vadd.f32 0.0, %v618
      %v620 = vpop.f32.mrf.mxu0
      %v621 = vpop.f32.mrf.mxu0
      %v622 = vadd.f32 0.0, %v621
      %v623 = vpop.f32.mrf.mxu0
      %624 = vmatprep.mubr.bf16.mxu0 0
      %625 = vmatmul.mubr.bf16.gmra.mxu0 %v471
      %v626 = vpop.f32.mrf.mxu0
      %v627 = vadd.f32 0.0, %v626
      %v628 = vpop.f32.mrf.mxu0
      %v629 = vpop.f32.mrf.mxu0
      %v630 = vadd.f32 0.0, %v629
      %v631 = vpop.f32.mrf.mxu0
      %632 = vmatprep.mubr.bf16.mxu0 0
      %633 = vmatmul.mubr.bf16.gmra.mxu0 %v474
      %v634 = vpop.f32.mrf.mxu0
      %v635 = vadd.f32 0.0, %v634
      %v636 = vpop.f32.mrf.mxu0
      %v637 = vpop.f32.mrf.mxu0
      %v638 = vadd.f32 0.0, %v637
      %v639 = vpop.f32.mrf.mxu0
      %640 = vmatprep.mubr.bf16.mxu0 0
      %641 = vmatmul.mubr.bf16.gmra.mxu0 %v477
      %v642 = vpop.f32.mrf.mxu0
      %v643 = vadd.f32 0.0, %v642
      %v644 = vpop.f32.mrf.mxu0
      %v645 = vpop.f32.mrf.mxu0
      %v646 = vadd.f32 0.0, %v645
      %v647 = vpop.f32.mrf.mxu0
      %648 = vmatprep.mubr.bf16.mxu0 0
      %649 = vmatmul.mubr.bf16.gmra.mxu0 %v480
      %v650 = vpop.f32.mrf.mxu0
      %v651 = vadd.f32 0.0, %v650
      %v652 = vpop.f32.mrf.mxu0
      %v653 = vpop.f32.mrf.mxu0
      %v654 = vadd.f32 0.0, %v653
      %v655 = vpop.f32.mrf.mxu0
      %656 = vmatprep.mubr.bf16.mxu0 0
      %657 = vmatmul.mubr.bf16.gmra.mxu0 %v483
      %v658 = vpop.f32.mrf.mxu0
      %v659 = vadd.f32 0.0, %v658
      %v660 = vpop.f32.mrf.mxu0
      %v661 = vpop.f32.mrf.mxu0
      %v662 = vadd.f32 0.0, %v661
      %v663 = vpop.f32.mrf.mxu0
      %664 = vmatprep.mubr.bf16.mxu0 0
      %665 = vmatmul.mubr.bf16.gmra.mxu0 %v486
      %v666 = vpop.f32.mrf.mxu0
      %v667 = vadd.f32 0.0, %v666
      %v668 = vpop.f32.mrf.mxu0
      %v669 = vpop.f32.mrf.mxu0
      %v670 = vadd.f32 0.0, %v669
      %v671 = vpop.f32.mrf.mxu0
      %672 = vmatprep.mubr.bf16.mxu0 0
      %673 = vmatmul.mubr.bf16.gmra.mxu0 %v489
      %v674 = vpop.f32.mrf.mxu0
      %v675 = vadd.f32 0.0, %v674
      %v676 = vpop.f32.mrf.mxu0
      %v677 = vpop.f32.mrf.mxu0
      %v678 = vadd.f32 0.0, %v677
      %v679 = vpop.f32.mrf.mxu0
      %680 = vmatprep.mubr.bf16.mxu0 0
      %681 = vmatmul.mubr.bf16.gmra.mxu0 %v492
      %v682 = vpop.f32.mrf.mxu0
      %v683 = vadd.f32 0.0, %v682
      %v684 = vpop.f32.mrf.mxu0
      %v685 = vpop.f32.mrf.mxu0
      %v686 = vadd.f32 0.0, %v685
      %v687 = vpop.f32.mrf.mxu0
      %688 = vmatprep.mubr.bf16.mxu0 0
      %689 = vmatmul.mubr.bf16.gmra.mxu0 %v495
      %v690 = vpop.f32.mrf.mxu0
      %v691 = vadd.f32 0.0, %v690
      %v692 = vpop.f32.mrf.mxu0
      %v693 = vpop.f32.mrf.mxu0
      %v694 = vadd.f32 0.0, %v693
      %v695 = vpop.f32.mrf.mxu0
      %696 = vmatprep.mubr.bf16.mxu0 0
      %697 = vmatmul.mubr.bf16.gmra.mxu0 %v498
      %v698 = vpop.f32.mrf.mxu0
      %v699 = vadd.f32 0.0, %v698
      %v700 = vpop.f32.mrf.mxu0
      %v701 = vpop.f32.mrf.mxu0
      %v702 = vpop.f32.mrf.mxu0
      %703 = vdwg.mxu0
      %vm704 = vsmask.f32 5376
      %v706 = vshrl.u32 %v349, 16
      %v708 = vrot.slane %v706, 2
      %v709 = vshll.u32 %v349, 16
      %v711 = vrot.slane %v709, 3
      %v712 = vor.u32 %v708, %v711
      %v714 = vshrl.u32 %v350, 16
      %v716 = vrot.slane %v714, 2
      %v717 = vshll.u32 %v350, 16
      %v719 = vrot.slane %v717, 3
      %v720 = vor.u32 %v716, %v719
      %v721 = vsel %vm704, %v712, %v720
      %v723 = vshrl.u32 %v351, 16
      %v725 = vrot.slane %v723, 2
      %v726 = vshll.u32 %v351, 16
      %v728 = vrot.slane %v726, 3
      %v729 = vor.u32 %v725, %v728
      %v730 = vsel %vm704, %v720, %v729
      %v732 = vshrl.u32 %v352, 16
      %v734 = vrot.slane %v732, 2
      %v735 = vshll.u32 %v352, 16
      %v737 = vrot.slane %v735, 3
      %v738 = vor.u32 %v734, %v737
      %v739 = vsel %vm704, %v729, %v738
      %v741 = vshrl.u32 %v353, 16
      %v743 = vrot.slane %v741, 2
      %v744 = vshll.u32 %v353, 16
      %v746 = vrot.slane %v744, 3
      %v747 = vor.u32 %v743, %v746
      %v748 = vsel %vm704, %v738, %v747
      %v750 = vshrl.u32 %v354, 16
      %v752 = vrot.slane %v750, 2
      %v753 = vshll.u32 %v354, 16
      %v755 = vrot.slane %v753, 3
      %v756 = vor.u32 %v752, %v755
      %v757 = vsel %vm704, %v747, %v756
      %v759 = vshrl.u32 %v355, 16
      %v761 = vrot.slane %v759, 2
      %v762 = vshll.u32 %v355, 16
      %v764 = vrot.slane %v762, 3
      %v765 = vor.u32 %v761, %v764
      %v766 = vsel %vm704, %v756, %v765
      %v768 = vshrl.u32 %v356, 16
      %v770 = vrot.slane %v768, 2
      %v771 = vshll.u32 %v356, 16
      %v773 = vrot.slane %v771, 3
      %v774 = vor.u32 %v770, %v773
      %v775 = vsel %vm704, %v765, %v774
      %v777 = vshrl.u32 %v357, 16
      %v779 = vrot.slane %v777, 2
      %v780 = vshll.u32 %v357, 16
      %v782 = vrot.slane %v780, 3
      %v783 = vor.u32 %v779, %v782
      %v784 = vsel %vm704, %v774, %v783
      %v786 = vshrl.u32 %v358, 16
      %v788 = vrot.slane %v786, 2
      %v789 = vshll.u32 %v358, 16
      %v791 = vrot.slane %v789, 3
      %v792 = vor.u32 %v788, %v791
      %v793 = vsel %vm704, %v783, %v792
      %v795 = vshrl.u32 %v359, 16
      %v797 = vrot.slane %v795, 2
      %v798 = vshll.u32 %v359, 16
      %v800 = vrot.slane %v798, 3
      %v801 = vor.u32 %v797, %v800
      %v802 = vsel %vm704, %v792, %v801
      %v804 = vshrl.u32 %v360, 16
      %v806 = vrot.slane %v804, 2
      %v807 = vshll.u32 %v360, 16
      %v809 = vrot.slane %v807, 3
      %v810 = vor.u32 %v806, %v809
      %v811 = vsel %vm704, %v801, %v810
      %v813 = vshrl.u32 %v361, 16
      %v815 = vrot.slane %v813, 2
      %v816 = vshll.u32 %v361, 16
      %v818 = vrot.slane %v816, 3
      %v819 = vor.u32 %v815, %v818
      %v820 = vsel %vm704, %v810, %v819
      %v822 = vshrl.u32 %v362, 16
      %v824 = vrot.slane %v822, 2
      %v825 = vshll.u32 %v362, 16
      %v827 = vrot.slane %v825, 3
      %v828 = vor.u32 %v824, %v827
      %v829 = vsel %vm704, %v819, %v828
      %v831 = vshrl.u32 %v363, 16
      %v833 = vrot.slane %v831, 2
      %v834 = vshll.u32 %v363, 16
      %v836 = vrot.slane %v834, 3
      %v837 = vor.u32 %v833, %v836
      %v838 = vsel %vm704, %v828, %v837
      %v840 = vshrl.u32 %v364, 16
      %v842 = vrot.slane %v840, 2
      %v843 = vshll.u32 %v364, 16
      %v845 = vrot.slane %v843, 3
      %v846 = vor.u32 %v842, %v845
      %v847 = vsel %vm704, %v837, %v846
      %v849 = vshrl.u32 %v365, 16
      %v851 = vrot.slane %v849, 2
      %v852 = vshll.u32 %v365, 16
      %v854 = vrot.slane %v852, 3
      %v855 = vor.u32 %v851, %v854
      %v856 = vsel %vm704, %v846, %v855
      %v858 = vshrl.u32 %v366, 16
      %v860 = vrot.slane %v858, 2
      %v861 = vshll.u32 %v366, 16
      %v863 = vrot.slane %v861, 3
      %v864 = vor.u32 %v860, %v863
      %v865 = vsel %vm704, %v855, %v864
      %v867 = vshrl.u32 %v367, 16
      %v869 = vrot.slane %v867, 2
      %v870 = vshll.u32 %v367, 16
      %v872 = vrot.slane %v870, 3
      %v873 = vor.u32 %v869, %v872
      %v874 = vsel %vm704, %v864, %v873
      %v876 = vshrl.u32 %v368, 16
      %v878 = vrot.slane %v876, 2
      %v879 = vshll.u32 %v368, 16
      %v881 = vrot.slane %v879, 3
      %v882 = vor.u32 %v878, %v881
      %v883 = vsel %vm704, %v873, %v882
      %v885 = vshrl.u32 %v369, 16
      %v887 = vrot.slane %v885, 2
      %v888 = vshll.u32 %v369, 16
      %v890 = vrot.slane %v888, 3
      %v891 = vor.u32 %v887, %v890
      %v892 = vsel %vm704, %v882, %v891
      %v894 = vsel %vm436, %v721, 0
      %v897 = vsel %vm436, %v730, 0
      %v900 = vsel %vm436, %v739, 0
      %v903 = vsel %vm436, %v748, 0
      %v906 = vsel %vm436, %v757, 0
      %v909 = vsel %vm436, %v766, 0
      %v912 = vsel %vm436, %v775, 0
      %v915 = vsel %vm436, %v784, 0
      %v918 = vsel %vm436, %v793, 0
      %v921 = vsel %vm436, %v802, 0
      %v924 = vsel %vm436, %v811, 0
      %v927 = vsel %vm436, %v820, 0
      %v930 = vsel %vm436, %v829, 0
      %v933 = vsel %vm436, %v838, 0
      %v936 = vsel %vm436, %v847, 0
      %v939 = vsel %vm436, %v856, 0
      %v942 = vsel %vm436, %v865, 0
      %v945 = vsel %vm436, %v874, 0
      %v948 = vsel %vm436, %v883, 0
      %v951 = vsel %vm436, %v892, 0
      %v954 = vsel %vm436, %v891, 0
      %v957 = vsel %vm500, %v370, 0
      %959 = vmatprep.subr.bf16.mxu0 0
      %960 = vmatpush1.bf16.msra.mxu0 0
      %961 = vmatprep.subr.bf16.mxu0 0
      %962 = vmatpush1.bf16.msra.mxu0 0
      %963 = vmatprep.subr.bf16.mxu0 0
      %964 = vmatpush1.bf16.msra.mxu0 0
      %965 = vmatprep.subr.bf16.mxu0 0
      %966 = vmatpush1.bf16.msra.mxu0 0
      %967 = vmatprep.subr.bf16.mxu0 0
      %968 = vmatpush1.bf16.msra.mxu0 0
      %969 = vmatprep.subr.bf16.mxu0 0
      %970 = vmatpush1.bf16.msra.mxu0 0
      %971 = vmatprep.subr.bf16.mxu0 0
      %972 = vmatpush1.bf16.msra.mxu0 0
      %973 = vmatprep.subr.bf16.mxu0 0
      %974 = vmatpush1.bf16.msra.mxu0 %v957
      %975 = vmatprep.subr.bf16.mxu0 0
      %976 = vmatpush2.bf16.msra.mxu0 0
      %977 = vmatprep.subr.bf16.mxu0 0
      %978 = vmatpush2.bf16.msra.mxu0 0
      %979 = vmatprep.subr.bf16.mxu0 0
      %980 = vmatpush2.bf16.msra.mxu0 0
      %981 = vmatprep.subr.bf16.mxu0 0
      %982 = vmatpush2.bf16.msra.mxu0 0
      %983 = vmatprep.subr.bf16.mxu0 0
      %984 = vmatpush2.bf16.msra.mxu0 0
      %985 = vmatprep.subr.bf16.mxu0 0
      %986 = vmatpush2.bf16.msra.mxu0 0
      %987 = vmatprep.subr.bf16.mxu0 0
      %988 = vmatpush2.bf16.msra.mxu0 0
      %989 = vmatprep.subr.bf16.mxu0 0
      %990 = vmatpush2.bf16.msra.mxu0 0
      %991 = vmatprep.mubr.bf16.mxu0 0
      %992 = vmatmul.mubr.bf16.gmra.mxu0 %v894
      %v993 = vpop.f32.mrf.mxu0
      %v994 = vadd.f32 %v539, %v993
      %v995 = vpop.f32.mrf.mxu0
      %v996 = vpop.f32.mrf.mxu0
      %v997 = vadd.f32 %v542, %v996
      %v998 = vpop.f32.mrf.mxu0
      %999 = vmatprep.mubr.bf16.mxu0 0
      %1000 = vmatmul.mubr.bf16.gmra.mxu0 %v897
      %v1001 = vpop.f32.mrf.mxu0
      %v1002 = vadd.f32 %v547, %v1001
      %v1003 = vpop.f32.mrf.mxu0
      %v1004 = vpop.f32.mrf.mxu0
      %v1005 = vadd.f32 %v550, %v1004
      %v1006 = vpop.f32.mrf.mxu0
      %1007 = vmatprep.mubr.bf16.mxu0 0
      %1008 = vmatmul.mubr.bf16.gmra.mxu0 %v900
      %v1009 = vpop.f32.mrf.mxu0
      %v1010 = vadd.f32 %v555, %v1009
      %v1011 = vpop.f32.mrf.mxu0
      %v1012 = vpop.f32.mrf.mxu0
      %v1013 = vadd.f32 %v558, %v1012
      %v1014 = vpop.f32.mrf.mxu0
      %1015 = vmatprep.mubr.bf16.mxu0 0
      %1016 = vmatmul.mubr.bf16.gmra.mxu0 %v903
      %v1017 = vpop.f32.mrf.mxu0
      %v1018 = vadd.f32 %v563, %v1017
      %v1019 = vpop.f32.mrf.mxu0
      %v1020 = vpop.f32.mrf.mxu0
      %v1021 = vadd.f32 %v566, %v1020
      %v1022 = vpop.f32.mrf.mxu0
      %1023 = vmatprep.mubr.bf16.mxu0 0
      %1024 = vmatmul.mubr.bf16.gmra.mxu0 %v906
      %v1025 = vpop.f32.mrf.mxu0
      %v1026 = vadd.f32 %v571, %v1025
      %v1027 = vpop.f32.mrf.mxu0
      %v1028 = vpop.f32.mrf.mxu0
      %v1029 = vadd.f32 %v574, %v1028
      %v1030 = vpop.f32.mrf.mxu0
      %1031 = vmatprep.mubr.bf16.mxu0 0
      %1032 = vmatmul.mubr.bf16.gmra.mxu0 %v909
      %v1033 = vpop.f32.mrf.mxu0
      %v1034 = vadd.f32 %v579, %v1033
      %v1035 = vpop.f32.mrf.mxu0
      %v1036 = vpop.f32.mrf.mxu0
      %v1037 = vadd.f32 %v582, %v1036
      %v1038 = vpop.f32.mrf.mxu0
      %1039 = vmatprep.mubr.bf16.mxu0 0
      %1040 = vmatmul.mubr.bf16.gmra.mxu0 %v912
      %v1041 = vpop.f32.mrf.mxu0
      %v1042 = vadd.f32 %v587, %v1041
      %v1043 = vpop.f32.mrf.mxu0
      %v1044 = vpop.f32.mrf.mxu0
      %v1045 = vadd.f32 %v590, %v1044
      %v1046 = vpop.f32.mrf.mxu0
      %1047 = vmatprep.mubr.bf16.mxu0 0
      %1048 = vmatmul.mubr.bf16.gmra.mxu0 %v915
      %v1049 = vpop.f32.mrf.mxu0
      %v1050 = vadd.f32 %v595, %v1049
      %v1051 = vpop.f32.mrf.mxu0
      %v1052 = vpop.f32.mrf.mxu0
      %v1053 = vadd.f32 %v598, %v1052
      %v1054 = vpop.f32.mrf.mxu0
      %1055 = vmatprep.mubr.bf16.mxu0 0
      %1056 = vmatmul.mubr.bf16.gmra.mxu0 %v918
      %v1057 = vpop.f32.mrf.mxu0
      %v1058 = vadd.f32 %v603, %v1057
      %v1059 = vpop.f32.mrf.mxu0
      %v1060 = vpop.f32.mrf.mxu0
      %v1061 = vadd.f32 %v606, %v1060
      %v1062 = vpop.f32.mrf.mxu0
      %1063 = vmatprep.mubr.bf16.mxu0 0
      %1064 = vmatmul.mubr.bf16.gmra.mxu0 %v921
      %v1065 = vpop.f32.mrf.mxu0
      %v1066 = vadd.f32 %v611, %v1065
      %v1067 = vpop.f32.mrf.mxu0
      %v1068 = vpop.f32.mrf.mxu0
      %v1069 = vadd.f32 %v614, %v1068
      %v1070 = vpop.f32.mrf.mxu0
      %1071 = vmatprep.mubr.bf16.mxu0 0
      %1072 = vmatmul.mubr.bf16.gmra.mxu0 %v924
      %v1073 = vpop.f32.mrf.mxu0
      %v1074 = vadd.f32 %v619, %v1073
      %v1075 = vpop.f32.mrf.mxu0
      %v1076 = vpop.f32.mrf.mxu0
      %v1077 = vadd.f32 %v622, %v1076
      %v1078 = vpop.f32.mrf.mxu0
      %1079 = vmatprep.mubr.bf16.mxu0 0
      %1080 = vmatmul.mubr.bf16.gmra.mxu0 %v927
      %v1081 = vpop.f32.mrf.mxu0
      %v1082 = vadd.f32 %v627, %v1081
      %v1083 = vpop.f32.mrf.mxu0
      %v1084 = vpop.f32.mrf.mxu0
      %v1085 = vadd.f32 %v630, %v1084
      %v1086 = vpop.f32.mrf.mxu0
      %1087 = vmatprep.mubr.bf16.mxu0 0
      %1088 = vmatmul.mubr.bf16.gmra.mxu0 %v930
      %v1089 = vpop.f32.mrf.mxu0
      %v1090 = vadd.f32 %v635, %v1089
      %v1091 = vpop.f32.mrf.mxu0
      %v1092 = vpop.f32.mrf.mxu0
      %v1093 = vadd.f32 %v638, %v1092
      %v1094 = vpop.f32.mrf.mxu0
      %1095 = vmatprep.mubr.bf16.mxu0 0
      %1096 = vmatmul.mubr.bf16.gmra.mxu0 %v933
      %v1097 = vpop.f32.mrf.mxu0
      %v1098 = vadd.f32 %v643, %v1097
      %v1099 = vpop.f32.mrf.mxu0
      %v1100 = vpop.f32.mrf.mxu0
      %v1101 = vadd.f32 %v646, %v1100
      %v1102 = vpop.f32.mrf.mxu0
      %1103 = vmatprep.mubr.bf16.mxu0 0
      %1104 = vmatmul.mubr.bf16.gmra.mxu0 %v936
      %v1105 = vpop.f32.mrf.mxu0
      %v1106 = vadd.f32 %v651, %v1105
      %v1107 = vpop.f32.mrf.mxu0
      %v1108 = vpop.f32.mrf.mxu0
      %v1109 = vadd.f32 %v654, %v1108
      %v1110 = vpop.f32.mrf.mxu0
      %1111 = vmatprep.mubr.bf16.mxu0 0
      %1112 = vmatmul.mubr.bf16.gmra.mxu0 %v939
      %v1113 = vpop.f32.mrf.mxu0
      %v1114 = vadd.f32 %v659, %v1113
      %v1115 = vpop.f32.mrf.mxu0
      %v1116 = vpop.f32.mrf.mxu0
      %v1117 = vadd.f32 %v662, %v1116
      %v1118 = vpop.f32.mrf.mxu0
      %1119 = vmatprep.mubr.bf16.mxu0 0
      %1120 = vmatmul.mubr.bf16.gmra.mxu0 %v942
      %v1121 = vpop.f32.mrf.mxu0
      %v1122 = vadd.f32 %v667, %v1121
      %v1123 = vpop.f32.mrf.mxu0
      %v1124 = vpop.f32.mrf.mxu0
      %v1125 = vadd.f32 %v670, %v1124
      %v1126 = vpop.f32.mrf.mxu0
      %1127 = vmatprep.mubr.bf16.mxu0 0
      %1128 = vmatmul.mubr.bf16.gmra.mxu0 %v945
      %v1129 = vpop.f32.mrf.mxu0
      %v1130 = vadd.f32 %v675, %v1129
      %v1131 = vpop.f32.mrf.mxu0
      %v1132 = vpop.f32.mrf.mxu0
      %v1133 = vadd.f32 %v678, %v1132
      %v1134 = vpop.f32.mrf.mxu0
      %1135 = vmatprep.mubr.bf16.mxu0 0
      %1136 = vmatmul.mubr.bf16.gmra.mxu0 %v948
      %v1137 = vpop.f32.mrf.mxu0
      %v1138 = vadd.f32 %v683, %v1137
      %v1139 = vpop.f32.mrf.mxu0
      %v1140 = vpop.f32.mrf.mxu0
      %v1141 = vadd.f32 %v686, %v1140
      %v1142 = vpop.f32.mrf.mxu0
      %1143 = vmatprep.mubr.bf16.mxu0 0
      %1144 = vmatmul.mubr.bf16.gmra.mxu0 %v951
      %v1145 = vpop.f32.mrf.mxu0
      %v1146 = vadd.f32 %v691, %v1145
      %v1147 = vpop.f32.mrf.mxu0
      %v1148 = vpop.f32.mrf.mxu0
      %v1149 = vadd.f32 %v694, %v1148
      %v1150 = vpop.f32.mrf.mxu0
      %1151 = vmatprep.mubr.bf16.mxu0 0
      %1152 = vmatmul.mubr.bf16.gmra.mxu0 %v954
      %v1153 = vpop.f32.mrf.mxu0
      %v1154 = vadd.f32 %v699, %v1153
      %v1155 = vpop.f32.mrf.mxu0
      %v1156 = vpop.f32.mrf.mxu0
      %v1157 = vpop.f32.mrf.mxu0
      %1158 = vdwg.mxu0
      %s1159 = scalar_lea.vmem %s1, 4
      %v1160 = vld [vmem:[%s1159] sm:$0x3]
      %vm1161 = vsmask.f32 4352
      %v1162 = vrot.slane %v706, 3
      %v1163 = vrot.slane %v709, 4
      %v1164 = vor.u32 %v1162, %v1163
      %v1165 = vrot.slane %v714, 3
      %v1166 = vrot.slane %v717, 4
      %v1167 = vor.u32 %v1165, %v1166
      %v1168 = vsel %vm1161, %v1164, %v1167
      %v1169 = vrot.slane %v723, 3
      %v1170 = vrot.slane %v726, 4
      %v1171 = vor.u32 %v1169, %v1170
      %v1172 = vsel %vm1161, %v1167, %v1171
      %v1173 = vrot.slane %v732, 3
      %v1174 = vrot.slane %v735, 4
      %v1175 = vor.u32 %v1173, %v1174
      %v1176 = vsel %vm1161, %v1171, %v1175
      %v1177 = vrot.slane %v741, 3
      %v1178 = vrot.slane %v744, 4
      %v1179 = vor.u32 %v1177, %v1178
      %v1180 = vsel %vm1161, %v1175, %v1179
      %v1181 = vrot.slane %v750, 3
      %v1182 = vrot.slane %v753, 4
      %v1183 = vor.u32 %v1181, %v1182
      %v1184 = vsel %vm1161, %v1179, %v1183
      %v1185 = vrot.slane %v759, 3
      %v1186 = vrot.slane %v762, 4
      %v1187 = vor.u32 %v1185, %v1186
      %v1188 = vsel %vm1161, %v1183, %v1187
      %v1189 = vrot.slane %v768, 3
      %v1190 = vrot.slane %v771, 4
      %v1191 = vor.u32 %v1189, %v1190
      %v1192 = vsel %vm1161, %v1187, %v1191
      %v1193 = vrot.slane %v777, 3
      %v1194 = vrot.slane %v780, 4
      %v1195 = vor.u32 %v1193, %v1194
      %v1196 = vsel %vm1161, %v1191, %v1195
      %v1197 = vrot.slane %v786, 3
      %v1198 = vrot.slane %v789, 4
      %v1199 = vor.u32 %v1197, %v1198
      %v1200 = vsel %vm1161, %v1195, %v1199
      %v1201 = vrot.slane %v795, 3
      %v1202 = vrot.slane %v798, 4
      %v1203 = vor.u32 %v1201, %v1202
      %v1204 = vsel %vm1161, %v1199, %v1203
      %v1205 = vrot.slane %v804, 3
      %v1206 = vrot.slane %v807, 4
      %v1207 = vor.u32 %v1205, %v1206
      %v1208 = vsel %vm1161, %v1203, %v1207
      %v1209 = vrot.slane %v813, 3
      %v1210 = vrot.slane %v816, 4
      %v1211 = vor.u32 %v1209, %v1210
      %v1212 = vsel %vm1161, %v1207, %v1211
      %v1213 = vrot.slane %v822, 3
      %v1214 = vrot.slane %v825, 4
      %v1215 = vor.u32 %v1213, %v1214
      %v1216 = vsel %vm1161, %v1211, %v1215
      %v1217 = vrot.slane %v831, 3
      %v1218 = vrot.slane %v834, 4
      %v1219 = vor.u32 %v1217, %v1218
      %v1220 = vsel %vm1161, %v1215, %v1219
      %v1221 = vrot.slane %v840, 3
      %v1222 = vrot.slane %v843, 4
      %v1223 = vor.u32 %v1221, %v1222
      %v1224 = vsel %vm1161, %v1219, %v1223
      %v1225 = vrot.slane %v849, 3
      %v1226 = vrot.slane %v852, 4
      %v1227 = vor.u32 %v1225, %v1226
      %v1228 = vsel %vm1161, %v1223, %v1227
      %v1229 = vrot.slane %v858, 3
      %v1230 = vrot.slane %v861, 4
      %v1231 = vor.u32 %v1229, %v1230
      %v1232 = vsel %vm1161, %v1227, %v1231
      %v1233 = vrot.slane %v867, 3
      %v1234 = vrot.slane %v870, 4
      %v1235 = vor.u32 %v1233, %v1234
      %v1236 = vsel %vm1161, %v1231, %v1235
      %v1237 = vrot.slane %v876, 3
      %v1238 = vrot.slane %v879, 4
      %v1239 = vor.u32 %v1237, %v1238
      %v1240 = vsel %vm1161, %v1235, %v1239
      %v1241 = vrot.slane %v885, 3
      %v1242 = vrot.slane %v888, 4
      %v1243 = vor.u32 %v1241, %v1242
      %v1244 = vsel %vm1161, %v1239, %v1243
      %v1246 = vsel %vm436, %v1168, 0
      %v1249 = vsel %vm436, %v1172, 0
      %v1252 = vsel %vm436, %v1176, 0
      %v1255 = vsel %vm436, %v1180, 0
      %v1258 = vsel %vm436, %v1184, 0
      %v1261 = vsel %vm436, %v1188, 0
      %v1264 = vsel %vm436, %v1192, 0
      %v1267 = vsel %vm436, %v1196, 0
      %v1270 = vsel %vm436, %v1200, 0
      %v1273 = vsel %vm436, %v1204, 0
      %v1276 = vsel %vm436, %v1208, 0
      %v1279 = vsel %vm436, %v1212, 0
      %v1282 = vsel %vm436, %v1216, 0
      %v1285 = vsel %vm436, %v1220, 0
      %v1288 = vsel %vm436, %v1224, 0
      %v1291 = vsel %vm436, %v1228, 0
      %v1294 = vsel %vm436, %v1232, 0
      %v1297 = vsel %vm436, %v1236, 0
      %v1300 = vsel %vm436, %v1240, 0
      %v1303 = vsel %vm436, %v1244, 0
      %v1306 = vsel %vm436, %v1243, 0
      %v1309 = vsel %vm500, %v1160, 0
      %1311 = vmatprep.subr.bf16.mxu0 0
      %1312 = vmatpush1.bf16.msra.mxu0 0
      %1313 = vmatprep.subr.bf16.mxu0 0
      %1314 = vmatpush1.bf16.msra.mxu0 0
      %1315 = vmatprep.subr.bf16.mxu0 0
      %1316 = vmatpush1.bf16.msra.mxu0 0
      %1317 = vmatprep.subr.bf16.mxu0 0
      %1318 = vmatpush1.bf16.msra.mxu0 0
      %1319 = vmatprep.subr.bf16.mxu0 0
      %1320 = vmatpush1.bf16.msra.mxu0 0
      %1321 = vmatprep.subr.bf16.mxu0 0
      %1322 = vmatpush1.bf16.msra.mxu0 0
      %1323 = vmatprep.subr.bf16.mxu0 0
      %1324 = vmatpush1.bf16.msra.mxu0 0
      %1325 = vmatprep.subr.bf16.mxu0 0
      %1326 = vmatpush1.bf16.msra.mxu0 %v1309
      %1327 = vmatprep.subr.bf16.mxu0 0
      %1328 = vmatpush2.bf16.msra.mxu0 0
      %1329 = vmatprep.subr.bf16.mxu0 0
      %1330 = vmatpush2.bf16.msra.mxu0 0
      %1331 = vmatprep.subr.bf16.mxu0 0
      %1332 = vmatpush2.bf16.msra.mxu0 0
      %1333 = vmatprep.subr.bf16.mxu0 0
      %1334 = vmatpush2.bf16.msra.mxu0 0
      %1335 = vmatprep.subr.bf16.mxu0 0
      %1336 = vmatpush2.bf16.msra.mxu0 0
      %1337 = vmatprep.subr.bf16.mxu0 0
      %1338 = vmatpush2.bf16.msra.mxu0 0
      %1339 = vmatprep.subr.bf16.mxu0 0
      %1340 = vmatpush2.bf16.msra.mxu0 0
      %1341 = vmatprep.subr.bf16.mxu0 0
      %1342 = vmatpush2.bf16.msra.mxu0 0
      %1343 = vmatprep.mubr.bf16.mxu0 0
      %1344 = vmatmul.mubr.bf16.gmra.mxu0 %v1246
      %v1345 = vpop.f32.mrf.mxu0
      %v1346 = vadd.f32 0.0, %v1345
      %v1347 = vpop.f32.mrf.mxu0
      %v1348 = vpop.f32.mrf.mxu0
      %v1349 = vadd.f32 0.0, %v1348
      %v1350 = vpop.f32.mrf.mxu0
      %1351 = vmatprep.mubr.bf16.mxu0 0
      %1352 = vmatmul.mubr.bf16.gmra.mxu0 %v1249
      %v1353 = vpop.f32.mrf.mxu0
      %v1354 = vadd.f32 0.0, %v1353
      %v1355 = vpop.f32.mrf.mxu0
      %v1356 = vpop.f32.mrf.mxu0
      %v1357 = vadd.f32 0.0, %v1356
      %v1358 = vpop.f32.mrf.mxu0
      %1359 = vmatprep.mubr.bf16.mxu0 0
      %1360 = vmatmul.mubr.bf16.gmra.mxu0 %v1252
      %v1361 = vpop.f32.mrf.mxu0
      %v1362 = vadd.f32 0.0, %v1361
      %v1363 = vpop.f32.mrf.mxu0
      %v1364 = vpop.f32.mrf.mxu0
      %v1365 = vadd.f32 0.0, %v1364
      %v1366 = vpop.f32.mrf.mxu0
      %1367 = vmatprep.mubr.bf16.mxu0 0
      %1368 = vmatmul.mubr.bf16.gmra.mxu0 %v1255
      %v1369 = vpop.f32.mrf.mxu0
      %v1370 = vadd.f32 0.0, %v1369
      %v1371 = vpop.f32.mrf.mxu0
      %v1372 = vpop.f32.mrf.mxu0
      %v1373 = vadd.f32 0.0, %v1372
      %v1374 = vpop.f32.mrf.mxu0
      %1375 = vmatprep.mubr.bf16.mxu0 0
      %1376 = vmatmul.mubr.bf16.gmra.mxu0 %v1258
      %v1377 = vpop.f32.mrf.mxu0
      %v1378 = vadd.f32 0.0, %v1377
      %v1379 = vpop.f32.mrf.mxu0
      %v1380 = vpop.f32.mrf.mxu0
      %v1381 = vadd.f32 0.0, %v1380
      %v1382 = vpop.f32.mrf.mxu0
      %1383 = vmatprep.mubr.bf16.mxu0 0
      %1384 = vmatmul.mubr.bf16.gmra.mxu0 %v1261
      %v1385 = vpop.f32.mrf.mxu0
      %v1386 = vadd.f32 0.0, %v1385
      %v1387 = vpop.f32.mrf.mxu0
      %v1388 = vpop.f32.mrf.mxu0
      %v1389 = vadd.f32 0.0, %v1388
      %v1390 = vpop.f32.mrf.mxu0
      %1391 = vmatprep.mubr.bf16.mxu0 0
      %1392 = vmatmul.mubr.bf16.gmra.mxu0 %v1264
      %v1393 = vpop.f32.mrf.mxu0
      %v1394 = vadd.f32 0.0, %v1393
      %v1395 = vpop.f32.mrf.mxu0
      %v1396 = vpop.f32.mrf.mxu0
      %v1397 = vadd.f32 0.0, %v1396
      %v1398 = vpop.f32.mrf.mxu0
      %1399 = vmatprep.mubr.bf16.mxu0 0
      %1400 = vmatmul.mubr.bf16.gmra.mxu0 %v1267
      %v1401 = vpop.f32.mrf.mxu0
      %v1402 = vadd.f32 0.0, %v1401
      %v1403 = vpop.f32.mrf.mxu0
      %v1404 = vpop.f32.mrf.mxu0
      %v1405 = vadd.f32 0.0, %v1404
      %v1406 = vpop.f32.mrf.mxu0
      %1407 = vmatprep.mubr.bf16.mxu0 0
      %1408 = vmatmul.mubr.bf16.gmra.mxu0 %v1270
      %v1409 = vpop.f32.mrf.mxu0
      %v1410 = vadd.f32 0.0, %v1409
      %v1411 = vpop.f32.mrf.mxu0
      %v1412 = vpop.f32.mrf.mxu0
      %v1413 = vadd.f32 0.0, %v1412
      %v1414 = vpop.f32.mrf.mxu0
      %1415 = vmatprep.mubr.bf16.mxu0 0
      %1416 = vmatmul.mubr.bf16.gmra.mxu0 %v1273
      %v1417 = vpop.f32.mrf.mxu0
      %v1418 = vadd.f32 0.0, %v1417
      %v1419 = vpop.f32.mrf.mxu0
      %v1420 = vpop.f32.mrf.mxu0
      %v1421 = vadd.f32 0.0, %v1420
      %v1422 = vpop.f32.mrf.mxu0
      %1423 = vmatprep.mubr.bf16.mxu0 0
      %1424 = vmatmul.mubr.bf16.gmra.mxu0 %v1276
      %v1425 = vpop.f32.mrf.mxu0
      %v1426 = vadd.f32 0.0, %v1425
      %v1427 = vpop.f32.mrf.mxu0
      %v1428 = vpop.f32.mrf.mxu0
      %v1429 = vadd.f32 0.0, %v1428
      %v1430 = vpop.f32.mrf.mxu0
      %1431 = vmatprep.mubr.bf16.mxu0 0
      %1432 = vmatmul.mubr.bf16.gmra.mxu0 %v1279
      %v1433 = vpop.f32.mrf.mxu0
      %v1434 = vadd.f32 0.0, %v1433
      %v1435 = vpop.f32.mrf.mxu0
      %v1436 = vpop.f32.mrf.mxu0
      %v1437 = vadd.f32 0.0, %v1436
      %v1438 = vpop.f32.mrf.mxu0
      %1439 = vmatprep.mubr.bf16.mxu0 0
      %1440 = vmatmul.mubr.bf16.gmra.mxu0 %v1282
      %v1441 = vpop.f32.mrf.mxu0
      %v1442 = vadd.f32 0.0, %v1441
      %v1443 = vpop.f32.mrf.mxu0
      %v1444 = vpop.f32.mrf.mxu0
      %v1445 = vadd.f32 0.0, %v1444
      %v1446 = vpop.f32.mrf.mxu0
      %1447 = vmatprep.mubr.bf16.mxu0 0
      %1448 = vmatmul.mubr.bf16.gmra.mxu0 %v1285
      %v1449 = vpop.f32.mrf.mxu0
      %v1450 = vadd.f32 0.0, %v1449
      %v1451 = vpop.f32.mrf.mxu0
      %v1452 = vpop.f32.mrf.mxu0
      %v1453 = vadd.f32 0.0, %v1452
      %v1454 = vpop.f32.mrf.mxu0
      %1455 = vmatprep.mubr.bf16.mxu0 0
      %1456 = vmatmul.mubr.bf16.gmra.mxu0 %v1288
      %v1457 = vpop.f32.mrf.mxu0
      %v1458 = vadd.f32 0.0, %v1457
      %v1459 = vpop.f32.mrf.mxu0
      %v1460 = vpop.f32.mrf.mxu0
      %v1461 = vadd.f32 0.0, %v1460
      %v1462 = vpop.f32.mrf.mxu0
      %1463 = vmatprep.mubr.bf16.mxu0 0
      %1464 = vmatmul.mubr.bf16.gmra.mxu0 %v1291
      %v1465 = vpop.f32.mrf.mxu0
      %v1466 = vadd.f32 0.0, %v1465
      %v1467 = vpop.f32.mrf.mxu0
      %v1468 = vpop.f32.mrf.mxu0
      %v1469 = vadd.f32 0.0, %v1468
      %v1470 = vpop.f32.mrf.mxu0
      %1471 = vmatprep.mubr.bf16.mxu0 0
      %1472 = vmatmul.mubr.bf16.gmra.mxu0 %v1294
      %v1473 = vpop.f32.mrf.mxu0
      %v1474 = vadd.f32 0.0, %v1473
      %v1475 = vpop.f32.mrf.mxu0
      %v1476 = vpop.f32.mrf.mxu0
      %v1477 = vadd.f32 0.0, %v1476
      %v1478 = vpop.f32.mrf.mxu0
      %1479 = vmatprep.mubr.bf16.mxu0 0
      %1480 = vmatmul.mubr.bf16.gmra.mxu0 %v1297
      %v1481 = vpop.f32.mrf.mxu0
      %v1482 = vadd.f32 0.0, %v1481
      %v1483 = vpop.f32.mrf.mxu0
      %v1484 = vpop.f32.mrf.mxu0
      %v1485 = vadd.f32 0.0, %v1484
      %v1486 = vpop.f32.mrf.mxu0
      %1487 = vmatprep.mubr.bf16.mxu0 0
      %1488 = vmatmul.mubr.bf16.gmra.mxu0 %v1300
      %v1489 = vpop.f32.mrf.mxu0
      %v1490 = vadd.f32 0.0, %v1489
      %v1491 = vpop.f32.mrf.mxu0
      %v1492 = vpop.f32.mrf.mxu0
      %v1493 = vadd.f32 0.0, %v1492
      %v1494 = vpop.f32.mrf.mxu0
      %1495 = vmatprep.mubr.bf16.mxu0 0
      %1496 = vmatmul.mubr.bf16.gmra.mxu0 %v1303
      %v1497 = vpop.f32.mrf.mxu0
      %v1498 = vadd.f32 0.0, %v1497
      %v1499 = vpop.f32.mrf.mxu0
      %v1500 = vpop.f32.mrf.mxu0
      %v1501 = vadd.f32 0.0, %v1500
      %v1502 = vpop.f32.mrf.mxu0
      %1503 = vmatprep.mubr.bf16.mxu0 0
      %1504 = vmatmul.mubr.bf16.gmra.mxu0 %v1306
      %v1505 = vpop.f32.mrf.mxu0
      %v1506 = vadd.f32 0.0, %v1505
      %v1507 = vpop.f32.mrf.mxu0
      %v1508 = vpop.f32.mrf.mxu0
      %v1509 = vpop.f32.mrf.mxu0
      %1510 = vdwg.mxu0
      %v1511 = vadd.f32 %v994, %v1346
      %v1512 = vadd.f32 %v997, %v1349
      %v1513 = vadd.f32 %v1002, %v1354
      %v1514 = vadd.f32 %v1005, %v1357
      %v1515 = vadd.f32 %v1010, %v1362
      %v1516 = vadd.f32 %v1013, %v1365
      %v1517 = vadd.f32 %v1018, %v1370
      %v1518 = vadd.f32 %v1021, %v1373
      %v1519 = vadd.f32 %v1026, %v1378
      %v1520 = vadd.f32 %v1029, %v1381
      %v1521 = vadd.f32 %v1034, %v1386
      %v1522 = vadd.f32 %v1037, %v1389
      %v1523 = vadd.f32 %v1042, %v1394
      %v1524 = vadd.f32 %v1045, %v1397
      %v1525 = vadd.f32 %v1050, %v1402
      %v1526 = vadd.f32 %v1053, %v1405
      %v1527 = vadd.f32 %v1058, %v1410
      %v1528 = vadd.f32 %v1061, %v1413
      %v1529 = vadd.f32 %v1066, %v1418
      %v1530 = vadd.f32 %v1069, %v1421
      %v1531 = vadd.f32 %v1074, %v1426
      %v1532 = vadd.f32 %v1077, %v1429
      %v1533 = vadd.f32 %v1082, %v1434
      %v1534 = vadd.f32 %v1085, %v1437
      %v1535 = vadd.f32 %v1090, %v1442
      %v1536 = vadd.f32 %v1093, %v1445
      %v1537 = vadd.f32 %v1098, %v1450
      %v1538 = vadd.f32 %v1101, %v1453
      %v1539 = vadd.f32 %v1106, %v1458
      %v1540 = vadd.f32 %v1109, %v1461
      %v1541 = vadd.f32 %v1114, %v1466
      %v1542 = vadd.f32 %v1117, %v1469
      %v1543 = vadd.f32 %v1122, %v1474
      %v1544 = vadd.f32 %v1125, %v1477
      %v1545 = vadd.f32 %v1130, %v1482
      %v1546 = vadd.f32 %v1133, %v1485
      %v1547 = vadd.f32 %v1138, %v1490
      %v1548 = vadd.f32 %v1141, %v1493
      %v1549 = vadd.f32 %v1146, %v1498
      %v1550 = vadd.f32 %v1149, %v1501
      %v1551 = vadd.f32 %v1154, %v1506
      %v1552 = vpack.c.bf16 %v345, %v344
      %s1553 = scalar_lea.vmem %s1, 6
      %v1554 = vld [vmem:[%s1553] sm:$0x3]
      %v1556 = vshrl.u32 %v1552, 16
      %v1558 = vrot.slane %v1556, 3
      %v1559 = vshll.u32 %v1552, 16
      %v1561 = vrot.slane %v1559, 4
      %v1562 = vor.u32 %v1558, %v1561
      %v1563 = vsel %vm1161, %v1243, %v1562
      %v1565 = vsel %vm436, %v1563, 0
      %v1568 = vsel %vm436, %v1562, 0
      %v1571 = vsel %vm500, %v1554, 0
      %1573 = vmatprep.subr.bf16.mxu0 0
      %1574 = vmatpush1.bf16.msra.mxu0 0
      %1575 = vmatprep.subr.bf16.mxu0 0
      %1576 = vmatpush1.bf16.msra.mxu0 0
      %1577 = vmatprep.subr.bf16.mxu0 0
      %1578 = vmatpush1.bf16.msra.mxu0 0
      %1579 = vmatprep.subr.bf16.mxu0 0
      %1580 = vmatpush1.bf16.msra.mxu0 0
      %1581 = vmatprep.subr.bf16.mxu0 0
      %1582 = vmatpush1.bf16.msra.mxu0 0
      %1583 = vmatprep.subr.bf16.mxu0 0
      %1584 = vmatpush1.bf16.msra.mxu0 0
      %1585 = vmatprep.subr.bf16.mxu0 0
      %1586 = vmatpush1.bf16.msra.mxu0 0
      %1587 = vmatprep.subr.bf16.mxu0 0
      %1588 = vmatpush1.bf16.msra.mxu0 %v1571
      %1589 = vmatprep.subr.bf16.mxu0 0
      %1590 = vmatpush2.bf16.msra.mxu0 0
      %1591 = vmatprep.subr.bf16.mxu0 0
      %1592 = vmatpush2.bf16.msra.mxu0 0
      %1593 = vmatprep.subr.bf16.mxu0 0
      %1594 = vmatpush2.bf16.msra.mxu0 0
      %1595 = vmatprep.subr.bf16.mxu0 0
      %1596 = vmatpush2.bf16.msra.mxu0 0
      %1597 = vmatprep.subr.bf16.mxu0 0
      %1598 = vmatpush2.bf16.msra.mxu0 0
      %1599 = vmatprep.subr.bf16.mxu0 0
      %1600 = vmatpush2.bf16.msra.mxu0 0
      %1601 = vmatprep.subr.bf16.mxu0 0
      %1602 = vmatpush2.bf16.msra.mxu0 0
      %1603 = vmatprep.subr.bf16.mxu0 0
      %1604 = vmatpush2.bf16.msra.mxu0 0
      %1605 = vmatprep.mubr.bf16.mxu0 0
      %1606 = vmatmul.mubr.bf16.gmra.mxu0 %v1249
      %v1607 = vpop.f32.mrf.mxu0
      %v1608 = vadd.f32 0.0, %v1607
      %v1609 = vpop.f32.mrf.mxu0
      %v1610 = vpop.f32.mrf.mxu0
      %v1611 = vadd.f32 0.0, %v1610
      %v1612 = vpop.f32.mrf.mxu0
      %1613 = vmatprep.mubr.bf16.mxu0 0
      %1614 = vmatmul.mubr.bf16.gmra.mxu0 %v1252
      %v1615 = vpop.f32.mrf.mxu0
      %v1616 = vadd.f32 0.0, %v1615
      %v1617 = vpop.f32.mrf.mxu0
      %v1618 = vpop.f32.mrf.mxu0
      %v1619 = vadd.f32 0.0, %v1618
      %v1620 = vpop.f32.mrf.mxu0
      %1621 = vmatprep.mubr.bf16.mxu0 0
      %1622 = vmatmul.mubr.bf16.gmra.mxu0 %v1255
      %v1623 = vpop.f32.mrf.mxu0
      %v1624 = vadd.f32 0.0, %v1623
      %v1625 = vpop.f32.mrf.mxu0
      %v1626 = vpop.f32.mrf.mxu0
      %v1627 = vadd.f32 0.0, %v1626
      %v1628 = vpop.f32.mrf.mxu0
      %1629 = vmatprep.mubr.bf16.mxu0 0
      %1630 = vmatmul.mubr.bf16.gmra.mxu0 %v1258
      %v1631 = vpop.f32.mrf.mxu0
      %v1632 = vadd.f32 0.0, %v1631
      %v1633 = vpop.f32.mrf.mxu0
      %v1634 = vpop.f32.mrf.mxu0
      %v1635 = vadd.f32 0.0, %v1634
      %v1636 = vpop.f32.mrf.mxu0
      %1637 = vmatprep.mubr.bf16.mxu0 0
      %1638 = vmatmul.mubr.bf16.gmra.mxu0 %v1261
      %v1639 = vpop.f32.mrf.mxu0
      %v1640 = vadd.f32 0.0, %v1639
      %v1641 = vpop.f32.mrf.mxu0
      %v1642 = vpop.f32.mrf.mxu0
      %v1643 = vadd.f32 0.0, %v1642
      %v1644 = vpop.f32.mrf.mxu0
      %1645 = vmatprep.mubr.bf16.mxu0 0
      %1646 = vmatmul.mubr.bf16.gmra.mxu0 %v1264
      %v1647 = vpop.f32.mrf.mxu0
      %v1648 = vadd.f32 0.0, %v1647
      %v1649 = vpop.f32.mrf.mxu0
      %v1650 = vpop.f32.mrf.mxu0
      %v1651 = vadd.f32 0.0, %v1650
      %v1652 = vpop.f32.mrf.mxu0
      %1653 = vmatprep.mubr.bf16.mxu0 0
      %1654 = vmatmul.mubr.bf16.gmra.mxu0 %v1267
      %v1655 = vpop.f32.mrf.mxu0
      %v1656 = vadd.f32 0.0, %v1655
      %v1657 = vpop.f32.mrf.mxu0
      %v1658 = vpop.f32.mrf.mxu0
      %v1659 = vadd.f32 0.0, %v1658
      %v1660 = vpop.f32.mrf.mxu0
      %1661 = vmatprep.mubr.bf16.mxu0 0
      %1662 = vmatmul.mubr.bf16.gmra.mxu0 %v1270
      %v1663 = vpop.f32.mrf.mxu0
      %v1664 = vadd.f32 0.0, %v1663
      %v1665 = vpop.f32.mrf.mxu0
      %v1666 = vpop.f32.mrf.mxu0
      %v1667 = vadd.f32 0.0, %v1666
      %v1668 = vpop.f32.mrf.mxu0
      %1669 = vmatprep.mubr.bf16.mxu0 0
      %1670 = vmatmul.mubr.bf16.gmra.mxu0 %v1273
      %v1671 = vpop.f32.mrf.mxu0
      %v1672 = vadd.f32 0.0, %v1671
      %v1673 = vpop.f32.mrf.mxu0
      %v1674 = vpop.f32.mrf.mxu0
      %v1675 = vadd.f32 0.0, %v1674
      %v1676 = vpop.f32.mrf.mxu0
      %1677 = vmatprep.mubr.bf16.mxu0 0
      %1678 = vmatmul.mubr.bf16.gmra.mxu0 %v1276
      %v1679 = vpop.f32.mrf.mxu0
      %v1680 = vadd.f32 0.0, %v1679
      %v1681 = vpop.f32.mrf.mxu0
      %v1682 = vpop.f32.mrf.mxu0
      %v1683 = vadd.f32 0.0, %v1682
      %v1684 = vpop.f32.mrf.mxu0
      %1685 = vmatprep.mubr.bf16.mxu0 0
      %1686 = vmatmul.mubr.bf16.gmra.mxu0 %v1279
      %v1687 = vpop.f32.mrf.mxu0
      %v1688 = vadd.f32 0.0, %v1687
      %v1689 = vpop.f32.mrf.mxu0
      %v1690 = vpop.f32.mrf.mxu0
      %v1691 = vadd.f32 0.0, %v1690
      %v1692 = vpop.f32.mrf.mxu0
      %1693 = vmatprep.mubr.bf16.mxu0 0
      %1694 = vmatmul.mubr.bf16.gmra.mxu0 %v1282
      %v1695 = vpop.f32.mrf.mxu0
      %v1696 = vadd.f32 0.0, %v1695
      %v1697 = vpop.f32.mrf.mxu0
      %v1698 = vpop.f32.mrf.mxu0
      %v1699 = vadd.f32 0.0, %v1698
      %v1700 = vpop.f32.mrf.mxu0
      %1701 = vmatprep.mubr.bf16.mxu0 0
      %1702 = vmatmul.mubr.bf16.gmra.mxu0 %v1285
      %v1703 = vpop.f32.mrf.mxu0
      %v1704 = vadd.f32 0.0, %v1703
      %v1705 = vpop.f32.mrf.mxu0
      %v1706 = vpop.f32.mrf.mxu0
      %v1707 = vadd.f32 0.0, %v1706
      %v1708 = vpop.f32.mrf.mxu0
      %1709 = vmatprep.mubr.bf16.mxu0 0
      %1710 = vmatmul.mubr.bf16.gmra.mxu0 %v1288
      %v1711 = vpop.f32.mrf.mxu0
      %v1712 = vadd.f32 0.0, %v1711
      %v1713 = vpop.f32.mrf.mxu0
      %v1714 = vpop.f32.mrf.mxu0
      %v1715 = vadd.f32 0.0, %v1714
      %v1716 = vpop.f32.mrf.mxu0
      %1717 = vmatprep.mubr.bf16.mxu0 0
      %1718 = vmatmul.mubr.bf16.gmra.mxu0 %v1291
      %v1719 = vpop.f32.mrf.mxu0
      %v1720 = vadd.f32 0.0, %v1719
      %v1721 = vpop.f32.mrf.mxu0
      %v1722 = vpop.f32.mrf.mxu0
      %v1723 = vadd.f32 0.0, %v1722
      %v1724 = vpop.f32.mrf.mxu0
      %1725 = vmatprep.mubr.bf16.mxu0 0
      %1726 = vmatmul.mubr.bf16.gmra.mxu0 %v1294
      %v1727 = vpop.f32.mrf.mxu0
      %v1728 = vadd.f32 0.0, %v1727
      %v1729 = vpop.f32.mrf.mxu0
      %v1730 = vpop.f32.mrf.mxu0
      %v1731 = vadd.f32 0.0, %v1730
      %v1732 = vpop.f32.mrf.mxu0
      %1733 = vmatprep.mubr.bf16.mxu0 0
      %1734 = vmatmul.mubr.bf16.gmra.mxu0 %v1297
      %v1735 = vpop.f32.mrf.mxu0
      %v1736 = vadd.f32 0.0, %v1735
      %v1737 = vpop.f32.mrf.mxu0
      %v1738 = vpop.f32.mrf.mxu0
      %v1739 = vadd.f32 0.0, %v1738
      %v1740 = vpop.f32.mrf.mxu0
      %1741 = vmatprep.mubr.bf16.mxu0 0
      %1742 = vmatmul.mubr.bf16.gmra.mxu0 %v1300
      %v1743 = vpop.f32.mrf.mxu0
      %v1744 = vadd.f32 0.0, %v1743
      %v1745 = vpop.f32.mrf.mxu0
      %v1746 = vpop.f32.mrf.mxu0
      %v1747 = vadd.f32 0.0, %v1746
      %v1748 = vpop.f32.mrf.mxu0
      %1749 = vmatprep.mubr.bf16.mxu0 0
      %1750 = vmatmul.mubr.bf16.gmra.mxu0 %v1303
      %v1751 = vpop.f32.mrf.mxu0
      %v1752 = vadd.f32 0.0, %v1751
      %v1753 = vpop.f32.mrf.mxu0
      %v1754 = vpop.f32.mrf.mxu0
      %v1755 = vadd.f32 0.0, %v1754
      %v1756 = vpop.f32.mrf.mxu0
      %1757 = vmatprep.mubr.bf16.mxu0 0
      %1758 = vmatmul.mubr.bf16.gmra.mxu0 %v1565
      %v1759 = vpop.f32.mrf.mxu0
      %v1760 = vadd.f32 0.0, %v1759
      %v1761 = vpop.f32.mrf.mxu0
      %v1762 = vpop.f32.mrf.mxu0
      %v1763 = vadd.f32 0.0, %v1762
      %v1764 = vpop.f32.mrf.mxu0
      %1765 = vmatprep.mubr.bf16.mxu0 0
      %1766 = vmatmul.mubr.bf16.gmra.mxu0 %v1568
      %v1767 = vpop.f32.mrf.mxu0
      %v1768 = vadd.f32 0.0, %v1767
      %v1769 = vpop.f32.mrf.mxu0
      %v1770 = vpop.f32.mrf.mxu0
      %v1771 = vpop.f32.mrf.mxu0
      %1772 = vdwg.mxu0
      %v1773 = vadd.f32 %v1511, %v1608
      %v1774 = vadd.f32 %v1512, %v1611
      %v1775 = vadd.f32 %v1513, %v1616
      %v1776 = vadd.f32 %v1514, %v1619
      %v1777 = vadd.f32 %v1515, %v1624
      %v1778 = vadd.f32 %v1516, %v1627
      %v1779 = vadd.f32 %v1517, %v1632
      %v1780 = vadd.f32 %v1518, %v1635
      %v1781 = vadd.f32 %v1519, %v1640
      %v1782 = vadd.f32 %v1520, %v1643
      %v1783 = vadd.f32 %v1521, %v1648
      %v1784 = vadd.f32 %v1522, %v1651
      %v1785 = vadd.f32 %v1523, %v1656
      %v1786 = vadd.f32 %v1524, %v1659
      %v1787 = vadd.f32 %v1525, %v1664
      %v1788 = vadd.f32 %v1526, %v1667
      %v1789 = vadd.f32 %v1527, %v1672
      %v1790 = vadd.f32 %v1528, %v1675
      %v1791 = vadd.f32 %v1529, %v1680
      %v1792 = vadd.f32 %v1530, %v1683
      %v1793 = vadd.f32 %v1531, %v1688
      %v1794 = vadd.f32 %v1532, %v1691
      %v1795 = vadd.f32 %v1533, %v1696
      %v1796 = vadd.f32 %v1534, %v1699
      %v1797 = vadd.f32 %v1535, %v1704
      %v1798 = vadd.f32 %v1536, %v1707
      %v1799 = vadd.f32 %v1537, %v1712
      %v1800 = vadd.f32 %v1538, %v1715
      %v1801 = vadd.f32 %v1539, %v1720
      %v1802 = vadd.f32 %v1540, %v1723
      %v1803 = vadd.f32 %v1541, %v1728
      %v1804 = vadd.f32 %v1542, %v1731
      %v1805 = vadd.f32 %v1543, %v1736
      %v1806 = vadd.f32 %v1544, %v1739
      %v1807 = vadd.f32 %v1545, %v1744
      %v1808 = vadd.f32 %v1546, %v1747
      %v1809 = vadd.f32 %v1547, %v1752
      %v1810 = vadd.f32 %v1548, %v1755
      %v1811 = vadd.f32 %v1549, %v1760
      %v1812 = vadd.f32 %v1550, %v1763
      %v1813 = vadd.f32 %v1551, %v1768
      %v1814 = vpack.c.bf16 %v306, %v305
      %v1815 = vpack.c.bf16 %v308, %v307
      %v1816 = vpack.c.bf16 %v310, %v309
      %v1817 = vpack.c.bf16 %v312, %v311
      %v1818 = vpack.c.bf16 %v314, %v313
      %v1819 = vpack.c.bf16 %v316, %v315
      %v1820 = vpack.c.bf16 %v318, %v317
      %v1821 = vpack.c.bf16 %v320, %v319
      %v1822 = vpack.c.bf16 %v322, %v321
      %v1823 = vpack.c.bf16 %v324, %v323
      %v1824 = vpack.c.bf16 %v326, %v325
      %v1825 = vpack.c.bf16 %v328, %v327
      %v1826 = vpack.c.bf16 %v330, %v329
      %v1827 = vpack.c.bf16 %v332, %v331
      %v1828 = vpack.c.bf16 %v334, %v333
      %v1829 = vpack.c.bf16 %v336, %v335
      %v1830 = vpack.c.bf16 %v338, %v337
      %v1831 = vpack.c.bf16 %v340, %v339
      %v1832 = vpack.c.bf16 %v342, %v341
      %v1833 = vpack.c.bf16 %v344, %v343
      %v1834 = vpack.c.bf16 %v345, %v345
      %s1835 = scalar_lea.vmem %s1, 8
      %v1836 = vld [vmem:[%s1835] sm:$0x3]
      %v1838 = vsel %vm436, %v1814, 0
      %v1841 = vsel %vm436, %v1815, 0
      %v1844 = vsel %vm436, %v1816, 0
      %v1847 = vsel %vm436, %v1817, 0
      %v1850 = vsel %vm436, %v1818, 0
      %v1853 = vsel %vm436, %v1819, 0
      %v1856 = vsel %vm436, %v1820, 0
      %v1859 = vsel %vm436, %v1821, 0
      %v1862 = vsel %vm436, %v1822, 0
      %v1865 = vsel %vm436, %v1823, 0
      %v1868 = vsel %vm436, %v1824, 0
      %v1871 = vsel %vm436, %v1825, 0
      %v1874 = vsel %vm436, %v1826, 0
      %v1877 = vsel %vm436, %v1827, 0
      %v1880 = vsel %vm436, %v1828, 0
      %v1883 = vsel %vm436, %v1829, 0
      %v1886 = vsel %vm436, %v1830, 0
      %v1889 = vsel %vm436, %v1831, 0
      %v1892 = vsel %vm436, %v1832, 0
      %v1895 = vsel %vm436, %v1833, 0
      %v1898 = vsel %vm436, %v1834, 0
      %v1901 = vsel %vm500, %v1836, 0
      %1903 = vmatprep.subr.bf16.mxu0 0
      %1904 = vmatpush1.bf16.msra.mxu0 0
      %1905 = vmatprep.subr.bf16.mxu0 0
      %1906 = vmatpush1.bf16.msra.mxu0 0
      %1907 = vmatprep.subr.bf16.mxu0 0
      %1908 = vmatpush1.bf16.msra.mxu0 0
      %1909 = vmatprep.subr.bf16.mxu0 0
      %1910 = vmatpush1.bf16.msra.mxu0 0
      %1911 = vmatprep.subr.bf16.mxu0 0
      %1912 = vmatpush1.bf16.msra.mxu0 0
      %1913 = vmatprep.subr.bf16.mxu0 0
      %1914 = vmatpush1.bf16.msra.mxu0 0
      %1915 = vmatprep.subr.bf16.mxu0 0
      %1916 = vmatpush1.bf16.msra.mxu0 0
      %1917 = vmatprep.subr.bf16.mxu0 0
      %1918 = vmatpush1.bf16.msra.mxu0 %v1901
      %1919 = vmatprep.subr.bf16.mxu0 0
      %1920 = vmatpush2.bf16.msra.mxu0 0
      %1921 = vmatprep.subr.bf16.mxu0 0
      %1922 = vmatpush2.bf16.msra.mxu0 0
      %1923 = vmatprep.subr.bf16.mxu0 0
      %1924 = vmatpush2.bf16.msra.mxu0 0
      %1925 = vmatprep.subr.bf16.mxu0 0
      %1926 = vmatpush2.bf16.msra.mxu0 0
      %1927 = vmatprep.subr.bf16.mxu0 0
      %1928 = vmatpush2.bf16.msra.mxu0 0
      %1929 = vmatprep.subr.bf16.mxu0 0
      %1930 = vmatpush2.bf16.msra.mxu0 0
      %1931 = vmatprep.subr.bf16.mxu0 0
      %1932 = vmatpush2.bf16.msra.mxu0 0
      %1933 = vmatprep.subr.bf16.mxu0 0
      %1934 = vmatpush2.bf16.msra.mxu0 0
      %1935 = vmatprep.mubr.bf16.mxu0 0
      %1936 = vmatmul.mubr.bf16.gmra.mxu0 %v1838
      %v1937 = vpop.f32.mrf.mxu0
      %v1938 = vadd.f32 0.0, %v1937
      %v1939 = vpop.f32.mrf.mxu0
      %v1940 = vpop.f32.mrf.mxu0
      %v1941 = vadd.f32 0.0, %v1940
      %v1942 = vpop.f32.mrf.mxu0
      %1943 = vmatprep.mubr.bf16.mxu0 0
      %1944 = vmatmul.mubr.bf16.gmra.mxu0 %v1841
      %v1945 = vpop.f32.mrf.mxu0
      %v1946 = vadd.f32 0.0, %v1945
      %v1947 = vpop.f32.mrf.mxu0
      %v1948 = vpop.f32.mrf.mxu0
      %v1949 = vadd.f32 0.0, %v1948
      %v1950 = vpop.f32.mrf.mxu0
      %1951 = vmatprep.mubr.bf16.mxu0 0
      %1952 = vmatmul.mubr.bf16.gmra.mxu0 %v1844
      %v1953 = vpop.f32.mrf.mxu0
      %v1954 = vadd.f32 0.0, %v1953
      %v1955 = vpop.f32.mrf.mxu0
      %v1956 = vpop.f32.mrf.mxu0
      %v1957 = vadd.f32 0.0, %v1956
      %v1958 = vpop.f32.mrf.mxu0
      %1959 = vmatprep.mubr.bf16.mxu0 0
      %1960 = vmatmul.mubr.bf16.gmra.mxu0 %v1847
      %v1961 = vpop.f32.mrf.mxu0
      %v1962 = vadd.f32 0.0, %v1961
      %v1963 = vpop.f32.mrf.mxu0
      %v1964 = vpop.f32.mrf.mxu0
      %v1965 = vadd.f32 0.0, %v1964
      %v1966 = vpop.f32.mrf.mxu0
      %1967 = vmatprep.mubr.bf16.mxu0 0
      %1968 = vmatmul.mubr.bf16.gmra.mxu0 %v1850
      %v1969 = vpop.f32.mrf.mxu0
      %v1970 = vadd.f32 0.0, %v1969
      %v1971 = vpop.f32.mrf.mxu0
      %v1972 = vpop.f32.mrf.mxu0
      %v1973 = vadd.f32 0.0, %v1972
      %v1974 = vpop.f32.mrf.mxu0
      %1975 = vmatprep.mubr.bf16.mxu0 0
      %1976 = vmatmul.mubr.bf16.gmra.mxu0 %v1853
      %v1977 = vpop.f32.mrf.mxu0
      %v1978 = vadd.f32 0.0, %v1977
      %v1979 = vpop.f32.mrf.mxu0
      %v1980 = vpop.f32.mrf.mxu0
      %v1981 = vadd.f32 0.0, %v1980
      %v1982 = vpop.f32.mrf.mxu0
      %1983 = vmatprep.mubr.bf16.mxu0 0
      %1984 = vmatmul.mubr.bf16.gmra.mxu0 %v1856
      %v1985 = vpop.f32.mrf.mxu0
      %v1986 = vadd.f32 0.0, %v1985
      %v1987 = vpop.f32.mrf.mxu0
      %v1988 = vpop.f32.mrf.mxu0
      %v1989 = vadd.f32 0.0, %v1988
      %v1990 = vpop.f32.mrf.mxu0
      %1991 = vmatprep.mubr.bf16.mxu0 0
      %1992 = vmatmul.mubr.bf16.gmra.mxu0 %v1859
      %v1993 = vpop.f32.mrf.mxu0
      %v1994 = vadd.f32 0.0, %v1993
      %v1995 = vpop.f32.mrf.mxu0
      %v1996 = vpop.f32.mrf.mxu0
      %v1997 = vadd.f32 0.0, %v1996
      %v1998 = vpop.f32.mrf.mxu0
      %1999 = vmatprep.mubr.bf16.mxu0 0
      %2000 = vmatmul.mubr.bf16.gmra.mxu0 %v1862
      %v2001 = vpop.f32.mrf.mxu0
      %v2002 = vadd.f32 0.0, %v2001
      %v2003 = vpop.f32.mrf.mxu0
      %v2004 = vpop.f32.mrf.mxu0
      %v2005 = vadd.f32 0.0, %v2004
      %v2006 = vpop.f32.mrf.mxu0
      %2007 = vmatprep.mubr.bf16.mxu0 0
      %2008 = vmatmul.mubr.bf16.gmra.mxu0 %v1865
      %v2009 = vpop.f32.mrf.mxu0
      %v2010 = vadd.f32 0.0, %v2009
      %v2011 = vpop.f32.mrf.mxu0
      %v2012 = vpop.f32.mrf.mxu0
      %v2013 = vadd.f32 0.0, %v2012
      %v2014 = vpop.f32.mrf.mxu0
      %2015 = vmatprep.mubr.bf16.mxu0 0
      %2016 = vmatmul.mubr.bf16.gmra.mxu0 %v1868
      %v2017 = vpop.f32.mrf.mxu0
      %v2018 = vadd.f32 0.0, %v2017
      %v2019 = vpop.f32.mrf.mxu0
      %v2020 = vpop.f32.mrf.mxu0
      %v2021 = vadd.f32 0.0, %v2020
      %v2022 = vpop.f32.mrf.mxu0
      %2023 = vmatprep.mubr.bf16.mxu0 0
      %2024 = vmatmul.mubr.bf16.gmra.mxu0 %v1871
      %v2025 = vpop.f32.mrf.mxu0
      %v2026 = vadd.f32 0.0, %v2025
      %v2027 = vpop.f32.mrf.mxu0
      %v2028 = vpop.f32.mrf.mxu0
      %v2029 = vadd.f32 0.0, %v2028
      %v2030 = vpop.f32.mrf.mxu0
      %2031 = vmatprep.mubr.bf16.mxu0 0
      %2032 = vmatmul.mubr.bf16.gmra.mxu0 %v1874
      %v2033 = vpop.f32.mrf.mxu0
      %v2034 = vadd.f32 0.0, %v2033
      %v2035 = vpop.f32.mrf.mxu0
      %v2036 = vpop.f32.mrf.mxu0
      %v2037 = vadd.f32 0.0, %v2036
      %v2038 = vpop.f32.mrf.mxu0
      %2039 = vmatprep.mubr.bf16.mxu0 0
      %2040 = vmatmul.mubr.bf16.gmra.mxu0 %v1877
      %v2041 = vpop.f32.mrf.mxu0
      %v2042 = vadd.f32 0.0, %v2041
      %v2043 = vpop.f32.mrf.mxu0
      %v2044 = vpop.f32.mrf.mxu0
      %v2045 = vadd.f32 0.0, %v2044
      %v2046 = vpop.f32.mrf.mxu0
      %2047 = vmatprep.mubr.bf16.mxu0 0
      %2048 = vmatmul.mubr.bf16.gmra.mxu0 %v1880
      %v2049 = vpop.f32.mrf.mxu0
      %v2050 = vadd.f32 0.0, %v2049
      %v2051 = vpop.f32.mrf.mxu0
      %v2052 = vpop.f32.mrf.mxu0
      %v2053 = vadd.f32 0.0, %v2052
      %v2054 = vpop.f32.mrf.mxu0
      %2055 = vmatprep.mubr.bf16.mxu0 0
      %2056 = vmatmul.mubr.bf16.gmra.mxu0 %v1883
      %v2057 = vpop.f32.mrf.mxu0
      %v2058 = vadd.f32 0.0, %v2057
      %v2059 = vpop.f32.mrf.mxu0
      %v2060 = vpop.f32.mrf.mxu0
      %v2061 = vadd.f32 0.0, %v2060
      %v2062 = vpop.f32.mrf.mxu0
      %2063 = vmatprep.mubr.bf16.mxu0 0
      %2064 = vmatmul.mubr.bf16.gmra.mxu0 %v1886
      %v2065 = vpop.f32.mrf.mxu0
      %v2066 = vadd.f32 0.0, %v2065
      %v2067 = vpop.f32.mrf.mxu0
      %v2068 = vpop.f32.mrf.mxu0
      %v2069 = vadd.f32 0.0, %v2068
      %v2070 = vpop.f32.mrf.mxu0
      %2071 = vmatprep.mubr.bf16.mxu0 0
      %2072 = vmatmul.mubr.bf16.gmra.mxu0 %v1889
      %v2073 = vpop.f32.mrf.mxu0
      %v2074 = vadd.f32 0.0, %v2073
      %v2075 = vpop.f32.mrf.mxu0
      %v2076 = vpop.f32.mrf.mxu0
      %v2077 = vadd.f32 0.0, %v2076
      %v2078 = vpop.f32.mrf.mxu0
      %2079 = vmatprep.mubr.bf16.mxu0 0
      %2080 = vmatmul.mubr.bf16.gmra.mxu0 %v1892
      %v2081 = vpop.f32.mrf.mxu0
      %v2082 = vadd.f32 0.0, %v2081
      %v2083 = vpop.f32.mrf.mxu0
      %v2084 = vpop.f32.mrf.mxu0
      %v2085 = vadd.f32 0.0, %v2084
      %v2086 = vpop.f32.mrf.mxu0
      %2087 = vmatprep.mubr.bf16.mxu0 0
      %2088 = vmatmul.mubr.bf16.gmra.mxu0 %v1895
      %v2089 = vpop.f32.mrf.mxu0
      %v2090 = vadd.f32 0.0, %v2089
      %v2091 = vpop.f32.mrf.mxu0
      %v2092 = vpop.f32.mrf.mxu0
      %v2093 = vadd.f32 0.0, %v2092
      %v2094 = vpop.f32.mrf.mxu0
      %2095 = vmatprep.mubr.bf16.mxu0 0
      %2096 = vmatmul.mubr.bf16.gmra.mxu0 %v1898
      %v2097 = vpop.f32.mrf.mxu0
      %v2098 = vadd.f32 0.0, %v2097
      %v2099 = vpop.f32.mrf.mxu0
      %v2100 = vpop.f32.mrf.mxu0
      %v2101 = vpop.f32.mrf.mxu0
      %2102 = vdwg.mxu0
      %v2103 = vadd.f32 %v1773, %v1938
      %v2104 = vadd.f32 %v1774, %v1941
      %v2105 = vadd.f32 %v1775, %v1946
      %v2106 = vadd.f32 %v1776, %v1949
      %v2107 = vadd.f32 %v1777, %v1954
      %v2108 = vadd.f32 %v1778, %v1957
      %v2109 = vadd.f32 %v1779, %v1962
      %v2110 = vadd.f32 %v1780, %v1965
      %v2111 = vadd.f32 %v1781, %v1970
      %v2112 = vadd.f32 %v1782, %v1973
      %v2113 = vadd.f32 %v1783, %v1978
      %v2114 = vadd.f32 %v1784, %v1981
      %v2115 = vadd.f32 %v1785, %v1986
      %v2116 = vadd.f32 %v1786, %v1989
      %v2117 = vadd.f32 %v1787, %v1994
      %v2118 = vadd.f32 %v1788, %v1997
      %v2119 = vadd.f32 %v1789, %v2002
      %v2120 = vadd.f32 %v1790, %v2005
      %v2121 = vadd.f32 %v1791, %v2010
      %v2122 = vadd.f32 %v1792, %v2013
      %v2123 = vadd.f32 %v1793, %v2018
      %v2124 = vadd.f32 %v1794, %v2021
      %v2125 = vadd.f32 %v1795, %v2026
      %v2126 = vadd.f32 %v1796, %v2029
      %v2127 = vadd.f32 %v1797, %v2034
      %v2128 = vadd.f32 %v1798, %v2037
      %v2129 = vadd.f32 %v1799, %v2042
      %v2130 = vadd.f32 %v1800, %v2045
      %v2131 = vadd.f32 %v1801, %v2050
      %v2132 = vadd.f32 %v1802, %v2053
      %v2133 = vadd.f32 %v1803, %v2058
      %v2134 = vadd.f32 %v1804, %v2061
      %v2135 = vadd.f32 %v1805, %v2066
      %v2136 = vadd.f32 %v1806, %v2069
      %v2137 = vadd.f32 %v1807, %v2074
      %v2138 = vadd.f32 %v1808, %v2077
      %v2139 = vadd.f32 %v1809, %v2082
      %v2140 = vadd.f32 %v1810, %v2085
      %v2141 = vadd.f32 %v1811, %v2090
      %v2142 = vadd.f32 %v1812, %v2093
      %v2143 = vadd.f32 %v1813, %v2098
      %v2144 = vpack.c.bf16 %v346, %v345
      %s2145 = scalar_lea.vmem %s1, 10
      %v2146 = vld [vmem:[%s2145] sm:$0x3]
      %vm2147 = vsmask.f32 7424
      %v2148 = vshrl.u32 %v1814, 16
      %v2150 = vshll.u32 %v1814, 16
      %v2152 = vrot.slane %v2150, 1
      %v2153 = vor.u32 %v2148, %v2152
      %v2154 = vshll.u32 %v1815, 16
      %v2156 = vrot.slane %v2154, 1
      %v2157 = vsel %vm2147, %v2153, %v2156
      %v2158 = vshrl.u32 %v1815, 16
      %v2160 = vor.u32 %v2158, %v2156
      %v2161 = vshll.u32 %v1816, 16
      %v2163 = vrot.slane %v2161, 1
      %v2164 = vsel %vm2147, %v2160, %v2163
      %v2165 = vshrl.u32 %v1816, 16
      %v2167 = vor.u32 %v2165, %v2163
      %v2168 = vshll.u32 %v1817, 16
      %v2170 = vrot.slane %v2168, 1
      %v2171 = vsel %vm2147, %v2167, %v2170
      %v2172 = vshrl.u32 %v1817, 16
      %v2174 = vor.u32 %v2172, %v2170
      %v2175 = vshll.u32 %v1818, 16
      %v2177 = vrot.slane %v2175, 1
      %v2178 = vsel %vm2147, %v2174, %v2177
      %v2179 = vshrl.u32 %v1818, 16
      %v2181 = vor.u32 %v2179, %v2177
      %v2182 = vshll.u32 %v1819, 16
      %v2184 = vrot.slane %v2182, 1
      %v2185 = vsel %vm2147, %v2181, %v2184
      %v2186 = vshrl.u32 %v1819, 16
      %v2188 = vor.u32 %v2186, %v2184
      %v2189 = vshll.u32 %v1820, 16
      %v2191 = vrot.slane %v2189, 1
      %v2192 = vsel %vm2147, %v2188, %v2191
      %v2193 = vshrl.u32 %v1820, 16
      %v2195 = vor.u32 %v2193, %v2191
      %v2196 = vshll.u32 %v1821, 16
      %v2198 = vrot.slane %v2196, 1
      %v2199 = vsel %vm2147, %v2195, %v2198
      %v2200 = vshrl.u32 %v1821, 16
      %v2202 = vor.u32 %v2200, %v2198
      %v2203 = vshll.u32 %v1822, 16
      %v2205 = vrot.slane %v2203, 1
      %v2206 = vsel %vm2147, %v2202, %v2205
      %v2207 = vshrl.u32 %v1822, 16
      %v2209 = vor.u32 %v2207, %v2205
      %v2210 = vshll.u32 %v1823, 16
      %v2212 = vrot.slane %v2210, 1
      %v2213 = vsel %vm2147, %v2209, %v2212
      %v2214 = vshrl.u32 %v1823, 16
      %v2216 = vor.u32 %v2214, %v2212
      %v2217 = vshll.u32 %v1824, 16
      %v2219 = vrot.slane %v2217, 1
      %v2220 = vsel %vm2147, %v2216, %v2219
      %v2221 = vshrl.u32 %v1824, 16
      %v2223 = vor.u32 %v2221, %v2219
      %v2224 = vshll.u32 %v1825, 16
      %v2226 = vrot.slane %v2224, 1
      %v2227 = vsel %vm2147, %v2223, %v2226
      %v2228 = vshrl.u32 %v1825, 16
      %v2230 = vor.u32 %v2228, %v2226
      %v2231 = vshll.u32 %v1826, 16
      %v2233 = vrot.slane %v2231, 1
      %v2234 = vsel %vm2147, %v2230, %v2233
      %v2235 = vshrl.u32 %v1826, 16
      %v2237 = vor.u32 %v2235, %v2233
      %v2238 = vshll.u32 %v1827, 16
      %v2240 = vrot.slane %v2238, 1
      %v2241 = vsel %vm2147, %v2237, %v2240
      %v2242 = vshrl.u32 %v1827, 16
      %v2244 = vor.u32 %v2242, %v2240
      %v2245 = vshll.u32 %v1828, 16
      %v2247 = vrot.slane %v2245, 1
      %v2248 = vsel %vm2147, %v2244, %v2247
      %v2249 = vshrl.u32 %v1828, 16
      %v2251 = vor.u32 %v2249, %v2247
      %v2252 = vshll.u32 %v1829, 16
      %v2254 = vrot.slane %v2252, 1
      %v2255 = vsel %vm2147, %v2251, %v2254
      %v2256 = vshrl.u32 %v1829, 16
      %v2258 = vor.u32 %v2256, %v2254
      %v2259 = vshll.u32 %v1830, 16
      %v2261 = vrot.slane %v2259, 1
      %v2262 = vsel %vm2147, %v2258, %v2261
      %v2263 = vshrl.u32 %v1830, 16
      %v2265 = vor.u32 %v2263, %v2261
      %v2266 = vshll.u32 %v1831, 16
      %v2268 = vrot.slane %v2266, 1
      %v2269 = vsel %vm2147, %v2265, %v2268
      %v2270 = vshrl.u32 %v1831, 16
      %v2272 = vor.u32 %v2270, %v2268
      %v2273 = vshll.u32 %v1832, 16
      %v2275 = vrot.slane %v2273, 1
      %v2276 = vsel %vm2147, %v2272, %v2275
      %v2277 = vshrl.u32 %v1832, 16
      %v2279 = vor.u32 %v2277, %v2275
      %v2280 = vshll.u32 %v1833, 16
      %v2282 = vrot.slane %v2280, 1
      %v2283 = vsel %vm2147, %v2279, %v2282
      %v2284 = vshrl.u32 %v1833, 16
      %v2286 = vor.u32 %v2284, %v2282
      %v2288 = vshll.u32 %v2144, 16
      %v2290 = vrot.slane %v2288, 1
      %v2291 = vsel %vm2147, %v2286, %v2290
      %v2292 = vshrl.u32 %v2144, 16
      %v2294 = vor.u32 %v2292, %v2290
      %v2296 = vsel %vm436, %v2157, 0
      %v2299 = vsel %vm436, %v2164, 0
      %v2302 = vsel %vm436, %v2171, 0
      %v2305 = vsel %vm436, %v2178, 0
      %v2308 = vsel %vm436, %v2185, 0
      %v2311 = vsel %vm436, %v2192, 0
      %v2314 = vsel %vm436, %v2199, 0
      %v2317 = vsel %vm436, %v2206, 0
      %v2320 = vsel %vm436, %v2213, 0
      %v2323 = vsel %vm436, %v2220, 0
      %v2326 = vsel %vm436, %v2227, 0
      %v2329 = vsel %vm436, %v2234, 0
      %v2332 = vsel %vm436, %v2241, 0
      %v2335 = vsel %vm436, %v2248, 0
      %v2338 = vsel %vm436, %v2255, 0
      %v2341 = vsel %vm436, %v2262, 0
      %v2344 = vsel %vm436, %v2269, 0
      %v2347 = vsel %vm436, %v2276, 0
      %v2350 = vsel %vm436, %v2283, 0
      %v2353 = vsel %vm436, %v2291, 0
      %v2356 = vsel %vm436, %v2294, 0
      %v2359 = vsel %vm500, %v2146, 0
      %2361 = vmatprep.subr.bf16.mxu0 0
      %2362 = vmatpush1.bf16.msra.mxu0 0
      %2363 = vmatprep.subr.bf16.mxu0 0
      %2364 = vmatpush1.bf16.msra.mxu0 0
      %2365 = vmatprep.subr.bf16.mxu0 0
      %2366 = vmatpush1.bf16.msra.mxu0 0
      %2367 = vmatprep.subr.bf16.mxu0 0
      %2368 = vmatpush1.bf16.msra.mxu0 0
      %2369 = vmatprep.subr.bf16.mxu0 0
      %2370 = vmatpush1.bf16.msra.mxu0 0
      %2371 = vmatprep.subr.bf16.mxu0 0
      %2372 = vmatpush1.bf16.msra.mxu0 0
      %2373 = vmatprep.subr.bf16.mxu0 0
      %2374 = vmatpush1.bf16.msra.mxu0 0
      %2375 = vmatprep.subr.bf16.mxu0 0
      %2376 = vmatpush1.bf16.msra.mxu0 %v2359
      %2377 = vmatprep.subr.bf16.mxu0 0
      %2378 = vmatpush2.bf16.msra.mxu0 0
      %2379 = vmatprep.subr.bf16.mxu0 0
      %2380 = vmatpush2.bf16.msra.mxu0 0
      %2381 = vmatprep.subr.bf16.mxu0 0
      %2382 = vmatpush2.bf16.msra.mxu0 0
      %2383 = vmatprep.subr.bf16.mxu0 0
      %2384 = vmatpush2.bf16.msra.mxu0 0
      %2385 = vmatprep.subr.bf16.mxu0 0
      %2386 = vmatpush2.bf16.msra.mxu0 0
      %2387 = vmatprep.subr.bf16.mxu0 0
      %2388 = vmatpush2.bf16.msra.mxu0 0
      %2389 = vmatprep.subr.bf16.mxu0 0
      %2390 = vmatpush2.bf16.msra.mxu0 0
      %2391 = vmatprep.subr.bf16.mxu0 0
      %2392 = vmatpush2.bf16.msra.mxu0 0
      %2393 = vmatprep.mubr.bf16.mxu0 0
      %2394 = vmatmul.mubr.bf16.gmra.mxu0 %v2296
      %v2395 = vpop.f32.mrf.mxu0
      %v2396 = vadd.f32 0.0, %v2395
      %v2397 = vpop.f32.mrf.mxu0
      %v2398 = vpop.f32.mrf.mxu0
      %v2399 = vadd.f32 0.0, %v2398
      %v2400 = vpop.f32.mrf.mxu0
      %2401 = vmatprep.mubr.bf16.mxu0 0
      %2402 = vmatmul.mubr.bf16.gmra.mxu0 %v2299
      %v2403 = vpop.f32.mrf.mxu0
      %v2404 = vadd.f32 0.0, %v2403
      %v2405 = vpop.f32.mrf.mxu0
      %v2406 = vpop.f32.mrf.mxu0
      %v2407 = vadd.f32 0.0, %v2406
      %v2408 = vpop.f32.mrf.mxu0
      %2409 = vmatprep.mubr.bf16.mxu0 0
      %2410 = vmatmul.mubr.bf16.gmra.mxu0 %v2302
      %v2411 = vpop.f32.mrf.mxu0
      %v2412 = vadd.f32 0.0, %v2411
      %v2413 = vpop.f32.mrf.mxu0
      %v2414 = vpop.f32.mrf.mxu0
      %v2415 = vadd.f32 0.0, %v2414
      %v2416 = vpop.f32.mrf.mxu0
      %2417 = vmatprep.mubr.bf16.mxu0 0
      %2418 = vmatmul.mubr.bf16.gmra.mxu0 %v2305
      %v2419 = vpop.f32.mrf.mxu0
      %v2420 = vadd.f32 0.0, %v2419
      %v2421 = vpop.f32.mrf.mxu0
      %v2422 = vpop.f32.mrf.mxu0
      %v2423 = vadd.f32 0.0, %v2422
      %v2424 = vpop.f32.mrf.mxu0
      %2425 = vmatprep.mubr.bf16.mxu0 0
      %2426 = vmatmul.mubr.bf16.gmra.mxu0 %v2308
      %v2427 = vpop.f32.mrf.mxu0
      %v2428 = vadd.f32 0.0, %v2427
      %v2429 = vpop.f32.mrf.mxu0
      %v2430 = vpop.f32.mrf.mxu0
      %v2431 = vadd.f32 0.0, %v2430
      %v2432 = vpop.f32.mrf.mxu0
      %2433 = vmatprep.mubr.bf16.mxu0 0
      %2434 = vmatmul.mubr.bf16.gmra.mxu0 %v2311
      %v2435 = vpop.f32.mrf.mxu0
      %v2436 = vadd.f32 0.0, %v2435
      %v2437 = vpop.f32.mrf.mxu0
      %v2438 = vpop.f32.mrf.mxu0
      %v2439 = vadd.f32 0.0, %v2438
      %v2440 = vpop.f32.mrf.mxu0
      %2441 = vmatprep.mubr.bf16.mxu0 0
      %2442 = vmatmul.mubr.bf16.gmra.mxu0 %v2314
      %v2443 = vpop.f32.mrf.mxu0
      %v2444 = vadd.f32 0.0, %v2443
      %v2445 = vpop.f32.mrf.mxu0
      %v2446 = vpop.f32.mrf.mxu0
      %v2447 = vadd.f32 0.0, %v2446
      %v2448 = vpop.f32.mrf.mxu0
      %2449 = vmatprep.mubr.bf16.mxu0 0
      %2450 = vmatmul.mubr.bf16.gmra.mxu0 %v2317
      %v2451 = vpop.f32.mrf.mxu0
      %v2452 = vadd.f32 0.0, %v2451
      %v2453 = vpop.f32.mrf.mxu0
      %v2454 = vpop.f32.mrf.mxu0
      %v2455 = vadd.f32 0.0, %v2454
      %v2456 = vpop.f32.mrf.mxu0
      %2457 = vmatprep.mubr.bf16.mxu0 0
      %2458 = vmatmul.mubr.bf16.gmra.mxu0 %v2320
      %v2459 = vpop.f32.mrf.mxu0
      %v2460 = vadd.f32 0.0, %v2459
      %v2461 = vpop.f32.mrf.mxu0
      %v2462 = vpop.f32.mrf.mxu0
      %v2463 = vadd.f32 0.0, %v2462
      %v2464 = vpop.f32.mrf.mxu0
      %2465 = vmatprep.mubr.bf16.mxu0 0
      %2466 = vmatmul.mubr.bf16.gmra.mxu0 %v2323
      %v2467 = vpop.f32.mrf.mxu0
      %v2468 = vadd.f32 0.0, %v2467
      %v2469 = vpop.f32.mrf.mxu0
      %v2470 = vpop.f32.mrf.mxu0
      %v2471 = vadd.f32 0.0, %v2470
      %v2472 = vpop.f32.mrf.mxu0
      %2473 = vmatprep.mubr.bf16.mxu0 0
      %2474 = vmatmul.mubr.bf16.gmra.mxu0 %v2326
      %v2475 = vpop.f32.mrf.mxu0
      %v2476 = vadd.f32 0.0, %v2475
      %v2477 = vpop.f32.mrf.mxu0
      %v2478 = vpop.f32.mrf.mxu0
      %v2479 = vadd.f32 0.0, %v2478
      %v2480 = vpop.f32.mrf.mxu0
      %2481 = vmatprep.mubr.bf16.mxu0 0
      %2482 = vmatmul.mubr.bf16.gmra.mxu0 %v2329
      %v2483 = vpop.f32.mrf.mxu0
      %v2484 = vadd.f32 0.0, %v2483
      %v2485 = vpop.f32.mrf.mxu0
      %v2486 = vpop.f32.mrf.mxu0
      %v2487 = vadd.f32 0.0, %v2486
      %v2488 = vpop.f32.mrf.mxu0
      %2489 = vmatprep.mubr.bf16.mxu0 0
      %2490 = vmatmul.mubr.bf16.gmra.mxu0 %v2332
      %v2491 = vpop.f32.mrf.mxu0
      %v2492 = vadd.f32 0.0, %v2491
      %v2493 = vpop.f32.mrf.mxu0
      %v2494 = vpop.f32.mrf.mxu0
      %v2495 = vadd.f32 0.0, %v2494
      %v2496 = vpop.f32.mrf.mxu0
      %2497 = vmatprep.mubr.bf16.mxu0 0
      %2498 = vmatmul.mubr.bf16.gmra.mxu0 %v2335
      %v2499 = vpop.f32.mrf.mxu0
      %v2500 = vadd.f32 0.0, %v2499
      %v2501 = vpop.f32.mrf.mxu0
      %v2502 = vpop.f32.mrf.mxu0
      %v2503 = vadd.f32 0.0, %v2502
      %v2504 = vpop.f32.mrf.mxu0
      %2505 = vmatprep.mubr.bf16.mxu0 0
      %2506 = vmatmul.mubr.bf16.gmra.mxu0 %v2338
      %v2507 = vpop.f32.mrf.mxu0
      %v2508 = vadd.f32 0.0, %v2507
      %v2509 = vpop.f32.mrf.mxu0
      %v2510 = vpop.f32.mrf.mxu0
      %v2511 = vadd.f32 0.0, %v2510
      %v2512 = vpop.f32.mrf.mxu0
      %2513 = vmatprep.mubr.bf16.mxu0 0
      %2514 = vmatmul.mubr.bf16.gmra.mxu0 %v2341
      %v2515 = vpop.f32.mrf.mxu0
      %v2516 = vadd.f32 0.0, %v2515
      %v2517 = vpop.f32.mrf.mxu0
      %v2518 = vpop.f32.mrf.mxu0
      %v2519 = vadd.f32 0.0, %v2518
      %v2520 = vpop.f32.mrf.mxu0
      %2521 = vmatprep.mubr.bf16.mxu0 0
      %2522 = vmatmul.mubr.bf16.gmra.mxu0 %v2344
      %v2523 = vpop.f32.mrf.mxu0
      %v2524 = vadd.f32 0.0, %v2523
      %v2525 = vpop.f32.mrf.mxu0
      %v2526 = vpop.f32.mrf.mxu0
      %v2527 = vadd.f32 0.0, %v2526
      %v2528 = vpop.f32.mrf.mxu0
      %2529 = vmatprep.mubr.bf16.mxu0 0
      %2530 = vmatmul.mubr.bf16.gmra.mxu0 %v2347
      %v2531 = vpop.f32.mrf.mxu0
      %v2532 = vadd.f32 0.0, %v2531
      %v2533 = vpop.f32.mrf.mxu0
      %v2534 = vpop.f32.mrf.mxu0
      %v2535 = vadd.f32 0.0, %v2534
      %v2536 = vpop.f32.mrf.mxu0
      %2537 = vmatprep.mubr.bf16.mxu0 0
      %2538 = vmatmul.mubr.bf16.gmra.mxu0 %v2350
      %v2539 = vpop.f32.mrf.mxu0
      %v2540 = vadd.f32 0.0, %v2539
      %v2541 = vpop.f32.mrf.mxu0
      %v2542 = vpop.f32.mrf.mxu0
      %v2543 = vadd.f32 0.0, %v2542
      %v2544 = vpop.f32.mrf.mxu0
      %2545 = vmatprep.mubr.bf16.mxu0 0
      %2546 = vmatmul.mubr.bf16.gmra.mxu0 %v2353
      %v2547 = vpop.f32.mrf.mxu0
      %v2548 = vadd.f32 0.0, %v2547
      %v2549 = vpop.f32.mrf.mxu0
      %v2550 = vpop.f32.mrf.mxu0
      %v2551 = vadd.f32 0.0, %v2550
      %v2552 = vpop.f32.mrf.mxu0
      %2553 = vmatprep.mubr.bf16.mxu0 0
      %2554 = vmatmul.mubr.bf16.gmra.mxu0 %v2356
      %v2555 = vpop.f32.mrf.mxu0
      %v2556 = vadd.f32 0.0, %v2555
      %v2557 = vpop.f32.mrf.mxu0
      %v2558 = vpop.f32.mrf.mxu0
      %v2559 = vpop.f32.mrf.mxu0
      %2560 = vdwg.mxu0
      %v2561 = vadd.f32 %v2103, %v2396
      %v2562 = vadd.f32 %v2104, %v2399
      %v2563 = vadd.f32 %v2105, %v2404
      %v2564 = vadd.f32 %v2106, %v2407
      %v2565 = vadd.f32 %v2107, %v2412
      %v2566 = vadd.f32 %v2108, %v2415
      %v2567 = vadd.f32 %v2109, %v2420
      %v2568 = vadd.f32 %v2110, %v2423
      %v2569 = vadd.f32 %v2111, %v2428
      %v2570 = vadd.f32 %v2112, %v2431
      %v2571 = vadd.f32 %v2113, %v2436
      %v2572 = vadd.f32 %v2114, %v2439
      %v2573 = vadd.f32 %v2115, %v2444
      %v2574 = vadd.f32 %v2116, %v2447
      %v2575 = vadd.f32 %v2117, %v2452
      %v2576 = vadd.f32 %v2118, %v2455
      %v2577 = vadd.f32 %v2119, %v2460
      %v2578 = vadd.f32 %v2120, %v2463
      %v2579 = vadd.f32 %v2121, %v2468
      %v2580 = vadd.f32 %v2122, %v2471
      %v2581 = vadd.f32 %v2123, %v2476
      %v2582 = vadd.f32 %v2124, %v2479
      %v2583 = vadd.f32 %v2125, %v2484
      %v2584 = vadd.f32 %v2126, %v2487
      %v2585 = vadd.f32 %v2127, %v2492
      %v2586 = vadd.f32 %v2128, %v2495
      %v2587 = vadd.f32 %v2129, %v2500
      %v2588 = vadd.f32 %v2130, %v2503
      %v2589 = vadd.f32 %v2131, %v2508
      %v2590 = vadd.f32 %v2132, %v2511
      %v2591 = vadd.f32 %v2133, %v2516
      %v2592 = vadd.f32 %v2134, %v2519
      %v2593 = vadd.f32 %v2135, %v2524
      %v2594 = vadd.f32 %v2136, %v2527
      %v2595 = vadd.f32 %v2137, %v2532
      %v2596 = vadd.f32 %v2138, %v2535
      %v2597 = vadd.f32 %v2139, %v2540
      %v2598 = vadd.f32 %v2140, %v2543
      %v2599 = vadd.f32 %v2141, %v2548
      %v2600 = vadd.f32 %v2142, %v2551
      %v2601 = vadd.f32 %v2143, %v2556
      %v2602 = vpack.c.bf16 %v348, %v347
      %s2603 = scalar_lea.vmem %s1, 12
      %v2604 = vld [vmem:[%s2603] sm:$0x3]
      %v2606 = vshll.u32 %v2602, 16
      %v2608 = vrot.slane %v2606, 1
      %v2609 = vsel %vm2147, %v2294, %v2608
      %v2610 = vshrl.u32 %v2602, 16
      %v2612 = vor.u32 %v2610, %v2608
      %v2614 = vsel %vm436, %v2609, 0
      %v2617 = vsel %vm436, %v2612, 0
      %v2620 = vsel %vm500, %v2604, 0
      %2622 = vmatprep.subr.bf16.mxu0 0
      %2623 = vmatpush1.bf16.msra.mxu0 0
      %2624 = vmatprep.subr.bf16.mxu0 0
      %2625 = vmatpush1.bf16.msra.mxu0 0
      %2626 = vmatprep.subr.bf16.mxu0 0
      %2627 = vmatpush1.bf16.msra.mxu0 0
      %2628 = vmatprep.subr.bf16.mxu0 0
      %2629 = vmatpush1.bf16.msra.mxu0 0
      %2630 = vmatprep.subr.bf16.mxu0 0
      %2631 = vmatpush1.bf16.msra.mxu0 0
      %2632 = vmatprep.subr.bf16.mxu0 0
      %2633 = vmatpush1.bf16.msra.mxu0 0
      %2634 = vmatprep.subr.bf16.mxu0 0
      %2635 = vmatpush1.bf16.msra.mxu0 0
      %2636 = vmatprep.subr.bf16.mxu0 0
      %2637 = vmatpush1.bf16.msra.mxu0 %v2620
      %2638 = vmatprep.subr.bf16.mxu0 0
      %2639 = vmatpush2.bf16.msra.mxu0 0
      %2640 = vmatprep.subr.bf16.mxu0 0
      %2641 = vmatpush2.bf16.msra.mxu0 0
      %2642 = vmatprep.subr.bf16.mxu0 0
      %2643 = vmatpush2.bf16.msra.mxu0 0
      %2644 = vmatprep.subr.bf16.mxu0 0
      %2645 = vmatpush2.bf16.msra.mxu0 0
      %2646 = vmatprep.subr.bf16.mxu0 0
      %2647 = vmatpush2.bf16.msra.mxu0 0
      %2648 = vmatprep.subr.bf16.mxu0 0
      %2649 = vmatpush2.bf16.msra.mxu0 0
      %2650 = vmatprep.subr.bf16.mxu0 0
      %2651 = vmatpush2.bf16.msra.mxu0 0
      %2652 = vmatprep.subr.bf16.mxu0 0
      %2653 = vmatpush2.bf16.msra.mxu0 0
      %2654 = vmatprep.mubr.bf16.mxu0 0
      %2655 = vmatmul.mubr.bf16.gmra.mxu0 %v2299
      %v2656 = vpop.f32.mrf.mxu0
      %v2657 = vadd.f32 0.0, %v2656
      %v2658 = vpop.f32.mrf.mxu0
      %v2659 = vpop.f32.mrf.mxu0
      %v2660 = vadd.f32 0.0, %v2659
      %v2661 = vpop.f32.mrf.mxu0
      %2662 = vmatprep.mubr.bf16.mxu0 0
      %2663 = vmatmul.mubr.bf16.gmra.mxu0 %v2302
      %v2664 = vpop.f32.mrf.mxu0
      %v2665 = vadd.f32 0.0, %v2664
      %v2666 = vpop.f32.mrf.mxu0
      %v2667 = vpop.f32.mrf.mxu0
      %v2668 = vadd.f32 0.0, %v2667
      %v2669 = vpop.f32.mrf.mxu0
      %2670 = vmatprep.mubr.bf16.mxu0 0
      %2671 = vmatmul.mubr.bf16.gmra.mxu0 %v2305
      %v2672 = vpop.f32.mrf.mxu0
      %v2673 = vadd.f32 0.0, %v2672
      %v2674 = vpop.f32.mrf.mxu0
      %v2675 = vpop.f32.mrf.mxu0
      %v2676 = vadd.f32 0.0, %v2675
      %v2677 = vpop.f32.mrf.mxu0
      %2678 = vmatprep.mubr.bf16.mxu0 0
      %2679 = vmatmul.mubr.bf16.gmra.mxu0 %v2308
      %v2680 = vpop.f32.mrf.mxu0
      %v2681 = vadd.f32 0.0, %v2680
      %v2682 = vpop.f32.mrf.mxu0
      %v2683 = vpop.f32.mrf.mxu0
      %v2684 = vadd.f32 0.0, %v2683
      %v2685 = vpop.f32.mrf.mxu0
      %2686 = vmatprep.mubr.bf16.mxu0 0
      %2687 = vmatmul.mubr.bf16.gmra.mxu0 %v2311
      %v2688 = vpop.f32.mrf.mxu0
      %v2689 = vadd.f32 0.0, %v2688
      %v2690 = vpop.f32.mrf.mxu0
      %v2691 = vpop.f32.mrf.mxu0
      %v2692 = vadd.f32 0.0, %v2691
      %v2693 = vpop.f32.mrf.mxu0
      %2694 = vmatprep.mubr.bf16.mxu0 0
      %2695 = vmatmul.mubr.bf16.gmra.mxu0 %v2314
      %v2696 = vpop.f32.mrf.mxu0
      %v2697 = vadd.f32 0.0, %v2696
      %v2698 = vpop.f32.mrf.mxu0
      %v2699 = vpop.f32.mrf.mxu0
      %v2700 = vadd.f32 0.0, %v2699
      %v2701 = vpop.f32.mrf.mxu0
      %2702 = vmatprep.mubr.bf16.mxu0 0
      %2703 = vmatmul.mubr.bf16.gmra.mxu0 %v2317
      %v2704 = vpop.f32.mrf.mxu0
      %v2705 = vadd.f32 0.0, %v2704
      %v2706 = vpop.f32.mrf.mxu0
      %v2707 = vpop.f32.mrf.mxu0
      %v2708 = vadd.f32 0.0, %v2707
      %v2709 = vpop.f32.mrf.mxu0
      %2710 = vmatprep.mubr.bf16.mxu0 0
      %2711 = vmatmul.mubr.bf16.gmra.mxu0 %v2320
      %v2712 = vpop.f32.mrf.mxu0
      %v2713 = vadd.f32 0.0, %v2712
      %v2714 = vpop.f32.mrf.mxu0
      %v2715 = vpop.f32.mrf.mxu0
      %v2716 = vadd.f32 0.0, %v2715
      %v2717 = vpop.f32.mrf.mxu0
      %2718 = vmatprep.mubr.bf16.mxu0 0
      %2719 = vmatmul.mubr.bf16.gmra.mxu0 %v2323
      %v2720 = vpop.f32.mrf.mxu0
      %v2721 = vadd.f32 0.0, %v2720
      %v2722 = vpop.f32.mrf.mxu0
      %v2723 = vpop.f32.mrf.mxu0
      %v2724 = vadd.f32 0.0, %v2723
      %v2725 = vpop.f32.mrf.mxu0
      %2726 = vmatprep.mubr.bf16.mxu0 0
      %2727 = vmatmul.mubr.bf16.gmra.mxu0 %v2326
      %v2728 = vpop.f32.mrf.mxu0
      %v2729 = vadd.f32 0.0, %v2728
      %v2730 = vpop.f32.mrf.mxu0
      %v2731 = vpop.f32.mrf.mxu0
      %v2732 = vadd.f32 0.0, %v2731
      %v2733 = vpop.f32.mrf.mxu0
      %2734 = vmatprep.mubr.bf16.mxu0 0
      %2735 = vmatmul.mubr.bf16.gmra.mxu0 %v2329
      %v2736 = vpop.f32.mrf.mxu0
      %v2737 = vadd.f32 0.0, %v2736
      %v2738 = vpop.f32.mrf.mxu0
      %v2739 = vpop.f32.mrf.mxu0
      %v2740 = vadd.f32 0.0, %v2739
      %v2741 = vpop.f32.mrf.mxu0
      %2742 = vmatprep.mubr.bf16.mxu0 0
      %2743 = vmatmul.mubr.bf16.gmra.mxu0 %v2332
      %v2744 = vpop.f32.mrf.mxu0
      %v2745 = vadd.f32 0.0, %v2744
      %v2746 = vpop.f32.mrf.mxu0
      %v2747 = vpop.f32.mrf.mxu0
      %v2748 = vadd.f32 0.0, %v2747
      %v2749 = vpop.f32.mrf.mxu0
      %2750 = vmatprep.mubr.bf16.mxu0 0
      %2751 = vmatmul.mubr.bf16.gmra.mxu0 %v2335
      %v2752 = vpop.f32.mrf.mxu0
      %v2753 = vadd.f32 0.0, %v2752
      %v2754 = vpop.f32.mrf.mxu0
      %v2755 = vpop.f32.mrf.mxu0
      %v2756 = vadd.f32 0.0, %v2755
      %v2757 = vpop.f32.mrf.mxu0
      %2758 = vmatprep.mubr.bf16.mxu0 0
      %2759 = vmatmul.mubr.bf16.gmra.mxu0 %v2338
      %v2760 = vpop.f32.mrf.mxu0
      %v2761 = vadd.f32 0.0, %v2760
      %v2762 = vpop.f32.mrf.mxu0
      %v2763 = vpop.f32.mrf.mxu0
      %v2764 = vadd.f32 0.0, %v2763
      %v2765 = vpop.f32.mrf.mxu0
      %2766 = vmatprep.mubr.bf16.mxu0 0
      %2767 = vmatmul.mubr.bf16.gmra.mxu0 %v2341
      %v2768 = vpop.f32.mrf.mxu0
      %v2769 = vadd.f32 0.0, %v2768
      %v2770 = vpop.f32.mrf.mxu0
      %v2771 = vpop.f32.mrf.mxu0
      %v2772 = vadd.f32 0.0, %v2771
      %v2773 = vpop.f32.mrf.mxu0
      %2774 = vmatprep.mubr.bf16.mxu0 0
      %2775 = vmatmul.mubr.bf16.gmra.mxu0 %v2344
      %v2776 = vpop.f32.mrf.mxu0
      %v2777 = vadd.f32 0.0, %v2776
      %v2778 = vpop.f32.mrf.mxu0
      %v2779 = vpop.f32.mrf.mxu0
      %v2780 = vadd.f32 0.0, %v2779
      %v2781 = vpop.f32.mrf.mxu0
      %2782 = vmatprep.mubr.bf16.mxu0 0
      %2783 = vmatmul.mubr.bf16.gmra.mxu0 %v2347
      %v2784 = vpop.f32.mrf.mxu0
      %v2785 = vadd.f32 0.0, %v2784
      %v2786 = vpop.f32.mrf.mxu0
      %v2787 = vpop.f32.mrf.mxu0
      %v2788 = vadd.f32 0.0, %v2787
      %v2789 = vpop.f32.mrf.mxu0
      %2790 = vmatprep.mubr.bf16.mxu0 0
      %2791 = vmatmul.mubr.bf16.gmra.mxu0 %v2350
      %v2792 = vpop.f32.mrf.mxu0
      %v2793 = vadd.f32 0.0, %v2792
      %v2794 = vpop.f32.mrf.mxu0
      %v2795 = vpop.f32.mrf.mxu0
      %v2796 = vadd.f32 0.0, %v2795
      %v2797 = vpop.f32.mrf.mxu0
      %2798 = vmatprep.mubr.bf16.mxu0 0
      %2799 = vmatmul.mubr.bf16.gmra.mxu0 %v2353
      %v2800 = vpop.f32.mrf.mxu0
      %v2801 = vadd.f32 0.0, %v2800
      %v2802 = vpop.f32.mrf.mxu0
      %v2803 = vpop.f32.mrf.mxu0
      %v2804 = vadd.f32 0.0, %v2803
      %v2805 = vpop.f32.mrf.mxu0
      %2806 = vmatprep.mubr.bf16.mxu0 0
      %2807 = vmatmul.mubr.bf16.gmra.mxu0 %v2614
      %v2808 = vpop.f32.mrf.mxu0
      %v2809 = vadd.f32 0.0, %v2808
      %v2810 = vpop.f32.mrf.mxu0
      %v2811 = vpop.f32.mrf.mxu0
      %v2812 = vadd.f32 0.0, %v2811
      %v2813 = vpop.f32.mrf.mxu0
      %2814 = vmatprep.mubr.bf16.mxu0 0
      %2815 = vmatmul.mubr.bf16.gmra.mxu0 %v2617
      %v2816 = vpop.f32.mrf.mxu0
      %v2817 = vadd.f32 0.0, %v2816
      %v2818 = vpop.f32.mrf.mxu0
      %v2819 = vpop.f32.mrf.mxu0
      %v2820 = vpop.f32.mrf.mxu0
      %2821 = vdwg.mxu0
      %v2822 = vadd.f32 %v2561, %v2657
      %v2823 = vadd.f32 %v2562, %v2660
      %v2824 = vadd.f32 %v2563, %v2665
      %v2825 = vadd.f32 %v2564, %v2668
      %v2826 = vadd.f32 %v2565, %v2673
      %v2827 = vadd.f32 %v2566, %v2676
      %v2828 = vadd.f32 %v2567, %v2681
      %v2829 = vadd.f32 %v2568, %v2684
      %v2830 = vadd.f32 %v2569, %v2689
      %v2831 = vadd.f32 %v2570, %v2692
      %v2832 = vadd.f32 %v2571, %v2697
      %v2833 = vadd.f32 %v2572, %v2700
      %v2834 = vadd.f32 %v2573, %v2705
      %v2835 = vadd.f32 %v2574, %v2708
      %v2836 = vadd.f32 %v2575, %v2713
      %v2837 = vadd.f32 %v2576, %v2716
      %v2838 = vadd.f32 %v2577, %v2721
      %v2839 = vadd.f32 %v2578, %v2724
      %v2840 = vadd.f32 %v2579, %v2729
      %v2841 = vadd.f32 %v2580, %v2732
      %v2842 = vadd.f32 %v2581, %v2737
      %v2843 = vadd.f32 %v2582, %v2740
      %v2844 = vadd.f32 %v2583, %v2745
      %v2845 = vadd.f32 %v2584, %v2748
      %v2846 = vadd.f32 %v2585, %v2753
      %v2847 = vadd.f32 %v2586, %v2756
      %v2848 = vadd.f32 %v2587, %v2761
      %v2849 = vadd.f32 %v2588, %v2764
      %v2850 = vadd.f32 %v2589, %v2769
      %v2851 = vadd.f32 %v2590, %v2772
      %v2852 = vadd.f32 %v2591, %v2777
      %v2853 = vadd.f32 %v2592, %v2780
      %v2854 = vadd.f32 %v2593, %v2785
      %v2855 = vadd.f32 %v2594, %v2788
      %v2856 = vadd.f32 %v2595, %v2793
      %v2857 = vadd.f32 %v2596, %v2796
      %v2858 = vadd.f32 %v2597, %v2801
      %v2859 = vadd.f32 %v2598, %v2804
      %v2860 = vadd.f32 %v2599, %v2809
      %v2861 = vadd.f32 %v2600, %v2812
      %v2862 = vadd.f32 %v2601, %v2817
      %s2863 = scalar_lea.vmem %s1, 14
      %v2864 = vld [vmem:[%s2863] sm:$0x3]
      %vm2886 = vcmask 1046528
      %v2887 = vrot.slane %v1815, 1
      %v2888 = vrot.slane %v1816, 1
      %v2889 = vsel %vm2886, %v2887, %v2888
      %v2890 = vrot.slane %v1817, 1
      %v2891 = vsel %vm2886, %v2888, %v2890
      %v2892 = vrot.slane %v1818, 1
      %v2893 = vsel %vm2886, %v2890, %v2892
      %v2894 = vrot.slane %v1819, 1
      %v2895 = vsel %vm2886, %v2892, %v2894
      %v2896 = vrot.slane %v1820, 1
      %v2897 = vsel %vm2886, %v2894, %v2896
      %v2898 = vrot.slane %v1821, 1
      %v2899 = vsel %vm2886, %v2896, %v2898
      %v2900 = vrot.slane %v1822, 1
      %v2901 = vsel %vm2886, %v2898, %v2900
      %v2902 = vrot.slane %v1823, 1
      %v2903 = vsel %vm2886, %v2900, %v2902
      %v2904 = vrot.slane %v1824, 1
      %v2905 = vsel %vm2886, %v2902, %v2904
      %v2906 = vrot.slane %v1825, 1
      %v2907 = vsel %vm2886, %v2904, %v2906
      %v2908 = vrot.slane %v1826, 1
      %v2909 = vsel %vm2886, %v2906, %v2908
      %v2910 = vrot.slane %v1827, 1
      %v2911 = vsel %vm2886, %v2908, %v2910
      %v2912 = vrot.slane %v1828, 1
      %v2913 = vsel %vm2886, %v2910, %v2912
      %v2914 = vrot.slane %v1829, 1
      %v2915 = vsel %vm2886, %v2912, %v2914
      %v2916 = vrot.slane %v1830, 1
      %v2917 = vsel %vm2886, %v2914, %v2916
      %v2918 = vrot.slane %v1831, 1
      %v2919 = vsel %vm2886, %v2916, %v2918
      %v2920 = vrot.slane %v1832, 1
      %v2921 = vsel %vm2886, %v2918, %v2920
      %v2922 = vrot.slane %v1833, 1
      %v2923 = vsel %vm2886, %v2920, %v2922
      %v2924 = vrot.slane %v2144, 1
      %v2925 = vsel %vm2886, %v2922, %v2924
      %v2926 = vrot.slane %v2602, 1
      %v2927 = vsel %vm2886, %v2924, %v2926
      %v2929 = vsel %vm436, %v2889, 0
      %v2932 = vsel %vm436, %v2891, 0
      %v2935 = vsel %vm436, %v2893, 0
      %v2938 = vsel %vm436, %v2895, 0
      %v2941 = vsel %vm436, %v2897, 0
      %v2944 = vsel %vm436, %v2899, 0
      %v2947 = vsel %vm436, %v2901, 0
      %v2950 = vsel %vm436, %v2903, 0
      %v2953 = vsel %vm436, %v2905, 0
      %v2956 = vsel %vm436, %v2907, 0
      %v2959 = vsel %vm436, %v2909, 0
      %v2962 = vsel %vm436, %v2911, 0
      %v2965 = vsel %vm436, %v2913, 0
      %v2968 = vsel %vm436, %v2915, 0
      %v2971 = vsel %vm436, %v2917, 0
      %v2974 = vsel %vm436, %v2919, 0
      %v2977 = vsel %vm436, %v2921, 0
      %v2980 = vsel %vm436, %v2923, 0
      %v2983 = vsel %vm436, %v2925, 0
      %v2986 = vsel %vm436, %v2927, 0
      %v2989 = vsel %vm436, %v2926, 0
      %v2992 = vsel %vm500, %v2864, 0
      %2994 = vmatprep.subr.bf16.mxu0 0
      %2995 = vmatpush1.bf16.msra.mxu0 0
      %2996 = vmatprep.subr.bf16.mxu0 0
      %2997 = vmatpush1.bf16.msra.mxu0 0
      %2998 = vmatprep.subr.bf16.mxu0 0
      %2999 = vmatpush1.bf16.msra.mxu0 0
      %3000 = vmatprep.subr.bf16.mxu0 0
      %3001 = vmatpush1.bf16.msra.mxu0 0
      %3002 = vmatprep.subr.bf16.mxu0 0
      %3003 = vmatpush1.bf16.msra.mxu0 0
      %3004 = vmatprep.subr.bf16.mxu0 0
      %3005 = vmatpush1.bf16.msra.mxu0 0
      %3006 = vmatprep.subr.bf16.mxu0 0
      %3007 = vmatpush1.bf16.msra.mxu0 0
      %3008 = vmatprep.subr.bf16.mxu0 0
      %3009 = vmatpush1.bf16.msra.mxu0 %v2992
      %3010 = vmatprep.subr.bf16.mxu0 0
      %3011 = vmatpush2.bf16.msra.mxu0 0
      %3012 = vmatprep.subr.bf16.mxu0 0
      %3013 = vmatpush2.bf16.msra.mxu0 0
      %3014 = vmatprep.subr.bf16.mxu0 0
      %3015 = vmatpush2.bf16.msra.mxu0 0
      %3016 = vmatprep.subr.bf16.mxu0 0
      %3017 = vmatpush2.bf16.msra.mxu0 0
      %3018 = vmatprep.subr.bf16.mxu0 0
      %3019 = vmatpush2.bf16.msra.mxu0 0
      %3020 = vmatprep.subr.bf16.mxu0 0
      %3021 = vmatpush2.bf16.msra.mxu0 0
      %3022 = vmatprep.subr.bf16.mxu0 0
      %3023 = vmatpush2.bf16.msra.mxu0 0
      %3024 = vmatprep.subr.bf16.mxu0 0
      %3025 = vmatpush2.bf16.msra.mxu0 0
      %3026 = vmatprep.mubr.bf16.mxu0 0
      %3027 = vmatmul.mubr.bf16.gmra.mxu0 %v2929
      %v3028 = vpop.f32.mrf.mxu0
      %v3029 = vadd.f32 0.0, %v3028
      %v3030 = vpop.f32.mrf.mxu0
      %v3031 = vpop.f32.mrf.mxu0
      %v3032 = vadd.f32 0.0, %v3031
      %v3033 = vpop.f32.mrf.mxu0
      %3034 = vmatprep.mubr.bf16.mxu0 0
      %3035 = vmatmul.mubr.bf16.gmra.mxu0 %v2932
      %v3036 = vpop.f32.mrf.mxu0
      %v3037 = vadd.f32 0.0, %v3036
      %v3038 = vpop.f32.mrf.mxu0
      %v3039 = vpop.f32.mrf.mxu0
      %v3040 = vadd.f32 0.0, %v3039
      %v3041 = vpop.f32.mrf.mxu0
      %3042 = vmatprep.mubr.bf16.mxu0 0
      %3043 = vmatmul.mubr.bf16.gmra.mxu0 %v2935
      %v3044 = vpop.f32.mrf.mxu0
      %v3045 = vadd.f32 0.0, %v3044
      %v3046 = vpop.f32.mrf.mxu0
      %v3047 = vpop.f32.mrf.mxu0
      %v3048 = vadd.f32 0.0, %v3047
      %v3049 = vpop.f32.mrf.mxu0
      %3050 = vmatprep.mubr.bf16.mxu0 0
      %3051 = vmatmul.mubr.bf16.gmra.mxu0 %v2938
      %v3052 = vpop.f32.mrf.mxu0
      %v3053 = vadd.f32 0.0, %v3052
      %v3054 = vpop.f32.mrf.mxu0
      %v3055 = vpop.f32.mrf.mxu0
      %v3056 = vadd.f32 0.0, %v3055
      %v3057 = vpop.f32.mrf.mxu0
      %3058 = vmatprep.mubr.bf16.mxu0 0
      %3059 = vmatmul.mubr.bf16.gmra.mxu0 %v2941
      %v3060 = vpop.f32.mrf.mxu0
      %v3061 = vadd.f32 0.0, %v3060
      %v3062 = vpop.f32.mrf.mxu0
      %v3063 = vpop.f32.mrf.mxu0
      %v3064 = vadd.f32 0.0, %v3063
      %v3065 = vpop.f32.mrf.mxu0
      %3066 = vmatprep.mubr.bf16.mxu0 0
      %3067 = vmatmul.mubr.bf16.gmra.mxu0 %v2944
      %v3068 = vpop.f32.mrf.mxu0
      %v3069 = vadd.f32 0.0, %v3068
      %v3070 = vpop.f32.mrf.mxu0
      %v3071 = vpop.f32.mrf.mxu0
      %v3072 = vadd.f32 0.0, %v3071
      %v3073 = vpop.f32.mrf.mxu0
      %3074 = vmatprep.mubr.bf16.mxu0 0
      %3075 = vmatmul.mubr.bf16.gmra.mxu0 %v2947
      %v3076 = vpop.f32.mrf.mxu0
      %v3077 = vadd.f32 0.0, %v3076
      %v3078 = vpop.f32.mrf.mxu0
      %v3079 = vpop.f32.mrf.mxu0
      %v3080 = vadd.f32 0.0, %v3079
      %v3081 = vpop.f32.mrf.mxu0
      %3082 = vmatprep.mubr.bf16.mxu0 0
      %3083 = vmatmul.mubr.bf16.gmra.mxu0 %v2950
      %v3084 = vpop.f32.mrf.mxu0
      %v3085 = vadd.f32 0.0, %v3084
      %v3086 = vpop.f32.mrf.mxu0
      %v3087 = vpop.f32.mrf.mxu0
      %v3088 = vadd.f32 0.0, %v3087
      %v3089 = vpop.f32.mrf.mxu0
      %3090 = vmatprep.mubr.bf16.mxu0 0
      %3091 = vmatmul.mubr.bf16.gmra.mxu0 %v2953
      %v3092 = vpop.f32.mrf.mxu0
      %v3093 = vadd.f32 0.0, %v3092
      %v3094 = vpop.f32.mrf.mxu0
      %v3095 = vpop.f32.mrf.mxu0
      %v3096 = vadd.f32 0.0, %v3095
      %v3097 = vpop.f32.mrf.mxu0
      %3098 = vmatprep.mubr.bf16.mxu0 0
      %3099 = vmatmul.mubr.bf16.gmra.mxu0 %v2956
      %v3100 = vpop.f32.mrf.mxu0
      %v3101 = vadd.f32 0.0, %v3100
      %v3102 = vpop.f32.mrf.mxu0
      %v3103 = vpop.f32.mrf.mxu0
      %v3104 = vadd.f32 0.0, %v3103
      %v3105 = vpop.f32.mrf.mxu0
      %3106 = vmatprep.mubr.bf16.mxu0 0
      %3107 = vmatmul.mubr.bf16.gmra.mxu0 %v2959
      %v3108 = vpop.f32.mrf.mxu0
      %v3109 = vadd.f32 0.0, %v3108
      %v3110 = vpop.f32.mrf.mxu0
      %v3111 = vpop.f32.mrf.mxu0
      %v3112 = vadd.f32 0.0, %v3111
      %v3113 = vpop.f32.mrf.mxu0
      %3114 = vmatprep.mubr.bf16.mxu0 0
      %3115 = vmatmul.mubr.bf16.gmra.mxu0 %v2962
      %v3116 = vpop.f32.mrf.mxu0
      %v3117 = vadd.f32 0.0, %v3116
      %v3118 = vpop.f32.mrf.mxu0
      %v3119 = vpop.f32.mrf.mxu0
      %v3120 = vadd.f32 0.0, %v3119
      %v3121 = vpop.f32.mrf.mxu0
      %3122 = vmatprep.mubr.bf16.mxu0 0
      %3123 = vmatmul.mubr.bf16.gmra.mxu0 %v2965
      %v3124 = vpop.f32.mrf.mxu0
      %v3125 = vadd.f32 0.0, %v3124
      %v3126 = vpop.f32.mrf.mxu0
      %v3127 = vpop.f32.mrf.mxu0
      %v3128 = vadd.f32 0.0, %v3127
      %v3129 = vpop.f32.mrf.mxu0
      %3130 = vmatprep.mubr.bf16.mxu0 0
      %3131 = vmatmul.mubr.bf16.gmra.mxu0 %v2968
      %v3132 = vpop.f32.mrf.mxu0
      %v3133 = vadd.f32 0.0, %v3132
      %v3134 = vpop.f32.mrf.mxu0
      %v3135 = vpop.f32.mrf.mxu0
      %v3136 = vadd.f32 0.0, %v3135
      %v3137 = vpop.f32.mrf.mxu0
      %3138 = vmatprep.mubr.bf16.mxu0 0
      %3139 = vmatmul.mubr.bf16.gmra.mxu0 %v2971
      %v3140 = vpop.f32.mrf.mxu0
      %v3141 = vadd.f32 0.0, %v3140
      %v3142 = vpop.f32.mrf.mxu0
      %v3143 = vpop.f32.mrf.mxu0
      %v3144 = vadd.f32 0.0, %v3143
      %v3145 = vpop.f32.mrf.mxu0
      %3146 = vmatprep.mubr.bf16.mxu0 0
      %3147 = vmatmul.mubr.bf16.gmra.mxu0 %v2974
      %v3148 = vpop.f32.mrf.mxu0
      %v3149 = vadd.f32 0.0, %v3148
      %v3150 = vpop.f32.mrf.mxu0
      %v3151 = vpop.f32.mrf.mxu0
      %v3152 = vadd.f32 0.0, %v3151
      %v3153 = vpop.f32.mrf.mxu0
      %3154 = vmatprep.mubr.bf16.mxu0 0
      %3155 = vmatmul.mubr.bf16.gmra.mxu0 %v2977
      %v3156 = vpop.f32.mrf.mxu0
      %v3157 = vadd.f32 0.0, %v3156
      %v3158 = vpop.f32.mrf.mxu0
      %v3159 = vpop.f32.mrf.mxu0
      %v3160 = vadd.f32 0.0, %v3159
      %v3161 = vpop.f32.mrf.mxu0
      %3162 = vmatprep.mubr.bf16.mxu0 0
      %3163 = vmatmul.mubr.bf16.gmra.mxu0 %v2980
      %v3164 = vpop.f32.mrf.mxu0
      %v3165 = vadd.f32 0.0, %v3164
      %v3166 = vpop.f32.mrf.mxu0
      %v3167 = vpop.f32.mrf.mxu0
      %v3168 = vadd.f32 0.0, %v3167
      %v3169 = vpop.f32.mrf.mxu0
      %3170 = vmatprep.mubr.bf16.mxu0 0
      %3171 = vmatmul.mubr.bf16.gmra.mxu0 %v2983
      %v3172 = vpop.f32.mrf.mxu0
      %v3173 = vadd.f32 0.0, %v3172
      %v3174 = vpop.f32.mrf.mxu0
      %v3175 = vpop.f32.mrf.mxu0
      %v3176 = vadd.f32 0.0, %v3175
      %v3177 = vpop.f32.mrf.mxu0
      %3178 = vmatprep.mubr.bf16.mxu0 0
      %3179 = vmatmul.mubr.bf16.gmra.mxu0 %v2986
      %v3180 = vpop.f32.mrf.mxu0
      %v3181 = vadd.f32 0.0, %v3180
      %v3182 = vpop.f32.mrf.mxu0
      %v3183 = vpop.f32.mrf.mxu0
      %v3184 = vadd.f32 0.0, %v3183
      %v3185 = vpop.f32.mrf.mxu0
      %3186 = vmatprep.mubr.bf16.mxu0 0
      %3187 = vmatmul.mubr.bf16.gmra.mxu0 %v2989
      %v3188 = vpop.f32.mrf.mxu0
      %v3189 = vadd.f32 0.0, %v3188
      %v3190 = vpop.f32.mrf.mxu0
      %v3191 = vpop.f32.mrf.mxu0
      %v3192 = vpop.f32.mrf.mxu0
      %3193 = vdwg.mxu0
      %v3194 = vadd.f32 %v2822, %v3029
      %v3195 = vadd.f32 %v2823, %v3032
      %v3196 = vadd.f32 %v2824, %v3037
      %v3197 = vadd.f32 %v2825, %v3040
      %v3198 = vadd.f32 %v2826, %v3045
      %v3199 = vadd.f32 %v2827, %v3048
      %v3200 = vadd.f32 %v2828, %v3053
      %v3201 = vadd.f32 %v2829, %v3056
      %v3202 = vadd.f32 %v2830, %v3061
      %v3203 = vadd.f32 %v2831, %v3064
      %v3204 = vadd.f32 %v2832, %v3069
      %v3205 = vadd.f32 %v2833, %v3072
      %v3206 = vadd.f32 %v2834, %v3077
      %v3207 = vadd.f32 %v2835, %v3080
      %v3208 = vadd.f32 %v2836, %v3085
      %v3209 = vadd.f32 %v2837, %v3088
      %v3210 = vadd.f32 %v2838, %v3093
      %v3211 = vadd.f32 %v2839, %v3096
      %v3212 = vadd.f32 %v2840, %v3101
      %v3213 = vadd.f32 %v2841, %v3104
      %v3214 = vadd.f32 %v2842, %v3109
      %v3215 = vadd.f32 %v2843, %v3112
      %v3216 = vadd.f32 %v2844, %v3117
      %v3217 = vadd.f32 %v2845, %v3120
      %v3218 = vadd.f32 %v2846, %v3125
      %v3219 = vadd.f32 %v2847, %v3128
      %v3220 = vadd.f32 %v2848, %v3133
      %v3221 = vadd.f32 %v2849, %v3136
      %v3222 = vadd.f32 %v2850, %v3141
      %v3223 = vadd.f32 %v2851, %v3144
      %v3224 = vadd.f32 %v2852, %v3149
      %v3225 = vadd.f32 %v2853, %v3152
      %v3226 = vadd.f32 %v2854, %v3157
      %v3227 = vadd.f32 %v2855, %v3160
      %v3228 = vadd.f32 %v2856, %v3165
      %v3229 = vadd.f32 %v2857, %v3168
      %v3230 = vadd.f32 %v2858, %v3173
      %v3231 = vadd.f32 %v2859, %v3176
      %v3232 = vadd.f32 %v2860, %v3181
      %v3233 = vadd.f32 %v2861, %v3184
      %v3234 = vadd.f32 %v2862, %v3189
      %s3235 = scalar_lea.vmem %s1, 16
      %v3236 = vld [vmem:[%s3235] sm:$0x3]
      %vm3237 = vsmask.f32 6400
      %v3238 = vrot.slane %v2158, 1
      %v3239 = vrot.slane %v2154, 2
      %v3240 = vor.u32 %v3238, %v3239
      %v3241 = vrot.slane %v2165, 1
      %v3242 = vrot.slane %v2161, 2
      %v3243 = vor.u32 %v3241, %v3242
      %v3244 = vsel %vm3237, %v3240, %v3243
      %v3245 = vrot.slane %v2172, 1
      %v3246 = vrot.slane %v2168, 2
      %v3247 = vor.u32 %v3245, %v3246
      %v3248 = vsel %vm3237, %v3243, %v3247
      %v3249 = vrot.slane %v2179, 1
      %v3250 = vrot.slane %v2175, 2
      %v3251 = vor.u32 %v3249, %v3250
      %v3252 = vsel %vm3237, %v3247, %v3251
      %v3253 = vrot.slane %v2186, 1
      %v3254 = vrot.slane %v2182, 2
      %v3255 = vor.u32 %v3253, %v3254
      %v3256 = vsel %vm3237, %v3251, %v3255
      %v3257 = vrot.slane %v2193, 1
      %v3258 = vrot.slane %v2189, 2
      %v3259 = vor.u32 %v3257, %v3258
      %v3260 = vsel %vm3237, %v3255, %v3259
      %v3261 = vrot.slane %v2200, 1
      %v3262 = vrot.slane %v2196, 2
      %v3263 = vor.u32 %v3261, %v3262
      %v3264 = vsel %vm3237, %v3259, %v3263
      %v3265 = vrot.slane %v2207, 1
      %v3266 = vrot.slane %v2203, 2
      %v3267 = vor.u32 %v3265, %v3266
      %v3268 = vsel %vm3237, %v3263, %v3267
      %v3269 = vrot.slane %v2214, 1
      %v3270 = vrot.slane %v2210, 2
      %v3271 = vor.u32 %v3269, %v3270
      %v3272 = vsel %vm3237, %v3267, %v3271
      %v3273 = vrot.slane %v2221, 1
      %v3274 = vrot.slane %v2217, 2
      %v3275 = vor.u32 %v3273, %v3274
      %v3276 = vsel %vm3237, %v3271, %v3275
      %v3277 = vrot.slane %v2228, 1
      %v3278 = vrot.slane %v2224, 2
      %v3279 = vor.u32 %v3277, %v3278
      %v3280 = vsel %vm3237, %v3275, %v3279
      %v3281 = vrot.slane %v2235, 1
      %v3282 = vrot.slane %v2231, 2
      %v3283 = vor.u32 %v3281, %v3282
      %v3284 = vsel %vm3237, %v3279, %v3283
      %v3285 = vrot.slane %v2242, 1
      %v3286 = vrot.slane %v2238, 2
      %v3287 = vor.u32 %v3285, %v3286
      %v3288 = vsel %vm3237, %v3283, %v3287
      %v3289 = vrot.slane %v2249, 1
      %v3290 = vrot.slane %v2245, 2
      %v3291 = vor.u32 %v3289, %v3290
      %v3292 = vsel %vm3237, %v3287, %v3291
      %v3293 = vrot.slane %v2256, 1
      %v3294 = vrot.slane %v2252, 2
      %v3295 = vor.u32 %v3293, %v3294
      %v3296 = vsel %vm3237, %v3291, %v3295
      %v3297 = vrot.slane %v2263, 1
      %v3298 = vrot.slane %v2259, 2
      %v3299 = vor.u32 %v3297, %v3298
      %v3300 = vsel %vm3237, %v3295, %v3299
      %v3301 = vrot.slane %v2270, 1
      %v3302 = vrot.slane %v2266, 2
      %v3303 = vor.u32 %v3301, %v3302
      %v3304 = vsel %vm3237, %v3299, %v3303
      %v3305 = vrot.slane %v2277, 1
      %v3306 = vrot.slane %v2273, 2
      %v3307 = vor.u32 %v3305, %v3306
      %v3308 = vsel %vm3237, %v3303, %v3307
      %v3309 = vrot.slane %v2284, 1
      %v3310 = vrot.slane %v2280, 2
      %v3311 = vor.u32 %v3309, %v3310
      %v3312 = vsel %vm3237, %v3307, %v3311
      %v3313 = vrot.slane %v2292, 1
      %v3314 = vrot.slane %v2288, 2
      %v3315 = vor.u32 %v3313, %v3314
      %v3316 = vsel %vm3237, %v3311, %v3315
      %v3317 = vrot.slane %v2610, 1
      %v3318 = vrot.slane %v2606, 2
      %v3319 = vor.u32 %v3317, %v3318
      %v3320 = vsel %vm3237, %v3315, %v3319
      %v3322 = vsel %vm436, %v3244, 0
      %v3325 = vsel %vm436, %v3248, 0
      %v3328 = vsel %vm436, %v3252, 0
      %v3331 = vsel %vm436, %v3256, 0
      %v3334 = vsel %vm436, %v3260, 0
      %v3337 = vsel %vm436, %v3264, 0
      %v3340 = vsel %vm436, %v3268, 0
      %v3343 = vsel %vm436, %v3272, 0
      %v3346 = vsel %vm436, %v3276, 0
      %v3349 = vsel %vm436, %v3280, 0
      %v3352 = vsel %vm436, %v3284, 0
      %v3355 = vsel %vm436, %v3288, 0
      %v3358 = vsel %vm436, %v3292, 0
      %v3361 = vsel %vm436, %v3296, 0
      %v3364 = vsel %vm436, %v3300, 0
      %v3367 = vsel %vm436, %v3304, 0
      %v3370 = vsel %vm436, %v3308, 0
      %v3373 = vsel %vm436, %v3312, 0
      %v3376 = vsel %vm436, %v3316, 0
      %v3379 = vsel %vm436, %v3320, 0
      %v3382 = vsel %vm436, %v3319, 0
      %v3385 = vsel %vm500, %v3236, 0
      %3387 = vmatprep.subr.bf16.mxu0 0
      %3388 = vmatpush1.bf16.msra.mxu0 0
      %3389 = vmatprep.subr.bf16.mxu0 0
      %3390 = vmatpush1.bf16.msra.mxu0 0
      %3391 = vmatprep.subr.bf16.mxu0 0
      %3392 = vmatpush1.bf16.msra.mxu0 0
      %3393 = vmatprep.subr.bf16.mxu0 0
      %3394 = vmatpush1.bf16.msra.mxu0 0
      %3395 = vmatprep.subr.bf16.mxu0 0
      %3396 = vmatpush1.bf16.msra.mxu0 0
      %3397 = vmatprep.subr.bf16.mxu0 0
      %3398 = vmatpush1.bf16.msra.mxu0 0
      %3399 = vmatprep.subr.bf16.mxu0 0
      %3400 = vmatpush1.bf16.msra.mxu0 0
      %3401 = vmatprep.subr.bf16.mxu0 0
      %3402 = vmatpush1.bf16.msra.mxu0 %v3385
      %3403 = vmatprep.subr.bf16.mxu0 0
      %3404 = vmatpush2.bf16.msra.mxu0 0
      %3405 = vmatprep.subr.bf16.mxu0 0
      %3406 = vmatpush2.bf16.msra.mxu0 0
      %3407 = vmatprep.subr.bf16.mxu0 0
      %3408 = vmatpush2.bf16.msra.mxu0 0
      %3409 = vmatprep.subr.bf16.mxu0 0
      %3410 = vmatpush2.bf16.msra.mxu0 0
      %3411 = vmatprep.subr.bf16.mxu0 0
      %3412 = vmatpush2.bf16.msra.mxu0 0
      %3413 = vmatprep.subr.bf16.mxu0 0
      %3414 = vmatpush2.bf16.msra.mxu0 0
      %3415 = vmatprep.subr.bf16.mxu0 0
      %3416 = vmatpush2.bf16.msra.mxu0 0
      %3417 = vmatprep.subr.bf16.mxu0 0
      %3418 = vmatpush2.bf16.msra.mxu0 0
      %3419 = vmatprep.mubr.bf16.mxu0 0
      %3420 = vmatmul.mubr.bf16.gmra.mxu0 %v3322
      %v3421 = vpop.f32.mrf.mxu0
      %v3422 = vadd.f32 0.0, %v3421
      %v3423 = vpop.f32.mrf.mxu0
      %v3424 = vpop.f32.mrf.mxu0
      %v3425 = vadd.f32 0.0, %v3424
      %v3426 = vpop.f32.mrf.mxu0
      %3427 = vmatprep.mubr.bf16.mxu0 0
      %3428 = vmatmul.mubr.bf16.gmra.mxu0 %v3325
      %v3429 = vpop.f32.mrf.mxu0
      %v3430 = vadd.f32 0.0, %v3429
      %v3431 = vpop.f32.mrf.mxu0
      %v3432 = vpop.f32.mrf.mxu0
      %v3433 = vadd.f32 0.0, %v3432
      %v3434 = vpop.f32.mrf.mxu0
      %3435 = vmatprep.mubr.bf16.mxu0 0
      %3436 = vmatmul.mubr.bf16.gmra.mxu0 %v3328
      %v3437 = vpop.f32.mrf.mxu0
      %v3438 = vadd.f32 0.0, %v3437
      %v3439 = vpop.f32.mrf.mxu0
      %v3440 = vpop.f32.mrf.mxu0
      %v3441 = vadd.f32 0.0, %v3440
      %v3442 = vpop.f32.mrf.mxu0
      %3443 = vmatprep.mubr.bf16.mxu0 0
      %3444 = vmatmul.mubr.bf16.gmra.mxu0 %v3331
      %v3445 = vpop.f32.mrf.mxu0
      %v3446 = vadd.f32 0.0, %v3445
      %v3447 = vpop.f32.mrf.mxu0
      %v3448 = vpop.f32.mrf.mxu0
      %v3449 = vadd.f32 0.0, %v3448
      %v3450 = vpop.f32.mrf.mxu0
      %3451 = vmatprep.mubr.bf16.mxu0 0
      %3452 = vmatmul.mubr.bf16.gmra.mxu0 %v3334
      %v3453 = vpop.f32.mrf.mxu0
      %v3454 = vadd.f32 0.0, %v3453
      %v3455 = vpop.f32.mrf.mxu0
      %v3456 = vpop.f32.mrf.mxu0
      %v3457 = vadd.f32 0.0, %v3456
      %v3458 = vpop.f32.mrf.mxu0
      %3459 = vmatprep.mubr.bf16.mxu0 0
      %3460 = vmatmul.mubr.bf16.gmra.mxu0 %v3337
      %v3461 = vpop.f32.mrf.mxu0
      %v3462 = vadd.f32 0.0, %v3461
      %v3463 = vpop.f32.mrf.mxu0
      %v3464 = vpop.f32.mrf.mxu0
      %v3465 = vadd.f32 0.0, %v3464
      %v3466 = vpop.f32.mrf.mxu0
      %3467 = vmatprep.mubr.bf16.mxu0 0
      %3468 = vmatmul.mubr.bf16.gmra.mxu0 %v3340
      %v3469 = vpop.f32.mrf.mxu0
      %v3470 = vadd.f32 0.0, %v3469
      %v3471 = vpop.f32.mrf.mxu0
      %v3472 = vpop.f32.mrf.mxu0
      %v3473 = vadd.f32 0.0, %v3472
      %v3474 = vpop.f32.mrf.mxu0
      %3475 = vmatprep.mubr.bf16.mxu0 0
      %3476 = vmatmul.mubr.bf16.gmra.mxu0 %v3343
      %v3477 = vpop.f32.mrf.mxu0
      %v3478 = vadd.f32 0.0, %v3477
      %v3479 = vpop.f32.mrf.mxu0
      %v3480 = vpop.f32.mrf.mxu0
      %v3481 = vadd.f32 0.0, %v3480
      %v3482 = vpop.f32.mrf.mxu0
      %3483 = vmatprep.mubr.bf16.mxu0 0
      %3484 = vmatmul.mubr.bf16.gmra.mxu0 %v3346
      %v3485 = vpop.f32.mrf.mxu0
      %v3486 = vadd.f32 0.0, %v3485
      %v3487 = vpop.f32.mrf.mxu0
      %v3488 = vpop.f32.mrf.mxu0
      %v3489 = vadd.f32 0.0, %v3488
      %v3490 = vpop.f32.mrf.mxu0
      %3491 = vmatprep.mubr.bf16.mxu0 0
      %3492 = vmatmul.mubr.bf16.gmra.mxu0 %v3349
      %v3493 = vpop.f32.mrf.mxu0
      %v3494 = vadd.f32 0.0, %v3493
      %v3495 = vpop.f32.mrf.mxu0
      %v3496 = vpop.f32.mrf.mxu0
      %v3497 = vadd.f32 0.0, %v3496
      %v3498 = vpop.f32.mrf.mxu0
      %3499 = vmatprep.mubr.bf16.mxu0 0
      %3500 = vmatmul.mubr.bf16.gmra.mxu0 %v3352
      %v3501 = vpop.f32.mrf.mxu0
      %v3502 = vadd.f32 0.0, %v3501
      %v3503 = vpop.f32.mrf.mxu0
      %v3504 = vpop.f32.mrf.mxu0
      %v3505 = vadd.f32 0.0, %v3504
      %v3506 = vpop.f32.mrf.mxu0
      %3507 = vmatprep.mubr.bf16.mxu0 0
      %3508 = vmatmul.mubr.bf16.gmra.mxu0 %v3355
      %v3509 = vpop.f32.mrf.mxu0
      %v3510 = vadd.f32 0.0, %v3509
      %v3511 = vpop.f32.mrf.mxu0
      %v3512 = vpop.f32.mrf.mxu0
      %v3513 = vadd.f32 0.0, %v3512
      %v3514 = vpop.f32.mrf.mxu0
      %3515 = vmatprep.mubr.bf16.mxu0 0
      %3516 = vmatmul.mubr.bf16.gmra.mxu0 %v3358
      %v3517 = vpop.f32.mrf.mxu0
      %v3518 = vadd.f32 0.0, %v3517
      %v3519 = vpop.f32.mrf.mxu0
      %v3520 = vpop.f32.mrf.mxu0
      %v3521 = vadd.f32 0.0, %v3520
      %v3522 = vpop.f32.mrf.mxu0
      %3523 = vmatprep.mubr.bf16.mxu0 0
      %3524 = vmatmul.mubr.bf16.gmra.mxu0 %v3361
      %v3525 = vpop.f32.mrf.mxu0
      %v3526 = vadd.f32 0.0, %v3525
      %v3527 = vpop.f32.mrf.mxu0
      %v3528 = vpop.f32.mrf.mxu0
      %v3529 = vadd.f32 0.0, %v3528
      %v3530 = vpop.f32.mrf.mxu0
      %3531 = vmatprep.mubr.bf16.mxu0 0
      %3532 = vmatmul.mubr.bf16.gmra.mxu0 %v3364
      %v3533 = vpop.f32.mrf.mxu0
      %v3534 = vadd.f32 0.0, %v3533
      %v3535 = vpop.f32.mrf.mxu0
      %v3536 = vpop.f32.mrf.mxu0
      %v3537 = vadd.f32 0.0, %v3536
      %v3538 = vpop.f32.mrf.mxu0
      %3539 = vmatprep.mubr.bf16.mxu0 0
      %3540 = vmatmul.mubr.bf16.gmra.mxu0 %v3367
      %v3541 = vpop.f32.mrf.mxu0
      %v3542 = vadd.f32 0.0, %v3541
      %v3543 = vpop.f32.mrf.mxu0
      %v3544 = vpop.f32.mrf.mxu0
      %v3545 = vadd.f32 0.0, %v3544
      %v3546 = vpop.f32.mrf.mxu0
      %3547 = vmatprep.mubr.bf16.mxu0 0
      %3548 = vmatmul.mubr.bf16.gmra.mxu0 %v3370
      %v3549 = vpop.f32.mrf.mxu0
      %v3550 = vadd.f32 0.0, %v3549
      %v3551 = vpop.f32.mrf.mxu0
      %v3552 = vpop.f32.mrf.mxu0
      %v3553 = vadd.f32 0.0, %v3552
      %v3554 = vpop.f32.mrf.mxu0
      %3555 = vmatprep.mubr.bf16.mxu0 0
      %3556 = vmatmul.mubr.bf16.gmra.mxu0 %v3373
      %v3557 = vpop.f32.mrf.mxu0
      %v3558 = vadd.f32 0.0, %v3557
      %v3559 = vpop.f32.mrf.mxu0
      %v3560 = vpop.f32.mrf.mxu0
      %v3561 = vadd.f32 0.0, %v3560
      %v3562 = vpop.f32.mrf.mxu0
      %3563 = vmatprep.mubr.bf16.mxu0 0
      %3564 = vmatmul.mubr.bf16.gmra.mxu0 %v3376
      %v3565 = vpop.f32.mrf.mxu0
      %v3566 = vadd.f32 0.0, %v3565
      %v3567 = vpop.f32.mrf.mxu0
      %v3568 = vpop.f32.mrf.mxu0
      %v3569 = vadd.f32 0.0, %v3568
      %v3570 = vpop.f32.mrf.mxu0
      %3571 = vmatprep.mubr.bf16.mxu0 0
      %3572 = vmatmul.mubr.bf16.gmra.mxu0 %v3379
      %v3573 = vpop.f32.mrf.mxu0
      %v3574 = vadd.f32 0.0, %v3573
      %v3575 = vpop.f32.mrf.mxu0
      %v3576 = vpop.f32.mrf.mxu0
      %v3577 = vadd.f32 0.0, %v3576
      %v3578 = vpop.f32.mrf.mxu0
      %3579 = vmatprep.mubr.bf16.mxu0 0
      %3580 = vmatmul.mubr.bf16.gmra.mxu0 %v3382
      %v3581 = vpop.f32.mrf.mxu0
      %v3582 = vadd.f32 0.0, %v3581
      %v3583 = vpop.f32.mrf.mxu0
      %v3584 = vpop.f32.mrf.mxu0
      %v3585 = vpop.f32.mrf.mxu0
      %3586 = vdwg.mxu0
      %v3587 = vadd.f32 %v3194, %v3422
      %v3588 = vadd.f32 %v3195, %v3425
      %v3589 = vadd.f32 %v3196, %v3430
      %v3590 = vadd.f32 %v3197, %v3433
      %v3591 = vadd.f32 %v3198, %v3438
      %v3592 = vadd.f32 %v3199, %v3441
      %v3593 = vadd.f32 %v3200, %v3446
      %v3594 = vadd.f32 %v3201, %v3449
      %v3595 = vadd.f32 %v3202, %v3454
      %v3596 = vadd.f32 %v3203, %v3457
      %v3597 = vadd.f32 %v3204, %v3462
      %v3598 = vadd.f32 %v3205, %v3465
      %v3599 = vadd.f32 %v3206, %v3470
      %v3600 = vadd.f32 %v3207, %v3473
      %v3601 = vadd.f32 %v3208, %v3478
      %v3602 = vadd.f32 %v3209, %v3481
      %v3603 = vadd.f32 %v3210, %v3486
      %v3604 = vadd.f32 %v3211, %v3489
      %v3605 = vadd.f32 %v3212, %v3494
      %v3606 = vadd.f32 %v3213, %v3497
      %v3607 = vadd.f32 %v3214, %v3502
      %v3608 = vadd.f32 %v3215, %v3505
      %v3609 = vadd.f32 %v3216, %v3510
      %v3610 = vadd.f32 %v3217, %v3513
      %v3611 = vadd.f32 %v3218, %v3518
      %v3612 = vadd.f32 %v3219, %v3521
      %v3613 = vadd.f32 %v3220, %v3526
      %v3614 = vadd.f32 %v3221, %v3529
      %v3615 = vadd.f32 %v3222, %v3534
      %v3616 = vadd.f32 %v3223, %v3537
      %v3617 = vadd.f32 %v3224, %v3542
      %v3618 = vadd.f32 %v3225, %v3545
      %v3619 = vadd.f32 %v3226, %v3550
      %v3620 = vadd.f32 %v3227, %v3553
      %v3621 = vadd.f32 %v3228, %v3558
      %v3622 = vadd.f32 %v3229, %v3561
      %v3623 = vadd.f32 %v3230, %v3566
      %v3624 = vadd.f32 %v3231, %v3569
      %v3625 = vadd.f32 %v3232, %v3574
      %v3626 = vadd.f32 %v3233, %v3577
      %v3627 = vadd.f32 %v3234, %v3582
      %v3628 = vld [vmem:[%s2] sm:$0x1]
      %v3630 = vlaneseq
      %v3631 = vshrl.u32 %v3630, 7
      %v3632 = vsub.s32 0, %v3631
      %v3633 = vrot.slane %v3628, %v3632
      %v3635 = vadd.f32 %v3587, %v3633
      %v3636 = vadd.f32 %v3588, %v3633
      %v3637 = vadd.f32 %v3589, %v3633
      %v3638 = vadd.f32 %v3590, %v3633
      %v3639 = vadd.f32 %v3591, %v3633
      %v3640 = vadd.f32 %v3592, %v3633
      %v3641 = vadd.f32 %v3593, %v3633
      %v3642 = vadd.f32 %v3594, %v3633
      %v3643 = vadd.f32 %v3595, %v3633
      %v3644 = vadd.f32 %v3596, %v3633
      %v3645 = vadd.f32 %v3597, %v3633
      %v3646 = vadd.f32 %v3598, %v3633
      %v3647 = vadd.f32 %v3599, %v3633
      %v3648 = vadd.f32 %v3600, %v3633
      %v3649 = vadd.f32 %v3601, %v3633
      %v3650 = vadd.f32 %v3602, %v3633
      %v3651 = vadd.f32 %v3603, %v3633
      %v3652 = vadd.f32 %v3604, %v3633
      %v3653 = vadd.f32 %v3605, %v3633
      %v3654 = vadd.f32 %v3606, %v3633
      %v3655 = vadd.f32 %v3607, %v3633
      %v3656 = vadd.f32 %v3608, %v3633
      %v3657 = vadd.f32 %v3609, %v3633
      %v3658 = vadd.f32 %v3610, %v3633
      %v3659 = vadd.f32 %v3611, %v3633
      %v3660 = vadd.f32 %v3612, %v3633
      %v3661 = vadd.f32 %v3613, %v3633
      %v3662 = vadd.f32 %v3614, %v3633
      %v3663 = vadd.f32 %v3615, %v3633
      %v3664 = vadd.f32 %v3616, %v3633
      %v3665 = vadd.f32 %v3617, %v3633
      %v3666 = vadd.f32 %v3618, %v3633
      %v3667 = vadd.f32 %v3619, %v3633
      %v3668 = vadd.f32 %v3620, %v3633
      %v3669 = vadd.f32 %v3621, %v3633
      %v3670 = vadd.f32 %v3622, %v3633
      %v3671 = vadd.f32 %v3623, %v3633
      %v3672 = vadd.f32 %v3624, %v3633
      %v3673 = vadd.f32 %v3625, %v3633
      %v3674 = vadd.f32 %v3626, %v3633
      %v3675 = vadd.f32 %v3627, %v3633
      %v3676 = vmax.f32 %v3635, 0.0
      %v3677 = vmax.f32 %v3636, 0.0
      %v3678 = vmax.f32 %v3637, 0.0
      %v3679 = vmax.f32 %v3638, 0.0
      %v3680 = vmax.f32 %v3639, 0.0
      %v3681 = vmax.f32 %v3640, 0.0
      %v3682 = vmax.f32 %v3641, 0.0
      %v3683 = vmax.f32 %v3642, 0.0
      %v3684 = vmax.f32 %v3643, 0.0
      %v3685 = vmax.f32 %v3644, 0.0
      %v3686 = vmax.f32 %v3645, 0.0
      %v3687 = vmax.f32 %v3646, 0.0
      %v3688 = vmax.f32 %v3647, 0.0
      %v3689 = vmax.f32 %v3648, 0.0
      %v3690 = vmax.f32 %v3649, 0.0
      %v3691 = vmax.f32 %v3650, 0.0
      %v3692 = vmax.f32 %v3651, 0.0
      %v3693 = vmax.f32 %v3652, 0.0
      %v3694 = vmax.f32 %v3653, 0.0
      %v3695 = vmax.f32 %v3654, 0.0
      %v3696 = vmax.f32 %v3655, 0.0
      %v3697 = vmax.f32 %v3656, 0.0
      %v3698 = vmax.f32 %v3657, 0.0
      %v3699 = vmax.f32 %v3658, 0.0
      %v3700 = vmax.f32 %v3659, 0.0
      %v3701 = vmax.f32 %v3660, 0.0
      %v3702 = vmax.f32 %v3661, 0.0
      %v3703 = vmax.f32 %v3662, 0.0
      %v3704 = vmax.f32 %v3663, 0.0
      %v3705 = vmax.f32 %v3664, 0.0
      %v3706 = vmax.f32 %v3665, 0.0
      %v3707 = vmax.f32 %v3666, 0.0
      %v3708 = vmax.f32 %v3667, 0.0
      %v3709 = vmax.f32 %v3668, 0.0
      %v3710 = vmax.f32 %v3669, 0.0
      %v3711 = vmax.f32 %v3670, 0.0
      %v3712 = vmax.f32 %v3671, 0.0
      %v3713 = vmax.f32 %v3672, 0.0
      %v3714 = vmax.f32 %v3673, 0.0
      %v3715 = vmax.f32 %v3674, 0.0
      %v3716 = vmax.f32 %v3675, 0.0
      %v3717 = vld [vmem:[%s234] sm:$0xff]
      %v3718 = vld [vmem:[%s234 + $0x8] sm:$0xff]
      %v3719 = vld [vmem:[%s234 + $0x10] sm:$0xff]
      %v3720 = vld [vmem:[%s234 + $0x18] sm:$0xff]
      %v3721 = vld [vmem:[%s234 + $0x20] sm:$0xff]
      %v3722 = vld [vmem:[%s234 + $0x28] sm:$0xff]
      %v3723 = vld [vmem:[%s234 + $0x30] sm:$0xff]
      %v3724 = vld [vmem:[%s234 + $0x38] sm:$0xff]
      %v3725 = vld [vmem:[%s234 + $0x40] sm:$0xff]
      %v3726 = vld [vmem:[%s234 + $0x48] sm:$0xff]
      %v3727 = vld [vmem:[%s234 + $0x50] sm:$0xff]
      %v3728 = vld [vmem:[%s234 + $0x58] sm:$0xff]
      %v3729 = vld [vmem:[%s234 + $0x60] sm:$0xff]
      %v3730 = vld [vmem:[%s234 + $0x68] sm:$0xff]
      %v3731 = vld [vmem:[%s234 + $0x70] sm:$0xff]
      %v3732 = vld [vmem:[%s234 + $0x78] sm:$0xff]
      %v3733 = vld [vmem:[%s234 + $0x80] sm:$0xff]
      %v3734 = vld [vmem:[%s234 + $0x88] sm:$0xff]
      %v3735 = vld [vmem:[%s234 + $0x90] sm:$0xff]
      %v3736 = vld [vmem:[%s234 + $0x98] sm:$0xff]
      %v3737 = vld [vmem:[%s234 + $0xa0] sm:$0xff]
      %v3738 = vld [vmem:[%s234 + $0xa8] sm:$0xff]
      %v3739 = vld [vmem:[%s234 + $0xb0] sm:$0xff]
      %v3740 = vld [vmem:[%s234 + $0xb8] sm:$0xff]
      %v3741 = vld [vmem:[%s234 + $0xc0] sm:$0xff]
      %v3742 = vld [vmem:[%s234 + $0xc8] sm:$0xff]
      %v3743 = vld [vmem:[%s234 + $0xd0] sm:$0xff]
      %v3744 = vld [vmem:[%s234 + $0xd8] sm:$0xff]
      %v3745 = vld [vmem:[%s234 + $0xe0] sm:$0xff]
      %v3746 = vld [vmem:[%s234 + $0xe8] sm:$0xff]
      %v3747 = vld [vmem:[%s234 + $0xf0] sm:$0xff]
      %v3748 = vld [vmem:[%s234 + $0xf8] sm:$0xff]
      %v3749 = vld [vmem:[%s234 + $0x100] sm:$0xff]
      %v3750 = vld [vmem:[%s234 + $0x108] sm:$0xff]
      %v3751 = vld [vmem:[%s234 + $0x110] sm:$0xff]
      %v3752 = vld [vmem:[%s234 + $0x118] sm:$0xff]
      %v3753 = vld [vmem:[%s234 + $0x120] sm:$0xff]
      %v3754 = vld [vmem:[%s234 + $0x128] sm:$0xff]
      %v3755 = vld [vmem:[%s234 + $0x130] sm:$0xff]
      %v3756 = vld [vmem:[%s234 + $0x138] sm:$0xff]
      %v3757 = vld [vmem:[%s234 + $0x140] sm:$0xff]
      %vm3758 = vcmp.ne.f32.partialorder %v3717, 0.0
      %vm3759 = vcmp.ne.f32.partialorder %v3718, 0.0
      %vm3760 = vcmp.ne.f32.partialorder %v3719, 0.0
      %vm3761 = vcmp.ne.f32.partialorder %v3720, 0.0
      %vm3762 = vcmp.ne.f32.partialorder %v3721, 0.0
      %vm3763 = vcmp.ne.f32.partialorder %v3722, 0.0
      %vm3764 = vcmp.ne.f32.partialorder %v3723, 0.0
      %vm3765 = vcmp.ne.f32.partialorder %v3724, 0.0
      %vm3766 = vcmp.ne.f32.partialorder %v3725, 0.0
      %vm3767 = vcmp.ne.f32.partialorder %v3726, 0.0
      %vm3768 = vcmp.ne.f32.partialorder %v3727, 0.0
      %vm3769 = vcmp.ne.f32.partialorder %v3728, 0.0
      %vm3770 = vcmp.ne.f32.partialorder %v3729, 0.0
      %vm3771 = vcmp.ne.f32.partialorder %v3730, 0.0
      %vm3772 = vcmp.ne.f32.partialorder %v3731, 0.0
      %vm3773 = vcmp.ne.f32.partialorder %v3732, 0.0
      %vm3774 = vcmp.ne.f32.partialorder %v3733, 0.0
      %vm3775 = vcmp.ne.f32.partialorder %v3734, 0.0
      %vm3776 = vcmp.ne.f32.partialorder %v3735, 0.0
      %vm3777 = vcmp.ne.f32.partialorder %v3736, 0.0
      %vm3778 = vcmp.ne.f32.partialorder %v3737, 0.0
      %vm3779 = vcmp.ne.f32.partialorder %v3738, 0.0
      %vm3780 = vcmp.ne.f32.partialorder %v3739, 0.0
      %vm3781 = vcmp.ne.f32.partialorder %v3740, 0.0
      %vm3782 = vcmp.ne.f32.partialorder %v3741, 0.0
      %vm3783 = vcmp.ne.f32.partialorder %v3742, 0.0
      %vm3784 = vcmp.ne.f32.partialorder %v3743, 0.0
      %vm3785 = vcmp.ne.f32.partialorder %v3744, 0.0
      %vm3786 = vcmp.ne.f32.partialorder %v3745, 0.0
      %vm3787 = vcmp.ne.f32.partialorder %v3746, 0.0
      %vm3788 = vcmp.ne.f32.partialorder %v3747, 0.0
      %vm3789 = vcmp.ne.f32.partialorder %v3748, 0.0
      %vm3790 = vcmp.ne.f32.partialorder %v3749, 0.0
      %vm3791 = vcmp.ne.f32.partialorder %v3750, 0.0
      %vm3792 = vcmp.ne.f32.partialorder %v3751, 0.0
      %vm3793 = vcmp.ne.f32.partialorder %v3752, 0.0
      %vm3794 = vcmp.ne.f32.partialorder %v3753, 0.0
      %vm3795 = vcmp.ne.f32.partialorder %v3754, 0.0
      %vm3796 = vcmp.ne.f32.partialorder %v3755, 0.0
      %vm3797 = vcmp.ne.f32.partialorder %v3756, 0.0
      %vm3798 = vcmp.ne.f32.partialorder %v3757, 0.0
      %v3799 = vsel %vm3758, 1, 0
      %v3800 = vsel %vm3759, 1, 0
      %v3801 = vsel %vm3760, 1, 0
      %v3802 = vsel %vm3761, 1, 0
      %v3803 = vsel %vm3762, 1, 0
      %v3804 = vsel %vm3763, 1, 0
      %v3805 = vsel %vm3764, 1, 0
      %v3806 = vsel %vm3765, 1, 0
      %v3807 = vsel %vm3766, 1, 0
      %v3808 = vsel %vm3767, 1, 0
      %v3809 = vsel %vm3768, 1, 0
      %v3810 = vsel %vm3769, 1, 0
      %v3811 = vsel %vm3770, 1, 0
      %v3812 = vsel %vm3771, 1, 0
      %v3813 = vsel %vm3772, 1, 0
      %v3814 = vsel %vm3773, 1, 0
      %v3815 = vsel %vm3774, 1, 0
      %v3816 = vsel %vm3775, 1, 0
      %v3817 = vsel %vm3776, 1, 0
      %v3818 = vsel %vm3777, 1, 0
      %v3819 = vsel %vm3778, 1, 0
      %v3820 = vsel %vm3779, 1, 0
      %v3821 = vsel %vm3780, 1, 0
      %v3822 = vsel %vm3781, 1, 0
      %v3823 = vsel %vm3782, 1, 0
      %v3824 = vsel %vm3783, 1, 0
      %v3825 = vsel %vm3784, 1, 0
      %v3826 = vsel %vm3785, 1, 0
      %v3827 = vsel %vm3786, 1, 0
      %v3828 = vsel %vm3787, 1, 0
      %v3829 = vsel %vm3788, 1, 0
      %v3830 = vsel %vm3789, 1, 0
      %v3831 = vsel %vm3790, 1, 0
      %v3832 = vsel %vm3791, 1, 0
      %v3833 = vsel %vm3792, 1, 0
      %v3834 = vsel %vm3793, 1, 0
      %v3835 = vsel %vm3794, 1, 0
      %v3836 = vsel %vm3795, 1, 0
      %v3837 = vsel %vm3796, 1, 0
      %v3838 = vsel %vm3797, 1, 0
      %v3839 = vsel %vm3798, 1, 0
      %3840 = vset.pattern.permute.xlu0 0
      %3841 = vperm.xlu0 %3840, %v3799
      %v3842 = vpop.permute.xlu0 %3841
      %3843 = vset.pattern.permute.xlu0 0
      %3844 = vperm.xlu0 %3843, %v3800
      %v3845 = vpop.permute.xlu0 %3844
      %3846 = vset.pattern.permute.xlu0 0
      %3847 = vperm.xlu0 %3846, %v3801
      %v3848 = vpop.permute.xlu0 %3847
      %3849 = vset.pattern.permute.xlu0 0
      %3850 = vperm.xlu0 %3849, %v3802
      %v3851 = vpop.permute.xlu0 %3850
      %3852 = vset.pattern.permute.xlu0 0
      %3853 = vperm.xlu0 %3852, %v3803
      %v3854 = vpop.permute.xlu0 %3853
      %3855 = vset.pattern.permute.xlu0 0
      %3856 = vperm.xlu0 %3855, %v3804
      %v3857 = vpop.permute.xlu0 %3856
      %3858 = vset.pattern.permute.xlu0 0
      %3859 = vperm.xlu0 %3858, %v3805
      %v3860 = vpop.permute.xlu0 %3859
      %3861 = vset.pattern.permute.xlu0 0
      %3862 = vperm.xlu0 %3861, %v3806
      %v3863 = vpop.permute.xlu0 %3862
      %3864 = vset.pattern.permute.xlu0 0
      %3865 = vperm.xlu0 %3864, %v3807
      %v3866 = vpop.permute.xlu0 %3865
      %3867 = vset.pattern.permute.xlu0 0
      %3868 = vperm.xlu0 %3867, %v3808
      %v3869 = vpop.permute.xlu0 %3868
      %3870 = vset.pattern.permute.xlu0 0
      %3871 = vperm.xlu0 %3870, %v3809
      %v3872 = vpop.permute.xlu0 %3871
      %3873 = vset.pattern.permute.xlu0 0
      %3874 = vperm.xlu0 %3873, %v3810
      %v3875 = vpop.permute.xlu0 %3874
      %3876 = vset.pattern.permute.xlu0 0
      %3877 = vperm.xlu0 %3876, %v3811
      %v3878 = vpop.permute.xlu0 %3877
      %3879 = vset.pattern.permute.xlu0 0
      %3880 = vperm.xlu0 %3879, %v3812
      %v3881 = vpop.permute.xlu0 %3880
      %3882 = vset.pattern.permute.xlu0 0
      %3883 = vperm.xlu0 %3882, %v3813
      %v3884 = vpop.permute.xlu0 %3883
      %3885 = vset.pattern.permute.xlu0 0
      %3886 = vperm.xlu0 %3885, %v3814
      %v3887 = vpop.permute.xlu0 %3886
      %3888 = vset.pattern.permute.xlu0 0
      %3889 = vperm.xlu0 %3888, %v3815
      %v3890 = vpop.permute.xlu0 %3889
      %3891 = vset.pattern.permute.xlu0 0
      %3892 = vperm.xlu0 %3891, %v3816
      %v3893 = vpop.permute.xlu0 %3892
      %3894 = vset.pattern.permute.xlu0 0
      %3895 = vperm.xlu0 %3894, %v3817
      %v3896 = vpop.permute.xlu0 %3895
      %3897 = vset.pattern.permute.xlu0 0
      %3898 = vperm.xlu0 %3897, %v3818
      %v3899 = vpop.permute.xlu0 %3898
      %3900 = vset.pattern.permute.xlu0 0
      %3901 = vperm.xlu0 %3900, %v3819
      %v3902 = vpop.permute.xlu0 %3901
      %3903 = vset.pattern.permute.xlu0 0
      %3904 = vperm.xlu0 %3903, %v3820
      %v3905 = vpop.permute.xlu0 %3904
      %3906 = vset.pattern.permute.xlu0 0
      %3907 = vperm.xlu0 %3906, %v3821
      %v3908 = vpop.permute.xlu0 %3907
      %3909 = vset.pattern.permute.xlu0 0
      %3910 = vperm.xlu0 %3909, %v3822
      %v3911 = vpop.permute.xlu0 %3910
      %3912 = vset.pattern.permute.xlu0 0
      %3913 = vperm.xlu0 %3912, %v3823
      %v3914 = vpop.permute.xlu0 %3913
      %3915 = vset.pattern.permute.xlu0 0
      %3916 = vperm.xlu0 %3915, %v3824
      %v3917 = vpop.permute.xlu0 %3916
      %3918 = vset.pattern.permute.xlu0 0
      %3919 = vperm.xlu0 %3918, %v3825
      %v3920 = vpop.permute.xlu0 %3919
      %3921 = vset.pattern.permute.xlu0 0
      %3922 = vperm.xlu0 %3921, %v3826
      %v3923 = vpop.permute.xlu0 %3922
      %3924 = vset.pattern.permute.xlu0 0
      %3925 = vperm.xlu0 %3924, %v3827
      %v3926 = vpop.permute.xlu0 %3925
      %3927 = vset.pattern.permute.xlu0 0
      %3928 = vperm.xlu0 %3927, %v3828
      %v3929 = vpop.permute.xlu0 %3928
      %3930 = vset.pattern.permute.xlu0 0
      %3931 = vperm.xlu0 %3930, %v3829
      %v3932 = vpop.permute.xlu0 %3931
      %3933 = vset.pattern.permute.xlu0 0
      %3934 = vperm.xlu0 %3933, %v3830
      %v3935 = vpop.permute.xlu0 %3934
      %3936 = vset.pattern.permute.xlu0 0
      %3937 = vperm.xlu0 %3936, %v3831
      %v3938 = vpop.permute.xlu0 %3937
      %3939 = vset.pattern.permute.xlu0 0
      %3940 = vperm.xlu0 %3939, %v3832
      %v3941 = vpop.permute.xlu0 %3940
      %3942 = vset.pattern.permute.xlu0 0
      %3943 = vperm.xlu0 %3942, %v3833
      %v3944 = vpop.permute.xlu0 %3943
      %3945 = vset.pattern.permute.xlu0 0
      %3946 = vperm.xlu0 %3945, %v3834
      %v3947 = vpop.permute.xlu0 %3946
      %3948 = vset.pattern.permute.xlu0 0
      %3949 = vperm.xlu0 %3948, %v3835
      %v3950 = vpop.permute.xlu0 %3949
      %3951 = vset.pattern.permute.xlu0 0
      %3952 = vperm.xlu0 %3951, %v3836
      %v3953 = vpop.permute.xlu0 %3952
      %3954 = vset.pattern.permute.xlu0 0
      %3955 = vperm.xlu0 %3954, %v3837
      %v3956 = vpop.permute.xlu0 %3955
      %3957 = vset.pattern.permute.xlu0 0
      %3958 = vperm.xlu0 %3957, %v3838
      %v3959 = vpop.permute.xlu0 %3958
      %3960 = vset.pattern.permute.xlu0 0
      %3961 = vperm.xlu0 %3960, %v3839
      %v3962 = vpop.permute.xlu0 %3961
      %vm3963 = vcmp.eq.s32.totalorder %v3842, 1
      %vm3964 = vcmp.eq.s32.totalorder %v3845, 1
      %vm3965 = vcmp.eq.s32.totalorder %v3848, 1
      %vm3966 = vcmp.eq.s32.totalorder %v3851, 1
      %vm3967 = vcmp.eq.s32.totalorder %v3854, 1
      %vm3968 = vcmp.eq.s32.totalorder %v3857, 1
      %vm3969 = vcmp.eq.s32.totalorder %v3860, 1
      %vm3970 = vcmp.eq.s32.totalorder %v3863, 1
      %vm3971 = vcmp.eq.s32.totalorder %v3866, 1
      %vm3972 = vcmp.eq.s32.totalorder %v3869, 1
      %vm3973 = vcmp.eq.s32.totalorder %v3872, 1
      %vm3974 = vcmp.eq.s32.totalorder %v3875, 1
      %vm3975 = vcmp.eq.s32.totalorder %v3878, 1
      %vm3976 = vcmp.eq.s32.totalorder %v3881, 1
      %vm3977 = vcmp.eq.s32.totalorder %v3884, 1
      %vm3978 = vcmp.eq.s32.totalorder %v3887, 1
      %vm3979 = vcmp.eq.s32.totalorder %v3890, 1
      %vm3980 = vcmp.eq.s32.totalorder %v3893, 1
      %vm3981 = vcmp.eq.s32.totalorder %v3896, 1
      %vm3982 = vcmp.eq.s32.totalorder %v3899, 1
      %vm3983 = vcmp.eq.s32.totalorder %v3902, 1
      %vm3984 = vcmp.eq.s32.totalorder %v3905, 1
      %vm3985 = vcmp.eq.s32.totalorder %v3908, 1
      %vm3986 = vcmp.eq.s32.totalorder %v3911, 1
      %vm3987 = vcmp.eq.s32.totalorder %v3914, 1
      %vm3988 = vcmp.eq.s32.totalorder %v3917, 1
      %vm3989 = vcmp.eq.s32.totalorder %v3920, 1
      %vm3990 = vcmp.eq.s32.totalorder %v3923, 1
      %vm3991 = vcmp.eq.s32.totalorder %v3926, 1
      %vm3992 = vcmp.eq.s32.totalorder %v3929, 1
      %vm3993 = vcmp.eq.s32.totalorder %v3932, 1
      %vm3994 = vcmp.eq.s32.totalorder %v3935, 1
      %vm3995 = vcmp.eq.s32.totalorder %v3938, 1
      %vm3996 = vcmp.eq.s32.totalorder %v3941, 1
      %vm3997 = vcmp.eq.s32.totalorder %v3944, 1
      %vm3998 = vcmp.eq.s32.totalorder %v3947, 1
      %vm3999 = vcmp.eq.s32.totalorder %v3950, 1
      %vm4000 = vcmp.eq.s32.totalorder %v3953, 1
      %vm4001 = vcmp.eq.s32.totalorder %v3956, 1
      %vm4002 = vcmp.eq.s32.totalorder %v3959, 1
      %vm4003 = vcmp.eq.s32.totalorder %v3962, 1
      %v4004 = vsel %vm3963, %v3676, 0.0
      %v4005 = vsel %vm3964, %v3677, 0.0
      %v4006 = vsel %vm3965, %v3678, 0.0
      %v4007 = vsel %vm3966, %v3679, 0.0
      %v4008 = vsel %vm3967, %v3680, 0.0
      %v4009 = vsel %vm3968, %v3681, 0.0
      %v4010 = vsel %vm3969, %v3682, 0.0
      %v4011 = vsel %vm3970, %v3683, 0.0
      %v4012 = vsel %vm3971, %v3684, 0.0
      %v4013 = vsel %vm3972, %v3685, 0.0
      %v4014 = vsel %vm3973, %v3686, 0.0
      %v4015 = vsel %vm3974, %v3687, 0.0
      %v4016 = vsel %vm3975, %v3688, 0.0
      %v4017 = vsel %vm3976, %v3689, 0.0
      %v4018 = vsel %vm3977, %v3690, 0.0
      %v4019 = vsel %vm3978, %v3691, 0.0
      %v4020 = vsel %vm3979, %v3692, 0.0
      %v4021 = vsel %vm3980, %v3693, 0.0
      %v4022 = vsel %vm3981, %v3694, 0.0
      %v4023 = vsel %vm3982, %v3695, 0.0
      %v4024 = vsel %vm3983, %v3696, 0.0
      %v4025 = vsel %vm3984, %v3697, 0.0
      %v4026 = vsel %vm3985, %v3698, 0.0
      %v4027 = vsel %vm3986, %v3699, 0.0
      %v4028 = vsel %vm3987, %v3700, 0.0
      %v4029 = vsel %vm3988, %v3701, 0.0
      %v4030 = vsel %vm3989, %v3702, 0.0
      %v4031 = vsel %vm3990, %v3703, 0.0
      %v4032 = vsel %vm3991, %v3704, 0.0
      %v4033 = vsel %vm3992, %v3705, 0.0
      %v4034 = vsel %vm3993, %v3706, 0.0
      %v4035 = vsel %vm3994, %v3707, 0.0
      %v4036 = vsel %vm3995, %v3708, 0.0
      %v4037 = vsel %vm3996, %v3709, 0.0
      %v4038 = vsel %vm3997, %v3710, 0.0
      %v4039 = vsel %vm3998, %v3711, 0.0
      %v4040 = vsel %vm3999, %v3712, 0.0
      %v4041 = vsel %vm4000, %v3713, 0.0
      %v4042 = vsel %vm4001, %v3714, 0.0
      %v4043 = vsel %vm4002, %v3715, 0.0
      %v4044 = vsel %vm4003, %v3716, 0.0
      %v4045 = vpack.c.bf16 %v4005, %v4004
      %v4046 = vpack.c.bf16 %v4007, %v4006
      %v4047 = vpack.c.bf16 %v4009, %v4008
      %v4048 = vpack.c.bf16 %v4011, %v4010
      %v4049 = vpack.c.bf16 %v4013, %v4012
      %v4050 = vpack.c.bf16 %v4015, %v4014
      %v4051 = vpack.c.bf16 %v4017, %v4016
      %v4052 = vpack.c.bf16 %v4019, %v4018
      %v4053 = vpack.c.bf16 %v4021, %v4020
      %v4054 = vpack.c.bf16 %v4023, %v4022
      %v4055 = vpack.c.bf16 %v4025, %v4024
      %v4056 = vpack.c.bf16 %v4027, %v4026
      %v4057 = vpack.c.bf16 %v4029, %v4028
      %v4058 = vpack.c.bf16 %v4031, %v4030
      %v4059 = vpack.c.bf16 %v4033, %v4032
      %v4060 = vpack.c.bf16 %v4035, %v4034
      %v4061 = vpack.c.bf16 %v4037, %v4036
      %v4062 = vpack.c.bf16 %v4039, %v4038
      %v4063 = vpack.c.bf16 %v4041, %v4040
      %v4064 = vpack.c.bf16 %v4043, %v4042
      %v4065 = vpack.c.bf16 %v4044, %v4044
      %v4087 = vunpack.c.l.b16 %v4045
      %v4088 = vunpack.c.h.b16 %v4045
      %v4089 = vunpack.c.l.b16 %v4046
      %v4090 = vunpack.c.h.b16 %v4046
      %v4091 = vunpack.c.l.b16 %v4047
      %v4092 = vunpack.c.h.b16 %v4047
      %v4093 = vunpack.c.l.b16 %v4048
      %v4094 = vunpack.c.h.b16 %v4048
      %v4095 = vunpack.c.l.b16 %v4049
      %v4096 = vunpack.c.h.b16 %v4049
      %v4097 = vunpack.c.l.b16 %v4050
      %v4098 = vunpack.c.h.b16 %v4050
      %v4099 = vunpack.c.l.b16 %v4051
      %v4100 = vunpack.c.h.b16 %v4051
      %v4101 = vunpack.c.l.b16 %v4052
      %v4102 = vunpack.c.h.b16 %v4052
      %v4103 = vunpack.c.l.b16 %v4053
      %v4104 = vunpack.c.h.b16 %v4053
      %v4105 = vunpack.c.l.b16 %v4054
      %v4106 = vunpack.c.h.b16 %v4054
      %v4107 = vunpack.c.l.b16 %v4055
      %v4108 = vunpack.c.h.b16 %v4055
      %v4109 = vunpack.c.l.b16 %v4056
      %v4110 = vunpack.c.h.b16 %v4056
      %v4111 = vunpack.c.l.b16 %v4057
      %v4112 = vunpack.c.h.b16 %v4057
      %v4113 = vunpack.c.l.b16 %v4058
      %v4114 = vunpack.c.h.b16 %v4058
      %v4115 = vunpack.c.l.b16 %v4059
      %v4116 = vunpack.c.h.b16 %v4059
      %v4117 = vunpack.c.l.b16 %v4060
      %v4118 = vunpack.c.h.b16 %v4060
      %v4119 = vunpack.c.l.b16 %v4061
      %v4120 = vunpack.c.h.b16 %v4061
      %v4121 = vunpack.c.l.b16 %v4062
      %v4122 = vunpack.c.h.b16 %v4062
      %v4123 = vunpack.c.l.b16 %v4063
      %v4124 = vunpack.c.h.b16 %v4063
      %v4125 = vunpack.c.l.b16 %v4064
      %v4126 = vunpack.c.h.b16 %v4064
      %v4127 = vunpack.c.l.b16 %v4065
      %v4128 = vpack.c.b16 %v4087, %v4087
      %v4129 = vpack.c.b16 %v4088, %v4088
      %v4130 = vpack.c.b16 %v4089, %v4089
      %v4131 = vpack.c.b16 %v4090, %v4090
      %v4132 = vpack.c.b16 %v4091, %v4091
      %v4133 = vpack.c.b16 %v4092, %v4092
      %v4134 = vpack.c.b16 %v4093, %v4093
      %v4135 = vpack.c.b16 %v4094, %v4094
      %v4136 = vpack.c.b16 %v4095, %v4095
      %v4137 = vpack.c.b16 %v4096, %v4096
      %v4138 = vpack.c.b16 %v4097, %v4097
      %v4139 = vpack.c.b16 %v4098, %v4098
      %v4140 = vpack.c.b16 %v4099, %v4099
      %v4141 = vpack.c.b16 %v4100, %v4100
      %v4142 = vpack.c.b16 %v4101, %v4101
      %v4143 = vpack.c.b16 %v4102, %v4102
      %v4144 = vpack.c.b16 %v4103, %v4103
      %v4145 = vpack.c.b16 %v4104, %v4104
      %v4146 = vpack.c.b16 %v4105, %v4105
      %v4147 = vpack.c.b16 %v4106, %v4106
      %v4148 = vpack.c.b16 %v4107, %v4107
      %v4149 = vpack.c.b16 %v4108, %v4108
      %v4150 = vpack.c.b16 %v4109, %v4109
      %v4151 = vpack.c.b16 %v4110, %v4110
      %v4152 = vpack.c.b16 %v4111, %v4111
      %v4153 = vpack.c.b16 %v4112, %v4112
      %v4154 = vpack.c.b16 %v4113, %v4113
      %v4155 = vpack.c.b16 %v4114, %v4114
      %v4156 = vpack.c.b16 %v4115, %v4115
      %v4157 = vpack.c.b16 %v4116, %v4116
      %v4158 = vpack.c.b16 %v4117, %v4117
      %v4159 = vpack.c.b16 %v4118, %v4118
      %v4160 = vpack.c.b16 %v4119, %v4119
      %v4161 = vpack.c.b16 %v4120, %v4120
      %v4162 = vpack.c.b16 %v4121, %v4121
      %v4163 = vpack.c.b16 %v4122, %v4122
      %v4164 = vpack.c.b16 %v4123, %v4123
      %v4165 = vpack.c.b16 %v4124, %v4124
      %v4166 = vpack.c.b16 %v4125, %v4125
      %v4167 = vpack.c.b16 %v4126, %v4126
      %v4168 = vpack.c.b16 %v4127, %v4127
      %4210 = vst [vmem:[%s245] sm:$0xf] %v4128
      %4211 = vst [vmem:[%s245 + $0x4] sm:$0xf] %v4129
      %4212 = vst [vmem:[%s245 + $0x8] sm:$0xf] %v4130
      %4213 = vst [vmem:[%s245 + $0xc] sm:$0xf] %v4131
      %4214 = vst [vmem:[%s245 + $0x10] sm:$0xf] %v4132
      %4215 = vst [vmem:[%s245 + $0x14] sm:$0xf] %v4133
      %4216 = vst [vmem:[%s245 + $0x18] sm:$0xf] %v4134
      %4217 = vst [vmem:[%s245 + $0x1c] sm:$0xf] %v4135
      %4218 = vst [vmem:[%s245 + $0x20] sm:$0xf] %v4136
      %4219 = vst [vmem:[%s245 + $0x24] sm:$0xf] %v4137
      %4220 = vst [vmem:[%s245 + $0x28] sm:$0xf] %v4138
      %4221 = vst [vmem:[%s245 + $0x2c] sm:$0xf] %v4139
      %4222 = vst [vmem:[%s245 + $0x30] sm:$0xf] %v4140
      %4223 = vst [vmem:[%s245 + $0x34] sm:$0xf] %v4141
      %4224 = vst [vmem:[%s245 + $0x38] sm:$0xf] %v4142
      %4225 = vst [vmem:[%s245 + $0x3c] sm:$0xf] %v4143
      %4226 = vst [vmem:[%s245 + $0x40] sm:$0xf] %v4144
      %4227 = vst [vmem:[%s245 + $0x44] sm:$0xf] %v4145
      %4228 = vst [vmem:[%s245 + $0x48] sm:$0xf] %v4146
      %4229 = vst [vmem:[%s245 + $0x4c] sm:$0xf] %v4147
      %4230 = vst [vmem:[%s245 + $0x50] sm:$0xf] %v4148
      %4231 = vst [vmem:[%s245 + $0x54] sm:$0xf] %v4149
      %4232 = vst [vmem:[%s245 + $0x58] sm:$0xf] %v4150
      %4233 = vst [vmem:[%s245 + $0x5c] sm:$0xf] %v4151
      %4234 = vst [vmem:[%s245 + $0x60] sm:$0xf] %v4152
      %4235 = vst [vmem:[%s245 + $0x64] sm:$0xf] %v4153
      %4236 = vst [vmem:[%s245 + $0x68] sm:$0xf] %v4154
      %4237 = vst [vmem:[%s245 + $0x6c] sm:$0xf] %v4155
      %4238 = vst [vmem:[%s245 + $0x70] sm:$0xf] %v4156
      %4239 = vst [vmem:[%s245 + $0x74] sm:$0xf] %v4157
      %4240 = vst [vmem:[%s245 + $0x78] sm:$0xf] %v4158
      %4241 = vst [vmem:[%s245 + $0x7c] sm:$0xf] %v4159
      %4242 = vst [vmem:[%s245 + $0x80] sm:$0xf] %v4160
      %4243 = vst [vmem:[%s245 + $0x84] sm:$0xf] %v4161
      %4244 = vst [vmem:[%s245 + $0x88] sm:$0xf] %v4162
      %4245 = vst [vmem:[%s245 + $0x8c] sm:$0xf] %v4163
      %4246 = vst [vmem:[%s245 + $0x90] sm:$0xf] %v4164
      %4247 = vst [vmem:[%s245 + $0x94] sm:$0xf] %v4165
      %4248 = vst [vmem:[%s245 + $0x98] sm:$0xf] %v4166
      %4249 = vst [vmem:[%s245 + $0x9c] sm:$0xf] %v4167
      %4250 = vst [vmem:[%s245 + $0xa0] sm:$0xf] %v4168
      %s4251 = sadd.s32 %s20, 1
      %s4252 = smul.u32 41, %s4251
      %p4253 = scmp.lt.s32.totalorder %s19, 1
      %s4254 = scalar_select %p4253, %s19, 1
      %p4255 = scmp.lt.s32.totalorder %s4252, 122
      %s4256 = scalar_select %p4255, %s4252, 122
      %s4257 = smul.addr %s4254, 123
      %s4258 = sadd.s32 %s4256, %s4257
      %s4259 = smul.addr %s4258, 4
      %s4260 = scalar_lea.vmem %s4, %s4259
      // Predicated region
      $region37: #{conv_block_forward.5} parent=35 // pred_check
        %p4261 = pneg %p143
      $region38: #{conv_block_forward.5} parent=35 // pred_check_branch
        %4263 = sbr.rel (%p4261) target = $region40
      $region39: #{conv_block_forward.5} parent=35 // pred_region
        %s4264 = sadd.s32 %s20, 1
        %s4265 = smul.u32 41, %s4264
      $region40: #{conv_block_forward.5} parent=35 // pred_fallthru
        _
    $region36: #{conv_block_forward.5} parent=5 // pred_fallthru
      _
    %p4266 = scmp.le.s32.totalorder 2, %s10
    // Predicated region
    $region41: #{conv_block_forward.5} parent=5 // pred_check
      %p4267 = pneg %p4266
    $region42: #{conv_block_forward.5} parent=5 // pred_check_branch
      %4269 = sbr.rel (%p4267) target = $region44
    $region43: #{conv_block_forward.5} parent=5 // pred_region
      %s4270 = ssub.s32 %s10, 2
      // Predicated region
      $region45: #{conv_block_forward.5} parent=43 // pred_check
        %p4271 = pneg %p149
      $region46: #{conv_block_forward.5} parent=43 // pred_check_branch
        %4273 = sbr.rel (%p4271) target = $region48
      $region47: #{conv_block_forward.5} parent=43 // pred_region
        %s4274 = sadd.s32 %s22, 1
        %s4275 = smul.u32 41, %s4274
        %p4276 = scmp.lt.s32.totalorder %s21, 1
        %s4277 = scalar_select %p4276, %s21, 1
        %p4278 = scmp.lt.s32.totalorder %s4275, 122
        %s4279 = scalar_select %p4278, %s4275, 122
        %s4280 = smul.addr %s4277, 123
        %s4281 = sadd.s32 %s4279, %s4280
        %s4282 = smul.addr %s4281, 4
        %s4283 = scalar_lea.vmem %s4, %s4282
      $region48: #{conv_block_forward.5} parent=43 // pred_fallthru
        _
    $region44: #{conv_block_forward.5} parent=5 // pred_fallthru
      _
  $region6: #{conv_block_forward.5} parent=0 // loop_footer
    %s14 = sadd.s32 1, %s10
  $region7: #{conv_block_forward.5} parent=0 // loop_footer_branch
    %9 = sbr.rel target = $region3
  $region8: #{conv_block_forward.5} parent=0 // loop_exit
    _

// kernel: conv_block_forward.6
$region0: #{conv_block_forward.6}
  #allocation0 [shape = 'u32[]', space=smem, size = 0x4, offset = 0x4, fixed_abs, tag = 'smem constant byte address 0x4 - core index']
  #allocation1 [shape = 'u32[144,128]{1,0:T(1,128)}', space=vmem, size = 0x12000, scoped, tag = 'internal scratch']
  %s0 = inlined_call_operand.vmem [shape: bf16[2,984,128], index: 0, kind: input, shape index: {}]
  %s1 = inlined_call_operand.vmem [shape: bf16[9,128,128], index: 1, kind: input, shape index: {}]
  %s2 = inlined_call_operand.vmem [shape: f32[1,128], index: 2, kind: input, shape index: {}]
  %s3 = inlined_call_operand.vmem [shape: f32[328,1], index: 3, kind: input, shape index: {}]
  %s4 = inlined_call_operand.vmem [shape: f32[2,984,128], index: 4, kind: output, shape index: {}]
  %s5 = sld [smem:[#allocation0]]
  $region49: #{conv_block_forward.6} parent=0
    _
  %s7 = ssub.s32 1, %s5
  %s8 = scalar_select 0, %s7, %s5
  loop: start=0, step=1, limit=4
  $region2: #{conv_block_forward.6} parent=0 // loop_pre_header
    _
  $region3: #{conv_block_forward.6} parent=0 // loop_header
    %s10 = sphi 0, %s14
    %p11 = scmp.ge.s32.totalorder %s10, 4
    %s17 = sphi 0, %s29
    %s18 = sphi 0, %s25
    %s19 = sphi 0, %s17
    %s20 = sphi 0, %s18
    %s21 = sphi 0, %s19
    %s22 = sphi 0, %s20
    %s32 = sphi 0, %s34
    %s35 = sphi 0, %s32
    %s36 = sphi 0, %s35
    %s52 = sphi 0, %s36
    %s56 = sphi 0, %s56
    %s58 = sphi 0, %s56
    %s59 = sphi 0, %s58
    %s73 = sphi 0, %s59
    %s77 = sphi 0, %s77
    %s79 = sphi 0, %s77
    %s80 = sphi 0, %s79
    %s94 = sphi 0, %s80
    %s100 = sphi 0, %s102
    %s103 = sphi 0, %s100
    %s104 = sphi 0, %s103
    %s120 = sphi 0, %s104
    %s130 = sphi 0, %s132
    %s133 = sphi 0, %s130
    %s134 = sphi 0, %s133
    %s150 = sphi 0, %s134
  $region4: #{conv_block_forward.6} parent=0 // loop_header_branch
    %13 = sbr.rel (%p11) target = $region8
  $region5: #{conv_block_forward.6} parent=0 // loop_body
    %s15 = ssub.s32 %s10, 1
    %s16 = ssub.s32 %s10, 2
    %s23 = sadd.s32 1, %s18
    %p24 = scmp.ge.s32.totalorder %s23, 1
    %s25 = scalar_select %p24, 0, %s23
    %s26 = sadd.s32 1, %s17
    %s27 = scalar_select %p24, %s26, %s17
    %p28 = scmp.ge.s32.totalorder %s27, 2
    %s29 = scalar_select %p28, 0, %s27
    %s30 = ssub.s32 %s17, %s29
    %p31 = scmp.eq.s32.totalorder %s30, 0
    %s33 = sadd.s32 %s32, 1
    %s34 = scalar_select %p31, %s32, %s33
    %p37 = pneg %p31
    %p38 = scmp.eq.s32.totalorder %s10, 1
    %p39 = por %p37, %p38
    %p40 = scmp.ne.s32.totalorder %s32, %s35
    %p41 = scmp.eq.s32.totalorder %s10, 0
    %p42 = por %p40, %p41
    %p43 = scmp.ne.s32.totalorder %s32, %s35
    %p44 = scmp.eq.s32.totalorder %s15, 1
    %p45 = por %p43, %p44
    %p46 = scmp.ne.s32.totalorder %s35, %s36
    %p47 = scmp.eq.s32.totalorder %s15, 0
    %p48 = por %p46, %p47
    %p49 = scmp.ne.s32.totalorder %s35, %s36
    %p50 = scmp.eq.s32.totalorder %s16, 1
    %p51 = por %p49, %p50
    %p53 = scmp.ne.s32.totalorder %s36, %s52
    %p54 = scmp.eq.s32.totalorder %s16, 0
    %p55 = por %p53, %p54
    %s57 = sadd.s32 %s56, 1
    %p60 = scmp.eq.s32.totalorder %s10, 1
    %p61 = scmp.ne.s32.totalorder %s56, %s58
    %p62 = scmp.eq.s32.totalorder %s10, 0
    %p63 = por %p61, %p62
    %p64 = scmp.ne.s32.totalorder %s56, %s58
    %p65 = scmp.eq.s32.totalorder %s15, 1
    %p66 = por %p64, %p65
    %p67 = scmp.ne.s32.totalorder %s58, %s59
    %p68 = scmp.eq.s32.totalorder %s15, 0
    %p69 = por %p67, %p68
    %p70 = scmp.ne.s32.totalorder %s58, %s59
    %p71 = scmp.eq.s32.totalorder %s16, 1
    %p72 = por %p70, %p71
    %p74 = scmp.ne.s32.totalorder %s59, %s73
    %p75 = scmp.eq.s32.totalorder %s16, 0
    %p76 = por %p74, %p75
    %s78 = sadd.s32 %s77, 1
    %p81 = scmp.eq.s32.totalorder %s10, 1
    %p82 = scmp.ne.s32.totalorder %s77, %s79
    %p83 = scmp.eq.s32.totalorder %s10, 0
    %p84 = por %p82, %p83
    %p85 = scmp.ne.s32.totalorder %s77, %s79
    %p86 = scmp.eq.s32.totalorder %s15, 1
    %p87 = por %p85, %p86
    %p88 = scmp.ne.s32.totalorder %s79, %s80
    %p89 = scmp.eq.s32.totalorder %s15, 0
    %p90 = por %p88, %p89
    %p91 = scmp.ne.s32.totalorder %s79, %s80
    %p92 = scmp.eq.s32.totalorder %s16, 1
    %p93 = por %p91, %p92
    %p95 = scmp.ne.s32.totalorder %s80, %s94
    %p96 = scmp.eq.s32.totalorder %s16, 0
    %p97 = por %p95, %p96
    %s98 = ssub.s32 %s18, %s25
    %p99 = scmp.eq.s32.totalorder %s98, 0
    %s101 = sadd.s32 %s100, 1
    %s102 = scalar_select %p99, %s100, %s101
    %p105 = pneg %p99
    %p106 = scmp.eq.s32.totalorder %s10, 1
    %p107 = por %p105, %p106
    %p108 = scmp.ne.s32.totalorder %s100, %s103
    %p109 = scmp.eq.s32.totalorder %s10, 0
    %p110 = por %p108, %p109
    %p111 = scmp.ne.s32.totalorder %s100, %s103
    %p112 = scmp.eq.s32.totalorder %s15, 1
    %p113 = por %p111, %p112
    %p114 = scmp.ne.s32.totalorder %s103, %s104
    %p115 = scmp.eq.s32.totalorder %s15, 0
    %p116 = por %p114, %p115
    %p117 = scmp.ne.s32.totalorder %s103, %s104
    %p118 = scmp.eq.s32.totalorder %s16, 1
    %p119 = por %p117, %p118
    %p121 = scmp.ne.s32.totalorder %s104, %s120
    %p122 = scmp.eq.s32.totalorder %s16, 0
    %p123 = por %p121, %p122
    %s124 = sadd.s32 %s18, 1
    %s125 = sadd.s32 %s25, 1
    %s126 = ssub.s32 %s17, %s29
    %s127 = ssub.s32 %s124, %s125
    %s128 = sor.u32 %s126, %s127
    %p129 = scmp.eq.s32.totalorder %s128, 0
    %s131 = sadd.s32 %s130, 1
    %s132 = scalar_select %p129, %s130, %s131
    %p135 = pneg %p129
    %p136 = scmp.eq.s32.totalorder %s10, 1
    %p137 = por %p135, %p136
    %p138 = scmp.ne.s32.totalorder %s130, %s133
    %p139 = scmp.eq.s32.totalorder %s10, 0
    %p140 = por %p138, %p139
    %p141 = scmp.ne.s32.totalorder %s130, %s133
    %p142 = scmp.eq.s32.totalorder %s15, 1
    %p143 = por %p141, %p142
    %p144 = scmp.ne.s32.totalorder %s133, %s134
    %p145 = scmp.eq.s32.totalorder %s15, 0
    %p146 = por %p144, %p145
    %p147 = scmp.ne.s32.totalorder %s133, %s134
    %p148 = scmp.eq.s32.totalorder %s16, 1
    %p149 = por %p147, %p148
    %p151 = scmp.ne.s32.totalorder %s134, %s150
    %p152 = scmp.eq.s32.totalorder %s16, 0
    %p153 = por %p151, %p152
    %p154 = scmp.le.s32.totalorder 1, %s10
    %p155 = scmp.lt.s32.totalorder %s10, 3
    %p156 = pnand %p154, %p155
    %p157 = pneg %p156
    // Predicated region
    $region9: #{conv_block_forward.6} parent=5 // pred_check
      _
    $region10: #{conv_block_forward.6} parent=5 // pred_check_branch
      %159 = sbr.rel (%p156) target = $region12
    $region11: #{conv_block_forward.6} parent=5 // pred_region
      %s160 = ssub.s32 %s10, 1
      // Predicated region
      $region13: #{conv_block_forward.6} parent=11 // pred_check
        %p161 = pneg %p69
      $region14: #{conv_block_forward.6} parent=11 // pred_check_branch
        %163 = sbr.rel (%p161) target = $region16
      $region15: #{conv_block_forward.6} parent=11 // pred_region
        _
      $region16: #{conv_block_forward.6} parent=11 // pred_fallthru
        _
      // Predicated region
      $region17: #{conv_block_forward.6} parent=11 // pred_check
        %p164 = pneg %p90
      $region18: #{conv_block_forward.6} parent=11 // pred_check_branch
        %166 = sbr.rel (%p164) target = $region20
      $region19: #{conv_block_forward.6} parent=11 // pred_region
        _
      $region20: #{conv_block_forward.6} parent=11 // pred_fallthru
        _
      // Predicated region
      $region21: #{conv_block_forward.6} parent=11 // pred_check
        %p167 = pneg %p116
      $region22: #{conv_block_forward.6} parent=11 // pred_check_branch
        %169 = sbr.rel (%p167) target = $region24
      $region23: #{conv_block_forward.6} parent=11 // pred_region
        %s170 = smul.u32 41, %s20
        %p171 = scmp.lt.s32.totalorder %s170, 40
        %s172 = scalar_select %p171, %s170, 40
        %s173 = smul.addr %s172, 8
        %s174 = scalar_lea.vmem %s3, %s173
        %s175 = smul.u32 41, %s20
      $region24: #{conv_block_forward.6} parent=11 // pred_fallthru
        _
    $region12: #{conv_block_forward.6} parent=5 // pred_fallthru
      _
    %p176 = scmp.lt.s32.totalorder %s10, 2
    // Predicated region
    $region25: #{conv_block_forward.6} parent=5 // pred_check
      %p177 = pneg %p176
    $region26: #{conv_block_forward.6} parent=5 // pred_check_branch
      %179 = sbr.rel (%p177) target = $region28
    $region27: #{conv_block_forward.6} parent=5 // pred_region
      // Predicated region
      $region29: #{conv_block_forward.6} parent=27 // pred_check
        %p180 = pneg %p42
      $region30: #{conv_block_forward.6} parent=27 // pred_check_branch
        %182 = sbr.rel (%p180) target = $region32
      $region31: #{conv_block_forward.6} parent=27 // pred_region
        %p183 = scmp.lt.s32.totalorder %s17, 1
        %s184 = scalar_select %p183, %s17, 1
        %s185 = smul.addr %s184, 123
        %s186 = smul.addr %s185, 4
        %s187 = scalar_lea.vmem %s0, %s186
      $region32: #{conv_block_forward.6} parent=27 // pred_fallthru
        _
    $region28: #{conv_block_forward.6} parent=5 // pred_fallthru
      _
    %p188 = scmp.le.s32.totalorder 1, %s10
    %p189 = scmp.lt.s32.totalorder %s10, 3
    %p190 = pnand %p188, %p189
    %p191 = pneg %p190
    // Predicated region
    $region33: #{conv_block_forward.6} parent=5 // pred_check
      _
    $region34: #{conv_block_forward.6} parent=5 // pred_check_branch
      %193 = sbr.rel (%p190) target = $region36
    $region35: #{conv_block_forward.6} parent=5 // pred_region
      %s194 = ssub.s32 %s10, 1
      %p195 = scmp.lt.s32.totalorder %s19, 1
      %s196 = scalar_select %p195, %s19, 1
      %s197 = smul.addr %s196, 123
      %s198 = smul.addr %s197, 4
      %s199 = scalar_lea.vmem %s0, %s198
      %p200 = pneg %p48
      %p201 = pneg %p45
      %p202 = pneg %p69
      %p203 = pneg %p66
      %p204 = pneg %p90
      %p205 = pneg %p87
      %s206 = smul.u32 41, %s20
      %p207 = scmp.lt.s32.totalorder %s206, 40
      %s208 = scalar_select %p207, %s206, 40
      %s209 = smul.addr %s208, 8
      %s210 = scalar_lea.vmem %s3, %s209
      %p211 = pneg %p116
      %p212 = pneg %p113
      %p213 = pneg %p146
      %p214 = pneg %p143
      %s215 = sadd.s32 %s20, 1
      %s216 = smul.u32 41, %s215
      %p217 = scmp.lt.s32.totalorder %s19, 1
      %s218 = scalar_select %p217, %s19, 1
      %p219 = scmp.lt.s32.totalorder %s216, 122
      %s220 = scalar_select %p219, %s216, 122
      %s221 = smul.addr %s218, 123
      %s222 = sadd.s32 %s220, %s221
      %s223 = smul.addr %s222, 8
      %s224 = scalar_lea.vmem %s4, %s223
      %p225 = scmp.lt.s32.totalorder %s19, 1
      %s226 = scalar_select %p225, %s19, 1
      %s227 = smul.addr %s226, 123
      %s228 = smul.addr %s227, 4
      %s229 = scalar_lea.vmem %s0, %s228
      %s230 = smul.u32 41, %s20
      %p231 = scmp.lt.s32.totalorder %s230, 40
      %s232 = scalar_select %p231, %s230, 40
      %s233 = smul.addr %s232, 8
      %s234 = scalar_lea.vmem %s3, %s233
      %s235 = smul.u32 41, %s20
      %s236 = sadd.s32 %s20, 1
      %s237 = smul.u32 41, %s236
      %p238 = scmp.lt.s32.totalorder %s19, 1
      %s239 = scalar_select %p238, %s19, 1
      %p240 = scmp.lt.s32.totalorder %s237, 122
      %s241 = scalar_select %p240, %s237, 122
      %s242 = smul.addr %s239, 123
      %s243 = sadd.s32 %s241, %s242
      %s244 = smul.addr %s243, 8
      %s245 = scalar_lea.vmem %s4, %s244
      %s246 = sadd.s32 %s20, 1
      %s247 = smul.u32 41, %s246
      %s249 = smul.u32 %s20, 328
      %s250 = sadd.s32 %s249, 304
      %s251 = sshra.s32 %s250, 3
      %s252 = sand.u32 %s250, 7
      %s253 = smul.addr %s251, 4
      %s254 = scalar_lea.vmem %s229, %s253
      %v255 = vld [vmem:[%s254] sm:$0xf]
      %v256 = vld [vmem:[%s254 + $0x4] sm:$0xf]
      %v257 = vld [vmem:[%s254 + $0x8] sm:$0xf]
      %v258 = vld [vmem:[%s254 + $0xc] sm:$0xf]
      %v259 = vld [vmem:[%s254 + $0x10] sm:$0xf]
      %v260 = vld [vmem:[%s254 + $0x14] sm:$0xf]
      %v261 = vld [vmem:[%s254 + $0x18] sm:$0xf]
      %v262 = vld [vmem:[%s254 + $0x1c] sm:$0xf]
      %v263 = vld [vmem:[%s254 + $0x20] sm:$0xf]
      %v264 = vld [vmem:[%s254 + $0x24] sm:$0xf]
      %v265 = vld [vmem:[%s254 + $0x28] sm:$0xf]
      %v266 = vld [vmem:[%s254 + $0x2c] sm:$0xf]
      %v267 = vld [vmem:[%s254 + $0x30] sm:$0xf]
      %v268 = vld [vmem:[%s254 + $0x34] sm:$0xf]
      %v269 = vld [vmem:[%s254 + $0x38] sm:$0xf]
      %v270 = vld [vmem:[%s254 + $0x3c] sm:$0xf]
      %v271 = vld [vmem:[%s254 + $0x40] sm:$0xf]
      %v272 = vld [vmem:[%s254 + $0x44] sm:$0xf]
      %v273 = vld [vmem:[%s254 + $0x48] sm:$0xf]
      %v274 = vld [vmem:[%s254 + $0x4c] sm:$0xf]
      %v275 = vld [vmem:[%s254 + $0x50] sm:$0xf]
      %v276 = vld [vmem:[%s254 + $0x54] sm:$0xf]
      %v277 = vld [vmem:[%s254 + $0x58] sm:$0xf]
      %v278 = vld [vmem:[%s254 + $0x5c] sm:$0xf]
      %v279 = vld [vmem:[%s254 + $0x60] sm:$0xf]
      %v280 = vld [vmem:[%s254 + $0x64] sm:$0xf]
      %v281 = vld [vmem:[%s254 + $0x68] sm:$0xf]
      %v282 = vld [vmem:[%s254 + $0x6c] sm:$0xf]
      %v283 = vld [vmem:[%s254 + $0x70] sm:$0xf]
      %v284 = vld [vmem:[%s254 + $0x74] sm:$0xf]
      %v285 = vld [vmem:[%s254 + $0x78] sm:$0xf]
      %v286 = vld [vmem:[%s254 + $0x7c] sm:$0xf]
      %v287 = vld [vmem:[%s254 + $0x80] sm:$0xf]
      %v288 = vld [vmem:[%s254 + $0x84] sm:$0xf]
      %v289 = vld [vmem:[%s254 + $0x88] sm:$0xf]
      %v290 = vld [vmem:[%s254 + $0x8c] sm:$0xf]
      %v291 = vld [vmem:[%s254 + $0x90] sm:$0xf]
      %v292 = vld [vmem:[%s254 + $0x94] sm:$0xf]
      %v293 = vld [vmem:[%s254 + $0x98] sm:$0xf]
      %v294 = vld [vmem:[%s254 + $0x9c] sm:$0xf]
      %v295 = vld [vmem:[%s254 + $0xa0] sm:$0xf]
      %v296 = vld [vmem:[%s254 + $0xa4] sm:$0xf]
      %v297 = vld [vmem:[%s254 + $0xa8] sm:$0xf]
      %v298 = vld [vmem:[%s254 + $0xac] sm:$0xf]
      %v299 = vld [vmem:[%s254 + $0xb0] sm:$0xf]
      %v300 = vld [vmem:[%s254 + $0xb4] sm:$0xf]
      %v301 = vld [vmem:[%s254 + $0xb8] sm:$0xf]
      %v302 = vunpack.c.l.bf16 %v255
      %v303 = vunpack.c.l.bf16 %v256
      %v304 = vunpack.c.l.bf16 %v257
      %v305 = vunpack.c.l.bf16 %v258
      %v306 = vunpack.c.l.bf16 %v259
      %v307 = vunpack.c.l.bf16 %v260
      %v308 = vunpack.c.l.bf16 %v261
      %v309 = vunpack.c.l.bf16 %v262
      %v310 = vunpack.c.l.bf16 %v263
      %v311 = vunpack.c.l.bf16 %v264
      %v312 = vunpack.c.l.bf16 %v265
      %v313 = vunpack.c.l.bf16 %v266
      %v314 = vunpack.c.l.bf16 %v267
      %v315 = vunpack.c.l.bf16 %v268
      %v316 = vunpack.c.l.bf16 %v269
      %v317 = vunpack.c.l.bf16 %v270
      %v318 = vunpack.c.l.bf16 %v271
      %v319 = vunpack.c.l.bf16 %v272
      %v320 = vunpack.c.l.bf16 %v273
      %v321 = vunpack.c.l.bf16 %v274
      %v322 = vunpack.c.l.bf16 %v275
      %v323 = vunpack.c.l.bf16 %v276
      %v324 = vunpack.c.l.bf16 %v277
      %v325 = vunpack.c.l.bf16 %v278
      %v326 = vunpack.c.l.bf16 %v279
      %v327 = vunpack.c.l.bf16 %v280
      %v328 = vunpack.c.l.bf16 %v281
      %v329 = vunpack.c.l.bf16 %v282
      %v330 = vunpack.c.l.bf16 %v283
      %v331 = vunpack.c.l.bf16 %v284
      %v332 = vunpack.c.l.bf16 %v285
      %v333 = vunpack.c.l.bf16 %v286
      %v334 = vunpack.c.l.bf16 %v287
      %v335 = vunpack.c.l.bf16 %v288
      %v336 = vunpack.c.l.bf16 %v289
      %v337 = vunpack.c.l.bf16 %v290
      %v338 = vunpack.c.l.bf16 %v291
      %v339 = vunpack.c.l.bf16 %v292
      %v340 = vunpack.c.l.bf16 %v293
      %v341 = vunpack.c.l.bf16 %v294
      %v342 = vunpack.c.l.bf16 %v295
      %v343 = vunpack.c.l.bf16 %v296
      %v344 = vunpack.c.l.bf16 %v297
      %v345 = vunpack.c.l.bf16 %v298
      %v346 = vunpack.c.l.bf16 %v299
      %v347 = vunpack.c.l.bf16 %v300
      %v348 = vunpack.c.l.bf16 %v301
      %v349 = vpack.c.bf16 %v303, %v302
      %v350 = vpack.c.bf16 %v305, %v304
      %v351 = vpack.c.bf16 %v307, %v306
      %v352 = vpack.c.bf16 %v309, %v308
      %v353 = vpack.c.bf16 %v311, %v310
      %v354 = vpack.c.bf16 %v313, %v312
      %v355 = vpack.c.bf16 %v315, %v314
      %v356 = vpack.c.bf16 %v317, %v316
      %v357 = vpack.c.bf16 %v319, %v318
      %v358 = vpack.c.bf16 %v321, %v320
      %v359 = vpack.c.bf16 %v323, %v322
      %v360 = vpack.c.bf16 %v325, %v324
      %v361 = vpack.c.bf16 %v327, %v326
      %v362 = vpack.c.bf16 %v329, %v328
      %v363 = vpack.c.bf16 %v331, %v330
      %v364 = vpack.c.bf16 %v333, %v332
      %v365 = vpack.c.bf16 %v335, %v334
      %v366 = vpack.c.bf16 %v337, %v336
      %v367 = vpack.c.bf16 %v339, %v338
      %v368 = vpack.c.bf16 %v341, %v340
      %v369 = vpack.c.bf16 %v343, %v342
      %v370 = vld [vmem:[%s1] sm:$0xf]
      %v371 = vld [vmem:[%s1 + $0x4] sm:$0xf]
      %v372 = vld [vmem:[%s1 + $0x8] sm:$0xf]
      %v373 = vld [vmem:[%s1 + $0xc] sm:$0xf]
      %v374 = vld [vmem:[%s1 + $0x10] sm:$0xf]
      %v375 = vld [vmem:[%s1 + $0x14] sm:$0xf]
      %v376 = vld [vmem:[%s1 + $0x18] sm:$0xf]
      %v377 = vld [vmem:[%s1 + $0x1c] sm:$0xf]
      %v378 = vld [vmem:[%s1 + $0x20] sm:$0xf]
      %v379 = vld [vmem:[%s1 + $0x24] sm:$0xf]
      %v380 = vld [vmem:[%s1 + $0x28] sm:$0xf]
      %v381 = vld [vmem:[%s1 + $0x2c] sm:$0xf]
      %v382 = vld [vmem:[%s1 + $0x30] sm:$0xf]
      %v383 = vld [vmem:[%s1 + $0x34] sm:$0xf]
      %v384 = vld [vmem:[%s1 + $0x38] sm:$0xf]
      %v385 = vld [vmem:[%s1 + $0x3c] sm:$0xf]
      %s386 = scalar_lea.vmem %s1, 64
      %v387 = vld [vmem:[%s386] sm:$0xf]
      %v388 = vld [vmem:[%s386 + $0x4] sm:$0xf]
      %v389 = vld [vmem:[%s386 + $0x8] sm:$0xf]
      %v390 = vld [vmem:[%s386 + $0xc] sm:$0xf]
      %v391 = vld [vmem:[%s386 + $0x10] sm:$0xf]
      %v392 = vld [vmem:[%s386 + $0x14] sm:$0xf]
      %v393 = vld [vmem:[%s386 + $0x18] sm:$0xf]
      %v394 = vld [vmem:[%s386 + $0x1c] sm:$0xf]
      %v395 = vld [vmem:[%s386 + $0x20] sm:$0xf]
      %v396 = vld [vmem:[%s386 + $0x24] sm:$0xf]
      %v397 = vld [vmem:[%s386 + $0x28] sm:$0xf]
      %v398 = vld [vmem:[%s386 + $0x2c] sm:$0xf]
      %v399 = vld [vmem:[%s386 + $0x30] sm:$0xf]
      %v400 = vld [vmem:[%s386 + $0x34] sm:$0xf]
      %v401 = vld [vmem:[%s386 + $0x38] sm:$0xf]
      %v402 = vld [vmem:[%s386 + $0x3c] sm:$0xf]
      %vm424 = vcmask 1044480
      %v425 = vrot.slane %v349, 3
      %v426 = vrot.slane %v350, 3
      %v427 = vsel %vm424, %v425, %v426
      %v428 = vrot.slane %v351, 3
      %v429 = vsel %vm424, %v426, %v428
      %v430 = vrot.slane %v352, 3
      %v431 = vsel %vm424, %v428, %v430
      %v432 = vrot.slane %v353, 3
      %v433 = vsel %vm424, %v430, %v432
      %v434 = vrot.slane %v354, 3
      %v435 = vsel %vm424, %v432, %v434
      %v436 = vrot.slane %v355, 3
      %v437 = vsel %vm424, %v434, %v436
      %v438 = vrot.slane %v356, 3
      %v439 = vsel %vm424, %v436, %v438
      %v440 = vrot.slane %v357, 3
      %v441 = vsel %vm424, %v438, %v440
      %v442 = vrot.slane %v358, 3
      %v443 = vsel %vm424, %v440, %v442
      %v444 = vrot.slane %v359, 3
      %v445 = vsel %vm424, %v442, %v444
      %v446 = vrot.slane %v360, 3
      %v447 = vsel %vm424, %v444, %v446
      %v448 = vrot.slane %v361, 3
      %v449 = vsel %vm424, %v446, %v448
      %v450 = vrot.slane %v362, 3
      %v451 = vsel %vm424, %v448, %v450
      %v452 = vrot.slane %v363, 3
      %v453 = vsel %vm424, %v450, %v452
      %v454 = vrot.slane %v364, 3
      %v455 = vsel %vm424, %v452, %v454
      %v456 = vrot.slane %v365, 3
      %v457 = vsel %vm424, %v454, %v456
      %v458 = vrot.slane %v366, 3
      %v459 = vsel %vm424, %v456, %v458
      %v460 = vrot.slane %v367, 3
      %v461 = vsel %vm424, %v458, %v460
      %v462 = vrot.slane %v368, 3
      %v463 = vsel %vm424, %v460, %v462
      %v464 = vrot.slane %v369, 3
      %v465 = vsel %vm424, %v462, %v464
      %v503 = vunpack.c.l.b16 %v387
      %v504 = vunpack.c.l.b16 %v388
      %v505 = vunpack.c.l.b16 %v389
      %v506 = vunpack.c.l.b16 %v390
      %v507 = vunpack.c.l.b16 %v391
      %v508 = vunpack.c.l.b16 %v392
      %v509 = vunpack.c.l.b16 %v393
      %v510 = vunpack.c.l.b16 %v394
      %v511 = vunpack.c.l.b16 %v395
      %v512 = vunpack.c.l.b16 %v396
      %v513 = vunpack.c.l.b16 %v397
      %v514 = vunpack.c.l.b16 %v398
      %v515 = vunpack.c.l.b16 %v399
      %v516 = vunpack.c.l.b16 %v400
      %v517 = vunpack.c.l.b16 %v401
      %v518 = vunpack.c.l.b16 %v402
      %v519 = vpack.c.b16 %v504, %v503
      %v520 = vpack.c.b16 %v506, %v505
      %v521 = vpack.c.b16 %v508, %v507
      %v522 = vpack.c.b16 %v510, %v509
      %v523 = vpack.c.b16 %v512, %v511
      %v524 = vpack.c.b16 %v514, %v513
      %v525 = vpack.c.b16 %v516, %v515
      %v526 = vpack.c.b16 %v518, %v517
      %535 = vmatprep.subr.bf16.mxu0 0
      %536 = vmatpush1.bf16.msra.mxu0 %v526
      %537 = vmatprep.subr.bf16.mxu0 0
      %538 = vmatpush1.bf16.msra.mxu0 %v525
      %539 = vmatprep.subr.bf16.mxu0 0
      %540 = vmatpush1.bf16.msra.mxu0 %v524
      %541 = vmatprep.subr.bf16.mxu0 0
      %542 = vmatpush1.bf16.msra.mxu0 %v523
      %543 = vmatprep.subr.bf16.mxu0 0
      %544 = vmatpush1.bf16.msra.mxu0 %v522
      %545 = vmatprep.subr.bf16.mxu0 0
      %546 = vmatpush1.bf16.msra.mxu0 %v521
      %547 = vmatprep.subr.bf16.mxu0 0
      %548 = vmatpush1.bf16.msra.mxu0 %v520
      %549 = vmatprep.subr.bf16.mxu0 0
      %550 = vmatpush1.bf16.msra.mxu0 %v519
      %551 = vmatprep.subr.bf16.mxu0 0
      %552 = vmatpush2.bf16.msra.mxu0 0
      %553 = vmatprep.subr.bf16.mxu0 0
      %554 = vmatpush2.bf16.msra.mxu0 0
      %555 = vmatprep.subr.bf16.mxu0 0
      %556 = vmatpush2.bf16.msra.mxu0 0
      %557 = vmatprep.subr.bf16.mxu0 0
      %558 = vmatpush2.bf16.msra.mxu0 0
      %559 = vmatprep.subr.bf16.mxu0 0
      %560 = vmatpush2.bf16.msra.mxu0 0
      %561 = vmatprep.subr.bf16.mxu0 0
      %562 = vmatpush2.bf16.msra.mxu0 0
      %563 = vmatprep.subr.bf16.mxu0 0
      %564 = vmatpush2.bf16.msra.mxu0 0
      %565 = vmatprep.subr.bf16.mxu0 0
      %566 = vmatpush2.bf16.msra.mxu0 0
      %567 = vmatprep.mubr.bf16.mxu0 0
      %568 = vmatmul.mubr.bf16.gmra.mxu0 %v427
      %v569 = vpop.f32.mrf.mxu0
      %v570 = vadd.f32 0.0, %v569
      %v571 = vpop.f32.mrf.mxu0
      %v572 = vpop.f32.mrf.mxu0
      %v573 = vadd.f32 0.0, %v572
      %v574 = vpop.f32.mrf.mxu0
      %575 = vmatprep.mubr.bf16.mxu0 0
      %576 = vmatmul.mubr.bf16.gmra.mxu0 %v429
      %v577 = vpop.f32.mrf.mxu0
      %v578 = vadd.f32 0.0, %v577
      %v579 = vpop.f32.mrf.mxu0
      %v580 = vpop.f32.mrf.mxu0
      %v581 = vadd.f32 0.0, %v580
      %v582 = vpop.f32.mrf.mxu0
      %583 = vmatprep.mubr.bf16.mxu0 0
      %584 = vmatmul.mubr.bf16.gmra.mxu0 %v431
      %v585 = vpop.f32.mrf.mxu0
      %v586 = vadd.f32 0.0, %v585
      %v587 = vpop.f32.mrf.mxu0
      %v588 = vpop.f32.mrf.mxu0
      %v589 = vadd.f32 0.0, %v588
      %v590 = vpop.f32.mrf.mxu0
      %591 = vmatprep.mubr.bf16.mxu0 0
      %592 = vmatmul.mubr.bf16.gmra.mxu0 %v433
      %v593 = vpop.f32.mrf.mxu0
      %v594 = vadd.f32 0.0, %v593
      %v595 = vpop.f32.mrf.mxu0
      %v596 = vpop.f32.mrf.mxu0
      %v597 = vadd.f32 0.0, %v596
      %v598 = vpop.f32.mrf.mxu0
      %599 = vmatprep.mubr.bf16.mxu0 0
      %600 = vmatmul.mubr.bf16.gmra.mxu0 %v435
      %v601 = vpop.f32.mrf.mxu0
      %v602 = vadd.f32 0.0, %v601
      %v603 = vpop.f32.mrf.mxu0
      %v604 = vpop.f32.mrf.mxu0
      %v605 = vadd.f32 0.0, %v604
      %v606 = vpop.f32.mrf.mxu0
      %607 = vmatprep.mubr.bf16.mxu0 0
      %608 = vmatmul.mubr.bf16.gmra.mxu0 %v437
      %v609 = vpop.f32.mrf.mxu0
      %v610 = vadd.f32 0.0, %v609
      %v611 = vpop.f32.mrf.mxu0
      %v612 = vpop.f32.mrf.mxu0
      %v613 = vadd.f32 0.0, %v612
      %v614 = vpop.f32.mrf.mxu0
      %615 = vmatprep.mubr.bf16.mxu0 0
      %616 = vmatmul.mubr.bf16.gmra.mxu0 %v439
      %v617 = vpop.f32.mrf.mxu0
      %v618 = vadd.f32 0.0, %v617
      %v619 = vpop.f32.mrf.mxu0
      %v620 = vpop.f32.mrf.mxu0
      %v621 = vadd.f32 0.0, %v620
      %v622 = vpop.f32.mrf.mxu0
      %623 = vmatprep.mubr.bf16.mxu0 0
      %624 = vmatmul.mubr.bf16.gmra.mxu0 %v441
      %v625 = vpop.f32.mrf.mxu0
      %v626 = vadd.f32 0.0, %v625
      %v627 = vpop.f32.mrf.mxu0
      %v628 = vpop.f32.mrf.mxu0
      %v629 = vadd.f32 0.0, %v628
      %v630 = vpop.f32.mrf.mxu0
      %631 = vmatprep.mubr.bf16.mxu0 0
      %632 = vmatmul.mubr.bf16.gmra.mxu0 %v443
      %v633 = vpop.f32.mrf.mxu0
      %v634 = vadd.f32 0.0, %v633
      %v635 = vpop.f32.mrf.mxu0
      %v636 = vpop.f32.mrf.mxu0
      %v637 = vadd.f32 0.0, %v636
      %v638 = vpop.f32.mrf.mxu0
      %639 = vmatprep.mubr.bf16.mxu0 0
      %640 = vmatmul.mubr.bf16.gmra.mxu0 %v445
      %v641 = vpop.f32.mrf.mxu0
      %v642 = vadd.f32 0.0, %v641
      %v643 = vpop.f32.mrf.mxu0
      %v644 = vpop.f32.mrf.mxu0
      %v645 = vadd.f32 0.0, %v644
      %v646 = vpop.f32.mrf.mxu0
      %647 = vmatprep.mubr.bf16.mxu0 0
      %648 = vmatmul.mubr.bf16.gmra.mxu0 %v447
      %v649 = vpop.f32.mrf.mxu0
      %v650 = vadd.f32 0.0, %v649
      %v651 = vpop.f32.mrf.mxu0
      %v652 = vpop.f32.mrf.mxu0
      %v653 = vadd.f32 0.0, %v652
      %v654 = vpop.f32.mrf.mxu0
      %655 = vmatprep.mubr.bf16.mxu0 0
      %656 = vmatmul.mubr.bf16.gmra.mxu0 %v449
      %v657 = vpop.f32.mrf.mxu0
      %v658 = vadd.f32 0.0, %v657
      %v659 = vpop.f32.mrf.mxu0
      %v660 = vpop.f32.mrf.mxu0
      %v661 = vadd.f32 0.0, %v660
      %v662 = vpop.f32.mrf.mxu0
      %663 = vmatprep.mubr.bf16.mxu0 0
      %664 = vmatmul.mubr.bf16.gmra.mxu0 %v451
      %v665 = vpop.f32.mrf.mxu0
      %v666 = vadd.f32 0.0, %v665
      %v667 = vpop.f32.mrf.mxu0
      %v668 = vpop.f32.mrf.mxu0
      %v669 = vadd.f32 0.0, %v668
      %v670 = vpop.f32.mrf.mxu0
      %671 = vmatprep.mubr.bf16.mxu0 0
      %672 = vmatmul.mubr.bf16.gmra.mxu0 %v453
      %v673 = vpop.f32.mrf.mxu0
      %v674 = vadd.f32 0.0, %v673
      %v675 = vpop.f32.mrf.mxu0
      %v676 = vpop.f32.mrf.mxu0
      %v677 = vadd.f32 0.0, %v676
      %v678 = vpop.f32.mrf.mxu0
      %679 = vmatprep.mubr.bf16.mxu0 0
      %680 = vmatmul.mubr.bf16.gmra.mxu0 %v455
      %v681 = vpop.f32.mrf.mxu0
      %v682 = vadd.f32 0.0, %v681
      %v683 = vpop.f32.mrf.mxu0
      %v684 = vpop.f32.mrf.mxu0
      %v685 = vadd.f32 0.0, %v684
      %v686 = vpop.f32.mrf.mxu0
      %687 = vmatprep.mubr.bf16.mxu0 0
      %688 = vmatmul.mubr.bf16.gmra.mxu0 %v457
      %v689 = vpop.f32.mrf.mxu0
      %v690 = vadd.f32 0.0, %v689
      %v691 = vpop.f32.mrf.mxu0
      %v692 = vpop.f32.mrf.mxu0
      %v693 = vadd.f32 0.0, %v692
      %v694 = vpop.f32.mrf.mxu0
      %695 = vmatprep.mubr.bf16.mxu0 0
      %696 = vmatmul.mubr.bf16.gmra.mxu0 %v459
      %v697 = vpop.f32.mrf.mxu0
      %v698 = vadd.f32 0.0, %v697
      %v699 = vpop.f32.mrf.mxu0
      %v700 = vpop.f32.mrf.mxu0
      %v701 = vadd.f32 0.0, %v700
      %v702 = vpop.f32.mrf.mxu0
      %703 = vmatprep.mubr.bf16.mxu0 0
      %704 = vmatmul.mubr.bf16.gmra.mxu0 %v461
      %v705 = vpop.f32.mrf.mxu0
      %v706 = vadd.f32 0.0, %v705
      %v707 = vpop.f32.mrf.mxu0
      %v708 = vpop.f32.mrf.mxu0
      %v709 = vadd.f32 0.0, %v708
      %v710 = vpop.f32.mrf.mxu0
      %711 = vmatprep.mubr.bf16.mxu0 0
      %712 = vmatmul.mubr.bf16.gmra.mxu0 %v463
      %v713 = vpop.f32.mrf.mxu0
      %v714 = vadd.f32 0.0, %v713
      %v715 = vpop.f32.mrf.mxu0
      %v716 = vpop.f32.mrf.mxu0
      %v717 = vadd.f32 0.0, %v716
      %v718 = vpop.f32.mrf.mxu0
      %719 = vmatprep.mubr.bf16.mxu0 0
      %720 = vmatmul.mubr.bf16.gmra.mxu0 %v465
      %v721 = vpop.f32.mrf.mxu0
      %v722 = vadd.f32 0.0, %v721
      %v723 = vpop.f32.mrf.mxu0
      %v724 = vpop.f32.mrf.mxu0
      %v725 = vadd.f32 0.0, %v724
      %v726 = vpop.f32.mrf.mxu0
      %727 = vmatprep.mubr.bf16.mxu0 0
      %728 = vmatmul.mubr.bf16.gmra.mxu0 %v464
      %v729 = vpop.f32.mrf.mxu0
      %v730 = vadd.f32 0.0, %v729
      %v731 = vpop.f32.mrf.mxu0
      %v732 = vpop.f32.mrf.mxu0
      %v733 = vpop.f32.mrf.mxu0
      %734 = vdwg.mxu0
      %vm735 = vsmask.f32 5376
      %v737 = vshrl.u32 %v349, 16
      %v739 = vrot.slane %v737, 2
      %v740 = vshll.u32 %v349, 16
      %v742 = vrot.slane %v740, 3
      %v743 = vor.u32 %v739, %v742
      %v745 = vshrl.u32 %v350, 16
      %v747 = vrot.slane %v745, 2
      %v748 = vshll.u32 %v350, 16
      %v750 = vrot.slane %v748, 3
      %v751 = vor.u32 %v747, %v750
      %v752 = vsel %vm735, %v743, %v751
      %v754 = vshrl.u32 %v351, 16
      %v756 = vrot.slane %v754, 2
      %v757 = vshll.u32 %v351, 16
      %v759 = vrot.slane %v757, 3
      %v760 = vor.u32 %v756, %v759
      %v761 = vsel %vm735, %v751, %v760
      %v763 = vshrl.u32 %v352, 16
      %v765 = vrot.slane %v763, 2
      %v766 = vshll.u32 %v352, 16
      %v768 = vrot.slane %v766, 3
      %v769 = vor.u32 %v765, %v768
      %v770 = vsel %vm735, %v760, %v769
      %v772 = vshrl.u32 %v353, 16
      %v774 = vrot.slane %v772, 2
      %v775 = vshll.u32 %v353, 16
      %v777 = vrot.slane %v775, 3
      %v778 = vor.u32 %v774, %v777
      %v779 = vsel %vm735, %v769, %v778
      %v781 = vshrl.u32 %v354, 16
      %v783 = vrot.slane %v781, 2
      %v784 = vshll.u32 %v354, 16
      %v786 = vrot.slane %v784, 3
      %v787 = vor.u32 %v783, %v786
      %v788 = vsel %vm735, %v778, %v787
      %v790 = vshrl.u32 %v355, 16
      %v792 = vrot.slane %v790, 2
      %v793 = vshll.u32 %v355, 16
      %v795 = vrot.slane %v793, 3
      %v796 = vor.u32 %v792, %v795
      %v797 = vsel %vm735, %v787, %v796
      %v799 = vshrl.u32 %v356, 16
      %v801 = vrot.slane %v799, 2
      %v802 = vshll.u32 %v356, 16
      %v804 = vrot.slane %v802, 3
      %v805 = vor.u32 %v801, %v804
      %v806 = vsel %vm735, %v796, %v805
      %v808 = vshrl.u32 %v357, 16
      %v810 = vrot.slane %v808, 2
      %v811 = vshll.u32 %v357, 16
      %v813 = vrot.slane %v811, 3
      %v814 = vor.u32 %v810, %v813
      %v815 = vsel %vm735, %v805, %v814
      %v817 = vshrl.u32 %v358, 16
      %v819 = vrot.slane %v817, 2
      %v820 = vshll.u32 %v358, 16
      %v822 = vrot.slane %v820, 3
      %v823 = vor.u32 %v819, %v822
      %v824 = vsel %vm735, %v814, %v823
      %v826 = vshrl.u32 %v359, 16
      %v828 = vrot.slane %v826, 2
      %v829 = vshll.u32 %v359, 16
      %v831 = vrot.slane %v829, 3
      %v832 = vor.u32 %v828, %v831
      %v833 = vsel %vm735, %v823, %v832
      %v835 = vshrl.u32 %v360, 16
      %v837 = vrot.slane %v835, 2
      %v838 = vshll.u32 %v360, 16
      %v840 = vrot.slane %v838, 3
      %v841 = vor.u32 %v837, %v840
      %v842 = vsel %vm735, %v832, %v841
      %v844 = vshrl.u32 %v361, 16
      %v846 = vrot.slane %v844, 2
      %v847 = vshll.u32 %v361, 16
      %v849 = vrot.slane %v847, 3
      %v850 = vor.u32 %v846, %v849
      %v851 = vsel %vm735, %v841, %v850
      %v853 = vshrl.u32 %v362, 16
      %v855 = vrot.slane %v853, 2
      %v856 = vshll.u32 %v362, 16
      %v858 = vrot.slane %v856, 3
      %v859 = vor.u32 %v855, %v858
      %v860 = vsel %vm735, %v850, %v859
      %v862 = vshrl.u32 %v363, 16
      %v864 = vrot.slane %v862, 2
      %v865 = vshll.u32 %v363, 16
      %v867 = vrot.slane %v865, 3
      %v868 = vor.u32 %v864, %v867
      %v869 = vsel %vm735, %v859, %v868
      %v871 = vshrl.u32 %v364, 16
      %v873 = vrot.slane %v871, 2
      %v874 = vshll.u32 %v364, 16
      %v876 = vrot.slane %v874, 3
      %v877 = vor.u32 %v873, %v876
      %v878 = vsel %vm735, %v868, %v877
      %v880 = vshrl.u32 %v365, 16
      %v882 = vrot.slane %v880, 2
      %v883 = vshll.u32 %v365, 16
      %v885 = vrot.slane %v883, 3
      %v886 = vor.u32 %v882, %v885
      %v887 = vsel %vm735, %v877, %v886
      %v889 = vshrl.u32 %v366, 16
      %v891 = vrot.slane %v889, 2
      %v892 = vshll.u32 %v366, 16
      %v894 = vrot.slane %v892, 3
      %v895 = vor.u32 %v891, %v894
      %v896 = vsel %vm735, %v886, %v895
      %v898 = vshrl.u32 %v367, 16
      %v900 = vrot.slane %v898, 2
      %v901 = vshll.u32 %v367, 16
      %v903 = vrot.slane %v901, 3
      %v904 = vor.u32 %v900, %v903
      %v905 = vsel %vm735, %v895, %v904
      %v907 = vshrl.u32 %v368, 16
      %v909 = vrot.slane %v907, 2
      %v910 = vshll.u32 %v368, 16
      %v912 = vrot.slane %v910, 3
      %v913 = vor.u32 %v909, %v912
      %v914 = vsel %vm735, %v904, %v913
      %v916 = vshrl.u32 %v369, 16
      %v918 = vrot.slane %v916, 2
      %v919 = vshll.u32 %v369, 16
      %v921 = vrot.slane %v919, 3
      %v922 = vor.u32 %v918, %v921
      %v923 = vsel %vm735, %v913, %v922
      %v961 = vunpack.c.l.b16 %v370
      %v962 = vunpack.c.l.b16 %v371
      %v963 = vunpack.c.l.b16 %v372
      %v964 = vunpack.c.l.b16 %v373
      %v965 = vunpack.c.l.b16 %v374
      %v966 = vunpack.c.l.b16 %v375
      %v967 = vunpack.c.l.b16 %v376
      %v968 = vunpack.c.l.b16 %v377
      %v969 = vunpack.c.l.b16 %v378
      %v970 = vunpack.c.l.b16 %v379
      %v971 = vunpack.c.l.b16 %v380
      %v972 = vunpack.c.l.b16 %v381
      %v973 = vunpack.c.l.b16 %v382
      %v974 = vunpack.c.l.b16 %v383
      %v975 = vunpack.c.l.b16 %v384
      %v976 = vunpack.c.l.b16 %v385
      %v977 = vpack.c.b16 %v962, %v961
      %v978 = vpack.c.b16 %v964, %v963
      %v979 = vpack.c.b16 %v966, %v965
      %v980 = vpack.c.b16 %v968, %v967
      %v981 = vpack.c.b16 %v970, %v969
      %v982 = vpack.c.b16 %v972, %v971
      %v983 = vpack.c.b16 %v974, %v973
      %v984 = vpack.c.b16 %v976, %v975
      %993 = vmatprep.subr.bf16.mxu0 0
      %994 = vmatpush1.bf16.msra.mxu0 %v984
      %995 = vmatprep.subr.bf16.mxu0 0
      %996 = vmatpush1.bf16.msra.mxu0 %v983
      %997 = vmatprep.subr.bf16.mxu0 0
      %998 = vmatpush1.bf16.msra.mxu0 %v982
      %999 = vmatprep.subr.bf16.mxu0 0
      %1000 = vmatpush1.bf16.msra.mxu0 %v981
      %1001 = vmatprep.subr.bf16.mxu0 0
      %1002 = vmatpush1.bf16.msra.mxu0 %v980
      %1003 = vmatprep.subr.bf16.mxu0 0
      %1004 = vmatpush1.bf16.msra.mxu0 %v979
      %1005 = vmatprep.subr.bf16.mxu0 0
      %1006 = vmatpush1.bf16.msra.mxu0 %v978
      %1007 = vmatprep.subr.bf16.mxu0 0
      %1008 = vmatpush1.bf16.msra.mxu0 %v977
      %1009 = vmatprep.subr.bf16.mxu0 0
      %1010 = vmatpush2.bf16.msra.mxu0 0
      %1011 = vmatprep.subr.bf16.mxu0 0
      %1012 = vmatpush2.bf16.msra.mxu0 0
      %1013 = vmatprep.subr.bf16.mxu0 0
      %1014 = vmatpush2.bf16.msra.mxu0 0
      %1015 = vmatprep.subr.bf16.mxu0 0
      %1016 = vmatpush2.bf16.msra.mxu0 0
      %1017 = vmatprep.subr.bf16.mxu0 0
      %1018 = vmatpush2.bf16.msra.mxu0 0
      %1019 = vmatprep.subr.bf16.mxu0 0
      %1020 = vmatpush2.bf16.msra.mxu0 0
      %1021 = vmatprep.subr.bf16.mxu0 0
      %1022 = vmatpush2.bf16.msra.mxu0 0
      %1023 = vmatprep.subr.bf16.mxu0 0
      %1024 = vmatpush2.bf16.msra.mxu0 0
      %1025 = vmatprep.mubr.bf16.mxu0 0
      %1026 = vmatmul.mubr.bf16.gmra.mxu0 %v752
      %v1027 = vpop.f32.mrf.mxu0
      %v1028 = vadd.f32 %v570, %v1027
      %v1029 = vpop.f32.mrf.mxu0
      %v1030 = vpop.f32.mrf.mxu0
      %v1031 = vadd.f32 %v573, %v1030
      %v1032 = vpop.f32.mrf.mxu0
      %1033 = vmatprep.mubr.bf16.mxu0 0
      %1034 = vmatmul.mubr.bf16.gmra.mxu0 %v761
      %v1035 = vpop.f32.mrf.mxu0
      %v1036 = vadd.f32 %v578, %v1035
      %v1037 = vpop.f32.mrf.mxu0
      %v1038 = vpop.f32.mrf.mxu0
      %v1039 = vadd.f32 %v581, %v1038
      %v1040 = vpop.f32.mrf.mxu0
      %1041 = vmatprep.mubr.bf16.mxu0 0
      %1042 = vmatmul.mubr.bf16.gmra.mxu0 %v770
      %v1043 = vpop.f32.mrf.mxu0
      %v1044 = vadd.f32 %v586, %v1043
      %v1045 = vpop.f32.mrf.mxu0
      %v1046 = vpop.f32.mrf.mxu0
      %v1047 = vadd.f32 %v589, %v1046
      %v1048 = vpop.f32.mrf.mxu0
      %1049 = vmatprep.mubr.bf16.mxu0 0
      %1050 = vmatmul.mubr.bf16.gmra.mxu0 %v779
      %v1051 = vpop.f32.mrf.mxu0
      %v1052 = vadd.f32 %v594, %v1051
      %v1053 = vpop.f32.mrf.mxu0
      %v1054 = vpop.f32.mrf.mxu0
      %v1055 = vadd.f32 %v597, %v1054
      %v1056 = vpop.f32.mrf.mxu0
      %1057 = vmatprep.mubr.bf16.mxu0 0
      %1058 = vmatmul.mubr.bf16.gmra.mxu0 %v788
      %v1059 = vpop.f32.mrf.mxu0
      %v1060 = vadd.f32 %v602, %v1059
      %v1061 = vpop.f32.mrf.mxu0
      %v1062 = vpop.f32.mrf.mxu0
      %v1063 = vadd.f32 %v605, %v1062
      %v1064 = vpop.f32.mrf.mxu0
      %1065 = vmatprep.mubr.bf16.mxu0 0
      %1066 = vmatmul.mubr.bf16.gmra.mxu0 %v797
      %v1067 = vpop.f32.mrf.mxu0
      %v1068 = vadd.f32 %v610, %v1067
      %v1069 = vpop.f32.mrf.mxu0
      %v1070 = vpop.f32.mrf.mxu0
      %v1071 = vadd.f32 %v613, %v1070
      %v1072 = vpop.f32.mrf.mxu0
      %1073 = vmatprep.mubr.bf16.mxu0 0
      %1074 = vmatmul.mubr.bf16.gmra.mxu0 %v806
      %v1075 = vpop.f32.mrf.mxu0
      %v1076 = vadd.f32 %v618, %v1075
      %v1077 = vpop.f32.mrf.mxu0
      %v1078 = vpop.f32.mrf.mxu0
      %v1079 = vadd.f32 %v621, %v1078
      %v1080 = vpop.f32.mrf.mxu0
      %1081 = vmatprep.mubr.bf16.mxu0 0
      %1082 = vmatmul.mubr.bf16.gmra.mxu0 %v815
      %v1083 = vpop.f32.mrf.mxu0
      %v1084 = vadd.f32 %v626, %v1083
      %v1085 = vpop.f32.mrf.mxu0
      %v1086 = vpop.f32.mrf.mxu0
      %v1087 = vadd.f32 %v629, %v1086
      %v1088 = vpop.f32.mrf.mxu0
      %1089 = vmatprep.mubr.bf16.mxu0 0
      %1090 = vmatmul.mubr.bf16.gmra.mxu0 %v824
      %v1091 = vpop.f32.mrf.mxu0
      %v1092 = vadd.f32 %v634, %v1091
      %v1093 = vpop.f32.mrf.mxu0
      %v1094 = vpop.f32.mrf.mxu0
      %v1095 = vadd.f32 %v637, %v1094
      %v1096 = vpop.f32.mrf.mxu0
      %1097 = vmatprep.mubr.bf16.mxu0 0
      %1098 = vmatmul.mubr.bf16.gmra.mxu0 %v833
      %v1099 = vpop.f32.mrf.mxu0
      %v1100 = vadd.f32 %v642, %v1099
      %v1101 = vpop.f32.mrf.mxu0
      %v1102 = vpop.f32.mrf.mxu0
      %v1103 = vadd.f32 %v645, %v1102
      %v1104 = vpop.f32.mrf.mxu0
      %1105 = vmatprep.mubr.bf16.mxu0 0
      %1106 = vmatmul.mubr.bf16.gmra.mxu0 %v842
      %v1107 = vpop.f32.mrf.mxu0
      %v1108 = vadd.f32 %v650, %v1107
      %v1109 = vpop.f32.mrf.mxu0
      %v1110 = vpop.f32.mrf.mxu0
      %v1111 = vadd.f32 %v653, %v1110
      %v1112 = vpop.f32.mrf.mxu0
      %1113 = vmatprep.mubr.bf16.mxu0 0
      %1114 = vmatmul.mubr.bf16.gmra.mxu0 %v851
      %v1115 = vpop.f32.mrf.mxu0
      %v1116 = vadd.f32 %v658, %v1115
      %v1117 = vpop.f32.mrf.mxu0
      %v1118 = vpop.f32.mrf.mxu0
      %v1119 = vadd.f32 %v661, %v1118
      %v1120 = vpop.f32.mrf.mxu0
      %1121 = vmatprep.mubr.bf16.mxu0 0
      %1122 = vmatmul.mubr.bf16.gmra.mxu0 %v860
      %v1123 = vpop.f32.mrf.mxu0
      %v1124 = vadd.f32 %v666, %v1123
      %v1125 = vpop.f32.mrf.mxu0
      %v1126 = vpop.f32.mrf.mxu0
      %v1127 = vadd.f32 %v669, %v1126
      %v1128 = vpop.f32.mrf.mxu0
      %1129 = vmatprep.mubr.bf16.mxu0 0
      %1130 = vmatmul.mubr.bf16.gmra.mxu0 %v869
      %v1131 = vpop.f32.mrf.mxu0
      %v1132 = vadd.f32 %v674, %v1131
      %v1133 = vpop.f32.mrf.mxu0
      %v1134 = vpop.f32.mrf.mxu0
      %v1135 = vadd.f32 %v677, %v1134
      %v1136 = vpop.f32.mrf.mxu0
      %1137 = vmatprep.mubr.bf16.mxu0 0
      %1138 = vmatmul.mubr.bf16.gmra.mxu0 %v878
      %v1139 = vpop.f32.mrf.mxu0
      %v1140 = vadd.f32 %v682, %v1139
      %v1141 = vpop.f32.mrf.mxu0
      %v1142 = vpop.f32.mrf.mxu0
      %v1143 = vadd.f32 %v685, %v1142
      %v1144 = vpop.f32.mrf.mxu0
      %1145 = vmatprep.mubr.bf16.mxu0 0
      %1146 = vmatmul.mubr.bf16.gmra.mxu0 %v887
      %v1147 = vpop.f32.mrf.mxu0
      %v1148 = vadd.f32 %v690, %v1147
      %v1149 = vpop.f32.mrf.mxu0
      %v1150 = vpop.f32.mrf.mxu0
      %v1151 = vadd.f32 %v693, %v1150
      %v1152 = vpop.f32.mrf.mxu0
      %1153 = vmatprep.mubr.bf16.mxu0 0
      %1154 = vmatmul.mubr.bf16.gmra.mxu0 %v896
      %v1155 = vpop.f32.mrf.mxu0
      %v1156 = vadd.f32 %v698, %v1155
      %v1157 = vpop.f32.mrf.mxu0
      %v1158 = vpop.f32.mrf.mxu0
      %v1159 = vadd.f32 %v701, %v1158
      %v1160 = vpop.f32.mrf.mxu0
      %1161 = vmatprep.mubr.bf16.mxu0 0
      %1162 = vmatmul.mubr.bf16.gmra.mxu0 %v905
      %v1163 = vpop.f32.mrf.mxu0
      %v1164 = vadd.f32 %v706, %v1163
      %v1165 = vpop.f32.mrf.mxu0
      %v1166 = vpop.f32.mrf.mxu0
      %v1167 = vadd.f32 %v709, %v1166
      %v1168 = vpop.f32.mrf.mxu0
      %1169 = vmatprep.mubr.bf16.mxu0 0
      %1170 = vmatmul.mubr.bf16.gmra.mxu0 %v914
      %v1171 = vpop.f32.mrf.mxu0
      %v1172 = vadd.f32 %v714, %v1171
      %v1173 = vpop.f32.mrf.mxu0
      %v1174 = vpop.f32.mrf.mxu0
      %v1175 = vadd.f32 %v717, %v1174
      %v1176 = vpop.f32.mrf.mxu0
      %1177 = vmatprep.mubr.bf16.mxu0 0
      %1178 = vmatmul.mubr.bf16.gmra.mxu0 %v923
      %v1179 = vpop.f32.mrf.mxu0
      %v1180 = vadd.f32 %v722, %v1179
      %v1181 = vpop.f32.mrf.mxu0
      %v1182 = vpop.f32.mrf.mxu0
      %v1183 = vadd.f32 %v725, %v1182
      %v1184 = vpop.f32.mrf.mxu0
      %1185 = vmatprep.mubr.bf16.mxu0 0
      %1186 = vmatmul.mubr.bf16.gmra.mxu0 %v922
      %v1187 = vpop.f32.mrf.mxu0
      %v1188 = vadd.f32 %v730, %v1187
      %v1189 = vpop.f32.mrf.mxu0
      %v1190 = vpop.f32.mrf.mxu0
      %v1191 = vpop.f32.mrf.mxu0
      %1192 = vdwg.mxu0
      %s1193 = scalar_lea.vmem %s1, 128
      %v1194 = vld [vmem:[%s1193] sm:$0xf]
      %v1195 = vld [vmem:[%s1193 + $0x4] sm:$0xf]
      %v1196 = vld [vmem:[%s1193 + $0x8] sm:$0xf]
      %v1197 = vld [vmem:[%s1193 + $0xc] sm:$0xf]
      %v1198 = vld [vmem:[%s1193 + $0x10] sm:$0xf]
      %v1199 = vld [vmem:[%s1193 + $0x14] sm:$0xf]
      %v1200 = vld [vmem:[%s1193 + $0x18] sm:$0xf]
      %v1201 = vld [vmem:[%s1193 + $0x1c] sm:$0xf]
      %v1202 = vld [vmem:[%s1193 + $0x20] sm:$0xf]
      %v1203 = vld [vmem:[%s1193 + $0x24] sm:$0xf]
      %v1204 = vld [vmem:[%s1193 + $0x28] sm:$0xf]
      %v1205 = vld [vmem:[%s1193 + $0x2c] sm:$0xf]
      %v1206 = vld [vmem:[%s1193 + $0x30] sm:$0xf]
      %v1207 = vld [vmem:[%s1193 + $0x34] sm:$0xf]
      %v1208 = vld [vmem:[%s1193 + $0x38] sm:$0xf]
      %v1209 = vld [vmem:[%s1193 + $0x3c] sm:$0xf]
      %vm1210 = vsmask.f32 4352
      %v1211 = vrot.slane %v737, 3
      %v1212 = vrot.slane %v740, 4
      %v1213 = vor.u32 %v1211, %v1212
      %v1214 = vrot.slane %v745, 3
      %v1215 = vrot.slane %v748, 4
      %v1216 = vor.u32 %v1214, %v1215
      %v1217 = vsel %vm1210, %v1213, %v1216
      %v1218 = vrot.slane %v754, 3
      %v1219 = vrot.slane %v757, 4
      %v1220 = vor.u32 %v1218, %v1219
      %v1221 = vsel %vm1210, %v1216, %v1220
      %v1222 = vrot.slane %v763, 3
      %v1223 = vrot.slane %v766, 4
      %v1224 = vor.u32 %v1222, %v1223
      %v1225 = vsel %vm1210, %v1220, %v1224
      %v1226 = vrot.slane %v772, 3
      %v1227 = vrot.slane %v775, 4
      %v1228 = vor.u32 %v1226, %v1227
      %v1229 = vsel %vm1210, %v1224, %v1228
      %v1230 = vrot.slane %v781, 3
      %v1231 = vrot.slane %v784, 4
      %v1232 = vor.u32 %v1230, %v1231
      %v1233 = vsel %vm1210, %v1228, %v1232
      %v1234 = vrot.slane %v790, 3
      %v1235 = vrot.slane %v793, 4
      %v1236 = vor.u32 %v1234, %v1235
      %v1237 = vsel %vm1210, %v1232, %v1236
      %v1238 = vrot.slane %v799, 3
      %v1239 = vrot.slane %v802, 4
      %v1240 = vor.u32 %v1238, %v1239
      %v1241 = vsel %vm1210, %v1236, %v1240
      %v1242 = vrot.slane %v808, 3
      %v1243 = vrot.slane %v811, 4
      %v1244 = vor.u32 %v1242, %v1243
      %v1245 = vsel %vm1210, %v1240, %v1244
      %v1246 = vrot.slane %v817, 3
      %v1247 = vrot.slane %v820, 4
      %v1248 = vor.u32 %v1246, %v1247
      %v1249 = vsel %vm1210, %v1244, %v1248
      %v1250 = vrot.slane %v826, 3
      %v1251 = vrot.slane %v829, 4
      %v1252 = vor.u32 %v1250, %v1251
      %v1253 = vsel %vm1210, %v1248, %v1252
      %v1254 = vrot.slane %v835, 3
      %v1255 = vrot.slane %v838, 4
      %v1256 = vor.u32 %v1254, %v1255
      %v1257 = vsel %vm1210, %v1252, %v1256
      %v1258 = vrot.slane %v844, 3
      %v1259 = vrot.slane %v847, 4
      %v1260 = vor.u32 %v1258, %v1259
      %v1261 = vsel %vm1210, %v1256, %v1260
      %v1262 = vrot.slane %v853, 3
      %v1263 = vrot.slane %v856, 4
      %v1264 = vor.u32 %v1262, %v1263
      %v1265 = vsel %vm1210, %v1260, %v1264
      %v1266 = vrot.slane %v862, 3
      %v1267 = vrot.slane %v865, 4
      %v1268 = vor.u32 %v1266, %v1267
      %v1269 = vsel %vm1210, %v1264, %v1268
      %v1270 = vrot.slane %v871, 3
      %v1271 = vrot.slane %v874, 4
      %v1272 = vor.u32 %v1270, %v1271
      %v1273 = vsel %vm1210, %v1268, %v1272
      %v1274 = vrot.slane %v880, 3
      %v1275 = vrot.slane %v883, 4
      %v1276 = vor.u32 %v1274, %v1275
      %v1277 = vsel %vm1210, %v1272, %v1276
      %v1278 = vrot.slane %v889, 3
      %v1279 = vrot.slane %v892, 4
      %v1280 = vor.u32 %v1278, %v1279
      %v1281 = vsel %vm1210, %v1276, %v1280
      %v1282 = vrot.slane %v898, 3
      %v1283 = vrot.slane %v901, 4
      %v1284 = vor.u32 %v1282, %v1283
      %v1285 = vsel %vm1210, %v1280, %v1284
      %v1286 = vrot.slane %v907, 3
      %v1287 = vrot.slane %v910, 4
      %v1288 = vor.u32 %v1286, %v1287
      %v1289 = vsel %vm1210, %v1284, %v1288
      %v1290 = vrot.slane %v916, 3
      %v1291 = vrot.slane %v919, 4
      %v1292 = vor.u32 %v1290, %v1291
      %v1293 = vsel %vm1210, %v1288, %v1292
      %v1331 = vunpack.c.l.b16 %v1194
      %v1332 = vunpack.c.l.b16 %v1195
      %v1333 = vunpack.c.l.b16 %v1196
      %v1334 = vunpack.c.l.b16 %v1197
      %v1335 = vunpack.c.l.b16 %v1198
      %v1336 = vunpack.c.l.b16 %v1199
      %v1337 = vunpack.c.l.b16 %v1200
      %v1338 = vunpack.c.l.b16 %v1201
      %v1339 = vunpack.c.l.b16 %v1202
      %v1340 = vunpack.c.l.b16 %v1203
      %v1341 = vunpack.c.l.b16 %v1204
      %v1342 = vunpack.c.l.b16 %v1205
      %v1343 = vunpack.c.l.b16 %v1206
      %v1344 = vunpack.c.l.b16 %v1207
      %v1345 = vunpack.c.l.b16 %v1208
      %v1346 = vunpack.c.l.b16 %v1209
      %v1347 = vpack.c.b16 %v1332, %v1331
      %v1348 = vpack.c.b16 %v1334, %v1333
      %v1349 = vpack.c.b16 %v1336, %v1335
      %v1350 = vpack.c.b16 %v1338, %v1337
      %v1351 = vpack.c.b16 %v1340, %v1339
      %v1352 = vpack.c.b16 %v1342, %v1341
      %v1353 = vpack.c.b16 %v1344, %v1343
      %v1354 = vpack.c.b16 %v1346, %v1345
      %1363 = vmatprep.subr.bf16.mxu0 0
      %1364 = vmatpush1.bf16.msra.mxu0 %v1354
      %1365 = vmatprep.subr.bf16.mxu0 0
      %1366 = vmatpush1.bf16.msra.mxu0 %v1353
      %1367 = vmatprep.subr.bf16.mxu0 0
      %1368 = vmatpush1.bf16.msra.mxu0 %v1352
      %1369 = vmatprep.subr.bf16.mxu0 0
      %1370 = vmatpush1.bf16.msra.mxu0 %v1351
      %1371 = vmatprep.subr.bf16.mxu0 0
      %1372 = vmatpush1.bf16.msra.mxu0 %v1350
      %1373 = vmatprep.subr.bf16.mxu0 0
      %1374 = vmatpush1.bf16.msra.mxu0 %v1349
      %1375 = vmatprep.subr.bf16.mxu0 0
      %1376 = vmatpush1.bf16.msra.mxu0 %v1348
      %1377 = vmatprep.subr.bf16.mxu0 0
      %1378 = vmatpush1.bf16.msra.mxu0 %v1347
      %1379 = vmatprep.subr.bf16.mxu0 0
      %1380 = vmatpush2.bf16.msra.mxu0 0
      %1381 = vmatprep.subr.bf16.mxu0 0
      %1382 = vmatpush2.bf16.msra.mxu0 0
      %1383 = vmatprep.subr.bf16.mxu0 0
      %1384 = vmatpush2.bf16.msra.mxu0 0
      %1385 = vmatprep.subr.bf16.mxu0 0
      %1386 = vmatpush2.bf16.msra.mxu0 0
      %1387 = vmatprep.subr.bf16.mxu0 0
      %1388 = vmatpush2.bf16.msra.mxu0 0
      %1389 = vmatprep.subr.bf16.mxu0 0
      %1390 = vmatpush2.bf16.msra.mxu0 0
      %1391 = vmatprep.subr.bf16.mxu0 0
      %1392 = vmatpush2.bf16.msra.mxu0 0
      %1393 = vmatprep.subr.bf16.mxu0 0
      %1394 = vmatpush2.bf16.msra.mxu0 0
      %1395 = vmatprep.mubr.bf16.mxu0 0
      %1396 = vmatmul.mubr.bf16.gmra.mxu0 %v1217
      %v1397 = vpop.f32.mrf.mxu0
      %v1398 = vadd.f32 0.0, %v1397
      %v1399 = vpop.f32.mrf.mxu0
      %v1400 = vpop.f32.mrf.mxu0
      %v1401 = vadd.f32 0.0, %v1400
      %v1402 = vpop.f32.mrf.mxu0
      %1403 = vmatprep.mubr.bf16.mxu0 0
      %1404 = vmatmul.mubr.bf16.gmra.mxu0 %v1221
      %v1405 = vpop.f32.mrf.mxu0
      %v1406 = vadd.f32 0.0, %v1405
      %v1407 = vpop.f32.mrf.mxu0
      %v1408 = vpop.f32.mrf.mxu0
      %v1409 = vadd.f32 0.0, %v1408
      %v1410 = vpop.f32.mrf.mxu0
      %1411 = vmatprep.mubr.bf16.mxu0 0
      %1412 = vmatmul.mubr.bf16.gmra.mxu0 %v1225
      %v1413 = vpop.f32.mrf.mxu0
      %v1414 = vadd.f32 0.0, %v1413
      %v1415 = vpop.f32.mrf.mxu0
      %v1416 = vpop.f32.mrf.mxu0
      %v1417 = vadd.f32 0.0, %v1416
      %v1418 = vpop.f32.mrf.mxu0
      %1419 = vmatprep.mubr.bf16.mxu0 0
      %1420 = vmatmul.mubr.bf16.gmra.mxu0 %v1229
      %v1421 = vpop.f32.mrf.mxu0
      %v1422 = vadd.f32 0.0, %v1421
      %v1423 = vpop.f32.mrf.mxu0
      %v1424 = vpop.f32.mrf.mxu0
      %v1425 = vadd.f32 0.0, %v1424
      %v1426 = vpop.f32.mrf.mxu0
      %1427 = vmatprep.mubr.bf16.mxu0 0
      %1428 = vmatmul.mubr.bf16.gmra.mxu0 %v1233
      %v1429 = vpop.f32.mrf.mxu0
      %v1430 = vadd.f32 0.0, %v1429
      %v1431 = vpop.f32.mrf.mxu0
      %v1432 = vpop.f32.mrf.mxu0
      %v1433 = vadd.f32 0.0, %v1432
      %v1434 = vpop.f32.mrf.mxu0
      %1435 = vmatprep.mubr.bf16.mxu0 0
      %1436 = vmatmul.mubr.bf16.gmra.mxu0 %v1237
      %v1437 = vpop.f32.mrf.mxu0
      %v1438 = vadd.f32 0.0, %v1437
      %v1439 = vpop.f32.mrf.mxu0
      %v1440 = vpop.f32.mrf.mxu0
      %v1441 = vadd.f32 0.0, %v1440
      %v1442 = vpop.f32.mrf.mxu0
      %1443 = vmatprep.mubr.bf16.mxu0 0
      %1444 = vmatmul.mubr.bf16.gmra.mxu0 %v1241
      %v1445 = vpop.f32.mrf.mxu0
      %v1446 = vadd.f32 0.0, %v1445
      %v1447 = vpop.f32.mrf.mxu0
      %v1448 = vpop.f32.mrf.mxu0
      %v1449 = vadd.f32 0.0, %v1448
      %v1450 = vpop.f32.mrf.mxu0
      %1451 = vmatprep.mubr.bf16.mxu0 0
      %1452 = vmatmul.mubr.bf16.gmra.mxu0 %v1245
      %v1453 = vpop.f32.mrf.mxu0
      %v1454 = vadd.f32 0.0, %v1453
      %v1455 = vpop.f32.mrf.mxu0
      %v1456 = vpop.f32.mrf.mxu0
      %v1457 = vadd.f32 0.0, %v1456
      %v1458 = vpop.f32.mrf.mxu0
      %1459 = vmatprep.mubr.bf16.mxu0 0
      %1460 = vmatmul.mubr.bf16.gmra.mxu0 %v1249
      %v1461 = vpop.f32.mrf.mxu0
      %v1462 = vadd.f32 0.0, %v1461
      %v1463 = vpop.f32.mrf.mxu0
      %v1464 = vpop.f32.mrf.mxu0
      %v1465 = vadd.f32 0.0, %v1464
      %v1466 = vpop.f32.mrf.mxu0
      %1467 = vmatprep.mubr.bf16.mxu0 0
      %1468 = vmatmul.mubr.bf16.gmra.mxu0 %v1253
      %v1469 = vpop.f32.mrf.mxu0
      %v1470 = vadd.f32 0.0, %v1469
      %v1471 = vpop.f32.mrf.mxu0
      %v1472 = vpop.f32.mrf.mxu0
      %v1473 = vadd.f32 0.0, %v1472
      %v1474 = vpop.f32.mrf.mxu0
      %1475 = vmatprep.mubr.bf16.mxu0 0
      %1476 = vmatmul.mubr.bf16.gmra.mxu0 %v1257
      %v1477 = vpop.f32.mrf.mxu0
      %v1478 = vadd.f32 0.0, %v1477
      %v1479 = vpop.f32.mrf.mxu0
      %v1480 = vpop.f32.mrf.mxu0
      %v1481 = vadd.f32 0.0, %v1480
      %v1482 = vpop.f32.mrf.mxu0
      %1483 = vmatprep.mubr.bf16.mxu0 0
      %1484 = vmatmul.mubr.bf16.gmra.mxu0 %v1261
      %v1485 = vpop.f32.mrf.mxu0
      %v1486 = vadd.f32 0.0, %v1485
      %v1487 = vpop.f32.mrf.mxu0
      %v1488 = vpop.f32.mrf.mxu0
      %v1489 = vadd.f32 0.0, %v1488
      %v1490 = vpop.f32.mrf.mxu0
      %1491 = vmatprep.mubr.bf16.mxu0 0
      %1492 = vmatmul.mubr.bf16.gmra.mxu0 %v1265
      %v1493 = vpop.f32.mrf.mxu0
      %v1494 = vadd.f32 0.0, %v1493
      %v1495 = vpop.f32.mrf.mxu0
      %v1496 = vpop.f32.mrf.mxu0
      %v1497 = vadd.f32 0.0, %v1496
      %v1498 = vpop.f32.mrf.mxu0
      %1499 = vmatprep.mubr.bf16.mxu0 0
      %1500 = vmatmul.mubr.bf16.gmra.mxu0 %v1269
      %v1501 = vpop.f32.mrf.mxu0
      %v1502 = vadd.f32 0.0, %v1501
      %v1503 = vpop.f32.mrf.mxu0
      %v1504 = vpop.f32.mrf.mxu0
      %v1505 = vadd.f32 0.0, %v1504
      %v1506 = vpop.f32.mrf.mxu0
      %1507 = vmatprep.mubr.bf16.mxu0 0
      %1508 = vmatmul.mubr.bf16.gmra.mxu0 %v1273
      %v1509 = vpop.f32.mrf.mxu0
      %v1510 = vadd.f32 0.0, %v1509
      %v1511 = vpop.f32.mrf.mxu0
      %v1512 = vpop.f32.mrf.mxu0
      %v1513 = vadd.f32 0.0, %v1512
      %v1514 = vpop.f32.mrf.mxu0
      %1515 = vmatprep.mubr.bf16.mxu0 0
      %1516 = vmatmul.mubr.bf16.gmra.mxu0 %v1277
      %v1517 = vpop.f32.mrf.mxu0
      %v1518 = vadd.f32 0.0, %v1517
      %v1519 = vpop.f32.mrf.mxu0
      %v1520 = vpop.f32.mrf.mxu0
      %v1521 = vadd.f32 0.0, %v1520
      %v1522 = vpop.f32.mrf.mxu0
      %1523 = vmatprep.mubr.bf16.mxu0 0
      %1524 = vmatmul.mubr.bf16.gmra.mxu0 %v1281
      %v1525 = vpop.f32.mrf.mxu0
      %v1526 = vadd.f32 0.0, %v1525
      %v1527 = vpop.f32.mrf.mxu0
      %v1528 = vpop.f32.mrf.mxu0
      %v1529 = vadd.f32 0.0, %v1528
      %v1530 = vpop.f32.mrf.mxu0
      %1531 = vmatprep.mubr.bf16.mxu0 0
      %1532 = vmatmul.mubr.bf16.gmra.mxu0 %v1285
      %v1533 = vpop.f32.mrf.mxu0
      %v1534 = vadd.f32 0.0, %v1533
      %v1535 = vpop.f32.mrf.mxu0
      %v1536 = vpop.f32.mrf.mxu0
      %v1537 = vadd.f32 0.0, %v1536
      %v1538 = vpop.f32.mrf.mxu0
      %1539 = vmatprep.mubr.bf16.mxu0 0
      %1540 = vmatmul.mubr.bf16.gmra.mxu0 %v1289
      %v1541 = vpop.f32.mrf.mxu0
      %v1542 = vadd.f32 0.0, %v1541
      %v1543 = vpop.f32.mrf.mxu0
      %v1544 = vpop.f32.mrf.mxu0
      %v1545 = vadd.f32 0.0, %v1544
      %v1546 = vpop.f32.mrf.mxu0
      %1547 = vmatprep.mubr.bf16.mxu0 0
      %1548 = vmatmul.mubr.bf16.gmra.mxu0 %v1293
      %v1549 = vpop.f32.mrf.mxu0
      %v1550 = vadd.f32 0.0, %v1549
      %v1551 = vpop.f32.mrf.mxu0
      %v1552 = vpop.f32.mrf.mxu0
      %v1553 = vadd.f32 0.0, %v1552
      %v1554 = vpop.f32.mrf.mxu0
      %1555 = vmatprep.mubr.bf16.mxu0 0
      %1556 = vmatmul.mubr.bf16.gmra.mxu0 %v1292
      %v1557 = vpop.f32.mrf.mxu0
      %v1558 = vadd.f32 0.0, %v1557
      %v1559 = vpop.f32.mrf.mxu0
      %v1560 = vpop.f32.mrf.mxu0
      %v1561 = vpop.f32.mrf.mxu0
      %1562 = vdwg.mxu0
      %v1563 = vadd.f32 %v1028, %v1398
      %v1564 = vadd.f32 %v1031, %v1401
      %v1565 = vadd.f32 %v1036, %v1406
      %v1566 = vadd.f32 %v1039, %v1409
      %v1567 = vadd.f32 %v1044, %v1414
      %v1568 = vadd.f32 %v1047, %v1417
      %v1569 = vadd.f32 %v1052, %v1422
      %v1570 = vadd.f32 %v1055, %v1425
      %v1571 = vadd.f32 %v1060, %v1430
      %v1572 = vadd.f32 %v1063, %v1433
      %v1573 = vadd.f32 %v1068, %v1438
      %v1574 = vadd.f32 %v1071, %v1441
      %v1575 = vadd.f32 %v1076, %v1446
      %v1576 = vadd.f32 %v1079, %v1449
      %v1577 = vadd.f32 %v1084, %v1454
      %v1578 = vadd.f32 %v1087, %v1457
      %v1579 = vadd.f32 %v1092, %v1462
      %v1580 = vadd.f32 %v1095, %v1465
      %v1581 = vadd.f32 %v1100, %v1470
      %v1582 = vadd.f32 %v1103, %v1473
      %v1583 = vadd.f32 %v1108, %v1478
      %v1584 = vadd.f32 %v1111, %v1481
      %v1585 = vadd.f32 %v1116, %v1486
      %v1586 = vadd.f32 %v1119, %v1489
      %v1587 = vadd.f32 %v1124, %v1494
      %v1588 = vadd.f32 %v1127, %v1497
      %v1589 = vadd.f32 %v1132, %v1502
      %v1590 = vadd.f32 %v1135, %v1505
      %v1591 = vadd.f32 %v1140, %v1510
      %v1592 = vadd.f32 %v1143, %v1513
      %v1593 = vadd.f32 %v1148, %v1518
      %v1594 = vadd.f32 %v1151, %v1521
      %v1595 = vadd.f32 %v1156, %v1526
      %v1596 = vadd.f32 %v1159, %v1529
      %v1597 = vadd.f32 %v1164, %v1534
      %v1598 = vadd.f32 %v1167, %v1537
      %v1599 = vadd.f32 %v1172, %v1542
      %v1600 = vadd.f32 %v1175, %v1545
      %v1601 = vadd.f32 %v1180, %v1550
      %v1602 = vadd.f32 %v1183, %v1553
      %v1603 = vadd.f32 %v1188, %v1558
      %v1604 = vpack.c.bf16 %v345, %v344
      %s1605 = scalar_lea.vmem %s1, 192
      %v1606 = vld [vmem:[%s1605] sm:$0xf]
      %v1607 = vld [vmem:[%s1605 + $0x4] sm:$0xf]
      %v1608 = vld [vmem:[%s1605 + $0x8] sm:$0xf]
      %v1609 = vld [vmem:[%s1605 + $0xc] sm:$0xf]
      %v1610 = vld [vmem:[%s1605 + $0x10] sm:$0xf]
      %v1611 = vld [vmem:[%s1605 + $0x14] sm:$0xf]
      %v1612 = vld [vmem:[%s1605 + $0x18] sm:$0xf]
      %v1613 = vld [vmem:[%s1605 + $0x1c] sm:$0xf]
      %v1614 = vld [vmem:[%s1605 + $0x20] sm:$0xf]
      %v1615 = vld [vmem:[%s1605 + $0x24] sm:$0xf]
      %v1616 = vld [vmem:[%s1605 + $0x28] sm:$0xf]
      %v1617 = vld [vmem:[%s1605 + $0x2c] sm:$0xf]
      %v1618 = vld [vmem:[%s1605 + $0x30] sm:$0xf]
      %v1619 = vld [vmem:[%s1605 + $0x34] sm:$0xf]
      %v1620 = vld [vmem:[%s1605 + $0x38] sm:$0xf]
      %v1621 = vld [vmem:[%s1605 + $0x3c] sm:$0xf]
      %v1623 = vshrl.u32 %v1604, 16
      %v1625 = vrot.slane %v1623, 3
      %v1626 = vshll.u32 %v1604, 16
      %v1628 = vrot.slane %v1626, 4
      %v1629 = vor.u32 %v1625, %v1628
      %v1630 = vsel %vm1210, %v1292, %v1629
      %v1649 = vunpack.c.l.b16 %v1606
      %v1650 = vunpack.c.l.b16 %v1607
      %v1651 = vunpack.c.l.b16 %v1608
      %v1652 = vunpack.c.l.b16 %v1609
      %v1653 = vunpack.c.l.b16 %v1610
      %v1654 = vunpack.c.l.b16 %v1611
      %v1655 = vunpack.c.l.b16 %v1612
      %v1656 = vunpack.c.l.b16 %v1613
      %v1657 = vunpack.c.l.b16 %v1614
      %v1658 = vunpack.c.l.b16 %v1615
      %v1659 = vunpack.c.l.b16 %v1616
      %v1660 = vunpack.c.l.b16 %v1617
      %v1661 = vunpack.c.l.b16 %v1618
      %v1662 = vunpack.c.l.b16 %v1619
      %v1663 = vunpack.c.l.b16 %v1620
      %v1664 = vunpack.c.l.b16 %v1621
      %v1665 = vpack.c.b16 %v1650, %v1649
      %v1666 = vpack.c.b16 %v1652, %v1651
      %v1667 = vpack.c.b16 %v1654, %v1653
      %v1668 = vpack.c.b16 %v1656, %v1655
      %v1669 = vpack.c.b16 %v1658, %v1657
      %v1670 = vpack.c.b16 %v1660, %v1659
      %v1671 = vpack.c.b16 %v1662, %v1661
      %v1672 = vpack.c.b16 %v1664, %v1663
      %1681 = vmatprep.subr.bf16.mxu0 0
      %1682 = vmatpush1.bf16.msra.mxu0 %v1672
      %1683 = vmatprep.subr.bf16.mxu0 0
      %1684 = vmatpush1.bf16.msra.mxu0 %v1671
      %1685 = vmatprep.subr.bf16.mxu0 0
      %1686 = vmatpush1.bf16.msra.mxu0 %v1670
      %1687 = vmatprep.subr.bf16.mxu0 0
      %1688 = vmatpush1.bf16.msra.mxu0 %v1669
      %1689 = vmatprep.subr.bf16.mxu0 0
      %1690 = vmatpush1.bf16.msra.mxu0 %v1668
      %1691 = vmatprep.subr.bf16.mxu0 0
      %1692 = vmatpush1.bf16.msra.mxu0 %v1667
      %1693 = vmatprep.subr.bf16.mxu0 0
      %1694 = vmatpush1.bf16.msra.mxu0 %v1666
      %1695 = vmatprep.subr.bf16.mxu0 0
      %1696 = vmatpush1.bf16.msra.mxu0 %v1665
      %1697 = vmatprep.subr.bf16.mxu0 0
      %1698 = vmatpush2.bf16.msra.mxu0 0
      %1699 = vmatprep.subr.bf16.mxu0 0
      %1700 = vmatpush2.bf16.msra.mxu0 0
      %1701 = vmatprep.subr.bf16.mxu0 0
      %1702 = vmatpush2.bf16.msra.mxu0 0
      %1703 = vmatprep.subr.bf16.mxu0 0
      %1704 = vmatpush2.bf16.msra.mxu0 0
      %1705 = vmatprep.subr.bf16.mxu0 0
      %1706 = vmatpush2.bf16.msra.mxu0 0
      %1707 = vmatprep.subr.bf16.mxu0 0
      %1708 = vmatpush2.bf16.msra.mxu0 0
      %1709 = vmatprep.subr.bf16.mxu0 0
      %1710 = vmatpush2.bf16.msra.mxu0 0
      %1711 = vmatprep.subr.bf16.mxu0 0
      %1712 = vmatpush2.bf16.msra.mxu0 0
      %1713 = vmatprep.mubr.bf16.mxu0 0
      %1714 = vmatmul.mubr.bf16.gmra.mxu0 %v1221
      %v1715 = vpop.f32.mrf.mxu0
      %v1716 = vadd.f32 0.0, %v1715
      %v1717 = vpop.f32.mrf.mxu0
      %v1718 = vpop.f32.mrf.mxu0
      %v1719 = vadd.f32 0.0, %v1718
      %v1720 = vpop.f32.mrf.mxu0
      %1721 = vmatprep.mubr.bf16.mxu0 0
      %1722 = vmatmul.mubr.bf16.gmra.mxu0 %v1225
      %v1723 = vpop.f32.mrf.mxu0
      %v1724 = vadd.f32 0.0, %v1723
      %v1725 = vpop.f32.mrf.mxu0
      %v1726 = vpop.f32.mrf.mxu0
      %v1727 = vadd.f32 0.0, %v1726
      %v1728 = vpop.f32.mrf.mxu0
      %1729 = vmatprep.mubr.bf16.mxu0 0
      %1730 = vmatmul.mubr.bf16.gmra.mxu0 %v1229
      %v1731 = vpop.f32.mrf.mxu0
      %v1732 = vadd.f32 0.0, %v1731
      %v1733 = vpop.f32.mrf.mxu0
      %v1734 = vpop.f32.mrf.mxu0
      %v1735 = vadd.f32 0.0, %v1734
      %v1736 = vpop.f32.mrf.mxu0
      %1737 = vmatprep.mubr.bf16.mxu0 0
      %1738 = vmatmul.mubr.bf16.gmra.mxu0 %v1233
      %v1739 = vpop.f32.mrf.mxu0
      %v1740 = vadd.f32 0.0, %v1739
      %v1741 = vpop.f32.mrf.mxu0
      %v1742 = vpop.f32.mrf.mxu0
      %v1743 = vadd.f32 0.0, %v1742
      %v1744 = vpop.f32.mrf.mxu0
      %1745 = vmatprep.mubr.bf16.mxu0 0
      %1746 = vmatmul.mubr.bf16.gmra.mxu0 %v1237
      %v1747 = vpop.f32.mrf.mxu0
      %v1748 = vadd.f32 0.0, %v1747
      %v1749 = vpop.f32.mrf.mxu0
      %v1750 = vpop.f32.mrf.mxu0
      %v1751 = vadd.f32 0.0, %v1750
      %v1752 = vpop.f32.mrf.mxu0
      %1753 = vmatprep.mubr.bf16.mxu0 0
      %1754 = vmatmul.mubr.bf16.gmra.mxu0 %v1241
      %v1755 = vpop.f32.mrf.mxu0
      %v1756 = vadd.f32 0.0, %v1755
      %v1757 = vpop.f32.mrf.mxu0
      %v1758 = vpop.f32.mrf.mxu0
      %v1759 = vadd.f32 0.0, %v1758
      %v1760 = vpop.f32.mrf.mxu0
      %1761 = vmatprep.mubr.bf16.mxu0 0
      %1762 = vmatmul.mubr.bf16.gmra.mxu0 %v1245
      %v1763 = vpop.f32.mrf.mxu0
      %v1764 = vadd.f32 0.0, %v1763
      %v1765 = vpop.f32.mrf.mxu0
      %v1766 = vpop.f32.mrf.mxu0
      %v1767 = vadd.f32 0.0, %v1766
      %v1768 = vpop.f32.mrf.mxu0
      %1769 = vmatprep.mubr.bf16.mxu0 0
      %1770 = vmatmul.mubr.bf16.gmra.mxu0 %v1249
      %v1771 = vpop.f32.mrf.mxu0
      %v1772 = vadd.f32 0.0, %v1771
      %v1773 = vpop.f32.mrf.mxu0
      %v1774 = vpop.f32.mrf.mxu0
      %v1775 = vadd.f32 0.0, %v1774
      %v1776 = vpop.f32.mrf.mxu0
      %1777 = vmatprep.mubr.bf16.mxu0 0
      %1778 = vmatmul.mubr.bf16.gmra.mxu0 %v1253
      %v1779 = vpop.f32.mrf.mxu0
      %v1780 = vadd.f32 0.0, %v1779
      %v1781 = vpop.f32.mrf.mxu0
      %v1782 = vpop.f32.mrf.mxu0
      %v1783 = vadd.f32 0.0, %v1782
      %v1784 = vpop.f32.mrf.mxu0
      %1785 = vmatprep.mubr.bf16.mxu0 0
      %1786 = vmatmul.mubr.bf16.gmra.mxu0 %v1257
      %v1787 = vpop.f32.mrf.mxu0
      %v1788 = vadd.f32 0.0, %v1787
      %v1789 = vpop.f32.mrf.mxu0
      %v1790 = vpop.f32.mrf.mxu0
      %v1791 = vadd.f32 0.0, %v1790
      %v1792 = vpop.f32.mrf.mxu0
      %1793 = vmatprep.mubr.bf16.mxu0 0
      %1794 = vmatmul.mubr.bf16.gmra.mxu0 %v1261
      %v1795 = vpop.f32.mrf.mxu0
      %v1796 = vadd.f32 0.0, %v1795
      %v1797 = vpop.f32.mrf.mxu0
      %v1798 = vpop.f32.mrf.mxu0
      %v1799 = vadd.f32 0.0, %v1798
      %v1800 = vpop.f32.mrf.mxu0
      %1801 = vmatprep.mubr.bf16.mxu0 0
      %1802 = vmatmul.mubr.bf16.gmra.mxu0 %v1265
      %v1803 = vpop.f32.mrf.mxu0
      %v1804 = vadd.f32 0.0, %v1803
      %v1805 = vpop.f32.mrf.mxu0
      %v1806 = vpop.f32.mrf.mxu0
      %v1807 = vadd.f32 0.0, %v1806
      %v1808 = vpop.f32.mrf.mxu0
      %1809 = vmatprep.mubr.bf16.mxu0 0
      %1810 = vmatmul.mubr.bf16.gmra.mxu0 %v1269
      %v1811 = vpop.f32.mrf.mxu0
      %v1812 = vadd.f32 0.0, %v1811
      %v1813 = vpop.f32.mrf.mxu0
      %v1814 = vpop.f32.mrf.mxu0
      %v1815 = vadd.f32 0.0, %v1814
      %v1816 = vpop.f32.mrf.mxu0
      %1817 = vmatprep.mubr.bf16.mxu0 0
      %1818 = vmatmul.mubr.bf16.gmra.mxu0 %v1273
      %v1819 = vpop.f32.mrf.mxu0
      %v1820 = vadd.f32 0.0, %v1819
      %v1821 = vpop.f32.mrf.mxu0
      %v1822 = vpop.f32.mrf.mxu0
      %v1823 = vadd.f32 0.0, %v1822
      %v1824 = vpop.f32.mrf.mxu0
      %1825 = vmatprep.mubr.bf16.mxu0 0
      %1826 = vmatmul.mubr.bf16.gmra.mxu0 %v1277
      %v1827 = vpop.f32.mrf.mxu0
      %v1828 = vadd.f32 0.0, %v1827
      %v1829 = vpop.f32.mrf.mxu0
      %v1830 = vpop.f32.mrf.mxu0
      %v1831 = vadd.f32 0.0, %v1830
      %v1832 = vpop.f32.mrf.mxu0
      %1833 = vmatprep.mubr.bf16.mxu0 0
      %1834 = vmatmul.mubr.bf16.gmra.mxu0 %v1281
      %v1835 = vpop.f32.mrf.mxu0
      %v1836 = vadd.f32 0.0, %v1835
      %v1837 = vpop.f32.mrf.mxu0
      %v1838 = vpop.f32.mrf.mxu0
      %v1839 = vadd.f32 0.0, %v1838
      %v1840 = vpop.f32.mrf.mxu0
      %1841 = vmatprep.mubr.bf16.mxu0 0
      %1842 = vmatmul.mubr.bf16.gmra.mxu0 %v1285
      %v1843 = vpop.f32.mrf.mxu0
      %v1844 = vadd.f32 0.0, %v1843
      %v1845 = vpop.f32.mrf.mxu0
      %v1846 = vpop.f32.mrf.mxu0
      %v1847 = vadd.f32 0.0, %v1846
      %v1848 = vpop.f32.mrf.mxu0
      %1849 = vmatprep.mubr.bf16.mxu0 0
      %1850 = vmatmul.mubr.bf16.gmra.mxu0 %v1289
      %v1851 = vpop.f32.mrf.mxu0
      %v1852 = vadd.f32 0.0, %v1851
      %v1853 = vpop.f32.mrf.mxu0
      %v1854 = vpop.f32.mrf.mxu0
      %v1855 = vadd.f32 0.0, %v1854
      %v1856 = vpop.f32.mrf.mxu0
      %1857 = vmatprep.mubr.bf16.mxu0 0
      %1858 = vmatmul.mubr.bf16.gmra.mxu0 %v1293
      %v1859 = vpop.f32.mrf.mxu0
      %v1860 = vadd.f32 0.0, %v1859
      %v1861 = vpop.f32.mrf.mxu0
      %v1862 = vpop.f32.mrf.mxu0
      %v1863 = vadd.f32 0.0, %v1862
      %v1864 = vpop.f32.mrf.mxu0
      %1865 = vmatprep.mubr.bf16.mxu0 0
      %1866 = vmatmul.mubr.bf16.gmra.mxu0 %v1630
      %v1867 = vpop.f32.mrf.mxu0
      %v1868 = vadd.f32 0.0, %v1867
      %v1869 = vpop.f32.mrf.mxu0
      %v1870 = vpop.f32.mrf.mxu0
      %v1871 = vadd.f32 0.0, %v1870
      %v1872 = vpop.f32.mrf.mxu0
      %1873 = vmatprep.mubr.bf16.mxu0 0
      %1874 = vmatmul.mubr.bf16.gmra.mxu0 %v1629
      %v1875 = vpop.f32.mrf.mxu0
      %v1876 = vadd.f32 0.0, %v1875
      %v1877 = vpop.f32.mrf.mxu0
      %v1878 = vpop.f32.mrf.mxu0
      %v1879 = vpop.f32.mrf.mxu0
      %1880 = vdwg.mxu0
      %v1881 = vadd.f32 %v1563, %v1716
      %v1882 = vadd.f32 %v1564, %v1719
      %v1883 = vadd.f32 %v1565, %v1724
      %v1884 = vadd.f32 %v1566, %v1727
      %v1885 = vadd.f32 %v1567, %v1732
      %v1886 = vadd.f32 %v1568, %v1735
      %v1887 = vadd.f32 %v1569, %v1740
      %v1888 = vadd.f32 %v1570, %v1743
      %v1889 = vadd.f32 %v1571, %v1748
      %v1890 = vadd.f32 %v1572, %v1751
      %v1891 = vadd.f32 %v1573, %v1756
      %v1892 = vadd.f32 %v1574, %v1759
      %v1893 = vadd.f32 %v1575, %v1764
      %v1894 = vadd.f32 %v1576, %v1767
      %v1895 = vadd.f32 %v1577, %v1772
      %v1896 = vadd.f32 %v1578, %v1775
      %v1897 = vadd.f32 %v1579, %v1780
      %v1898 = vadd.f32 %v1580, %v1783
      %v1899 = vadd.f32 %v1581, %v1788
      %v1900 = vadd.f32 %v1582, %v1791
      %v1901 = vadd.f32 %v1583, %v1796
      %v1902 = vadd.f32 %v1584, %v1799
      %v1903 = vadd.f32 %v1585, %v1804
      %v1904 = vadd.f32 %v1586, %v1807
      %v1905 = vadd.f32 %v1587, %v1812
      %v1906 = vadd.f32 %v1588, %v1815
      %v1907 = vadd.f32 %v1589, %v1820
      %v1908 = vadd.f32 %v1590, %v1823
      %v1909 = vadd.f32 %v1591, %v1828
      %v1910 = vadd.f32 %v1592, %v1831
      %v1911 = vadd.f32 %v1593, %v1836
      %v1912 = vadd.f32 %v1594, %v1839
      %v1913 = vadd.f32 %v1595, %v1844
      %v1914 = vadd.f32 %v1596, %v1847
      %v1915 = vadd.f32 %v1597, %v1852
      %v1916 = vadd.f32 %v1598, %v1855
      %v1917 = vadd.f32 %v1599, %v1860
      %v1918 = vadd.f32 %v1600, %v1863
      %v1919 = vadd.f32 %v1601, %v1868
      %v1920 = vadd.f32 %v1602, %v1871
      %v1921 = vadd.f32 %v1603, %v1876
      %v1922 = vpack.c.bf16 %v306, %v305
      %v1923 = vpack.c.bf16 %v308, %v307
      %v1924 = vpack.c.bf16 %v310, %v309
      %v1925 = vpack.c.bf16 %v312, %v311
      %v1926 = vpack.c.bf16 %v314, %v313
      %v1927 = vpack.c.bf16 %v316, %v315
      %v1928 = vpack.c.bf16 %v318, %v317
      %v1929 = vpack.c.bf16 %v320, %v319
      %v1930 = vpack.c.bf16 %v322, %v321
      %v1931 = vpack.c.bf16 %v324, %v323
      %v1932 = vpack.c.bf16 %v326, %v325
      %v1933 = vpack.c.bf16 %v328, %v327
      %v1934 = vpack.c.bf16 %v330, %v329
      %v1935 = vpack.c.bf16 %v332, %v331
      %v1936 = vpack.c.bf16 %v334, %v333
      %v1937 = vpack.c.bf16 %v336, %v335
      %v1938 = vpack.c.bf16 %v338, %v337
      %v1939 = vpack.c.bf16 %v340, %v339
      %v1940 = vpack.c.bf16 %v342, %v341
      %v1941 = vpack.c.bf16 %v344, %v343
      %v1942 = vpack.c.bf16 %v345, %v345
      %s1943 = scalar_lea.vmem %s1, 256
      %v1944 = vld [vmem:[%s1943] sm:$0xf]
      %v1945 = vld [vmem:[%s1943 + $0x4] sm:$0xf]
      %v1946 = vld [vmem:[%s1943 + $0x8] sm:$0xf]
      %v1947 = vld [vmem:[%s1943 + $0xc] sm:$0xf]
      %v1948 = vld [vmem:[%s1943 + $0x10] sm:$0xf]
      %v1949 = vld [vmem:[%s1943 + $0x14] sm:$0xf]
      %v1950 = vld [vmem:[%s1943 + $0x18] sm:$0xf]
      %v1951 = vld [vmem:[%s1943 + $0x1c] sm:$0xf]
      %v1952 = vld [vmem:[%s1943 + $0x20] sm:$0xf]
      %v1953 = vld [vmem:[%s1943 + $0x24] sm:$0xf]
      %v1954 = vld [vmem:[%s1943 + $0x28] sm:$0xf]
      %v1955 = vld [vmem:[%s1943 + $0x2c] sm:$0xf]
      %v1956 = vld [vmem:[%s1943 + $0x30] sm:$0xf]
      %v1957 = vld [vmem:[%s1943 + $0x34] sm:$0xf]
      %v1958 = vld [vmem:[%s1943 + $0x38] sm:$0xf]
      %v1959 = vld [vmem:[%s1943 + $0x3c] sm:$0xf]
      %v1976 = vunpack.c.l.b16 %v1944
      %v1977 = vunpack.c.l.b16 %v1945
      %v1978 = vunpack.c.l.b16 %v1946
      %v1979 = vunpack.c.l.b16 %v1947
      %v1980 = vunpack.c.l.b16 %v1948
      %v1981 = vunpack.c.l.b16 %v1949
      %v1982 = vunpack.c.l.b16 %v1950
      %v1983 = vunpack.c.l.b16 %v1951
      %v1984 = vunpack.c.l.b16 %v1952
      %v1985 = vunpack.c.l.b16 %v1953
      %v1986 = vunpack.c.l.b16 %v1954
      %v1987 = vunpack.c.l.b16 %v1955
      %v1988 = vunpack.c.l.b16 %v1956
      %v1989 = vunpack.c.l.b16 %v1957
      %v1990 = vunpack.c.l.b16 %v1958
      %v1991 = vunpack.c.l.b16 %v1959
      %v1992 = vpack.c.b16 %v1977, %v1976
      %v1993 = vpack.c.b16 %v1979, %v1978
      %v1994 = vpack.c.b16 %v1981, %v1980
      %v1995 = vpack.c.b16 %v1983, %v1982
      %v1996 = vpack.c.b16 %v1985, %v1984
      %v1997 = vpack.c.b16 %v1987, %v1986
      %v1998 = vpack.c.b16 %v1989, %v1988
      %v1999 = vpack.c.b16 %v1991, %v1990
      %2008 = vmatprep.subr.bf16.mxu0 0
      %2009 = vmatpush1.bf16.msra.mxu0 %v1999
      %2010 = vmatprep.subr.bf16.mxu0 0
      %2011 = vmatpush1.bf16.msra.mxu0 %v1998
      %2012 = vmatprep.subr.bf16.mxu0 0
      %2013 = vmatpush1.bf16.msra.mxu0 %v1997
      %2014 = vmatprep.subr.bf16.mxu0 0
      %2015 = vmatpush1.bf16.msra.mxu0 %v1996
      %2016 = vmatprep.subr.bf16.mxu0 0
      %2017 = vmatpush1.bf16.msra.mxu0 %v1995
      %2018 = vmatprep.subr.bf16.mxu0 0
      %2019 = vmatpush1.bf16.msra.mxu0 %v1994
      %2020 = vmatprep.subr.bf16.mxu0 0
      %2021 = vmatpush1.bf16.msra.mxu0 %v1993
      %2022 = vmatprep.subr.bf16.mxu0 0
      %2023 = vmatpush1.bf16.msra.mxu0 %v1992
      %2024 = vmatprep.subr.bf16.mxu0 0
      %2025 = vmatpush2.bf16.msra.mxu0 0
      %2026 = vmatprep.subr.bf16.mxu0 0
      %2027 = vmatpush2.bf16.msra.mxu0 0
      %2028 = vmatprep.subr.bf16.mxu0 0
      %2029 = vmatpush2.bf16.msra.mxu0 0
      %2030 = vmatprep.subr.bf16.mxu0 0
      %2031 = vmatpush2.bf16.msra.mxu0 0
      %2032 = vmatprep.subr.bf16.mxu0 0
      %2033 = vmatpush2.bf16.msra.mxu0 0
      %2034 = vmatprep.subr.bf16.mxu0 0
      %2035 = vmatpush2.bf16.msra.mxu0 0
      %2036 = vmatprep.subr.bf16.mxu0 0
      %2037 = vmatpush2.bf16.msra.mxu0 0
      %2038 = vmatprep.subr.bf16.mxu0 0
      %2039 = vmatpush2.bf16.msra.mxu0 0
      %2040 = vmatprep.mubr.bf16.mxu0 0
      %2041 = vmatmul.mubr.bf16.gmra.mxu0 %v1922
      %v2042 = vpop.f32.mrf.mxu0
      %v2043 = vadd.f32 0.0, %v2042
      %v2044 = vpop.f32.mrf.mxu0
      %v2045 = vpop.f32.mrf.mxu0
      %v2046 = vadd.f32 0.0, %v2045
      %v2047 = vpop.f32.mrf.mxu0
      %2048 = vmatprep.mubr.bf16.mxu0 0
      %2049 = vmatmul.mubr.bf16.gmra.mxu0 %v1923
      %v2050 = vpop.f32.mrf.mxu0
      %v2051 = vadd.f32 0.0, %v2050
      %v2052 = vpop.f32.mrf.mxu0
      %v2053 = vpop.f32.mrf.mxu0
      %v2054 = vadd.f32 0.0, %v2053
      %v2055 = vpop.f32.mrf.mxu0
      %2056 = vmatprep.mubr.bf16.mxu0 0
      %2057 = vmatmul.mubr.bf16.gmra.mxu0 %v1924
      %v2058 = vpop.f32.mrf.mxu0
      %v2059 = vadd.f32 0.0, %v2058
      %v2060 = vpop.f32.mrf.mxu0
      %v2061 = vpop.f32.mrf.mxu0
      %v2062 = vadd.f32 0.0, %v2061
      %v2063 = vpop.f32.mrf.mxu0
      %2064 = vmatprep.mubr.bf16.mxu0 0
      %2065 = vmatmul.mubr.bf16.gmra.mxu0 %v1925
      %v2066 = vpop.f32.mrf.mxu0
      %v2067 = vadd.f32 0.0, %v2066
      %v2068 = vpop.f32.mrf.mxu0
      %v2069 = vpop.f32.mrf.mxu0
      %v2070 = vadd.f32 0.0, %v2069
      %v2071 = vpop.f32.mrf.mxu0
      %2072 = vmatprep.mubr.bf16.mxu0 0
      %2073 = vmatmul.mubr.bf16.gmra.mxu0 %v1926
      %v2074 = vpop.f32.mrf.mxu0
      %v2075 = vadd.f32 0.0, %v2074
      %v2076 = vpop.f32.mrf.mxu0
      %v2077 = vpop.f32.mrf.mxu0
      %v2078 = vadd.f32 0.0, %v2077
      %v2079 = vpop.f32.mrf.mxu0
      %2080 = vmatprep.mubr.bf16.mxu0 0
      %2081 = vmatmul.mubr.bf16.gmra.mxu0 %v1927
      %v2082 = vpop.f32.mrf.mxu0
      %v2083 = vadd.f32 0.0, %v2082
      %v2084 = vpop.f32.mrf.mxu0
      %v2085 = vpop.f32.mrf.mxu0
      %v2086 = vadd.f32 0.0, %v2085
      %v2087 = vpop.f32.mrf.mxu0
      %2088 = vmatprep.mubr.bf16.mxu0 0
      %2089 = vmatmul.mubr.bf16.gmra.mxu0 %v1928
      %v2090 = vpop.f32.mrf.mxu0
      %v2091 = vadd.f32 0.0, %v2090
      %v2092 = vpop.f32.mrf.mxu0
      %v2093 = vpop.f32.mrf.mxu0
      %v2094 = vadd.f32 0.0, %v2093
      %v2095 = vpop.f32.mrf.mxu0
      %2096 = vmatprep.mubr.bf16.mxu0 0
      %2097 = vmatmul.mubr.bf16.gmra.mxu0 %v1929
      %v2098 = vpop.f32.mrf.mxu0
      %v2099 = vadd.f32 0.0, %v2098
      %v2100 = vpop.f32.mrf.mxu0
      %v2101 = vpop.f32.mrf.mxu0
      %v2102 = vadd.f32 0.0, %v2101
      %v2103 = vpop.f32.mrf.mxu0
      %2104 = vmatprep.mubr.bf16.mxu0 0
      %2105 = vmatmul.mubr.bf16.gmra.mxu0 %v1930
      %v2106 = vpop.f32.mrf.mxu0
      %v2107 = vadd.f32 0.0, %v2106
      %v2108 = vpop.f32.mrf.mxu0
      %v2109 = vpop.f32.mrf.mxu0
      %v2110 = vadd.f32 0.0, %v2109
      %v2111 = vpop.f32.mrf.mxu0
      %2112 = vmatprep.mubr.bf16.mxu0 0
      %2113 = vmatmul.mubr.bf16.gmra.mxu0 %v1931
      %v2114 = vpop.f32.mrf.mxu0
      %v2115 = vadd.f32 0.0, %v2114
      %v2116 = vpop.f32.mrf.mxu0
      %v2117 = vpop.f32.mrf.mxu0
      %v2118 = vadd.f32 0.0, %v2117
      %v2119 = vpop.f32.mrf.mxu0
      %2120 = vmatprep.mubr.bf16.mxu0 0
      %2121 = vmatmul.mubr.bf16.gmra.mxu0 %v1932
      %v2122 = vpop.f32.mrf.mxu0
      %v2123 = vadd.f32 0.0, %v2122
      %v2124 = vpop.f32.mrf.mxu0
      %v2125 = vpop.f32.mrf.mxu0
      %v2126 = vadd.f32 0.0, %v2125
      %v2127 = vpop.f32.mrf.mxu0
      %2128 = vmatprep.mubr.bf16.mxu0 0
      %2129 = vmatmul.mubr.bf16.gmra.mxu0 %v1933
      %v2130 = vpop.f32.mrf.mxu0
      %v2131 = vadd.f32 0.0, %v2130
      %v2132 = vpop.f32.mrf.mxu0
      %v2133 = vpop.f32.mrf.mxu0
      %v2134 = vadd.f32 0.0, %v2133
      %v2135 = vpop.f32.mrf.mxu0
      %2136 = vmatprep.mubr.bf16.mxu0 0
      %2137 = vmatmul.mubr.bf16.gmra.mxu0 %v1934
      %v2138 = vpop.f32.mrf.mxu0
      %v2139 = vadd.f32 0.0, %v2138
      %v2140 = vpop.f32.mrf.mxu0
      %v2141 = vpop.f32.mrf.mxu0
      %v2142 = vadd.f32 0.0, %v2141
      %v2143 = vpop.f32.mrf.mxu0
      %2144 = vmatprep.mubr.bf16.mxu0 0
      %2145 = vmatmul.mubr.bf16.gmra.mxu0 %v1935
      %v2146 = vpop.f32.mrf.mxu0
      %v2147 = vadd.f32 0.0, %v2146
      %v2148 = vpop.f32.mrf.mxu0
      %v2149 = vpop.f32.mrf.mxu0
      %v2150 = vadd.f32 0.0, %v2149
      %v2151 = vpop.f32.mrf.mxu0
      %2152 = vmatprep.mubr.bf16.mxu0 0
      %2153 = vmatmul.mubr.bf16.gmra.mxu0 %v1936
      %v2154 = vpop.f32.mrf.mxu0
      %v2155 = vadd.f32 0.0, %v2154
      %v2156 = vpop.f32.mrf.mxu0
      %v2157 = vpop.f32.mrf.mxu0
      %v2158 = vadd.f32 0.0, %v2157
      %v2159 = vpop.f32.mrf.mxu0
      %2160 = vmatprep.mubr.bf16.mxu0 0
      %2161 = vmatmul.mubr.bf16.gmra.mxu0 %v1937
      %v2162 = vpop.f32.mrf.mxu0
      %v2163 = vadd.f32 0.0, %v2162
      %v2164 = vpop.f32.mrf.mxu0
      %v2165 = vpop.f32.mrf.mxu0
      %v2166 = vadd.f32 0.0, %v2165
      %v2167 = vpop.f32.mrf.mxu0
      %2168 = vmatprep.mubr.bf16.mxu0 0
      %2169 = vmatmul.mubr.bf16.gmra.mxu0 %v1938
      %v2170 = vpop.f32.mrf.mxu0
      %v2171 = vadd.f32 0.0, %v2170
      %v2172 = vpop.f32.mrf.mxu0
      %v2173 = vpop.f32.mrf.mxu0
      %v2174 = vadd.f32 0.0, %v2173
      %v2175 = vpop.f32.mrf.mxu0
      %2176 = vmatprep.mubr.bf16.mxu0 0
      %2177 = vmatmul.mubr.bf16.gmra.mxu0 %v1939
      %v2178 = vpop.f32.mrf.mxu0
      %v2179 = vadd.f32 0.0, %v2178
      %v2180 = vpop.f32.mrf.mxu0
      %v2181 = vpop.f32.mrf.mxu0
      %v2182 = vadd.f32 0.0, %v2181
      %v2183 = vpop.f32.mrf.mxu0
      %2184 = vmatprep.mubr.bf16.mxu0 0
      %2185 = vmatmul.mubr.bf16.gmra.mxu0 %v1940
      %v2186 = vpop.f32.mrf.mxu0
      %v2187 = vadd.f32 0.0, %v2186
      %v2188 = vpop.f32.mrf.mxu0
      %v2189 = vpop.f32.mrf.mxu0
      %v2190 = vadd.f32 0.0, %v2189
      %v2191 = vpop.f32.mrf.mxu0
      %2192 = vmatprep.mubr.bf16.mxu0 0
      %2193 = vmatmul.mubr.bf16.gmra.mxu0 %v1941
      %v2194 = vpop.f32.mrf.mxu0
      %v2195 = vadd.f32 0.0, %v2194
      %v2196 = vpop.f32.mrf.mxu0
      %v2197 = vpop.f32.mrf.mxu0
      %v2198 = vadd.f32 0.0, %v2197
      %v2199 = vpop.f32.mrf.mxu0
      %2200 = vmatprep.mubr.bf16.mxu0 0
      %2201 = vmatmul.mubr.bf16.gmra.mxu0 %v1942
      %v2202 = vpop.f32.mrf.mxu0
      %v2203 = vadd.f32 0.0, %v2202
      %v2204 = vpop.f32.mrf.mxu0
      %v2205 = vpop.f32.mrf.mxu0
      %v2206 = vpop.f32.mrf.mxu0
      %2207 = vdwg.mxu0
      %v2208 = vadd.f32 %v1881, %v2043
      %v2209 = vadd.f32 %v1882, %v2046
      %v2210 = vadd.f32 %v1883, %v2051
      %v2211 = vadd.f32 %v1884, %v2054
      %v2212 = vadd.f32 %v1885, %v2059
      %v2213 = vadd.f32 %v1886, %v2062
      %v2214 = vadd.f32 %v1887, %v2067
      %v2215 = vadd.f32 %v1888, %v2070
      %v2216 = vadd.f32 %v1889, %v2075
      %v2217 = vadd.f32 %v1890, %v2078
      %v2218 = vadd.f32 %v1891, %v2083
      %v2219 = vadd.f32 %v1892, %v2086
      %v2220 = vadd.f32 %v1893, %v2091
      %v2221 = vadd.f32 %v1894, %v2094
      %v2222 = vadd.f32 %v1895, %v2099
      %v2223 = vadd.f32 %v1896, %v2102
      %v2224 = vadd.f32 %v1897, %v2107
      %v2225 = vadd.f32 %v1898, %v2110
      %v2226 = vadd.f32 %v1899, %v2115
      %v2227 = vadd.f32 %v1900, %v2118
      %v2228 = vadd.f32 %v1901, %v2123
      %v2229 = vadd.f32 %v1902, %v2126
      %v2230 = vadd.f32 %v1903, %v2131
      %v2231 = vadd.f32 %v1904, %v2134
      %v2232 = vadd.f32 %v1905, %v2139
      %v2233 = vadd.f32 %v1906, %v2142
      %v2234 = vadd.f32 %v1907, %v2147
      %v2235 = vadd.f32 %v1908, %v2150
      %v2236 = vadd.f32 %v1909, %v2155
      %v2237 = vadd.f32 %v1910, %v2158
      %v2238 = vadd.f32 %v1911, %v2163
      %v2239 = vadd.f32 %v1912, %v2166
      %v2240 = vadd.f32 %v1913, %v2171
      %v2241 = vadd.f32 %v1914, %v2174
      %v2242 = vadd.f32 %v1915, %v2179
      %v2243 = vadd.f32 %v1916, %v2182
      %v2244 = vadd.f32 %v1917, %v2187
      %v2245 = vadd.f32 %v1918, %v2190
      %v2246 = vadd.f32 %v1919, %v2195
      %v2247 = vadd.f32 %v1920, %v2198
      %v2248 = vadd.f32 %v1921, %v2203
      %v2249 = vpack.c.bf16 %v346, %v345
      %s2250 = scalar_lea.vmem %s1, 320
      %v2251 = vld [vmem:[%s2250] sm:$0xf]
      %v2252 = vld [vmem:[%s2250 + $0x4] sm:$0xf]
      %v2253 = vld [vmem:[%s2250 + $0x8] sm:$0xf]
      %v2254 = vld [vmem:[%s2250 + $0xc] sm:$0xf]
      %v2255 = vld [vmem:[%s2250 + $0x10] sm:$0xf]
      %v2256 = vld [vmem:[%s2250 + $0x14] sm:$0xf]
      %v2257 = vld [vmem:[%s2250 + $0x18] sm:$0xf]
      %v2258 = vld [vmem:[%s2250 + $0x1c] sm:$0xf]
      %v2259 = vld [vmem:[%s2250 + $0x20] sm:$0xf]
      %v2260 = vld [vmem:[%s2250 + $0x24] sm:$0xf]
      %v2261 = vld [vmem:[%s2250 + $0x28] sm:$0xf]
      %v2262 = vld [vmem:[%s2250 + $0x2c] sm:$0xf]
      %v2263 = vld [vmem:[%s2250 + $0x30] sm:$0xf]
      %v2264 = vld [vmem:[%s2250 + $0x34] sm:$0xf]
      %v2265 = vld [vmem:[%s2250 + $0x38] sm:$0xf]
      %v2266 = vld [vmem:[%s2250 + $0x3c] sm:$0xf]
      %vm2267 = vsmask.f32 7424
      %v2269 = vshrl.u32 %v1922, 16
      %v2271 = vshll.u32 %v1922, 16
      %v2273 = vrot.slane %v2271, 1
      %v2274 = vor.u32 %v2269, %v2273
      %v2276 = vshll.u32 %v1923, 16
      %v2278 = vrot.slane %v2276, 1
      %v2279 = vsel %vm2267, %v2274, %v2278
      %v2280 = vshrl.u32 %v1923, 16
      %v2282 = vor.u32 %v2280, %v2278
      %v2284 = vshll.u32 %v1924, 16
      %v2286 = vrot.slane %v2284, 1
      %v2287 = vsel %vm2267, %v2282, %v2286
      %v2288 = vshrl.u32 %v1924, 16
      %v2290 = vor.u32 %v2288, %v2286
      %v2292 = vshll.u32 %v1925, 16
      %v2294 = vrot.slane %v2292, 1
      %v2295 = vsel %vm2267, %v2290, %v2294
      %v2296 = vshrl.u32 %v1925, 16
      %v2298 = vor.u32 %v2296, %v2294
      %v2300 = vshll.u32 %v1926, 16
      %v2302 = vrot.slane %v2300, 1
      %v2303 = vsel %vm2267, %v2298, %v2302
      %v2304 = vshrl.u32 %v1926, 16
      %v2306 = vor.u32 %v2304, %v2302
      %v2308 = vshll.u32 %v1927, 16
      %v2310 = vrot.slane %v2308, 1
      %v2311 = vsel %vm2267, %v2306, %v2310
      %v2312 = vshrl.u32 %v1927, 16
      %v2314 = vor.u32 %v2312, %v2310
      %v2316 = vshll.u32 %v1928, 16
      %v2318 = vrot.slane %v2316, 1
      %v2319 = vsel %vm2267, %v2314, %v2318
      %v2320 = vshrl.u32 %v1928, 16
      %v2322 = vor.u32 %v2320, %v2318
      %v2324 = vshll.u32 %v1929, 16
      %v2326 = vrot.slane %v2324, 1
      %v2327 = vsel %vm2267, %v2322, %v2326
      %v2328 = vshrl.u32 %v1929, 16
      %v2330 = vor.u32 %v2328, %v2326
      %v2332 = vshll.u32 %v1930, 16
      %v2334 = vrot.slane %v2332, 1
      %v2335 = vsel %vm2267, %v2330, %v2334
      %v2336 = vshrl.u32 %v1930, 16
      %v2338 = vor.u32 %v2336, %v2334
      %v2340 = vshll.u32 %v1931, 16
      %v2342 = vrot.slane %v2340, 1
      %v2343 = vsel %vm2267, %v2338, %v2342
      %v2344 = vshrl.u32 %v1931, 16
      %v2346 = vor.u32 %v2344, %v2342
      %v2348 = vshll.u32 %v1932, 16
      %v2350 = vrot.slane %v2348, 1
      %v2351 = vsel %vm2267, %v2346, %v2350
      %v2352 = vshrl.u32 %v1932, 16
      %v2354 = vor.u32 %v2352, %v2350
      %v2356 = vshll.u32 %v1933, 16
      %v2358 = vrot.slane %v2356, 1
      %v2359 = vsel %vm2267, %v2354, %v2358
      %v2360 = vshrl.u32 %v1933, 16
      %v2362 = vor.u32 %v2360, %v2358
      %v2364 = vshll.u32 %v1934, 16
      %v2366 = vrot.slane %v2364, 1
      %v2367 = vsel %vm2267, %v2362, %v2366
      %v2368 = vshrl.u32 %v1934, 16
      %v2370 = vor.u32 %v2368, %v2366
      %v2372 = vshll.u32 %v1935, 16
      %v2374 = vrot.slane %v2372, 1
      %v2375 = vsel %vm2267, %v2370, %v2374
      %v2376 = vshrl.u32 %v1935, 16
      %v2378 = vor.u32 %v2376, %v2374
      %v2380 = vshll.u32 %v1936, 16
      %v2382 = vrot.slane %v2380, 1
      %v2383 = vsel %vm2267, %v2378, %v2382
      %v2384 = vshrl.u32 %v1936, 16
      %v2386 = vor.u32 %v2384, %v2382
      %v2388 = vshll.u32 %v1937, 16
      %v2390 = vrot.slane %v2388, 1
      %v2391 = vsel %vm2267, %v2386, %v2390
      %v2392 = vshrl.u32 %v1937, 16
      %v2394 = vor.u32 %v2392, %v2390
      %v2396 = vshll.u32 %v1938, 16
      %v2398 = vrot.slane %v2396, 1
      %v2399 = vsel %vm2267, %v2394, %v2398
      %v2400 = vshrl.u32 %v1938, 16
      %v2402 = vor.u32 %v2400, %v2398
      %v2404 = vshll.u32 %v1939, 16
      %v2406 = vrot.slane %v2404, 1
      %v2407 = vsel %vm2267, %v2402, %v2406
      %v2408 = vshrl.u32 %v1939, 16
      %v2410 = vor.u32 %v2408, %v2406
      %v2412 = vshll.u32 %v1940, 16
      %v2414 = vrot.slane %v2412, 1
      %v2415 = vsel %vm2267, %v2410, %v2414
      %v2416 = vshrl.u32 %v1940, 16
      %v2418 = vor.u32 %v2416, %v2414
      %v2420 = vshll.u32 %v1941, 16
      %v2422 = vrot.slane %v2420, 1
      %v2423 = vsel %vm2267, %v2418, %v2422
      %v2424 = vshrl.u32 %v1941, 16
      %v2426 = vor.u32 %v2424, %v2422
      %v2428 = vshll.u32 %v2249, 16
      %v2430 = vrot.slane %v2428, 1
      %v2431 = vsel %vm2267, %v2426, %v2430
      %v2432 = vshrl.u32 %v2249, 16
      %v2434 = vor.u32 %v2432, %v2430
      %v2472 = vunpack.c.l.b16 %v2251
      %v2473 = vunpack.c.l.b16 %v2252
      %v2474 = vunpack.c.l.b16 %v2253
      %v2475 = vunpack.c.l.b16 %v2254
      %v2476 = vunpack.c.l.b16 %v2255
      %v2477 = vunpack.c.l.b16 %v2256
      %v2478 = vunpack.c.l.b16 %v2257
      %v2479 = vunpack.c.l.b16 %v2258
      %v2480 = vunpack.c.l.b16 %v2259
      %v2481 = vunpack.c.l.b16 %v2260
      %v2482 = vunpack.c.l.b16 %v2261
      %v2483 = vunpack.c.l.b16 %v2262
      %v2484 = vunpack.c.l.b16 %v2263
      %v2485 = vunpack.c.l.b16 %v2264
      %v2486 = vunpack.c.l.b16 %v2265
      %v2487 = vunpack.c.l.b16 %v2266
      %v2488 = vpack.c.b16 %v2473, %v2472
      %v2489 = vpack.c.b16 %v2475, %v2474
      %v2490 = vpack.c.b16 %v2477, %v2476
      %v2491 = vpack.c.b16 %v2479, %v2478
      %v2492 = vpack.c.b16 %v2481, %v2480
      %v2493 = vpack.c.b16 %v2483, %v2482
      %v2494 = vpack.c.b16 %v2485, %v2484
      %v2495 = vpack.c.b16 %v2487, %v2486
      %2504 = vmatprep.subr.bf16.mxu0 0
      %2505 = vmatpush1.bf16.msra.mxu0 %v2495
      %2506 = vmatprep.subr.bf16.mxu0 0
      %2507 = vmatpush1.bf16.msra.mxu0 %v2494
      %2508 = vmatprep.subr.bf16.mxu0 0
      %2509 = vmatpush1.bf16.msra.mxu0 %v2493
      %2510 = vmatprep.subr.bf16.mxu0 0
      %2511 = vmatpush1.bf16.msra.mxu0 %v2492
      %2512 = vmatprep.subr.bf16.mxu0 0
      %2513 = vmatpush1.bf16.msra.mxu0 %v2491
      %2514 = vmatprep.subr.bf16.mxu0 0
      %2515 = vmatpush1.bf16.msra.mxu0 %v2490
      %2516 = vmatprep.subr.bf16.mxu0 0
      %2517 = vmatpush1.bf16.msra.mxu0 %v2489
      %2518 = vmatprep.subr.bf16.mxu0 0
      %2519 = vmatpush1.bf16.msra.mxu0 %v2488
      %2520 = vmatprep.subr.bf16.mxu0 0
      %2521 = vmatpush2.bf16.msra.mxu0 0
      %2522 = vmatprep.subr.bf16.mxu0 0
      %2523 = vmatpush2.bf16.msra.mxu0 0
      %2524 = vmatprep.subr.bf16.mxu0 0
      %2525 = vmatpush2.bf16.msra.mxu0 0
      %2526 = vmatprep.subr.bf16.mxu0 0
      %2527 = vmatpush2.bf16.msra.mxu0 0
      %2528 = vmatprep.subr.bf16.mxu0 0
      %2529 = vmatpush2.bf16.msra.mxu0 0
      %2530 = vmatprep.subr.bf16.mxu0 0
      %2531 = vmatpush2.bf16.msra.mxu0 0
      %2532 = vmatprep.subr.bf16.mxu0 0
      %2533 = vmatpush2.bf16.msra.mxu0 0
      %2534 = vmatprep.subr.bf16.mxu0 0
      %2535 = vmatpush2.bf16.msra.mxu0 0
      %2536 = vmatprep.mubr.bf16.mxu0 0
      %2537 = vmatmul.mubr.bf16.gmra.mxu0 %v2279
      %v2538 = vpop.f32.mrf.mxu0
      %v2539 = vadd.f32 0.0, %v2538
      %v2540 = vpop.f32.mrf.mxu0
      %v2541 = vpop.f32.mrf.mxu0
      %v2542 = vadd.f32 0.0, %v2541
      %v2543 = vpop.f32.mrf.mxu0
      %2544 = vmatprep.mubr.bf16.mxu0 0
      %2545 = vmatmul.mubr.bf16.gmra.mxu0 %v2287
      %v2546 = vpop.f32.mrf.mxu0
      %v2547 = vadd.f32 0.0, %v2546
      %v2548 = vpop.f32.mrf.mxu0
      %v2549 = vpop.f32.mrf.mxu0
      %v2550 = vadd.f32 0.0, %v2549
      %v2551 = vpop.f32.mrf.mxu0
      %2552 = vmatprep.mubr.bf16.mxu0 0
      %2553 = vmatmul.mubr.bf16.gmra.mxu0 %v2295
      %v2554 = vpop.f32.mrf.mxu0
      %v2555 = vadd.f32 0.0, %v2554
      %v2556 = vpop.f32.mrf.mxu0
      %v2557 = vpop.f32.mrf.mxu0
      %v2558 = vadd.f32 0.0, %v2557
      %v2559 = vpop.f32.mrf.mxu0
      %2560 = vmatprep.mubr.bf16.mxu0 0
      %2561 = vmatmul.mubr.bf16.gmra.mxu0 %v2303
      %v2562 = vpop.f32.mrf.mxu0
      %v2563 = vadd.f32 0.0, %v2562
      %v2564 = vpop.f32.mrf.mxu0
      %v2565 = vpop.f32.mrf.mxu0
      %v2566 = vadd.f32 0.0, %v2565
      %v2567 = vpop.f32.mrf.mxu0
      %2568 = vmatprep.mubr.bf16.mxu0 0
      %2569 = vmatmul.mubr.bf16.gmra.mxu0 %v2311
      %v2570 = vpop.f32.mrf.mxu0
      %v2571 = vadd.f32 0.0, %v2570
      %v2572 = vpop.f32.mrf.mxu0
      %v2573 = vpop.f32.mrf.mxu0
      %v2574 = vadd.f32 0.0, %v2573
      %v2575 = vpop.f32.mrf.mxu0
      %2576 = vmatprep.mubr.bf16.mxu0 0
      %2577 = vmatmul.mubr.bf16.gmra.mxu0 %v2319
      %v2578 = vpop.f32.mrf.mxu0
      %v2579 = vadd.f32 0.0, %v2578
      %v2580 = vpop.f32.mrf.mxu0
      %v2581 = vpop.f32.mrf.mxu0
      %v2582 = vadd.f32 0.0, %v2581
      %v2583 = vpop.f32.mrf.mxu0
      %2584 = vmatprep.mubr.bf16.mxu0 0
      %2585 = vmatmul.mubr.bf16.gmra.mxu0 %v2327
      %v2586 = vpop.f32.mrf.mxu0
      %v2587 = vadd.f32 0.0, %v2586
      %v2588 = vpop.f32.mrf.mxu0
      %v2589 = vpop.f32.mrf.mxu0
      %v2590 = vadd.f32 0.0, %v2589
      %v2591 = vpop.f32.mrf.mxu0
      %2592 = vmatprep.mubr.bf16.mxu0 0
      %2593 = vmatmul.mubr.bf16.gmra.mxu0 %v2335
      %v2594 = vpop.f32.mrf.mxu0
      %v2595 = vadd.f32 0.0, %v2594
      %v2596 = vpop.f32.mrf.mxu0
      %v2597 = vpop.f32.mrf.mxu0
      %v2598 = vadd.f32 0.0, %v2597
      %v2599 = vpop.f32.mrf.mxu0
      %2600 = vmatprep.mubr.bf16.mxu0 0
      %2601 = vmatmul.mubr.bf16.gmra.mxu0 %v2343
      %v2602 = vpop.f32.mrf.mxu0
      %v2603 = vadd.f32 0.0, %v2602
      %v2604 = vpop.f32.mrf.mxu0
      %v2605 = vpop.f32.mrf.mxu0
      %v2606 = vadd.f32 0.0, %v2605
      %v2607 = vpop.f32.mrf.mxu0
      %2608 = vmatprep.mubr.bf16.mxu0 0
      %2609 = vmatmul.mubr.bf16.gmra.mxu0 %v2351
      %v2610 = vpop.f32.mrf.mxu0
      %v2611 = vadd.f32 0.0, %v2610
      %v2612 = vpop.f32.mrf.mxu0
      %v2613 = vpop.f32.mrf.mxu0
      %v2614 = vadd.f32 0.0, %v2613
      %v2615 = vpop.f32.mrf.mxu0
      %2616 = vmatprep.mubr.bf16.mxu0 0
      %2617 = vmatmul.mubr.bf16.gmra.mxu0 %v2359
      %v2618 = vpop.f32.mrf.mxu0
      %v2619 = vadd.f32 0.0, %v2618
      %v2620 = vpop.f32.mrf.mxu0
      %v2621 = vpop.f32.mrf.mxu0
      %v2622 = vadd.f32 0.0, %v2621
      %v2623 = vpop.f32.mrf.mxu0
      %2624 = vmatprep.mubr.bf16.mxu0 0
      %2625 = vmatmul.mubr.bf16.gmra.mxu0 %v2367
      %v2626 = vpop.f32.mrf.mxu0
      %v2627 = vadd.f32 0.0, %v2626
      %v2628 = vpop.f32.mrf.mxu0
      %v2629 = vpop.f32.mrf.mxu0
      %v2630 = vadd.f32 0.0, %v2629
      %v2631 = vpop.f32.mrf.mxu0
      %2632 = vmatprep.mubr.bf16.mxu0 0
      %2633 = vmatmul.mubr.bf16.gmra.mxu0 %v2375
      %v2634 = vpop.f32.mrf.mxu0
      %v2635 = vadd.f32 0.0, %v2634
      %v2636 = vpop.f32.mrf.mxu0
      %v2637 = vpop.f32.mrf.mxu0
      %v2638 = vadd.f32 0.0, %v2637
      %v2639 = vpop.f32.mrf.mxu0
      %2640 = vmatprep.mubr.bf16.mxu0 0
      %2641 = vmatmul.mubr.bf16.gmra.mxu0 %v2383
      %v2642 = vpop.f32.mrf.mxu0
      %v2643 = vadd.f32 0.0, %v2642
      %v2644 = vpop.f32.mrf.mxu0
      %v2645 = vpop.f32.mrf.mxu0
      %v2646 = vadd.f32 0.0, %v2645
      %v2647 = vpop.f32.mrf.mxu0
      %2648 = vmatprep.mubr.bf16.mxu0 0
      %2649 = vmatmul.mubr.bf16.gmra.mxu0 %v2391
      %v2650 = vpop.f32.mrf.mxu0
      %v2651 = vadd.f32 0.0, %v2650
      %v2652 = vpop.f32.mrf.mxu0
      %v2653 = vpop.f32.mrf.mxu0
      %v2654 = vadd.f32 0.0, %v2653
      %v2655 = vpop.f32.mrf.mxu0
      %2656 = vmatprep.mubr.bf16.mxu0 0
      %2657 = vmatmul.mubr.bf16.gmra.mxu0 %v2399
      %v2658 = vpop.f32.mrf.mxu0
      %v2659 = vadd.f32 0.0, %v2658
      %v2660 = vpop.f32.mrf.mxu0
      %v2661 = vpop.f32.mrf.mxu0
      %v2662 = vadd.f32 0.0, %v2661
      %v2663 = vpop.f32.mrf.mxu0
      %2664 = vmatprep.mubr.bf16.mxu0 0
      %2665 = vmatmul.mubr.bf16.gmra.mxu0 %v2407
      %v2666 = vpop.f32.mrf.mxu0
      %v2667 = vadd.f32 0.0, %v2666
      %v2668 = vpop.f32.mrf.mxu0
      %v2669 = vpop.f32.mrf.mxu0
      %v2670 = vadd.f32 0.0, %v2669
      %v2671 = vpop.f32.mrf.mxu0
      %2672 = vmatprep.mubr.bf16.mxu0 0
      %2673 = vmatmul.mubr.bf16.gmra.mxu0 %v2415
      %v2674 = vpop.f32.mrf.mxu0
      %v2675 = vadd.f32 0.0, %v2674
      %v2676 = vpop.f32.mrf.mxu0
      %v2677 = vpop.f32.mrf.mxu0
      %v2678 = vadd.f32 0.0, %v2677
      %v2679 = vpop.f32.mrf.mxu0
      %2680 = vmatprep.mubr.bf16.mxu0 0
      %2681 = vmatmul.mubr.bf16.gmra.mxu0 %v2423
      %v2682 = vpop.f32.mrf.mxu0
      %v2683 = vadd.f32 0.0, %v2682
      %v2684 = vpop.f32.mrf.mxu0
      %v2685 = vpop.f32.mrf.mxu0
      %v2686 = vadd.f32 0.0, %v2685
      %v2687 = vpop.f32.mrf.mxu0
      %2688 = vmatprep.mubr.bf16.mxu0 0
      %2689 = vmatmul.mubr.bf16.gmra.mxu0 %v2431
      %v2690 = vpop.f32.mrf.mxu0
      %v2691 = vadd.f32 0.0, %v2690
      %v2692 = vpop.f32.mrf.mxu0
      %v2693 = vpop.f32.mrf.mxu0
      %v2694 = vadd.f32 0.0, %v2693
      %v2695 = vpop.f32.mrf.mxu0
      %2696 = vmatprep.mubr.bf16.mxu0 0
      %2697 = vmatmul.mubr.bf16.gmra.mxu0 %v2434
      %v2698 = vpop.f32.mrf.mxu0
      %v2699 = vadd.f32 0.0, %v2698
      %v2700 = vpop.f32.mrf.mxu0
      %v2701 = vpop.f32.mrf.mxu0
      %v2702 = vpop.f32.mrf.mxu0
      %2703 = vdwg.mxu0
      %v2704 = vadd.f32 %v2208, %v2539
      %v2705 = vadd.f32 %v2209, %v2542
      %v2706 = vadd.f32 %v2210, %v2547
      %v2707 = vadd.f32 %v2211, %v2550
      %v2708 = vadd.f32 %v2212, %v2555
      %v2709 = vadd.f32 %v2213, %v2558
      %v2710 = vadd.f32 %v2214, %v2563
      %v2711 = vadd.f32 %v2215, %v2566
      %v2712 = vadd.f32 %v2216, %v2571
      %v2713 = vadd.f32 %v2217, %v2574
      %v2714 = vadd.f32 %v2218, %v2579
      %v2715 = vadd.f32 %v2219, %v2582
      %v2716 = vadd.f32 %v2220, %v2587
      %v2717 = vadd.f32 %v2221, %v2590
      %v2718 = vadd.f32 %v2222, %v2595
      %v2719 = vadd.f32 %v2223, %v2598
      %v2720 = vadd.f32 %v2224, %v2603
      %v2721 = vadd.f32 %v2225, %v2606
      %v2722 = vadd.f32 %v2226, %v2611
      %v2723 = vadd.f32 %v2227, %v2614
      %v2724 = vadd.f32 %v2228, %v2619
      %v2725 = vadd.f32 %v2229, %v2622
      %v2726 = vadd.f32 %v2230, %v2627
      %v2727 = vadd.f32 %v2231, %v2630
      %v2728 = vadd.f32 %v2232, %v2635
      %v2729 = vadd.f32 %v2233, %v2638
      %v2730 = vadd.f32 %v2234, %v2643
      %v2731 = vadd.f32 %v2235, %v2646
      %v2732 = vadd.f32 %v2236, %v2651
      %v2733 = vadd.f32 %v2237, %v2654
      %v2734 = vadd.f32 %v2238, %v2659
      %v2735 = vadd.f32 %v2239, %v2662
      %v2736 = vadd.f32 %v2240, %v2667
      %v2737 = vadd.f32 %v2241, %v2670
      %v2738 = vadd.f32 %v2242, %v2675
      %v2739 = vadd.f32 %v2243, %v2678
      %v2740 = vadd.f32 %v2244, %v2683
      %v2741 = vadd.f32 %v2245, %v2686
      %v2742 = vadd.f32 %v2246, %v2691
      %v2743 = vadd.f32 %v2247, %v2694
      %v2744 = vadd.f32 %v2248, %v2699
      %v2745 = vpack.c.bf16 %v348, %v347
      %s2746 = scalar_lea.vmem %s1, 384
      %v2747 = vld [vmem:[%s2746] sm:$0xf]
      %v2748 = vld [vmem:[%s2746 + $0x4] sm:$0xf]
      %v2749 = vld [vmem:[%s2746 + $0x8] sm:$0xf]
      %v2750 = vld [vmem:[%s2746 + $0xc] sm:$0xf]
      %v2751 = vld [vmem:[%s2746 + $0x10] sm:$0xf]
      %v2752 = vld [vmem:[%s2746 + $0x14] sm:$0xf]
      %v2753 = vld [vmem:[%s2746 + $0x18] sm:$0xf]
      %v2754 = vld [vmem:[%s2746 + $0x1c] sm:$0xf]
      %v2755 = vld [vmem:[%s2746 + $0x20] sm:$0xf]
      %v2756 = vld [vmem:[%s2746 + $0x24] sm:$0xf]
      %v2757 = vld [vmem:[%s2746 + $0x28] sm:$0xf]
      %v2758 = vld [vmem:[%s2746 + $0x2c] sm:$0xf]
      %v2759 = vld [vmem:[%s2746 + $0x30] sm:$0xf]
      %v2760 = vld [vmem:[%s2746 + $0x34] sm:$0xf]
      %v2761 = vld [vmem:[%s2746 + $0x38] sm:$0xf]
      %v2762 = vld [vmem:[%s2746 + $0x3c] sm:$0xf]
      %v2764 = vshll.u32 %v2745, 16
      %v2766 = vrot.slane %v2764, 1
      %v2767 = vsel %vm2267, %v2434, %v2766
      %v2768 = vshrl.u32 %v2745, 16
      %v2770 = vor.u32 %v2768, %v2766
      %v2789 = vunpack.c.l.b16 %v2747
      %v2790 = vunpack.c.l.b16 %v2748
      %v2791 = vunpack.c.l.b16 %v2749
      %v2792 = vunpack.c.l.b16 %v2750
      %v2793 = vunpack.c.l.b16 %v2751
      %v2794 = vunpack.c.l.b16 %v2752
      %v2795 = vunpack.c.l.b16 %v2753
      %v2796 = vunpack.c.l.b16 %v2754
      %v2797 = vunpack.c.l.b16 %v2755
      %v2798 = vunpack.c.l.b16 %v2756
      %v2799 = vunpack.c.l.b16 %v2757
      %v2800 = vunpack.c.l.b16 %v2758
      %v2801 = vunpack.c.l.b16 %v2759
      %v2802 = vunpack.c.l.b16 %v2760
      %v2803 = vunpack.c.l.b16 %v2761
      %v2804 = vunpack.c.l.b16 %v2762
      %v2805 = vpack.c.b16 %v2790, %v2789
      %v2806 = vpack.c.b16 %v2792, %v2791
      %v2807 = vpack.c.b16 %v2794, %v2793
      %v2808 = vpack.c.b16 %v2796, %v2795
      %v2809 = vpack.c.b16 %v2798, %v2797
      %v2810 = vpack.c.b16 %v2800, %v2799
      %v2811 = vpack.c.b16 %v2802, %v2801
      %v2812 = vpack.c.b16 %v2804, %v2803
      %2821 = vmatprep.subr.bf16.mxu0 0
      %2822 = vmatpush1.bf16.msra.mxu0 %v2812
      %2823 = vmatprep.subr.bf16.mxu0 0
      %2824 = vmatpush1.bf16.msra.mxu0 %v2811
      %2825 = vmatprep.subr.bf16.mxu0 0
      %2826 = vmatpush1.bf16.msra.mxu0 %v2810
      %2827 = vmatprep.subr.bf16.mxu0 0
      %2828 = vmatpush1.bf16.msra.mxu0 %v2809
      %2829 = vmatprep.subr.bf16.mxu0 0
      %2830 = vmatpush1.bf16.msra.mxu0 %v2808
      %2831 = vmatprep.subr.bf16.mxu0 0
      %2832 = vmatpush1.bf16.msra.mxu0 %v2807
      %2833 = vmatprep.subr.bf16.mxu0 0
      %2834 = vmatpush1.bf16.msra.mxu0 %v2806
      %2835 = vmatprep.subr.bf16.mxu0 0
      %2836 = vmatpush1.bf16.msra.mxu0 %v2805
      %2837 = vmatprep.subr.bf16.mxu0 0
      %2838 = vmatpush2.bf16.msra.mxu0 0
      %2839 = vmatprep.subr.bf16.mxu0 0
      %2840 = vmatpush2.bf16.msra.mxu0 0
      %2841 = vmatprep.subr.bf16.mxu0 0
      %2842 = vmatpush2.bf16.msra.mxu0 0
      %2843 = vmatprep.subr.bf16.mxu0 0
      %2844 = vmatpush2.bf16.msra.mxu0 0
      %2845 = vmatprep.subr.bf16.mxu0 0
      %2846 = vmatpush2.bf16.msra.mxu0 0
      %2847 = vmatprep.subr.bf16.mxu0 0
      %2848 = vmatpush2.bf16.msra.mxu0 0
      %2849 = vmatprep.subr.bf16.mxu0 0
      %2850 = vmatpush2.bf16.msra.mxu0 0
      %2851 = vmatprep.subr.bf16.mxu0 0
      %2852 = vmatpush2.bf16.msra.mxu0 0
      %2853 = vmatprep.mubr.bf16.mxu0 0
      %2854 = vmatmul.mubr.bf16.gmra.mxu0 %v2287
      %v2855 = vpop.f32.mrf.mxu0
      %v2856 = vadd.f32 0.0, %v2855
      %v2857 = vpop.f32.mrf.mxu0
      %v2858 = vpop.f32.mrf.mxu0
      %v2859 = vadd.f32 0.0, %v2858
      %v2860 = vpop.f32.mrf.mxu0
      %2861 = vmatprep.mubr.bf16.mxu0 0
      %2862 = vmatmul.mubr.bf16.gmra.mxu0 %v2295
      %v2863 = vpop.f32.mrf.mxu0
      %v2864 = vadd.f32 0.0, %v2863
      %v2865 = vpop.f32.mrf.mxu0
      %v2866 = vpop.f32.mrf.mxu0
      %v2867 = vadd.f32 0.0, %v2866
      %v2868 = vpop.f32.mrf.mxu0
      %2869 = vmatprep.mubr.bf16.mxu0 0
      %2870 = vmatmul.mubr.bf16.gmra.mxu0 %v2303
      %v2871 = vpop.f32.mrf.mxu0
      %v2872 = vadd.f32 0.0, %v2871
      %v2873 = vpop.f32.mrf.mxu0
      %v2874 = vpop.f32.mrf.mxu0
      %v2875 = vadd.f32 0.0, %v2874
      %v2876 = vpop.f32.mrf.mxu0
      %2877 = vmatprep.mubr.bf16.mxu0 0
      %2878 = vmatmul.mubr.bf16.gmra.mxu0 %v2311
      %v2879 = vpop.f32.mrf.mxu0
      %v2880 = vadd.f32 0.0, %v2879
      %v2881 = vpop.f32.mrf.mxu0
      %v2882 = vpop.f32.mrf.mxu0
      %v2883 = vadd.f32 0.0, %v2882
      %v2884 = vpop.f32.mrf.mxu0
      %2885 = vmatprep.mubr.bf16.mxu0 0
      %2886 = vmatmul.mubr.bf16.gmra.mxu0 %v2319
      %v2887 = vpop.f32.mrf.mxu0
      %v2888 = vadd.f32 0.0, %v2887
      %v2889 = vpop.f32.mrf.mxu0
      %v2890 = vpop.f32.mrf.mxu0
      %v2891 = vadd.f32 0.0, %v2890
      %v2892 = vpop.f32.mrf.mxu0
      %2893 = vmatprep.mubr.bf16.mxu0 0
      %2894 = vmatmul.mubr.bf16.gmra.mxu0 %v2327
      %v2895 = vpop.f32.mrf.mxu0
      %v2896 = vadd.f32 0.0, %v2895
      %v2897 = vpop.f32.mrf.mxu0
      %v2898 = vpop.f32.mrf.mxu0
      %v2899 = vadd.f32 0.0, %v2898
      %v2900 = vpop.f32.mrf.mxu0
      %2901 = vmatprep.mubr.bf16.mxu0 0
      %2902 = vmatmul.mubr.bf16.gmra.mxu0 %v2335
      %v2903 = vpop.f32.mrf.mxu0
      %v2904 = vadd.f32 0.0, %v2903
      %v2905 = vpop.f32.mrf.mxu0
      %v2906 = vpop.f32.mrf.mxu0
      %v2907 = vadd.f32 0.0, %v2906
      %v2908 = vpop.f32.mrf.mxu0
      %2909 = vmatprep.mubr.bf16.mxu0 0
      %2910 = vmatmul.mubr.bf16.gmra.mxu0 %v2343
      %v2911 = vpop.f32.mrf.mxu0
      %v2912 = vadd.f32 0.0, %v2911
      %v2913 = vpop.f32.mrf.mxu0
      %v2914 = vpop.f32.mrf.mxu0
      %v2915 = vadd.f32 0.0, %v2914
      %v2916 = vpop.f32.mrf.mxu0
      %2917 = vmatprep.mubr.bf16.mxu0 0
      %2918 = vmatmul.mubr.bf16.gmra.mxu0 %v2351
      %v2919 = vpop.f32.mrf.mxu0
      %v2920 = vadd.f32 0.0, %v2919
      %v2921 = vpop.f32.mrf.mxu0
      %v2922 = vpop.f32.mrf.mxu0
      %v2923 = vadd.f32 0.0, %v2922
      %v2924 = vpop.f32.mrf.mxu0
      %2925 = vmatprep.mubr.bf16.mxu0 0
      %2926 = vmatmul.mubr.bf16.gmra.mxu0 %v2359
      %v2927 = vpop.f32.mrf.mxu0
      %v2928 = vadd.f32 0.0, %v2927
      %v2929 = vpop.f32.mrf.mxu0
      %v2930 = vpop.f32.mrf.mxu0
      %v2931 = vadd.f32 0.0, %v2930
      %v2932 = vpop.f32.mrf.mxu0
      %2933 = vmatprep.mubr.bf16.mxu0 0
      %2934 = vmatmul.mubr.bf16.gmra.mxu0 %v2367
      %v2935 = vpop.f32.mrf.mxu0
      %v2936 = vadd.f32 0.0, %v2935
      %v2937 = vpop.f32.mrf.mxu0
      %v2938 = vpop.f32.mrf.mxu0
      %v2939 = vadd.f32 0.0, %v2938
      %v2940 = vpop.f32.mrf.mxu0
      %2941 = vmatprep.mubr.bf16.mxu0 0
      %2942 = vmatmul.mubr.bf16.gmra.mxu0 %v2375
      %v2943 = vpop.f32.mrf.mxu0
      %v2944 = vadd.f32 0.0, %v2943
      %v2945 = vpop.f32.mrf.mxu0
      %v2946 = vpop.f32.mrf.mxu0
      %v2947 = vadd.f32 0.0, %v2946
      %v2948 = vpop.f32.mrf.mxu0
      %2949 = vmatprep.mubr.bf16.mxu0 0
      %2950 = vmatmul.mubr.bf16.gmra.mxu0 %v2383
      %v2951 = vpop.f32.mrf.mxu0
      %v2952 = vadd.f32 0.0, %v2951
      %v2953 = vpop.f32.mrf.mxu0
      %v2954 = vpop.f32.mrf.mxu0
      %v2955 = vadd.f32 0.0, %v2954
      %v2956 = vpop.f32.mrf.mxu0
      %2957 = vmatprep.mubr.bf16.mxu0 0
      %2958 = vmatmul.mubr.bf16.gmra.mxu0 %v2391
      %v2959 = vpop.f32.mrf.mxu0
      %v2960 = vadd.f32 0.0, %v2959
      %v2961 = vpop.f32.mrf.mxu0
      %v2962 = vpop.f32.mrf.mxu0
      %v2963 = vadd.f32 0.0, %v2962
      %v2964 = vpop.f32.mrf.mxu0
      %2965 = vmatprep.mubr.bf16.mxu0 0
      %2966 = vmatmul.mubr.bf16.gmra.mxu0 %v2399
      %v2967 = vpop.f32.mrf.mxu0
      %v2968 = vadd.f32 0.0, %v2967
      %v2969 = vpop.f32.mrf.mxu0
      %v2970 = vpop.f32.mrf.mxu0
      %v2971 = vadd.f32 0.0, %v2970
      %v2972 = vpop.f32.mrf.mxu0
      %2973 = vmatprep.mubr.bf16.mxu0 0
      %2974 = vmatmul.mubr.bf16.gmra.mxu0 %v2407
      %v2975 = vpop.f32.mrf.mxu0
      %v2976 = vadd.f32 0.0, %v2975
      %v2977 = vpop.f32.mrf.mxu0
      %v2978 = vpop.f32.mrf.mxu0
      %v2979 = vadd.f32 0.0, %v2978
      %v2980 = vpop.f32.mrf.mxu0
      %2981 = vmatprep.mubr.bf16.mxu0 0
      %2982 = vmatmul.mubr.bf16.gmra.mxu0 %v2415
      %v2983 = vpop.f32.mrf.mxu0
      %v2984 = vadd.f32 0.0, %v2983
      %v2985 = vpop.f32.mrf.mxu0
      %v2986 = vpop.f32.mrf.mxu0
      %v2987 = vadd.f32 0.0, %v2986
      %v2988 = vpop.f32.mrf.mxu0
      %2989 = vmatprep.mubr.bf16.mxu0 0
      %2990 = vmatmul.mubr.bf16.gmra.mxu0 %v2423
      %v2991 = vpop.f32.mrf.mxu0
      %v2992 = vadd.f32 0.0, %v2991
      %v2993 = vpop.f32.mrf.mxu0
      %v2994 = vpop.f32.mrf.mxu0
      %v2995 = vadd.f32 0.0, %v2994
      %v2996 = vpop.f32.mrf.mxu0
      %2997 = vmatprep.mubr.bf16.mxu0 0
      %2998 = vmatmul.mubr.bf16.gmra.mxu0 %v2431
      %v2999 = vpop.f32.mrf.mxu0
      %v3000 = vadd.f32 0.0, %v2999
      %v3001 = vpop.f32.mrf.mxu0
      %v3002 = vpop.f32.mrf.mxu0
      %v3003 = vadd.f32 0.0, %v3002
      %v3004 = vpop.f32.mrf.mxu0
      %3005 = vmatprep.mubr.bf16.mxu0 0
      %3006 = vmatmul.mubr.bf16.gmra.mxu0 %v2767
      %v3007 = vpop.f32.mrf.mxu0
      %v3008 = vadd.f32 0.0, %v3007
      %v3009 = vpop.f32.mrf.mxu0
      %v3010 = vpop.f32.mrf.mxu0
      %v3011 = vadd.f32 0.0, %v3010
      %v3012 = vpop.f32.mrf.mxu0
      %3013 = vmatprep.mubr.bf16.mxu0 0
      %3014 = vmatmul.mubr.bf16.gmra.mxu0 %v2770
      %v3015 = vpop.f32.mrf.mxu0
      %v3016 = vadd.f32 0.0, %v3015
      %v3017 = vpop.f32.mrf.mxu0
      %v3018 = vpop.f32.mrf.mxu0
      %v3019 = vpop.f32.mrf.mxu0
      %3020 = vdwg.mxu0
      %v3021 = vadd.f32 %v2704, %v2856
      %v3022 = vadd.f32 %v2705, %v2859
      %v3023 = vadd.f32 %v2706, %v2864
      %v3024 = vadd.f32 %v2707, %v2867
      %v3025 = vadd.f32 %v2708, %v2872
      %v3026 = vadd.f32 %v2709, %v2875
      %v3027 = vadd.f32 %v2710, %v2880
      %v3028 = vadd.f32 %v2711, %v2883
      %v3029 = vadd.f32 %v2712, %v2888
      %v3030 = vadd.f32 %v2713, %v2891
      %v3031 = vadd.f32 %v2714, %v2896
      %v3032 = vadd.f32 %v2715, %v2899
      %v3033 = vadd.f32 %v2716, %v2904
      %v3034 = vadd.f32 %v2717, %v2907
      %v3035 = vadd.f32 %v2718, %v2912
      %v3036 = vadd.f32 %v2719, %v2915
      %v3037 = vadd.f32 %v2720, %v2920
      %v3038 = vadd.f32 %v2721, %v2923
      %v3039 = vadd.f32 %v2722, %v2928
      %v3040 = vadd.f32 %v2723, %v2931
      %v3041 = vadd.f32 %v2724, %v2936
      %v3042 = vadd.f32 %v2725, %v2939
      %v3043 = vadd.f32 %v2726, %v2944
      %v3044 = vadd.f32 %v2727, %v2947
      %v3045 = vadd.f32 %v2728, %v2952
      %v3046 = vadd.f32 %v2729, %v2955
      %v3047 = vadd.f32 %v2730, %v2960
      %v3048 = vadd.f32 %v2731, %v2963
      %v3049 = vadd.f32 %v2732, %v2968
      %v3050 = vadd.f32 %v2733, %v2971
      %v3051 = vadd.f32 %v2734, %v2976
      %v3052 = vadd.f32 %v2735, %v2979
      %v3053 = vadd.f32 %v2736, %v2984
      %v3054 = vadd.f32 %v2737, %v2987
      %v3055 = vadd.f32 %v2738, %v2992
      %v3056 = vadd.f32 %v2739, %v2995
      %v3057 = vadd.f32 %v2740, %v3000
      %v3058 = vadd.f32 %v2741, %v3003
      %v3059 = vadd.f32 %v2742, %v3008
      %v3060 = vadd.f32 %v2743, %v3011
      %v3061 = vadd.f32 %v2744, %v3016
      %s3062 = scalar_lea.vmem %s1, 448
      %v3063 = vld [vmem:[%s3062] sm:$0xf]
      %v3064 = vld [vmem:[%s3062 + $0x4] sm:$0xf]
      %v3065 = vld [vmem:[%s3062 + $0x8] sm:$0xf]
      %v3066 = vld [vmem:[%s3062 + $0xc] sm:$0xf]
      %v3067 = vld [vmem:[%s3062 + $0x10] sm:$0xf]
      %v3068 = vld [vmem:[%s3062 + $0x14] sm:$0xf]
      %v3069 = vld [vmem:[%s3062 + $0x18] sm:$0xf]
      %v3070 = vld [vmem:[%s3062 + $0x1c] sm:$0xf]
      %v3071 = vld [vmem:[%s3062 + $0x20] sm:$0xf]
      %v3072 = vld [vmem:[%s3062 + $0x24] sm:$0xf]
      %v3073 = vld [vmem:[%s3062 + $0x28] sm:$0xf]
      %v3074 = vld [vmem:[%s3062 + $0x2c] sm:$0xf]
      %v3075 = vld [vmem:[%s3062 + $0x30] sm:$0xf]
      %v3076 = vld [vmem:[%s3062 + $0x34] sm:$0xf]
      %v3077 = vld [vmem:[%s3062 + $0x38] sm:$0xf]
      %v3078 = vld [vmem:[%s3062 + $0x3c] sm:$0xf]
      %vm3100 = vcmask 1046528
      %v3101 = vrot.slane %v1923, 1
      %v3102 = vrot.slane %v1924, 1
      %v3103 = vsel %vm3100, %v3101, %v3102
      %v3104 = vrot.slane %v1925, 1
      %v3105 = vsel %vm3100, %v3102, %v3104
      %v3106 = vrot.slane %v1926, 1
      %v3107 = vsel %vm3100, %v3104, %v3106
      %v3108 = vrot.slane %v1927, 1
      %v3109 = vsel %vm3100, %v3106, %v3108
      %v3110 = vrot.slane %v1928, 1
      %v3111 = vsel %vm3100, %v3108, %v3110
      %v3112 = vrot.slane %v1929, 1
      %v3113 = vsel %vm3100, %v3110, %v3112
      %v3114 = vrot.slane %v1930, 1
      %v3115 = vsel %vm3100, %v3112, %v3114
      %v3116 = vrot.slane %v1931, 1
      %v3117 = vsel %vm3100, %v3114, %v3116
      %v3118 = vrot.slane %v1932, 1
      %v3119 = vsel %vm3100, %v3116, %v3118
      %v3120 = vrot.slane %v1933, 1
      %v3121 = vsel %vm3100, %v3118, %v3120
      %v3122 = vrot.slane %v1934, 1
      %v3123 = vsel %vm3100, %v3120, %v3122
      %v3124 = vrot.slane %v1935, 1
      %v3125 = vsel %vm3100, %v3122, %v3124
      %v3126 = vrot.slane %v1936, 1
      %v3127 = vsel %vm3100, %v3124, %v3126
      %v3128 = vrot.slane %v1937, 1
      %v3129 = vsel %vm3100, %v3126, %v3128
      %v3130 = vrot.slane %v1938, 1
      %v3131 = vsel %vm3100, %v3128, %v3130
      %v3132 = vrot.slane %v1939, 1
      %v3133 = vsel %vm3100, %v3130, %v3132
      %v3134 = vrot.slane %v1940, 1
      %v3135 = vsel %vm3100, %v3132, %v3134
      %v3136 = vrot.slane %v1941, 1
      %v3137 = vsel %vm3100, %v3134, %v3136
      %v3138 = vrot.slane %v2249, 1
      %v3139 = vsel %vm3100, %v3136, %v3138
      %v3140 = vrot.slane %v2745, 1
      %v3141 = vsel %vm3100, %v3138, %v3140
      %v3179 = vunpack.c.l.b16 %v3063
      %v3180 = vunpack.c.l.b16 %v3064
      %v3181 = vunpack.c.l.b16 %v3065
      %v3182 = vunpack.c.l.b16 %v3066
      %v3183 = vunpack.c.l.b16 %v3067
      %v3184 = vunpack.c.l.b16 %v3068
      %v3185 = vunpack.c.l.b16 %v3069
      %v3186 = vunpack.c.l.b16 %v3070
      %v3187 = vunpack.c.l.b16 %v3071
      %v3188 = vunpack.c.l.b16 %v3072
      %v3189 = vunpack.c.l.b16 %v3073
      %v3190 = vunpack.c.l.b16 %v3074
      %v3191 = vunpack.c.l.b16 %v3075
      %v3192 = vunpack.c.l.b16 %v3076
      %v3193 = vunpack.c.l.b16 %v3077
      %v3194 = vunpack.c.l.b16 %v3078
      %v3195 = vpack.c.b16 %v3180, %v3179
      %v3196 = vpack.c.b16 %v3182, %v3181
      %v3197 = vpack.c.b16 %v3184, %v3183
      %v3198 = vpack.c.b16 %v3186, %v3185
      %v3199 = vpack.c.b16 %v3188, %v3187
      %v3200 = vpack.c.b16 %v3190, %v3189
      %v3201 = vpack.c.b16 %v3192, %v3191
      %v3202 = vpack.c.b16 %v3194, %v3193
      %3211 = vmatprep.subr.bf16.mxu0 0
      %3212 = vmatpush1.bf16.msra.mxu0 %v3202
      %3213 = vmatprep.subr.bf16.mxu0 0
      %3214 = vmatpush1.bf16.msra.mxu0 %v3201
      %3215 = vmatprep.subr.bf16.mxu0 0
      %3216 = vmatpush1.bf16.msra.mxu0 %v3200
      %3217 = vmatprep.subr.bf16.mxu0 0
      %3218 = vmatpush1.bf16.msra.mxu0 %v3199
      %3219 = vmatprep.subr.bf16.mxu0 0
      %3220 = vmatpush1.bf16.msra.mxu0 %v3198
      %3221 = vmatprep.subr.bf16.mxu0 0
      %3222 = vmatpush1.bf16.msra.mxu0 %v3197
      %3223 = vmatprep.subr.bf16.mxu0 0
      %3224 = vmatpush1.bf16.msra.mxu0 %v3196
      %3225 = vmatprep.subr.bf16.mxu0 0
      %3226 = vmatpush1.bf16.msra.mxu0 %v3195
      %3227 = vmatprep.subr.bf16.mxu0 0
      %3228 = vmatpush2.bf16.msra.mxu0 0
      %3229 = vmatprep.subr.bf16.mxu0 0
      %3230 = vmatpush2.bf16.msra.mxu0 0
      %3231 = vmatprep.subr.bf16.mxu0 0
      %3232 = vmatpush2.bf16.msra.mxu0 0
      %3233 = vmatprep.subr.bf16.mxu0 0
      %3234 = vmatpush2.bf16.msra.mxu0 0
      %3235 = vmatprep.subr.bf16.mxu0 0
      %3236 = vmatpush2.bf16.msra.mxu0 0
      %3237 = vmatprep.subr.bf16.mxu0 0
      %3238 = vmatpush2.bf16.msra.mxu0 0
      %3239 = vmatprep.subr.bf16.mxu0 0
      %3240 = vmatpush2.bf16.msra.mxu0 0
      %3241 = vmatprep.subr.bf16.mxu0 0
      %3242 = vmatpush2.bf16.msra.mxu0 0
      %3243 = vmatprep.mubr.bf16.mxu0 0
      %3244 = vmatmul.mubr.bf16.gmra.mxu0 %v3103
      %v3245 = vpop.f32.mrf.mxu0
      %v3246 = vadd.f32 0.0, %v3245
      %v3247 = vpop.f32.mrf.mxu0
      %v3248 = vpop.f32.mrf.mxu0
      %v3249 = vadd.f32 0.0, %v3248
      %v3250 = vpop.f32.mrf.mxu0
      %3251 = vmatprep.mubr.bf16.mxu0 0
      %3252 = vmatmul.mubr.bf16.gmra.mxu0 %v3105
      %v3253 = vpop.f32.mrf.mxu0
      %v3254 = vadd.f32 0.0, %v3253
      %v3255 = vpop.f32.mrf.mxu0
      %v3256 = vpop.f32.mrf.mxu0
      %v3257 = vadd.f32 0.0, %v3256
      %v3258 = vpop.f32.mrf.mxu0
      %3259 = vmatprep.mubr.bf16.mxu0 0
      %3260 = vmatmul.mubr.bf16.gmra.mxu0 %v3107
      %v3261 = vpop.f32.mrf.mxu0
      %v3262 = vadd.f32 0.0, %v3261
      %v3263 = vpop.f32.mrf.mxu0
      %v3264 = vpop.f32.mrf.mxu0
      %v3265 = vadd.f32 0.0, %v3264
      %v3266 = vpop.f32.mrf.mxu0
      %3267 = vmatprep.mubr.bf16.mxu0 0
      %3268 = vmatmul.mubr.bf16.gmra.mxu0 %v3109
      %v3269 = vpop.f32.mrf.mxu0
      %v3270 = vadd.f32 0.0, %v3269
      %v3271 = vpop.f32.mrf.mxu0
      %v3272 = vpop.f32.mrf.mxu0
      %v3273 = vadd.f32 0.0, %v3272
      %v3274 = vpop.f32.mrf.mxu0
      %3275 = vmatprep.mubr.bf16.mxu0 0
      %3276 = vmatmul.mubr.bf16.gmra.mxu0 %v3111
      %v3277 = vpop.f32.mrf.mxu0
      %v3278 = vadd.f32 0.0, %v3277
      %v3279 = vpop.f32.mrf.mxu0
      %v3280 = vpop.f32.mrf.mxu0
      %v3281 = vadd.f32 0.0, %v3280
      %v3282 = vpop.f32.mrf.mxu0
      %3283 = vmatprep.mubr.bf16.mxu0 0
      %3284 = vmatmul.mubr.bf16.gmra.mxu0 %v3113
      %v3285 = vpop.f32.mrf.mxu0
      %v3286 = vadd.f32 0.0, %v3285
      %v3287 = vpop.f32.mrf.mxu0
      %v3288 = vpop.f32.mrf.mxu0
      %v3289 = vadd.f32 0.0, %v3288
      %v3290 = vpop.f32.mrf.mxu0
      %3291 = vmatprep.mubr.bf16.mxu0 0
      %3292 = vmatmul.mubr.bf16.gmra.mxu0 %v3115
      %v3293 = vpop.f32.mrf.mxu0
      %v3294 = vadd.f32 0.0, %v3293
      %v3295 = vpop.f32.mrf.mxu0
      %v3296 = vpop.f32.mrf.mxu0
      %v3297 = vadd.f32 0.0, %v3296
      %v3298 = vpop.f32.mrf.mxu0
      %3299 = vmatprep.mubr.bf16.mxu0 0
      %3300 = vmatmul.mubr.bf16.gmra.mxu0 %v3117
      %v3301 = vpop.f32.mrf.mxu0
      %v3302 = vadd.f32 0.0, %v3301
      %v3303 = vpop.f32.mrf.mxu0
      %v3304 = vpop.f32.mrf.mxu0
      %v3305 = vadd.f32 0.0, %v3304
      %v3306 = vpop.f32.mrf.mxu0
      %3307 = vmatprep.mubr.bf16.mxu0 0
      %3308 = vmatmul.mubr.bf16.gmra.mxu0 %v3119
      %v3309 = vpop.f32.mrf.mxu0
      %v3310 = vadd.f32 0.0, %v3309
      %v3311 = vpop.f32.mrf.mxu0
      %v3312 = vpop.f32.mrf.mxu0
      %v3313 = vadd.f32 0.0, %v3312
      %v3314 = vpop.f32.mrf.mxu0
      %3315 = vmatprep.mubr.bf16.mxu0 0
      %3316 = vmatmul.mubr.bf16.gmra.mxu0 %v3121
      %v3317 = vpop.f32.mrf.mxu0
      %v3318 = vadd.f32 0.0, %v3317
      %v3319 = vpop.f32.mrf.mxu0
      %v3320 = vpop.f32.mrf.mxu0
      %v3321 = vadd.f32 0.0, %v3320
      %v3322 = vpop.f32.mrf.mxu0
      %3323 = vmatprep.mubr.bf16.mxu0 0
      %3324 = vmatmul.mubr.bf16.gmra.mxu0 %v3123
      %v3325 = vpop.f32.mrf.mxu0
      %v3326 = vadd.f32 0.0, %v3325
      %v3327 = vpop.f32.mrf.mxu0
      %v3328 = vpop.f32.mrf.mxu0
      %v3329 = vadd.f32 0.0, %v3328
      %v3330 = vpop.f32.mrf.mxu0
      %3331 = vmatprep.mubr.bf16.mxu0 0
      %3332 = vmatmul.mubr.bf16.gmra.mxu0 %v3125
      %v3333 = vpop.f32.mrf.mxu0
      %v3334 = vadd.f32 0.0, %v3333
      %v3335 = vpop.f32.mrf.mxu0
      %v3336 = vpop.f32.mrf.mxu0
      %v3337 = vadd.f32 0.0, %v3336
      %v3338 = vpop.f32.mrf.mxu0
      %3339 = vmatprep.mubr.bf16.mxu0 0
      %3340 = vmatmul.mubr.bf16.gmra.mxu0 %v3127
      %v3341 = vpop.f32.mrf.mxu0
      %v3342 = vadd.f32 0.0, %v3341
      %v3343 = vpop.f32.mrf.mxu0
      %v3344 = vpop.f32.mrf.mxu0
      %v3345 = vadd.f32 0.0, %v3344
      %v3346 = vpop.f32.mrf.mxu0
      %3347 = vmatprep.mubr.bf16.mxu0 0
      %3348 = vmatmul.mubr.bf16.gmra.mxu0 %v3129
      %v3349 = vpop.f32.mrf.mxu0
      %v3350 = vadd.f32 0.0, %v3349
      %v3351 = vpop.f32.mrf.mxu0
      %v3352 = vpop.f32.mrf.mxu0
      %v3353 = vadd.f32 0.0, %v3352
      %v3354 = vpop.f32.mrf.mxu0
      %3355 = vmatprep.mubr.bf16.mxu0 0
      %3356 = vmatmul.mubr.bf16.gmra.mxu0 %v3131
      %v3357 = vpop.f32.mrf.mxu0
      %v3358 = vadd.f32 0.0, %v3357
      %v3359 = vpop.f32.mrf.mxu0
      %v3360 = vpop.f32.mrf.mxu0
      %v3361 = vadd.f32 0.0, %v3360
      %v3362 = vpop.f32.mrf.mxu0
      %3363 = vmatprep.mubr.bf16.mxu0 0
      %3364 = vmatmul.mubr.bf16.gmra.mxu0 %v3133
      %v3365 = vpop.f32.mrf.mxu0
      %v3366 = vadd.f32 0.0, %v3365
      %v3367 = vpop.f32.mrf.mxu0
      %v3368 = vpop.f32.mrf.mxu0
      %v3369 = vadd.f32 0.0, %v3368
      %v3370 = vpop.f32.mrf.mxu0
      %3371 = vmatprep.mubr.bf16.mxu0 0
      %3372 = vmatmul.mubr.bf16.gmra.mxu0 %v3135
      %v3373 = vpop.f32.mrf.mxu0
      %v3374 = vadd.f32 0.0, %v3373
      %v3375 = vpop.f32.mrf.mxu0
      %v3376 = vpop.f32.mrf.mxu0
      %v3377 = vadd.f32 0.0, %v3376
      %v3378 = vpop.f32.mrf.mxu0
      %3379 = vmatprep.mubr.bf16.mxu0 0
      %3380 = vmatmul.mubr.bf16.gmra.mxu0 %v3137
      %v3381 = vpop.f32.mrf.mxu0
      %v3382 = vadd.f32 0.0, %v3381
      %v3383 = vpop.f32.mrf.mxu0
      %v3384 = vpop.f32.mrf.mxu0
      %v3385 = vadd.f32 0.0, %v3384
      %v3386 = vpop.f32.mrf.mxu0
      %3387 = vmatprep.mubr.bf16.mxu0 0
      %3388 = vmatmul.mubr.bf16.gmra.mxu0 %v3139
      %v3389 = vpop.f32.mrf.mxu0
      %v3390 = vadd.f32 0.0, %v3389
      %v3391 = vpop.f32.mrf.mxu0
      %v3392 = vpop.f32.mrf.mxu0
      %v3393 = vadd.f32 0.0, %v3392
      %v3394 = vpop.f32.mrf.mxu0
      %3395 = vmatprep.mubr.bf16.mxu0 0
      %3396 = vmatmul.mubr.bf16.gmra.mxu0 %v3141
      %v3397 = vpop.f32.mrf.mxu0
      %v3398 = vadd.f32 0.0, %v3397
      %v3399 = vpop.f32.mrf.mxu0
      %v3400 = vpop.f32.mrf.mxu0
      %v3401 = vadd.f32 0.0, %v3400
      %v3402 = vpop.f32.mrf.mxu0
      %3403 = vmatprep.mubr.bf16.mxu0 0
      %3404 = vmatmul.mubr.bf16.gmra.mxu0 %v3140
      %v3405 = vpop.f32.mrf.mxu0
      %v3406 = vadd.f32 0.0, %v3405
      %v3407 = vpop.f32.mrf.mxu0
      %v3408 = vpop.f32.mrf.mxu0
      %v3409 = vpop.f32.mrf.mxu0
      %3410 = vdwg.mxu0
      %v3411 = vadd.f32 %v3021, %v3246
      %v3412 = vadd.f32 %v3022, %v3249
      %v3413 = vadd.f32 %v3023, %v3254
      %v3414 = vadd.f32 %v3024, %v3257
      %v3415 = vadd.f32 %v3025, %v3262
      %v3416 = vadd.f32 %v3026, %v3265
      %v3417 = vadd.f32 %v3027, %v3270
      %v3418 = vadd.f32 %v3028, %v3273
      %v3419 = vadd.f32 %v3029, %v3278
      %v3420 = vadd.f32 %v3030, %v3281
      %v3421 = vadd.f32 %v3031, %v3286
      %v3422 = vadd.f32 %v3032, %v3289
      %v3423 = vadd.f32 %v3033, %v3294
      %v3424 = vadd.f32 %v3034, %v3297
      %v3425 = vadd.f32 %v3035, %v3302
      %v3426 = vadd.f32 %v3036, %v3305
      %v3427 = vadd.f32 %v3037, %v3310
      %v3428 = vadd.f32 %v3038, %v3313
      %v3429 = vadd.f32 %v3039, %v3318
      %v3430 = vadd.f32 %v3040, %v3321
      %v3431 = vadd.f32 %v3041, %v3326
      %v3432 = vadd.f32 %v3042, %v3329
      %v3433 = vadd.f32 %v3043, %v3334
      %v3434 = vadd.f32 %v3044, %v3337
      %v3435 = vadd.f32 %v3045, %v3342
      %v3436 = vadd.f32 %v3046, %v3345
      %v3437 = vadd.f32 %v3047, %v3350
      %v3438 = vadd.f32 %v3048, %v3353
      %v3439 = vadd.f32 %v3049, %v3358
      %v3440 = vadd.f32 %v3050, %v3361
      %v3441 = vadd.f32 %v3051, %v3366
      %v3442 = vadd.f32 %v3052, %v3369
      %v3443 = vadd.f32 %v3053, %v3374
      %v3444 = vadd.f32 %v3054, %v3377
      %v3445 = vadd.f32 %v3055, %v3382
      %v3446 = vadd.f32 %v3056, %v3385
      %v3447 = vadd.f32 %v3057, %v3390
      %v3448 = vadd.f32 %v3058, %v3393
      %v3449 = vadd.f32 %v3059, %v3398
      %v3450 = vadd.f32 %v3060, %v3401
      %v3451 = vadd.f32 %v3061, %v3406
      %s3452 = scalar_lea.vmem %s1, 512
      %v3453 = vld [vmem:[%s3452] sm:$0xf]
      %v3454 = vld [vmem:[%s3452 + $0x4] sm:$0xf]
      %v3455 = vld [vmem:[%s3452 + $0x8] sm:$0xf]
      %v3456 = vld [vmem:[%s3452 + $0xc] sm:$0xf]
      %v3457 = vld [vmem:[%s3452 + $0x10] sm:$0xf]
      %v3458 = vld [vmem:[%s3452 + $0x14] sm:$0xf]
      %v3459 = vld [vmem:[%s3452 + $0x18] sm:$0xf]
      %v3460 = vld [vmem:[%s3452 + $0x1c] sm:$0xf]
      %v3461 = vld [vmem:[%s3452 + $0x20] sm:$0xf]
      %v3462 = vld [vmem:[%s3452 + $0x24] sm:$0xf]
      %v3463 = vld [vmem:[%s3452 + $0x28] sm:$0xf]
      %v3464 = vld [vmem:[%s3452 + $0x2c] sm:$0xf]
      %v3465 = vld [vmem:[%s3452 + $0x30] sm:$0xf]
      %v3466 = vld [vmem:[%s3452 + $0x34] sm:$0xf]
      %v3467 = vld [vmem:[%s3452 + $0x38] sm:$0xf]
      %v3468 = vld [vmem:[%s3452 + $0x3c] sm:$0xf]
      %vm3469 = vsmask.f32 6400
      %v3470 = vrot.slane %v2280, 1
      %v3471 = vrot.slane %v2276, 2
      %v3472 = vor.u32 %v3470, %v3471
      %v3473 = vrot.slane %v2288, 1
      %v3474 = vrot.slane %v2284, 2
      %v3475 = vor.u32 %v3473, %v3474
      %v3476 = vsel %vm3469, %v3472, %v3475
      %v3477 = vrot.slane %v2296, 1
      %v3478 = vrot.slane %v2292, 2
      %v3479 = vor.u32 %v3477, %v3478
      %v3480 = vsel %vm3469, %v3475, %v3479
      %v3481 = vrot.slane %v2304, 1
      %v3482 = vrot.slane %v2300, 2
      %v3483 = vor.u32 %v3481, %v3482
      %v3484 = vsel %vm3469, %v3479, %v3483
      %v3485 = vrot.slane %v2312, 1
      %v3486 = vrot.slane %v2308, 2
      %v3487 = vor.u32 %v3485, %v3486
      %v3488 = vsel %vm3469, %v3483, %v3487
      %v3489 = vrot.slane %v2320, 1
      %v3490 = vrot.slane %v2316, 2
      %v3491 = vor.u32 %v3489, %v3490
      %v3492 = vsel %vm3469, %v3487, %v3491
      %v3493 = vrot.slane %v2328, 1
      %v3494 = vrot.slane %v2324, 2
      %v3495 = vor.u32 %v3493, %v3494
      %v3496 = vsel %vm3469, %v3491, %v3495
      %v3497 = vrot.slane %v2336, 1
      %v3498 = vrot.slane %v2332, 2
      %v3499 = vor.u32 %v3497, %v3498
      %v3500 = vsel %vm3469, %v3495, %v3499
      %v3501 = vrot.slane %v2344, 1
      %v3502 = vrot.slane %v2340, 2
      %v3503 = vor.u32 %v3501, %v3502
      %v3504 = vsel %vm3469, %v3499, %v3503
      %v3505 = vrot.slane %v2352, 1
      %v3506 = vrot.slane %v2348, 2
      %v3507 = vor.u32 %v3505, %v3506
      %v3508 = vsel %vm3469, %v3503, %v3507
      %v3509 = vrot.slane %v2360, 1
      %v3510 = vrot.slane %v2356, 2
      %v3511 = vor.u32 %v3509, %v3510
      %v3512 = vsel %vm3469, %v3507, %v3511
      %v3513 = vrot.slane %v2368, 1
      %v3514 = vrot.slane %v2364, 2
      %v3515 = vor.u32 %v3513, %v3514
      %v3516 = vsel %vm3469, %v3511, %v3515
      %v3517 = vrot.slane %v2376, 1
      %v3518 = vrot.slane %v2372, 2
      %v3519 = vor.u32 %v3517, %v3518
      %v3520 = vsel %vm3469, %v3515, %v3519
      %v3521 = vrot.slane %v2384, 1
      %v3522 = vrot.slane %v2380, 2
      %v3523 = vor.u32 %v3521, %v3522
      %v3524 = vsel %vm3469, %v3519, %v3523
      %v3525 = vrot.slane %v2392, 1
      %v3526 = vrot.slane %v2388, 2
      %v3527 = vor.u32 %v3525, %v3526
      %v3528 = vsel %vm3469, %v3523, %v3527
      %v3529 = vrot.slane %v2400, 1
      %v3530 = vrot.slane %v2396, 2
      %v3531 = vor.u32 %v3529, %v3530
      %v3532 = vsel %vm3469, %v3527, %v3531
      %v3533 = vrot.slane %v2408, 1
      %v3534 = vrot.slane %v2404, 2
      %v3535 = vor.u32 %v3533, %v3534
      %v3536 = vsel %vm3469, %v3531, %v3535
      %v3537 = vrot.slane %v2416, 1
      %v3538 = vrot.slane %v2412, 2
      %v3539 = vor.u32 %v3537, %v3538
      %v3540 = vsel %vm3469, %v3535, %v3539
      %v3541 = vrot.slane %v2424, 1
      %v3542 = vrot.slane %v2420, 2
      %v3543 = vor.u32 %v3541, %v3542
      %v3544 = vsel %vm3469, %v3539, %v3543
      %v3545 = vrot.slane %v2432, 1
      %v3546 = vrot.slane %v2428, 2
      %v3547 = vor.u32 %v3545, %v3546
      %v3548 = vsel %vm3469, %v3543, %v3547
      %v3549 = vrot.slane %v2768, 1
      %v3550 = vrot.slane %v2764, 2
      %v3551 = vor.u32 %v3549, %v3550
      %v3552 = vsel %vm3469, %v3547, %v3551
      %v3590 = vunpack.c.l.b16 %v3453
      %v3591 = vunpack.c.l.b16 %v3454
      %v3592 = vunpack.c.l.b16 %v3455
      %v3593 = vunpack.c.l.b16 %v3456
      %v3594 = vunpack.c.l.b16 %v3457
      %v3595 = vunpack.c.l.b16 %v3458
      %v3596 = vunpack.c.l.b16 %v3459
      %v3597 = vunpack.c.l.b16 %v3460
      %v3598 = vunpack.c.l.b16 %v3461
      %v3599 = vunpack.c.l.b16 %v3462
      %v3600 = vunpack.c.l.b16 %v3463
      %v3601 = vunpack.c.l.b16 %v3464
      %v3602 = vunpack.c.l.b16 %v3465
      %v3603 = vunpack.c.l.b16 %v3466
      %v3604 = vunpack.c.l.b16 %v3467
      %v3605 = vunpack.c.l.b16 %v3468
      %v3606 = vpack.c.b16 %v3591, %v3590
      %v3607 = vpack.c.b16 %v3593, %v3592
      %v3608 = vpack.c.b16 %v3595, %v3594
      %v3609 = vpack.c.b16 %v3597, %v3596
      %v3610 = vpack.c.b16 %v3599, %v3598
      %v3611 = vpack.c.b16 %v3601, %v3600
      %v3612 = vpack.c.b16 %v3603, %v3602
      %v3613 = vpack.c.b16 %v3605, %v3604
      %3622 = vmatprep.subr.bf16.mxu0 0
      %3623 = vmatpush1.bf16.msra.mxu0 %v3613
      %3624 = vmatprep.subr.bf16.mxu0 0
      %3625 = vmatpush1.bf16.msra.mxu0 %v3612
      %3626 = vmatprep.subr.bf16.mxu0 0
      %3627 = vmatpush1.bf16.msra.mxu0 %v3611
      %3628 = vmatprep.subr.bf16.mxu0 0
      %3629 = vmatpush1.bf16.msra.mxu0 %v3610
      %3630 = vmatprep.subr.bf16.mxu0 0
      %3631 = vmatpush1.bf16.msra.mxu0 %v3609
      %3632 = vmatprep.subr.bf16.mxu0 0
      %3633 = vmatpush1.bf16.msra.mxu0 %v3608
      %3634 = vmatprep.subr.bf16.mxu0 0
      %3635 = vmatpush1.bf16.msra.mxu0 %v3607
      %3636 = vmatprep.subr.bf16.mxu0 0
      %3637 = vmatpush1.bf16.msra.mxu0 %v3606
      %3638 = vmatprep.subr.bf16.mxu0 0
      %3639 = vmatpush2.bf16.msra.mxu0 0
      %3640 = vmatprep.subr.bf16.mxu0 0
      %3641 = vmatpush2.bf16.msra.mxu0 0
      %3642 = vmatprep.subr.bf16.mxu0 0
      %3643 = vmatpush2.bf16.msra.mxu0 0
      %3644 = vmatprep.subr.bf16.mxu0 0
      %3645 = vmatpush2.bf16.msra.mxu0 0
      %3646 = vmatprep.subr.bf16.mxu0 0
      %3647 = vmatpush2.bf16.msra.mxu0 0
      %3648 = vmatprep.subr.bf16.mxu0 0
      %3649 = vmatpush2.bf16.msra.mxu0 0
      %3650 = vmatprep.subr.bf16.mxu0 0
      %3651 = vmatpush2.bf16.msra.mxu0 0
      %3652 = vmatprep.subr.bf16.mxu0 0
      %3653 = vmatpush2.bf16.msra.mxu0 0
      %3654 = vmatprep.mubr.bf16.mxu0 0
      %3655 = vmatmul.mubr.bf16.gmra.mxu0 %v3476
      %v3656 = vpop.f32.mrf.mxu0
      %v3657 = vadd.f32 0.0, %v3656
      %v3658 = vpop.f32.mrf.mxu0
      %v3659 = vpop.f32.mrf.mxu0
      %v3660 = vadd.f32 0.0, %v3659
      %v3661 = vpop.f32.mrf.mxu0
      %3662 = vmatprep.mubr.bf16.mxu0 0
      %3663 = vmatmul.mubr.bf16.gmra.mxu0 %v3480
      %v3664 = vpop.f32.mrf.mxu0
      %v3665 = vadd.f32 0.0, %v3664
      %v3666 = vpop.f32.mrf.mxu0
      %v3667 = vpop.f32.mrf.mxu0
      %v3668 = vadd.f32 0.0, %v3667
      %v3669 = vpop.f32.mrf.mxu0
      %3670 = vmatprep.mubr.bf16.mxu0 0
      %3671 = vmatmul.mubr.bf16.gmra.mxu0 %v3484
      %v3672 = vpop.f32.mrf.mxu0
      %v3673 = vadd.f32 0.0, %v3672
      %v3674 = vpop.f32.mrf.mxu0
      %v3675 = vpop.f32.mrf.mxu0
      %v3676 = vadd.f32 0.0, %v3675
      %v3677 = vpop.f32.mrf.mxu0
      %3678 = vmatprep.mubr.bf16.mxu0 0
      %3679 = vmatmul.mubr.bf16.gmra.mxu0 %v3488
      %v3680 = vpop.f32.mrf.mxu0
      %v3681 = vadd.f32 0.0, %v3680
      %v3682 = vpop.f32.mrf.mxu0
      %v3683 = vpop.f32.mrf.mxu0
      %v3684 = vadd.f32 0.0, %v3683
      %v3685 = vpop.f32.mrf.mxu0
      %3686 = vmatprep.mubr.bf16.mxu0 0
      %3687 = vmatmul.mubr.bf16.gmra.mxu0 %v3492
      %v3688 = vpop.f32.mrf.mxu0
      %v3689 = vadd.f32 0.0, %v3688
      %v3690 = vpop.f32.mrf.mxu0
      %v3691 = vpop.f32.mrf.mxu0
      %v3692 = vadd.f32 0.0, %v3691
      %v3693 = vpop.f32.mrf.mxu0
      %3694 = vmatprep.mubr.bf16.mxu0 0
      %3695 = vmatmul.mubr.bf16.gmra.mxu0 %v3496
      %v3696 = vpop.f32.mrf.mxu0
      %v3697 = vadd.f32 0.0, %v3696
      %v3698 = vpop.f32.mrf.mxu0
      %v3699 = vpop.f32.mrf.mxu0
      %v3700 = vadd.f32 0.0, %v3699
      %v3701 = vpop.f32.mrf.mxu0
      %3702 = vmatprep.mubr.bf16.mxu0 0
      %3703 = vmatmul.mubr.bf16.gmra.mxu0 %v3500
      %v3704 = vpop.f32.mrf.mxu0
      %v3705 = vadd.f32 0.0, %v3704
      %v3706 = vpop.f32.mrf.mxu0
      %v3707 = vpop.f32.mrf.mxu0
      %v3708 = vadd.f32 0.0, %v3707
      %v3709 = vpop.f32.mrf.mxu0
      %3710 = vmatprep.mubr.bf16.mxu0 0
      %3711 = vmatmul.mubr.bf16.gmra.mxu0 %v3504
      %v3712 = vpop.f32.mrf.mxu0
      %v3713 = vadd.f32 0.0, %v3712
      %v3714 = vpop.f32.mrf.mxu0
      %v3715 = vpop.f32.mrf.mxu0
      %v3716 = vadd.f32 0.0, %v3715
      %v3717 = vpop.f32.mrf.mxu0
      %3718 = vmatprep.mubr.bf16.mxu0 0
      %3719 = vmatmul.mubr.bf16.gmra.mxu0 %v3508
      %v3720 = vpop.f32.mrf.mxu0
      %v3721 = vadd.f32 0.0, %v3720
      %v3722 = vpop.f32.mrf.mxu0
      %v3723 = vpop.f32.mrf.mxu0
      %v3724 = vadd.f32 0.0, %v3723
      %v3725 = vpop.f32.mrf.mxu0
      %3726 = vmatprep.mubr.bf16.mxu0 0
      %3727 = vmatmul.mubr.bf16.gmra.mxu0 %v3512
      %v3728 = vpop.f32.mrf.mxu0
      %v3729 = vadd.f32 0.0, %v3728
      %v3730 = vpop.f32.mrf.mxu0
      %v3731 = vpop.f32.mrf.mxu0
      %v3732 = vadd.f32 0.0, %v3731
      %v3733 = vpop.f32.mrf.mxu0
      %3734 = vmatprep.mubr.bf16.mxu0 0
      %3735 = vmatmul.mubr.bf16.gmra.mxu0 %v3516
      %v3736 = vpop.f32.mrf.mxu0
      %v3737 = vadd.f32 0.0, %v3736
      %v3738 = vpop.f32.mrf.mxu0
      %v3739 = vpop.f32.mrf.mxu0
      %v3740 = vadd.f32 0.0, %v3739
      %v3741 = vpop.f32.mrf.mxu0
      %3742 = vmatprep.mubr.bf16.mxu0 0
      %3743 = vmatmul.mubr.bf16.gmra.mxu0 %v3520
      %v3744 = vpop.f32.mrf.mxu0
      %v3745 = vadd.f32 0.0, %v3744
      %v3746 = vpop.f32.mrf.mxu0
      %v3747 = vpop.f32.mrf.mxu0
      %v3748 = vadd.f32 0.0, %v3747
      %v3749 = vpop.f32.mrf.mxu0
      %3750 = vmatprep.mubr.bf16.mxu0 0
      %3751 = vmatmul.mubr.bf16.gmra.mxu0 %v3524
      %v3752 = vpop.f32.mrf.mxu0
      %v3753 = vadd.f32 0.0, %v3752
      %v3754 = vpop.f32.mrf.mxu0
      %v3755 = vpop.f32.mrf.mxu0
      %v3756 = vadd.f32 0.0, %v3755
      %v3757 = vpop.f32.mrf.mxu0
      %3758 = vmatprep.mubr.bf16.mxu0 0
      %3759 = vmatmul.mubr.bf16.gmra.mxu0 %v3528
      %v3760 = vpop.f32.mrf.mxu0
      %v3761 = vadd.f32 0.0, %v3760
      %v3762 = vpop.f32.mrf.mxu0
      %v3763 = vpop.f32.mrf.mxu0
      %v3764 = vadd.f32 0.0, %v3763
      %v3765 = vpop.f32.mrf.mxu0
      %3766 = vmatprep.mubr.bf16.mxu0 0
      %3767 = vmatmul.mubr.bf16.gmra.mxu0 %v3532
      %v3768 = vpop.f32.mrf.mxu0
      %v3769 = vadd.f32 0.0, %v3768
      %v3770 = vpop.f32.mrf.mxu0
      %v3771 = vpop.f32.mrf.mxu0
      %v3772 = vadd.f32 0.0, %v3771
      %v3773 = vpop.f32.mrf.mxu0
      %3774 = vmatprep.mubr.bf16.mxu0 0
      %3775 = vmatmul.mubr.bf16.gmra.mxu0 %v3536
      %v3776 = vpop.f32.mrf.mxu0
      %v3777 = vadd.f32 0.0, %v3776
      %v3778 = vpop.f32.mrf.mxu0
      %v3779 = vpop.f32.mrf.mxu0
      %v3780 = vadd.f32 0.0, %v3779
      %v3781 = vpop.f32.mrf.mxu0
      %3782 = vmatprep.mubr.bf16.mxu0 0
      %3783 = vmatmul.mubr.bf16.gmra.mxu0 %v3540
      %v3784 = vpop.f32.mrf.mxu0
      %v3785 = vadd.f32 0.0, %v3784
      %v3786 = vpop.f32.mrf.mxu0
      %v3787 = vpop.f32.mrf.mxu0
      %v3788 = vadd.f32 0.0, %v3787
      %v3789 = vpop.f32.mrf.mxu0
      %3790 = vmatprep.mubr.bf16.mxu0 0
      %3791 = vmatmul.mubr.bf16.gmra.mxu0 %v3544
      %v3792 = vpop.f32.mrf.mxu0
      %v3793 = vadd.f32 0.0, %v3792
      %v3794 = vpop.f32.mrf.mxu0
      %v3795 = vpop.f32.mrf.mxu0
      %v3796 = vadd.f32 0.0, %v3795
      %v3797 = vpop.f32.mrf.mxu0
      %3798 = vmatprep.mubr.bf16.mxu0 0
      %3799 = vmatmul.mubr.bf16.gmra.mxu0 %v3548
      %v3800 = vpop.f32.mrf.mxu0
      %v3801 = vadd.f32 0.0, %v3800
      %v3802 = vpop.f32.mrf.mxu0
      %v3803 = vpop.f32.mrf.mxu0
      %v3804 = vadd.f32 0.0, %v3803
      %v3805 = vpop.f32.mrf.mxu0
      %3806 = vmatprep.mubr.bf16.mxu0 0
      %3807 = vmatmul.mubr.bf16.gmra.mxu0 %v3552
      %v3808 = vpop.f32.mrf.mxu0
      %v3809 = vadd.f32 0.0, %v3808
      %v3810 = vpop.f32.mrf.mxu0
      %v3811 = vpop.f32.mrf.mxu0
      %v3812 = vadd.f32 0.0, %v3811
      %v3813 = vpop.f32.mrf.mxu0
      %3814 = vmatprep.mubr.bf16.mxu0 0
      %3815 = vmatmul.mubr.bf16.gmra.mxu0 %v3551
      %v3816 = vpop.f32.mrf.mxu0
      %v3817 = vadd.f32 0.0, %v3816
      %v3818 = vpop.f32.mrf.mxu0
      %v3819 = vpop.f32.mrf.mxu0
      %v3820 = vpop.f32.mrf.mxu0
      %3821 = vdwg.mxu0
      %v3822 = vadd.f32 %v3411, %v3657
      %v3823 = vadd.f32 %v3412, %v3660
      %v3824 = vadd.f32 %v3413, %v3665
      %v3825 = vadd.f32 %v3414, %v3668
      %v3826 = vadd.f32 %v3415, %v3673
      %v3827 = vadd.f32 %v3416, %v3676
      %v3828 = vadd.f32 %v3417, %v3681
      %v3829 = vadd.f32 %v3418, %v3684
      %v3830 = vadd.f32 %v3419, %v3689
      %v3831 = vadd.f32 %v3420, %v3692
      %v3832 = vadd.f32 %v3421, %v3697
      %v3833 = vadd.f32 %v3422, %v3700
      %v3834 = vadd.f32 %v3423, %v3705
      %v3835 = vadd.f32 %v3424, %v3708
      %v3836 = vadd.f32 %v3425, %v3713
      %v3837 = vadd.f32 %v3426, %v3716
      %v3838 = vadd.f32 %v3427, %v3721
      %v3839 = vadd.f32 %v3428, %v3724
      %v3840 = vadd.f32 %v3429, %v3729
      %v3841 = vadd.f32 %v3430, %v3732
      %v3842 = vadd.f32 %v3431, %v3737
      %v3843 = vadd.f32 %v3432, %v3740
      %v3844 = vadd.f32 %v3433, %v3745
      %v3845 = vadd.f32 %v3434, %v3748
      %v3846 = vadd.f32 %v3435, %v3753
      %v3847 = vadd.f32 %v3436, %v3756
      %v3848 = vadd.f32 %v3437, %v3761
      %v3849 = vadd.f32 %v3438, %v3764
      %v3850 = vadd.f32 %v3439, %v3769
      %v3851 = vadd.f32 %v3440, %v3772
      %v3852 = vadd.f32 %v3441, %v3777
      %v3853 = vadd.f32 %v3442, %v3780
      %v3854 = vadd.f32 %v3443, %v3785
      %v3855 = vadd.f32 %v3444, %v3788
      %v3856 = vadd.f32 %v3445, %v3793
      %v3857 = vadd.f32 %v3446, %v3796
      %v3858 = vadd.f32 %v3447, %v3801
      %v3859 = vadd.f32 %v3448, %v3804
      %v3860 = vadd.f32 %v3449, %v3809
      %v3861 = vadd.f32 %v3450, %v3812
      %v3862 = vadd.f32 %v3451, %v3817
      %v3863 = vld [vmem:[%s2] sm:$0x1]
      %v3865 = vlaneseq
      %v3866 = vshrl.u32 %v3865, 7
      %v3867 = vsub.s32 0, %v3866
      %v3868 = vrot.slane %v3863, %v3867
      %v3870 = vadd.f32 %v3822, %v3868
      %v3871 = vadd.f32 %v3823, %v3868
      %v3872 = vadd.f32 %v3824, %v3868
      %v3873 = vadd.f32 %v3825, %v3868
      %v3874 = vadd.f32 %v3826, %v3868
      %v3875 = vadd.f32 %v3827, %v3868
      %v3876 = vadd.f32 %v3828, %v3868
      %v3877 = vadd.f32 %v3829, %v3868
      %v3878 = vadd.f32 %v3830, %v3868
      %v3879 = vadd.f32 %v3831, %v3868
      %v3880 = vadd.f32 %v3832, %v3868
      %v3881 = vadd.f32 %v3833, %v3868
      %v3882 = vadd.f32 %v3834, %v3868
      %v3883 = vadd.f32 %v3835, %v3868
      %v3884 = vadd.f32 %v3836, %v3868
      %v3885 = vadd.f32 %v3837, %v3868
      %v3886 = vadd.f32 %v3838, %v3868
      %v3887 = vadd.f32 %v3839, %v3868
      %v3888 = vadd.f32 %v3840, %v3868
      %v3889 = vadd.f32 %v3841, %v3868
      %v3890 = vadd.f32 %v3842, %v3868
      %v3891 = vadd.f32 %v3843, %v3868
      %v3892 = vadd.f32 %v3844, %v3868
      %v3893 = vadd.f32 %v3845, %v3868
      %v3894 = vadd.f32 %v3846, %v3868
      %v3895 = vadd.f32 %v3847, %v3868
      %v3896 = vadd.f32 %v3848, %v3868
      %v3897 = vadd.f32 %v3849, %v3868
      %v3898 = vadd.f32 %v3850, %v3868
      %v3899 = vadd.f32 %v3851, %v3868
      %v3900 = vadd.f32 %v3852, %v3868
      %v3901 = vadd.f32 %v3853, %v3868
      %v3902 = vadd.f32 %v3854, %v3868
      %v3903 = vadd.f32 %v3855, %v3868
      %v3904 = vadd.f32 %v3856, %v3868
      %v3905 = vadd.f32 %v3857, %v3868
      %v3906 = vadd.f32 %v3858, %v3868
      %v3907 = vadd.f32 %v3859, %v3868
      %v3908 = vadd.f32 %v3860, %v3868
      %v3909 = vadd.f32 %v3861, %v3868
      %v3910 = vadd.f32 %v3862, %v3868
      %v3911 = vmax.f32 %v3870, 0.0
      %v3912 = vmax.f32 %v3871, 0.0
      %v3913 = vmax.f32 %v3872, 0.0
      %v3914 = vmax.f32 %v3873, 0.0
      %v3915 = vmax.f32 %v3874, 0.0
      %v3916 = vmax.f32 %v3875, 0.0
      %v3917 = vmax.f32 %v3876, 0.0
      %v3918 = vmax.f32 %v3877, 0.0
      %v3919 = vmax.f32 %v3878, 0.0
      %v3920 = vmax.f32 %v3879, 0.0
      %v3921 = vmax.f32 %v3880, 0.0
      %v3922 = vmax.f32 %v3881, 0.0
      %v3923 = vmax.f32 %v3882, 0.0
      %v3924 = vmax.f32 %v3883, 0.0
      %v3925 = vmax.f32 %v3884, 0.0
      %v3926 = vmax.f32 %v3885, 0.0
      %v3927 = vmax.f32 %v3886, 0.0
      %v3928 = vmax.f32 %v3887, 0.0
      %v3929 = vmax.f32 %v3888, 0.0
      %v3930 = vmax.f32 %v3889, 0.0
      %v3931 = vmax.f32 %v3890, 0.0
      %v3932 = vmax.f32 %v3891, 0.0
      %v3933 = vmax.f32 %v3892, 0.0
      %v3934 = vmax.f32 %v3893, 0.0
      %v3935 = vmax.f32 %v3894, 0.0
      %v3936 = vmax.f32 %v3895, 0.0
      %v3937 = vmax.f32 %v3896, 0.0
      %v3938 = vmax.f32 %v3897, 0.0
      %v3939 = vmax.f32 %v3898, 0.0
      %v3940 = vmax.f32 %v3899, 0.0
      %v3941 = vmax.f32 %v3900, 0.0
      %v3942 = vmax.f32 %v3901, 0.0
      %v3943 = vmax.f32 %v3902, 0.0
      %v3944 = vmax.f32 %v3903, 0.0
      %v3945 = vmax.f32 %v3904, 0.0
      %v3946 = vmax.f32 %v3905, 0.0
      %v3947 = vmax.f32 %v3906, 0.0
      %v3948 = vmax.f32 %v3907, 0.0
      %v3949 = vmax.f32 %v3908, 0.0
      %v3950 = vmax.f32 %v3909, 0.0
      %v3951 = vmax.f32 %v3910, 0.0
      %v3952 = vld [vmem:[%s234] sm:$0xff]
      %v3953 = vld [vmem:[%s234 + $0x8] sm:$0xff]
      %v3954 = vld [vmem:[%s234 + $0x10] sm:$0xff]
      %v3955 = vld [vmem:[%s234 + $0x18] sm:$0xff]
      %v3956 = vld [vmem:[%s234 + $0x20] sm:$0xff]
      %v3957 = vld [vmem:[%s234 + $0x28] sm:$0xff]
      %v3958 = vld [vmem:[%s234 + $0x30] sm:$0xff]
      %v3959 = vld [vmem:[%s234 + $0x38] sm:$0xff]
      %v3960 = vld [vmem:[%s234 + $0x40] sm:$0xff]
      %v3961 = vld [vmem:[%s234 + $0x48] sm:$0xff]
      %v3962 = vld [vmem:[%s234 + $0x50] sm:$0xff]
      %v3963 = vld [vmem:[%s234 + $0x58] sm:$0xff]
      %v3964 = vld [vmem:[%s234 + $0x60] sm:$0xff]
      %v3965 = vld [vmem:[%s234 + $0x68] sm:$0xff]
      %v3966 = vld [vmem:[%s234 + $0x70] sm:$0xff]
      %v3967 = vld [vmem:[%s234 + $0x78] sm:$0xff]
      %v3968 = vld [vmem:[%s234 + $0x80] sm:$0xff]
      %v3969 = vld [vmem:[%s234 + $0x88] sm:$0xff]
      %v3970 = vld [vmem:[%s234 + $0x90] sm:$0xff]
      %v3971 = vld [vmem:[%s234 + $0x98] sm:$0xff]
      %v3972 = vld [vmem:[%s234 + $0xa0] sm:$0xff]
      %v3973 = vld [vmem:[%s234 + $0xa8] sm:$0xff]
      %v3974 = vld [vmem:[%s234 + $0xb0] sm:$0xff]
      %v3975 = vld [vmem:[%s234 + $0xb8] sm:$0xff]
      %v3976 = vld [vmem:[%s234 + $0xc0] sm:$0xff]
      %v3977 = vld [vmem:[%s234 + $0xc8] sm:$0xff]
      %v3978 = vld [vmem:[%s234 + $0xd0] sm:$0xff]
      %v3979 = vld [vmem:[%s234 + $0xd8] sm:$0xff]
      %v3980 = vld [vmem:[%s234 + $0xe0] sm:$0xff]
      %v3981 = vld [vmem:[%s234 + $0xe8] sm:$0xff]
      %v3982 = vld [vmem:[%s234 + $0xf0] sm:$0xff]
      %v3983 = vld [vmem:[%s234 + $0xf8] sm:$0xff]
      %v3984 = vld [vmem:[%s234 + $0x100] sm:$0xff]
      %v3985 = vld [vmem:[%s234 + $0x108] sm:$0xff]
      %v3986 = vld [vmem:[%s234 + $0x110] sm:$0xff]
      %v3987 = vld [vmem:[%s234 + $0x118] sm:$0xff]
      %v3988 = vld [vmem:[%s234 + $0x120] sm:$0xff]
      %v3989 = vld [vmem:[%s234 + $0x128] sm:$0xff]
      %v3990 = vld [vmem:[%s234 + $0x130] sm:$0xff]
      %v3991 = vld [vmem:[%s234 + $0x138] sm:$0xff]
      %v3992 = vld [vmem:[%s234 + $0x140] sm:$0xff]
      %vm3993 = vcmp.ne.f32.partialorder %v3952, 0.0
      %vm3994 = vcmp.ne.f32.partialorder %v3953, 0.0
      %vm3995 = vcmp.ne.f32.partialorder %v3954, 0.0
      %vm3996 = vcmp.ne.f32.partialorder %v3955, 0.0
      %vm3997 = vcmp.ne.f32.partialorder %v3956, 0.0
      %vm3998 = vcmp.ne.f32.partialorder %v3957, 0.0
      %vm3999 = vcmp.ne.f32.partialorder %v3958, 0.0
      %vm4000 = vcmp.ne.f32.partialorder %v3959, 0.0
      %vm4001 = vcmp.ne.f32.partialorder %v3960, 0.0
      %vm4002 = vcmp.ne.f32.partialorder %v3961, 0.0
      %vm4003 = vcmp.ne.f32.partialorder %v3962, 0.0
      %vm4004 = vcmp.ne.f32.partialorder %v3963, 0.0
      %vm4005 = vcmp.ne.f32.partialorder %v3964, 0.0
      %vm4006 = vcmp.ne.f32.partialorder %v3965, 0.0
      %vm4007 = vcmp.ne.f32.partialorder %v3966, 0.0
      %vm4008 = vcmp.ne.f32.partialorder %v3967, 0.0
      %vm4009 = vcmp.ne.f32.partialorder %v3968, 0.0
      %vm4010 = vcmp.ne.f32.partialorder %v3969, 0.0
      %vm4011 = vcmp.ne.f32.partialorder %v3970, 0.0
      %vm4012 = vcmp.ne.f32.partialorder %v3971, 0.0
      %vm4013 = vcmp.ne.f32.partialorder %v3972, 0.0
      %vm4014 = vcmp.ne.f32.partialorder %v3973, 0.0
      %vm4015 = vcmp.ne.f32.partialorder %v3974, 0.0
      %vm4016 = vcmp.ne.f32.partialorder %v3975, 0.0
      %vm4017 = vcmp.ne.f32.partialorder %v3976, 0.0
      %vm4018 = vcmp.ne.f32.partialorder %v3977, 0.0
      %vm4019 = vcmp.ne.f32.partialorder %v3978, 0.0
      %vm4020 = vcmp.ne.f32.partialorder %v3979, 0.0
      %vm4021 = vcmp.ne.f32.partialorder %v3980, 0.0
      %vm4022 = vcmp.ne.f32.partialorder %v3981, 0.0
      %vm4023 = vcmp.ne.f32.partialorder %v3982, 0.0
      %vm4024 = vcmp.ne.f32.partialorder %v3983, 0.0
      %vm4025 = vcmp.ne.f32.partialorder %v3984, 0.0
      %vm4026 = vcmp.ne.f32.partialorder %v3985, 0.0
      %vm4027 = vcmp.ne.f32.partialorder %v3986, 0.0
      %vm4028 = vcmp.ne.f32.partialorder %v3987, 0.0
      %vm4029 = vcmp.ne.f32.partialorder %v3988, 0.0
      %vm4030 = vcmp.ne.f32.partialorder %v3989, 0.0
      %vm4031 = vcmp.ne.f32.partialorder %v3990, 0.0
      %vm4032 = vcmp.ne.f32.partialorder %v3991, 0.0
      %vm4033 = vcmp.ne.f32.partialorder %v3992, 0.0
      %v4034 = vsel %vm3993, 1, 0
      %v4035 = vsel %vm3994, 1, 0
      %v4036 = vsel %vm3995, 1, 0
      %v4037 = vsel %vm3996, 1, 0
      %v4038 = vsel %vm3997, 1, 0
      %v4039 = vsel %vm3998, 1, 0
      %v4040 = vsel %vm3999, 1, 0
      %v4041 = vsel %vm4000, 1, 0
      %v4042 = vsel %vm4001, 1, 0
      %v4043 = vsel %vm4002, 1, 0
      %v4044 = vsel %vm4003, 1, 0
      %v4045 = vsel %vm4004, 1, 0
      %v4046 = vsel %vm4005, 1, 0
      %v4047 = vsel %vm4006, 1, 0
      %v4048 = vsel %vm4007, 1, 0
      %v4049 = vsel %vm4008, 1, 0
      %v4050 = vsel %vm4009, 1, 0
      %v4051 = vsel %vm4010, 1, 0
      %v4052 = vsel %vm4011, 1, 0
      %v4053 = vsel %vm4012, 1, 0
      %v4054 = vsel %vm4013, 1, 0
      %v4055 = vsel %vm4014, 1, 0
      %v4056 = vsel %vm4015, 1, 0
      %v4057 = vsel %vm4016, 1, 0
      %v4058 = vsel %vm4017, 1, 0
      %v4059 = vsel %vm4018, 1, 0
      %v4060 = vsel %vm4019, 1, 0
      %v4061 = vsel %vm4020, 1, 0
      %v4062 = vsel %vm4021, 1, 0
      %v4063 = vsel %vm4022, 1, 0
      %v4064 = vsel %vm4023, 1, 0
      %v4065 = vsel %vm4024, 1, 0
      %v4066 = vsel %vm4025, 1, 0
      %v4067 = vsel %vm4026, 1, 0
      %v4068 = vsel %vm4027, 1, 0
      %v4069 = vsel %vm4028, 1, 0
      %v4070 = vsel %vm4029, 1, 0
      %v4071 = vsel %vm4030, 1, 0
      %v4072 = vsel %vm4031, 1, 0
      %v4073 = vsel %vm4032, 1, 0
      %v4074 = vsel %vm4033, 1, 0
      %4075 = vset.pattern.permute.xlu0 0
      %4076 = vperm.xlu0 %4075, %v4034
      %v4077 = vpop.permute.xlu0 %4076
      %4078 = vset.pattern.permute.xlu0 0
      %4079 = vperm.xlu0 %4078, %v4035
      %v4080 = vpop.permute.xlu0 %4079
      %4081 = vset.pattern.permute.xlu0 0
      %4082 = vperm.xlu0 %4081, %v4036
      %v4083 = vpop.permute.xlu0 %4082
      %4084 = vset.pattern.permute.xlu0 0
      %4085 = vperm.xlu0 %4084, %v4037
      %v4086 = vpop.permute.xlu0 %4085
      %4087 = vset.pattern.permute.xlu0 0
      %4088 = vperm.xlu0 %4087, %v4038
      %v4089 = vpop.permute.xlu0 %4088
      %4090 = vset.pattern.permute.xlu0 0
      %4091 = vperm.xlu0 %4090, %v4039
      %v4092 = vpop.permute.xlu0 %4091
      %4093 = vset.pattern.permute.xlu0 0
      %4094 = vperm.xlu0 %4093, %v4040
      %v4095 = vpop.permute.xlu0 %4094
      %4096 = vset.pattern.permute.xlu0 0
      %4097 = vperm.xlu0 %4096, %v4041
      %v4098 = vpop.permute.xlu0 %4097
      %4099 = vset.pattern.permute.xlu0 0
      %4100 = vperm.xlu0 %4099, %v4042
      %v4101 = vpop.permute.xlu0 %4100
      %4102 = vset.pattern.permute.xlu0 0
      %4103 = vperm.xlu0 %4102, %v4043
      %v4104 = vpop.permute.xlu0 %4103
      %4105 = vset.pattern.permute.xlu0 0
      %4106 = vperm.xlu0 %4105, %v4044
      %v4107 = vpop.permute.xlu0 %4106
      %4108 = vset.pattern.permute.xlu0 0
      %4109 = vperm.xlu0 %4108, %v4045
      %v4110 = vpop.permute.xlu0 %4109
      %4111 = vset.pattern.permute.xlu0 0
      %4112 = vperm.xlu0 %4111, %v4046
      %v4113 = vpop.permute.xlu0 %4112
      %4114 = vset.pattern.permute.xlu0 0
      %4115 = vperm.xlu0 %4114, %v4047
      %v4116 = vpop.permute.xlu0 %4115
      %4117 = vset.pattern.permute.xlu0 0
      %4118 = vperm.xlu0 %4117, %v4048
      %v4119 = vpop.permute.xlu0 %4118
      %4120 = vset.pattern.permute.xlu0 0
      %4121 = vperm.xlu0 %4120, %v4049
      %v4122 = vpop.permute.xlu0 %4121
      %4123 = vset.pattern.permute.xlu0 0
      %4124 = vperm.xlu0 %4123, %v4050
      %v4125 = vpop.permute.xlu0 %4124
      %4126 = vset.pattern.permute.xlu0 0
      %4127 = vperm.xlu0 %4126, %v4051
      %v4128 = vpop.permute.xlu0 %4127
      %4129 = vset.pattern.permute.xlu0 0
      %4130 = vperm.xlu0 %4129, %v4052
      %v4131 = vpop.permute.xlu0 %4130
      %4132 = vset.pattern.permute.xlu0 0
      %4133 = vperm.xlu0 %4132, %v4053
      %v4134 = vpop.permute.xlu0 %4133
      %4135 = vset.pattern.permute.xlu0 0
      %4136 = vperm.xlu0 %4135, %v4054
      %v4137 = vpop.permute.xlu0 %4136
      %4138 = vset.pattern.permute.xlu0 0
      %4139 = vperm.xlu0 %4138, %v4055
      %v4140 = vpop.permute.xlu0 %4139
      %4141 = vset.pattern.permute.xlu0 0
      %4142 = vperm.xlu0 %4141, %v4056
      %v4143 = vpop.permute.xlu0 %4142
      %4144 = vset.pattern.permute.xlu0 0
      %4145 = vperm.xlu0 %4144, %v4057
      %v4146 = vpop.permute.xlu0 %4145
      %4147 = vset.pattern.permute.xlu0 0
      %4148 = vperm.xlu0 %4147, %v4058
      %v4149 = vpop.permute.xlu0 %4148
      %4150 = vset.pattern.permute.xlu0 0
      %4151 = vperm.xlu0 %4150, %v4059
      %v4152 = vpop.permute.xlu0 %4151
      %4153 = vset.pattern.permute.xlu0 0
      %4154 = vperm.xlu0 %4153, %v4060
      %v4155 = vpop.permute.xlu0 %4154
      %4156 = vset.pattern.permute.xlu0 0
      %4157 = vperm.xlu0 %4156, %v4061
      %v4158 = vpop.permute.xlu0 %4157
      %4159 = vset.pattern.permute.xlu0 0
      %4160 = vperm.xlu0 %4159, %v4062
      %v4161 = vpop.permute.xlu0 %4160
      %4162 = vset.pattern.permute.xlu0 0
      %4163 = vperm.xlu0 %4162, %v4063
      %v4164 = vpop.permute.xlu0 %4163
      %4165 = vset.pattern.permute.xlu0 0
      %4166 = vperm.xlu0 %4165, %v4064
      %v4167 = vpop.permute.xlu0 %4166
      %4168 = vset.pattern.permute.xlu0 0
      %4169 = vperm.xlu0 %4168, %v4065
      %v4170 = vpop.permute.xlu0 %4169
      %4171 = vset.pattern.permute.xlu0 0
      %4172 = vperm.xlu0 %4171, %v4066
      %v4173 = vpop.permute.xlu0 %4172
      %4174 = vset.pattern.permute.xlu0 0
      %4175 = vperm.xlu0 %4174, %v4067
      %v4176 = vpop.permute.xlu0 %4175
      %4177 = vset.pattern.permute.xlu0 0
      %4178 = vperm.xlu0 %4177, %v4068
      %v4179 = vpop.permute.xlu0 %4178
      %4180 = vset.pattern.permute.xlu0 0
      %4181 = vperm.xlu0 %4180, %v4069
      %v4182 = vpop.permute.xlu0 %4181
      %4183 = vset.pattern.permute.xlu0 0
      %4184 = vperm.xlu0 %4183, %v4070
      %v4185 = vpop.permute.xlu0 %4184
      %4186 = vset.pattern.permute.xlu0 0
      %4187 = vperm.xlu0 %4186, %v4071
      %v4188 = vpop.permute.xlu0 %4187
      %4189 = vset.pattern.permute.xlu0 0
      %4190 = vperm.xlu0 %4189, %v4072
      %v4191 = vpop.permute.xlu0 %4190
      %4192 = vset.pattern.permute.xlu0 0
      %4193 = vperm.xlu0 %4192, %v4073
      %v4194 = vpop.permute.xlu0 %4193
      %4195 = vset.pattern.permute.xlu0 0
      %4196 = vperm.xlu0 %4195, %v4074
      %v4197 = vpop.permute.xlu0 %4196
      %vm4198 = vcmp.eq.s32.totalorder %v4077, 1
      %vm4199 = vcmp.eq.s32.totalorder %v4080, 1
      %vm4200 = vcmp.eq.s32.totalorder %v4083, 1
      %vm4201 = vcmp.eq.s32.totalorder %v4086, 1
      %vm4202 = vcmp.eq.s32.totalorder %v4089, 1
      %vm4203 = vcmp.eq.s32.totalorder %v4092, 1
      %vm4204 = vcmp.eq.s32.totalorder %v4095, 1
      %vm4205 = vcmp.eq.s32.totalorder %v4098, 1
      %vm4206 = vcmp.eq.s32.totalorder %v4101, 1
      %vm4207 = vcmp.eq.s32.totalorder %v4104, 1
      %vm4208 = vcmp.eq.s32.totalorder %v4107, 1
      %vm4209 = vcmp.eq.s32.totalorder %v4110, 1
      %vm4210 = vcmp.eq.s32.totalorder %v4113, 1
      %vm4211 = vcmp.eq.s32.totalorder %v4116, 1
      %vm4212 = vcmp.eq.s32.totalorder %v4119, 1
      %vm4213 = vcmp.eq.s32.totalorder %v4122, 1
      %vm4214 = vcmp.eq.s32.totalorder %v4125, 1
      %vm4215 = vcmp.eq.s32.totalorder %v4128, 1
      %vm4216 = vcmp.eq.s32.totalorder %v4131, 1
      %vm4217 = vcmp.eq.s32.totalorder %v4134, 1
      %vm4218 = vcmp.eq.s32.totalorder %v4137, 1
      %vm4219 = vcmp.eq.s32.totalorder %v4140, 1
      %vm4220 = vcmp.eq.s32.totalorder %v4143, 1
      %vm4221 = vcmp.eq.s32.totalorder %v4146, 1
      %vm4222 = vcmp.eq.s32.totalorder %v4149, 1
      %vm4223 = vcmp.eq.s32.totalorder %v4152, 1
      %vm4224 = vcmp.eq.s32.totalorder %v4155, 1
      %vm4225 = vcmp.eq.s32.totalorder %v4158, 1
      %vm4226 = vcmp.eq.s32.totalorder %v4161, 1
      %vm4227 = vcmp.eq.s32.totalorder %v4164, 1
      %vm4228 = vcmp.eq.s32.totalorder %v4167, 1
      %vm4229 = vcmp.eq.s32.totalorder %v4170, 1
      %vm4230 = vcmp.eq.s32.totalorder %v4173, 1
      %vm4231 = vcmp.eq.s32.totalorder %v4176, 1
      %vm4232 = vcmp.eq.s32.totalorder %v4179, 1
      %vm4233 = vcmp.eq.s32.totalorder %v4182, 1
      %vm4234 = vcmp.eq.s32.totalorder %v4185, 1
      %vm4235 = vcmp.eq.s32.totalorder %v4188, 1
      %vm4236 = vcmp.eq.s32.totalorder %v4191, 1
      %vm4237 = vcmp.eq.s32.totalorder %v4194, 1
      %vm4238 = vcmp.eq.s32.totalorder %v4197, 1
      %v4239 = vsel %vm4198, %v3911, 0.0
      %v4240 = vsel %vm4199, %v3912, 0.0
      %v4241 = vsel %vm4200, %v3913, 0.0
      %v4242 = vsel %vm4201, %v3914, 0.0
      %v4243 = vsel %vm4202, %v3915, 0.0
      %v4244 = vsel %vm4203, %v3916, 0.0
      %v4245 = vsel %vm4204, %v3917, 0.0
      %v4246 = vsel %vm4205, %v3918, 0.0
      %v4247 = vsel %vm4206, %v3919, 0.0
      %v4248 = vsel %vm4207, %v3920, 0.0
      %v4249 = vsel %vm4208, %v3921, 0.0
      %v4250 = vsel %vm4209, %v3922, 0.0
      %v4251 = vsel %vm4210, %v3923, 0.0
      %v4252 = vsel %vm4211, %v3924, 0.0
      %v4253 = vsel %vm4212, %v3925, 0.0
      %v4254 = vsel %vm4213, %v3926, 0.0
      %v4255 = vsel %vm4214, %v3927, 0.0
      %v4256 = vsel %vm4215, %v3928, 0.0
      %v4257 = vsel %vm4216, %v3929, 0.0
      %v4258 = vsel %vm4217, %v3930, 0.0
      %v4259 = vsel %vm4218, %v3931, 0.0
      %v4260 = vsel %vm4219, %v3932, 0.0
      %v4261 = vsel %vm4220, %v3933, 0.0
      %v4262 = vsel %vm4221, %v3934, 0.0
      %v4263 = vsel %vm4222, %v3935, 0.0
      %v4264 = vsel %vm4223, %v3936, 0.0
      %v4265 = vsel %vm4224, %v3937, 0.0
      %v4266 = vsel %vm4225, %v3938, 0.0
      %v4267 = vsel %vm4226, %v3939, 0.0
      %v4268 = vsel %vm4227, %v3940, 0.0
      %v4269 = vsel %vm4228, %v3941, 0.0
      %v4270 = vsel %vm4229, %v3942, 0.0
      %v4271 = vsel %vm4230, %v3943, 0.0
      %v4272 = vsel %vm4231, %v3944, 0.0
      %v4273 = vsel %vm4232, %v3945, 0.0
      %v4274 = vsel %vm4233, %v3946, 0.0
      %v4275 = vsel %vm4234, %v3947, 0.0
      %v4276 = vsel %vm4235, %v3948, 0.0
      %v4277 = vsel %vm4236, %v3949, 0.0
      %v4278 = vsel %vm4237, %v3950, 0.0
      %v4279 = vsel %vm4238, %v3951, 0.0
      %4280 = vst [vmem:[%s245] sm:$0xff] %v4239
      %4281 = vst [vmem:[%s245 + $0x8] sm:$0xff] %v4240
      %4282 = vst [vmem:[%s245 + $0x10] sm:$0xff] %v4241
      %4283 = vst [vmem:[%s245 + $0x18] sm:$0xff] %v4242
      %4284 = vst [vmem:[%s245 + $0x20] sm:$0xff] %v4243
      %4285 = vst [vmem:[%s245 + $0x28] sm:$0xff] %v4244
      %4286 = vst [vmem:[%s245 + $0x30] sm:$0xff] %v4245
      %4287 = vst [vmem:[%s245 + $0x38] sm:$0xff] %v4246
      %4288 = vst [vmem:[%s245 + $0x40] sm:$0xff] %v4247
      %4289 = vst [vmem:[%s245 + $0x48] sm:$0xff] %v4248
      %4290 = vst [vmem:[%s245 + $0x50] sm:$0xff] %v4249
      %4291 = vst [vmem:[%s245 + $0x58] sm:$0xff] %v4250
      %4292 = vst [vmem:[%s245 + $0x60] sm:$0xff] %v4251
      %4293 = vst [vmem:[%s245 + $0x68] sm:$0xff] %v4252
      %4294 = vst [vmem:[%s245 + $0x70] sm:$0xff] %v4253
      %4295 = vst [vmem:[%s245 + $0x78] sm:$0xff] %v4254
      %4296 = vst [vmem:[%s245 + $0x80] sm:$0xff] %v4255
      %4297 = vst [vmem:[%s245 + $0x88] sm:$0xff] %v4256
      %4298 = vst [vmem:[%s245 + $0x90] sm:$0xff] %v4257
      %4299 = vst [vmem:[%s245 + $0x98] sm:$0xff] %v4258
      %4300 = vst [vmem:[%s245 + $0xa0] sm:$0xff] %v4259
      %4301 = vst [vmem:[%s245 + $0xa8] sm:$0xff] %v4260
      %4302 = vst [vmem:[%s245 + $0xb0] sm:$0xff] %v4261
      %4303 = vst [vmem:[%s245 + $0xb8] sm:$0xff] %v4262
      %4304 = vst [vmem:[%s245 + $0xc0] sm:$0xff] %v4263
      %4305 = vst [vmem:[%s245 + $0xc8] sm:$0xff] %v4264
      %4306 = vst [vmem:[%s245 + $0xd0] sm:$0xff] %v4265
      %4307 = vst [vmem:[%s245 + $0xd8] sm:$0xff] %v4266
      %4308 = vst [vmem:[%s245 + $0xe0] sm:$0xff] %v4267
      %4309 = vst [vmem:[%s245 + $0xe8] sm:$0xff] %v4268
      %4310 = vst [vmem:[%s245 + $0xf0] sm:$0xff] %v4269
      %4311 = vst [vmem:[%s245 + $0xf8] sm:$0xff] %v4270
      %4312 = vst [vmem:[%s245 + $0x100] sm:$0xff] %v4271
      %4313 = vst [vmem:[%s245 + $0x108] sm:$0xff] %v4272
      %4314 = vst [vmem:[%s245 + $0x110] sm:$0xff] %v4273
      %4315 = vst [vmem:[%s245 + $0x118] sm:$0xff] %v4274
      %4316 = vst [vmem:[%s245 + $0x120] sm:$0xff] %v4275
      %4317 = vst [vmem:[%s245 + $0x128] sm:$0xff] %v4276
      %4318 = vst [vmem:[%s245 + $0x130] sm:$0xff] %v4277
      %4319 = vst [vmem:[%s245 + $0x138] sm:$0xff] %v4278
      %4320 = vst [vmem:[%s245 + $0x140] sm:$0xff] %v4279
      %s4321 = sadd.s32 %s20, 1
      %s4322 = smul.u32 41, %s4321
      %p4323 = scmp.lt.s32.totalorder %s19, 1
      %s4324 = scalar_select %p4323, %s19, 1
      %p4325 = scmp.lt.s32.totalorder %s4322, 122
      %s4326 = scalar_select %p4325, %s4322, 122
      %s4327 = smul.addr %s4324, 123
      %s4328 = sadd.s32 %s4326, %s4327
      %s4329 = smul.addr %s4328, 8
      %s4330 = scalar_lea.vmem %s4, %s4329
      // Predicated region
      $region37: #{conv_block_forward.6} parent=35 // pred_check
        %p4331 = pneg %p143
      $region38: #{conv_block_forward.6} parent=35 // pred_check_branch
        %4333 = sbr.rel (%p4331) target = $region40
      $region39: #{conv_block_forward.6} parent=35 // pred_region
        %s4334 = sadd.s32 %s20, 1
        %s4335 = smul.u32 41, %s4334
      $region40: #{conv_block_forward.6} parent=35 // pred_fallthru
        _
    $region36: #{conv_block_forward.6} parent=5 // pred_fallthru
      _
    %p4336 = scmp.le.s32.totalorder 2, %s10
    // Predicated region
    $region41: #{conv_block_forward.6} parent=5 // pred_check
      %p4337 = pneg %p4336
    $region42: #{conv_block_forward.6} parent=5 // pred_check_branch
      %4339 = sbr.rel (%p4337) target = $region44
    $region43: #{conv_block_forward.6} parent=5 // pred_region
      %s4340 = ssub.s32 %s10, 2
      // Predicated region
      $region45: #{conv_block_forward.6} parent=43 // pred_check
        %p4341 = pneg %p149
      $region46: #{conv_block_forward.6} parent=43 // pred_check_branch
        %4343 = sbr.rel (%p4341) target = $region48
      $region47: #{conv_block_forward.6} parent=43 // pred_region
        %s4344 = sadd.s32 %s22, 1
        %s4345 = smul.u32 41, %s4344
        %p4346 = scmp.lt.s32.totalorder %s21, 1
        %s4347 = scalar_select %p4346, %s21, 1
        %p4348 = scmp.lt.s32.totalorder %s4345, 122
        %s4349 = scalar_select %p4348, %s4345, 122
        %s4350 = smul.addr %s4347, 123
        %s4351 = sadd.s32 %s4349, %s4350
        %s4352 = smul.addr %s4351, 8
        %s4353 = scalar_lea.vmem %s4, %s4352
      $region48: #{conv_block_forward.6} parent=43 // pred_fallthru
        _
    $region44: #{conv_block_forward.6} parent=5 // pred_fallthru
      _
  $region6: #{conv_block_forward.6} parent=0 // loop_footer
    %s14 = sadd.s32 1, %s10
  $region7: #{conv_block_forward.6} parent=0 // loop_footer_branch
    %9 = sbr.rel target = $region3
  $region8: #{conv_block_forward.6} parent=0 // loop_exit
    _

</llo_original>
